<compile_context>
chip_gen: v6e
topology: v6e:2x2x1
jax: 0.10.0
libtpu: 0.0.40
codegen_flags: <defaults>
</compile_context>

<pallas_src>
import jax
import jax.numpy as jnp
from jax import lax
from jax.experimental import pallas as pl
from jax.experimental.pallas import tpu as pltpu

# Small shapes consistent with the module (channels are fixed at 256).
N, H, W, C = 2, 8, 8, 256
KH = KW = 3
EPS = 1e-5

NW = N * W                 # 16  (second-minor dim of the patch scratch)
NHW = N * H * W            # 128 rows, ordered row = h*(N*W) + n*W + w
HP = H + 2                 # H padded by 1 on each side (only inside the patch)


def block_kernel(x_ref, w1_hbm, g1_ref, be1_ref, w2_hbm, g2_ref, be2_ref,
                 out_ref, patch_ref, w1_ref, w2_ref, w1_sem, w2_sem):
    """x_ref:    (N*H*W, C)      f32, unpadded, (h, n, w)-major rows.
       w*_hbm:   (KH, KW*C, C)   bf16 left in HBM (manual overlapped DMA).
       g*/be*:   (1, C)          f32 BN affine params.
       out_ref:  (N*H*W, C)      f32, (h, n, w)-major rows.
       patch_ref:(HP*N*W, KW*C)  bf16 scratch: rows (h+1, n, w) hold the 3
                                 kw-shifted taps; rows 0..NW-1 / last NW rows
                                 are the zero H halos.
       w*_ref:   (KH, KW*C, C)   bf16 staging scratch for the conv weights."""

    # ---- kick off both weight fetches; they overlap all the patch work ------
    w1_copy = pltpu.make_async_copy(w1_hbm, w1_ref, w1_sem)
    w1_copy.start()
    w2_copy = pltpu.make_async_copy(w2_hbm, w2_ref, w2_sem)
    w2_copy.start()

    # ---- W-boundary masks, built once and reused by both patch builds -------
    w_ids = lax.broadcasted_iota(jnp.int32, (NHW, 1), 0) & (W - 1)
    is_w0 = w_ids == 0
    is_wlast = w_ids == W - 1

    def build_patch(vals):
        """vals: (NHW, C) f32.  Writes the center rows of the patch scratch
        with the [x(w-1) | x(w) | x(w+1)] kw taps (zeros at the W halos).
        The shift is a cheap XLU sublane roll; rows that would wrap across an
        (n, h) boundary are exactly the masked w==0 / w==W-1 rows."""
        left = jnp.where(is_w0, 0.0, pltpu.roll(vals, 1, axis=0))
        right = jnp.where(is_wlast, 0.0, pltpu.roll(vals, NHW - 1, axis=0))
        patch_ref[NW:NW + NHW, 0:C] = left.astype(jnp.bfloat16)
        patch_ref[NW:NW + NHW, C:2 * C] = vals.astype(jnp.bfloat16)
        patch_ref[NW:NW + NHW, 2 * C:3 * C] = right.astype(jnp.bfloat16)

    def conv3x3(w_ref):
        # 3 MXU dots (one per kh); the 3 kw taps are merged along K (=768).
        acc = None
        for kh in range(KH):
            lhs = patch_ref[kh * NW:kh * NW + NHW, :]          # (128, 768) bf16
            d = jnp.dot(lhs, w_ref[kh], preferred_element_type=jnp.float32)
            acc = d if acc is None else acc + d
        return acc

    def batchnorm(r, g_ref, be_ref):
        # Training-mode BN (biased variance); one reduction pass over [r | r*r].
        inv_n = 1.0 / NHW
        s = jnp.sum(jnp.concatenate([r, r * r], axis=1), axis=0, keepdims=True)
        mean = s[:, :C] * inv_n
        var = s[:, C:] * inv_n - mean * mean
        scale = g_ref[...] * lax.rsqrt(var + EPS)               # (1, C)
        shift = be_ref[...] - mean * scale                      # (1, C)
        return r * scale + shift

    # ---- zero the two H-halo row bands once (shared by conv1 and conv2) -----
    halo = jnp.zeros((NW, KW * C), jnp.bfloat16)
    patch_ref[0:NW, :] = halo
    patch_ref[NW + NHW:NW + NHW + NW, :] = halo

    # ---- conv1: patch build overlaps the w1 DMA ------------------------------
    build_patch(x_ref[...])
    w1_copy.wait()
    r = jnp.maximum(batchnorm(conv3x3(w1_ref), g1_ref, be1_ref), 0.0)

    # ---- conv2: patch rebuild overlaps the tail of the w2 DMA ----------------
    build_patch(r)
    w2_copy.wait()
    r2 = batchnorm(conv3x3(w2_ref), g2_ref, be2_ref)

    # ---- residual (fresh VMEM load, no long live range) + final ReLU ---------
    out_ref[...] = jnp.maximum(r2 + x_ref[...], 0.0)


def pack_block_params(w1, g1, be1, w2, g2, be2):
    """Pre-pack the conv weights ONCE, outside the jit'd forward:
    (KH, KW, Cin, Cout) HWIO -> (KH, KW*Cin, Cout) bf16 for the MXU.
    Conv biases are omitted: a bias right before training-mode BN cancels."""
    w1p = jnp.asarray(w1, jnp.bfloat16).reshape(KH, KW * C, C)
    w2p = jnp.asarray(w2, jnp.bfloat16).reshape(KH, KW * C, C)
    return (w1p, g1, be1, w2p, g2, be2)


@jax.jit
def block_forward(x_nchw, packed_params):
    """x_nchw: (N, C, H, W) f32.  packed_params from pack_block_params."""
    w1p, g1, be1, w2p, g2, be2 = packed_params

    # (N,C,H,W) -> (H,N,W,C) -> (N*H*W, C): rows are (h, n, w) with w fastest
    # so W (=8) packs cleanly into sublanes.  No padding: halos live in-kernel.
    # TODO(synk): when Blocks are stacked, keep activations in this layout
    # between blocks and drop the NCHW<->row-major transposes entirely.
    x_rows = jnp.transpose(x_nchw, (2, 0, 3, 1)).reshape(NHW, C)

    vmem = pl.BlockSpec(memory_space=pltpu.MemorySpace.VMEM)
    hbm = pl.BlockSpec(memory_space=pl.ANY)   # conv weights: manual overlapped DMA

    out2d = pl.pallas_call(
        block_kernel,
        out_shape=jax.ShapeDtypeStruct((NHW, C), jnp.float32),
        in_specs=[vmem, hbm, vmem, vmem, hbm, vmem, vmem],
        out_specs=vmem,
        scratch_shapes=[
            pltpu.VMEM((HP * NW, KW * C), jnp.bfloat16),   # kw-shifted tap patch
            pltpu.VMEM((KH, KW * C, C), jnp.bfloat16),     # staged conv1 weights
            pltpu.VMEM((KH, KW * C, C), jnp.bfloat16),     # staged conv2 weights
            pltpu.SemaphoreType.DMA(()),                   # conv1-weight DMA sem
            pltpu.SemaphoreType.DMA(()),                   # conv2-weight DMA sem
        ],
        compiler_params=pltpu.CompilerParams(vmem_limit_bytes=32 << 20),
        # TODO(synk): for larger batches / stacked Blocks add a leading
        # "parallel" grid axis over batch/H bands (weights kept VMEM-resident
        # via a constant block index) so v7x can shard across its two TCs.
    )(x_rows, w1p, g1, be1, w2p, g2, be2)

    out = out2d.reshape(H, N, W, C)
    return jnp.transpose(out, (1, 3, 0, 2))                # (H,N,W,C) -> (N,C,H,W)


def ref_forward(x_nchw, w1, b1, g1, be1, w2, b2, g2, be2):
    """Pure-JAX reference (NCHW), training-mode BN, conv biases included."""
    def conv(x, w_hwio, b):
        out = lax.conv_general_dilated(
            x, w_hwio, window_strides=(1, 1), padding=((1, 1), (1, 1)),
            dimension_numbers=('NCHW', 'HWIO', 'NCHW'))
        return out + b.reshape(1, C, 1, 1)

    def bn(x, g, be):
        mean = jnp.mean(x, axis=(0, 2, 3), keepdims=True)
        var = jnp.mean(jnp.square(x - mean), axis=(0, 2, 3), keepdims=True)
        return (x - mean) * lax.rsqrt(var + EPS) * g.reshape(1, C, 1, 1) \
               + be.reshape(1, C, 1, 1)

    r = jax.nn.relu(bn(conv(x_nchw, w1, b1), g1, be1))
    r = bn(conv(r, w2, b2), g2, be2)
    return jax.nn.relu(r + x_nchw)


if __name__ == "__main__":
    key = jax.random.PRNGKey(0)
    ks = jax.random.split(key, 9)

    x = jax.random.normal(ks[0], (N, C, H, W), jnp.float32)

    w1 = 0.02 * jax.random.normal(ks[1], (KH, KW, C, C), jnp.float32)
    b1 = 0.10 * jax.random.normal(ks[2], (1, C), jnp.float32)
    g1 = 1.0 + 0.10 * jax.random.normal(ks[3], (1, C), jnp.float32)
    be1 = 0.10 * jax.random.normal(ks[4], (1, C), jnp.float32)

    w2 = 0.02 * jax.random.normal(ks[5], (KH, KW, C, C), jnp.float32)
    b2 = 0.10 * jax.random.normal(ks[6], (1, C), jnp.float32)
    g2 = 1.0 + 0.10 * jax.random.normal(ks[7], (1, C), jnp.float32)
    be2 = 0.10 * jax.random.normal(ks[8], (1, C), jnp.float32)

    # Conv biases go only to the reference: with training-mode BN right after
    # each conv they are exactly cancelled, so the kernel drops them.
    packed = pack_block_params(w1, g1, be1, w2, g2, be2)   # once, outside jit

    out = jax.block_until_ready(block_forward(x, packed))
    ref = jax.block_until_ready(ref_forward(x, w1, b1, g1, be1, w2, b2, g2, be2))

    assert out.shape == (N, C, H, W)
    assert bool(jnp.all(jnp.isfinite(out)))
    assert bool(jnp.allclose(out, ref, atol=3e-2, rtol=3e-2))
    print("KERNEL_OK")
</pallas_src>

<mosaic_0001>
module attributes {stable_mosaic.version = 11 : i64} {
  func.func @block_kernel(%arg0: memref<128x256xf32, #tpu.memory_space<vmem>>, %arg1: memref<3x768x256xbf16, #tpu.memory_space<any>>, %arg2: memref<1x256xf32, #tpu.memory_space<vmem>>, %arg3: memref<1x256xf32, #tpu.memory_space<vmem>>, %arg4: memref<3x768x256xbf16, #tpu.memory_space<any>>, %arg5: memref<1x256xf32, #tpu.memory_space<vmem>>, %arg6: memref<1x256xf32, #tpu.memory_space<vmem>>, %arg7: memref<128x256xf32, #tpu.memory_space<vmem>>, %arg8: memref<160x768xbf16, #tpu.memory_space<vmem>>, %arg9: memref<3x768x256xbf16, #tpu.memory_space<vmem>>, %arg10: memref<3x768x256xbf16, #tpu.memory_space<vmem>>, %arg11: memref<!tpu.dma_semaphore, #tpu.memory_space<semaphore_mem>>, %arg12: memref<!tpu.dma_semaphore, #tpu.memory_space<semaphore_mem>>) attributes {dimension_semantics = [], scalar_prefetch = 0 : i64, scratch_operands = 5 : i64, tpu.core_type = #tpu.core_type<tc>} {
    tpu.enqueue_dma source(%arg1 : memref<3x768x256xbf16, #tpu.memory_space<any>>) target(%arg9 : memref<3x768x256xbf16, #tpu.memory_space<vmem>>) target_semaphore(%arg11 : memref<!tpu.dma_semaphore, #tpu.memory_space<semaphore_mem>>)
    tpu.enqueue_dma source(%arg4 : memref<3x768x256xbf16, #tpu.memory_space<any>>) target(%arg10 : memref<3x768x256xbf16, #tpu.memory_space<vmem>>) target_semaphore(%arg12 : memref<!tpu.dma_semaphore, #tpu.memory_space<semaphore_mem>>)
    %0 = tpu.iota {dimensions = array<i32: 0>} : vector<128x1xi32>
    %c7_i32 = arith.constant 7 : i32
    %1 = vector.broadcast %c7_i32 : i32 to vector<128x1xi32>
    %2 = arith.andi %0, %1 : vector<128x1xi32>
    %c0_i32 = arith.constant 0 : i32
    %3 = vector.broadcast %c0_i32 : i32 to vector<128x1xi32>
    %4 = arith.cmpi eq, %2, %3 : vector<128x1xi32>
    %c7_i32_0 = arith.constant 7 : i32
    %5 = vector.broadcast %c7_i32_0 : i32 to vector<128x1xi32>
    %6 = arith.cmpi eq, %2, %5 : vector<128x1xi32>
    %cst = arith.constant 0.000000e+00 : bf16
    %7 = vector.broadcast %cst : bf16 to vector<16x768xbf16>
    %c0 = arith.constant 0 : index
    %c0_1 = arith.constant 0 : index
    %8 = vector.load %arg8[%c0, %c0_1] : memref<160x768xbf16, #tpu.memory_space<vmem>>, vector<16x768xbf16>
    tpu.vector_store %arg8[%c0, %c0_1], %7 {strides = array<i32>} : memref<160x768xbf16, #tpu.memory_space<vmem>>, vector<16x768xbf16>,
    %c144 = arith.constant 144 : index
    %c0_2 = arith.constant 0 : index
    %9 = vector.load %arg8[%c144, %c0_2] : memref<160x768xbf16, #tpu.memory_space<vmem>>, vector<16x768xbf16>
    tpu.vector_store %arg8[%c144, %c0_2], %7 {strides = array<i32>} : memref<160x768xbf16, #tpu.memory_space<vmem>>, vector<16x768xbf16>,
    %c0_3 = arith.constant 0 : index
    %c0_4 = arith.constant 0 : index
    %10 = vector.load %arg0[%c0_3, %c0_4] : memref<128x256xf32, #tpu.memory_space<vmem>>, vector<128x256xf32>
    %c1_i32 = arith.constant 1 : i32
    %11 = tpu.dynamic_rotate %10 by %c1_i32 dim 0 : vector<128x256xf32>, i32 -> vector<128x256xf32>
    %cst_5 = arith.constant 0.000000e+00 : f32
    %12 = vector.shape_cast %4 : vector<128x1xi1> to vector<128x1xi1>
    %13 = vector.broadcast %12 : vector<128x1xi1> to vector<128x256xi1>
    %14 = vector.broadcast %cst_5 : f32 to vector<128x256xf32>
    %15 = arith.select %13, %14, %11 : vector<128x256xi1>, vector<128x256xf32>
    %c127_i32 = arith.constant 127 : i32
    %16 = tpu.dynamic_rotate %10 by %c127_i32 dim 0 : vector<128x256xf32>, i32 -> vector<128x256xf32>
    %cst_6 = arith.constant 0.000000e+00 : f32
    %17 = vector.shape_cast %6 : vector<128x1xi1> to vector<128x1xi1>
    %18 = vector.broadcast %17 : vector<128x1xi1> to vector<128x256xi1>
    %19 = vector.broadcast %cst_6 : f32 to vector<128x256xf32>
    %20 = arith.select %18, %19, %16 : vector<128x256xi1>, vector<128x256xf32>
    %21 = arith.truncf %15 : vector<128x256xf32> to vector<128x256xbf16>
    %c16 = arith.constant 16 : index
    %c0_7 = arith.constant 0 : index
    %22 = vector.load %arg8[%c16, %c0_7] : memref<160x768xbf16, #tpu.memory_space<vmem>>, vector<128x256xbf16>
    tpu.vector_store %arg8[%c16, %c0_7], %21 {strides = array<i32>} : memref<160x768xbf16, #tpu.memory_space<vmem>>, vector<128x256xbf16>,
    %23 = arith.truncf %10 : vector<128x256xf32> to vector<128x256xbf16>
    %c16_8 = arith.constant 16 : index
    %c256 = arith.constant 256 : index
    %24 = vector.load %arg8[%c16_8, %c256] : memref<160x768xbf16, #tpu.memory_space<vmem>>, vector<128x256xbf16>
    tpu.vector_store %arg8[%c16_8, %c256], %23 {strides = array<i32>} : memref<160x768xbf16, #tpu.memory_space<vmem>>, vector<128x256xbf16>,
    %25 = arith.truncf %20 : vector<128x256xf32> to vector<128x256xbf16>
    %c16_9 = arith.constant 16 : index
    %c512 = arith.constant 512 : index
    %26 = vector.load %arg8[%c16_9, %c512] : memref<160x768xbf16, #tpu.memory_space<vmem>>, vector<128x256xbf16>
    tpu.vector_store %arg8[%c16_9, %c512], %25 {strides = array<i32>} : memref<160x768xbf16, #tpu.memory_space<vmem>>, vector<128x256xbf16>,
    tpu.wait_dma2 semaphore(%arg11 : memref<!tpu.dma_semaphore, #tpu.memory_space<semaphore_mem>>) src(%arg1 : memref<3x768x256xbf16, #tpu.memory_space<any>>) dst(%arg9 : memref<3x768x256xbf16, #tpu.memory_space<vmem>>)
    %c0_10 = arith.constant 0 : index
    %c0_11 = arith.constant 0 : index
    %27 = vector.load %arg8[%c0_10, %c0_11] : memref<160x768xbf16, #tpu.memory_space<vmem>>, vector<128x768xbf16>
    %c0_12 = arith.constant 0 : index
    %c0_13 = arith.constant 0 : index
    %c0_14 = arith.constant 0 : index
    %28 = vector.load %arg9[%c0_12, %c0_13, %c0_14] : memref<3x768x256xbf16, #tpu.memory_space<vmem>>, vector<1x768x256xbf16>
    %29 = vector.shape_cast %28 : vector<1x768x256xbf16> to vector<768x256xbf16>
    %cst_15 = arith.constant dense<0.000000e+00> : vector<128x256xf32>
    %30 = tpu.matmul %27, %29, %cst_15 {dimension_numbers = #tpu.dot_dimension_numbers<[1], [0], [0], [1], [0, 0, 1, 1], [], []>} : vector<128x768xbf16>, vector<768x256xbf16>, vector<128x256xf32> -> vector<128x256xf32>
    %c16_16 = arith.constant 16 : index
    %c0_17 = arith.constant 0 : index
    %31 = vector.load %arg8[%c16_16, %c0_17] : memref<160x768xbf16, #tpu.memory_space<vmem>>, vector<128x768xbf16>
    %c1 = arith.constant 1 : index
    %c0_18 = arith.constant 0 : index
    %c0_19 = arith.constant 0 : index
    %32 = vector.load %arg9[%c1, %c0_18, %c0_19] : memref<3x768x256xbf16, #tpu.memory_space<vmem>>, vector<1x768x256xbf16>
    %33 = vector.shape_cast %32 : vector<1x768x256xbf16> to vector<768x256xbf16>
    %cst_20 = arith.constant dense<0.000000e+00> : vector<128x256xf32>
    %34 = tpu.matmul %31, %33, %cst_20 {dimension_numbers = #tpu.dot_dimension_numbers<[1], [0], [0], [1], [0, 0, 1, 1], [], []>} : vector<128x768xbf16>, vector<768x256xbf16>, vector<128x256xf32> -> vector<128x256xf32>
    %35 = arith.addf %30, %34 : vector<128x256xf32>
    %c32 = arith.constant 32 : index
    %c0_21 = arith.constant 0 : index
    %36 = vector.load %arg8[%c32, %c0_21] : memref<160x768xbf16, #tpu.memory_space<vmem>>, vector<128x768xbf16>
    %c2 = arith.constant 2 : index
    %c0_22 = arith.constant 0 : index
    %c0_23 = arith.constant 0 : index
    %37 = vector.load %arg9[%c2, %c0_22, %c0_23] : memref<3x768x256xbf16, #tpu.memory_space<vmem>>, vector<1x768x256xbf16>
    %38 = vector.shape_cast %37 : vector<1x768x256xbf16> to vector<768x256xbf16>
    %cst_24 = arith.constant dense<0.000000e+00> : vector<128x256xf32>
    %39 = tpu.matmul %36, %38, %cst_24 {dimension_numbers = #tpu.dot_dimension_numbers<[1], [0], [0], [1], [0, 0, 1, 1], [], []>} : vector<128x768xbf16>, vector<768x256xbf16>, vector<128x256xf32> -> vector<128x256xf32>
    %40 = arith.addf %35, %39 : vector<128x256xf32>
    %41 = arith.mulf %40, %40 : vector<128x256xf32>
    %42 = tpu.concatenate %40, %41 in 1 : vector<128x256xf32>, vector<128x256xf32> -> vector<128x512xf32>
    %cst_25 = arith.constant dense<0.000000e+00> : vector<512xf32>
    %43 = vector.multi_reduction <add>, %42, %cst_25 [0] : vector<128x512xf32> to vector<512xf32>
    %44 = vector.shape_cast %43 : vector<512xf32> to vector<1x512xf32>
    %45 = vector.extract_strided_slice %44 {offsets = [0, 0], sizes = [1, 256], strides = [1, 1]} : vector<1x512xf32> to vector<1x256xf32>
    %cst_26 = arith.constant 7.812500e-03 : f32
    %46 = vector.broadcast %cst_26 : f32 to vector<1x256xf32>
    %47 = arith.mulf %45, %46 : vector<1x256xf32>
    %48 = vector.extract_strided_slice %44 {offsets = [0, 256], sizes = [1, 256], strides = [1, 1]} : vector<1x512xf32> to vector<1x256xf32>
    %cst_27 = arith.constant 7.812500e-03 : f32
    %49 = vector.broadcast %cst_27 : f32 to vector<1x256xf32>
    %50 = arith.mulf %48, %49 : vector<1x256xf32>
    %51 = arith.mulf %47, %47 : vector<1x256xf32>
    %52 = arith.subf %50, %51 : vector<1x256xf32>
    %c0_28 = arith.constant 0 : index
    %c0_29 = arith.constant 0 : index
    %53 = vector.load %arg2[%c0_28, %c0_29] : memref<1x256xf32, #tpu.memory_space<vmem>>, vector<1x256xf32>
    %cst_30 = arith.constant 9.99999974E-6 : f32
    %54 = vector.broadcast %cst_30 : f32 to vector<1x256xf32>
    %55 = arith.addf %52, %54 : vector<1x256xf32>
    %56 = math.rsqrt %55 : vector<1x256xf32>
    %57 = arith.mulf %53, %56 : vector<1x256xf32>
    %c0_31 = arith.constant 0 : index
    %c0_32 = arith.constant 0 : index
    %58 = vector.load %arg3[%c0_31, %c0_32] : memref<1x256xf32, #tpu.memory_space<vmem>>, vector<1x256xf32>
    %59 = arith.mulf %47, %57 : vector<1x256xf32>
    %60 = arith.subf %58, %59 : vector<1x256xf32>
    %61 = vector.broadcast %57 : vector<1x256xf32> to vector<128x256xf32>
    %62 = arith.mulf %40, %61 : vector<128x256xf32>
    %63 = vector.broadcast %60 : vector<1x256xf32> to vector<128x256xf32>
    %64 = arith.addf %62, %63 : vector<128x256xf32>
    %cst_33 = arith.constant 0.000000e+00 : f32
    %65 = vector.broadcast %cst_33 : f32 to vector<128x256xf32>
    %66 = arith.maximumf %64, %65 : vector<128x256xf32>
    %c1_i32_34 = arith.constant 1 : i32
    %67 = tpu.dynamic_rotate %66 by %c1_i32_34 dim 0 : vector<128x256xf32>, i32 -> vector<128x256xf32>
    %cst_35 = arith.constant 0.000000e+00 : f32
    %68 = vector.shape_cast %4 : vector<128x1xi1> to vector<128x1xi1>
    %69 = vector.broadcast %68 : vector<128x1xi1> to vector<128x256xi1>
    %70 = vector.broadcast %cst_35 : f32 to vector<128x256xf32>
    %71 = arith.select %69, %70, %67 : vector<128x256xi1>, vector<128x256xf32>
    %c127_i32_36 = arith.constant 127 : i32
    %72 = tpu.dynamic_rotate %66 by %c127_i32_36 dim 0 : vector<128x256xf32>, i32 -> vector<128x256xf32>
    %cst_37 = arith.constant 0.000000e+00 : f32
    %73 = vector.shape_cast %6 : vector<128x1xi1> to vector<128x1xi1>
    %74 = vector.broadcast %73 : vector<128x1xi1> to vector<128x256xi1>
    %75 = vector.broadcast %cst_37 : f32 to vector<128x256xf32>
    %76 = arith.select %74, %75, %72 : vector<128x256xi1>, vector<128x256xf32>
    %77 = arith.truncf %71 : vector<128x256xf32> to vector<128x256xbf16>
    %c16_38 = arith.constant 16 : index
    %c0_39 = arith.constant 0 : index
    %78 = vector.load %arg8[%c16_38, %c0_39] : memref<160x768xbf16, #tpu.memory_space<vmem>>, vector<128x256xbf16>
    tpu.vector_store %arg8[%c16_38, %c0_39], %77 {strides = array<i32>} : memref<160x768xbf16, #tpu.memory_space<vmem>>, vector<128x256xbf16>,
    %79 = arith.truncf %66 : vector<128x256xf32> to vector<128x256xbf16>
    %c16_40 = arith.constant 16 : index
    %c256_41 = arith.constant 256 : index
    %80 = vector.load %arg8[%c16_40, %c256_41] : memref<160x768xbf16, #tpu.memory_space<vmem>>, vector<128x256xbf16>
    tpu.vector_store %arg8[%c16_40, %c256_41], %79 {strides = array<i32>} : memref<160x768xbf16, #tpu.memory_space<vmem>>, vector<128x256xbf16>,
    %81 = arith.truncf %76 : vector<128x256xf32> to vector<128x256xbf16>
    %c16_42 = arith.constant 16 : index
    %c512_43 = arith.constant 512 : index
    %82 = vector.load %arg8[%c16_42, %c512_43] : memref<160x768xbf16, #tpu.memory_space<vmem>>, vector<128x256xbf16>
    tpu.vector_store %arg8[%c16_42, %c512_43], %81 {strides = array<i32>} : memref<160x768xbf16, #tpu.memory_space<vmem>>, vector<128x256xbf16>,
    tpu.wait_dma2 semaphore(%arg12 : memref<!tpu.dma_semaphore, #tpu.memory_space<semaphore_mem>>) src(%arg4 : memref<3x768x256xbf16, #tpu.memory_space<any>>) dst(%arg10 : memref<3x768x256xbf16, #tpu.memory_space<vmem>>)
    %c0_44 = arith.constant 0 : index
    %c0_45 = arith.constant 0 : index
    %83 = vector.load %arg8[%c0_44, %c0_45] : memref<160x768xbf16, #tpu.memory_space<vmem>>, vector<128x768xbf16>
    %c0_46 = arith.constant 0 : index
    %c0_47 = arith.constant 0 : index
    %c0_48 = arith.constant 0 : index
    %84 = vector.load %arg10[%c0_46, %c0_47, %c0_48] : memref<3x768x256xbf16, #tpu.memory_space<vmem>>, vector<1x768x256xbf16>
    %85 = vector.shape_cast %84 : vector<1x768x256xbf16> to vector<768x256xbf16>
    %cst_49 = arith.constant dense<0.000000e+00> : vector<128x256xf32>
    %86 = tpu.matmul %83, %85, %cst_49 {dimension_numbers = #tpu.dot_dimension_numbers<[1], [0], [0], [1], [0, 0, 1, 1], [], []>} : vector<128x768xbf16>, vector<768x256xbf16>, vector<128x256xf32> -> vector<128x256xf32>
    %c16_50 = arith.constant 16 : index
    %c0_51 = arith.constant 0 : index
    %87 = vector.load %arg8[%c16_50, %c0_51] : memref<160x768xbf16, #tpu.memory_space<vmem>>, vector<128x768xbf16>
    %c1_52 = arith.constant 1 : index
    %c0_53 = arith.constant 0 : index
    %c0_54 = arith.constant 0 : index
    %88 = vector.load %arg10[%c1_52, %c0_53, %c0_54] : memref<3x768x256xbf16, #tpu.memory_space<vmem>>, vector<1x768x256xbf16>
    %89 = vector.shape_cast %88 : vector<1x768x256xbf16> to vector<768x256xbf16>
    %cst_55 = arith.constant dense<0.000000e+00> : vector<128x256xf32>
    %90 = tpu.matmul %87, %89, %cst_55 {dimension_numbers = #tpu.dot_dimension_numbers<[1], [0], [0], [1], [0, 0, 1, 1], [], []>} : vector<128x768xbf16>, vector<768x256xbf16>, vector<128x256xf32> -> vector<128x256xf32>
    %91 = arith.addf %86, %90 : vector<128x256xf32>
    %c32_56 = arith.constant 32 : index
    %c0_57 = arith.constant 0 : index
    %92 = vector.load %arg8[%c32_56, %c0_57] : memref<160x768xbf16, #tpu.memory_space<vmem>>, vector<128x768xbf16>
    %c2_58 = arith.constant 2 : index
    %c0_59 = arith.constant 0 : index
    %c0_60 = arith.constant 0 : index
    %93 = vector.load %arg10[%c2_58, %c0_59, %c0_60] : memref<3x768x256xbf16, #tpu.memory_space<vmem>>, vector<1x768x256xbf16>
    %94 = vector.shape_cast %93 : vector<1x768x256xbf16> to vector<768x256xbf16>
    %cst_61 = arith.constant dense<0.000000e+00> : vector<128x256xf32>
    %95 = tpu.matmul %92, %94, %cst_61 {dimension_numbers = #tpu.dot_dimension_numbers<[1], [0], [0], [1], [0, 0, 1, 1], [], []>} : vector<128x768xbf16>, vector<768x256xbf16>, vector<128x256xf32> -> vector<128x256xf32>
    %96 = arith.addf %91, %95 : vector<128x256xf32>
    %97 = arith.mulf %96, %96 : vector<128x256xf32>
    %98 = tpu.concatenate %96, %97 in 1 : vector<128x256xf32>, vector<128x256xf32> -> vector<128x512xf32>
    %cst_62 = arith.constant dense<0.000000e+00> : vector<512xf32>
    %99 = vector.multi_reduction <add>, %98, %cst_62 [0] : vector<128x512xf32> to vector<512xf32>
    %100 = vector.shape_cast %99 : vector<512xf32> to vector<1x512xf32>
    %101 = vector.extract_strided_slice %100 {offsets = [0, 0], sizes = [1, 256], strides = [1, 1]} : vector<1x512xf32> to vector<1x256xf32>
    %cst_63 = arith.constant 7.812500e-03 : f32
    %102 = vector.broadcast %cst_63 : f32 to vector<1x256xf32>
    %103 = arith.mulf %101, %102 : vector<1x256xf32>
    %104 = vector.extract_strided_slice %100 {offsets = [0, 256], sizes = [1, 256], strides = [1, 1]} : vector<1x512xf32> to vector<1x256xf32>
    %cst_64 = arith.constant 7.812500e-03 : f32
    %105 = vector.broadcast %cst_64 : f32 to vector<1x256xf32>
    %106 = arith.mulf %104, %105 : vector<1x256xf32>
    %107 = arith.mulf %103, %103 : vector<1x256xf32>
    %108 = arith.subf %106, %107 : vector<1x256xf32>
    %c0_65 = arith.constant 0 : index
    %c0_66 = arith.constant 0 : index
    %109 = vector.load %arg5[%c0_65, %c0_66] : memref<1x256xf32, #tpu.memory_space<vmem>>, vector<1x256xf32>
    %cst_67 = arith.constant 9.99999974E-6 : f32
    %110 = vector.broadcast %cst_67 : f32 to vector<1x256xf32>
    %111 = arith.addf %108, %110 : vector<1x256xf32>
    %112 = math.rsqrt %111 : vector<1x256xf32>
    %113 = arith.mulf %109, %112 : vector<1x256xf32>
    %c0_68 = arith.constant 0 : index
    %c0_69 = arith.constant 0 : index
    %114 = vector.load %arg6[%c0_68, %c0_69] : memref<1x256xf32, #tpu.memory_space<vmem>>, vector<1x256xf32>
    %115 = arith.mulf %103, %113 : vector<1x256xf32>
    %116 = arith.subf %114, %115 : vector<1x256xf32>
    %117 = vector.broadcast %113 : vector<1x256xf32> to vector<128x256xf32>
    %118 = arith.mulf %96, %117 : vector<128x256xf32>
    %119 = vector.broadcast %116 : vector<1x256xf32> to vector<128x256xf32>
    %120 = arith.addf %118, %119 : vector<128x256xf32>
    %c0_70 = arith.constant 0 : index
    %c0_71 = arith.constant 0 : index
    %121 = vector.load %arg0[%c0_70, %c0_71] : memref<128x256xf32, #tpu.memory_space<vmem>>, vector<128x256xf32>
    %122 = arith.addf %120, %121 : vector<128x256xf32>
    %cst_72 = arith.constant 0.000000e+00 : f32
    %123 = vector.broadcast %cst_72 : f32 to vector<128x256xf32>
    %124 = arith.maximumf %122, %123 : vector<128x256xf32>
    %c0_73 = arith.constant 0 : index
    %c0_74 = arith.constant 0 : index
    %125 = vector.load %arg7[%c0_73, %c0_74] : memref<128x256xf32, #tpu.memory_space<vmem>>, vector<128x256xf32>
    tpu.vector_store %arg7[%c0_73, %c0_74], %124 {strides = array<i32>} : memref<128x256xf32, #tpu.memory_space<vmem>>, vector<128x256xf32>,
    return
  }
}

</mosaic_0001>

<llo_original>
// kernel: block_forward.1
$region0: #{block_forward.1}
  #allocation0 [shape = 'u32[]', space=smem, size = 0x4, offset = 0x4, fixed_abs, tag = 'smem constant byte address 0x4 - core index']
  #allocation1 [shape = 'u32[144,128]{1,0:T(1,128)}', space=vmem, size = 0x12000, scoped, tag = 'internal scratch']
  #allocation2 [shape = 'bf16[160,768]{1,0:T(8,128)(2,1)}', space=vmem, size = 0x3c000, scoped, tag = 'scratch operand']
  #allocation3 [shape = 'bf16[3,768,256]{2,1,0:T(8,128)(2,1)}', space=vmem, size = 0x120000, scoped, tag = 'scratch operand']
  #allocation4 [shape = 'bf16[3,768,256]{2,1,0:T(8,128)(2,1)}', space=vmem, size = 0x120000, scoped, tag = 'scratch operand']
  #allocation5 [shape = 's32[1]{0}', space=sflag, size = 0x4, scoped, tag = 'scratch operand']
  #allocation6 [shape = 's32[1]{0}', space=sflag, size = 0x4, scoped, tag = 'scratch operand']
  #allocation14 [shape = 's32[]', space=sflag, size = 0x4, offset = 0, fixed_abs, tag = 'sflag constant byte address 0x0 - dummy sync flag']
  #allocation15 [shape = 's32[]', space=sflag, size = 0x4, offset = 0, fixed_abs, tag = 'sflag constant byte address 0x0 - dummy sync flag']
  #allocation16 [shape = 'u32[]', space=smem, size = 0x4, offset = 0x44, fixed_abs, tag = 'smem constant byte address 0x44 - assertion arg 0']
  #allocation17 [shape = 'u32[]', space=smem, size = 0x4, offset = 0x48, fixed_abs, tag = 'smem constant byte address 0x48 - assertion arg 1']
  #allocation18 [shape = 's32[]', space=sflag, size = 0x4, offset = 0, fixed_abs, tag = 'sflag constant byte address 0x0 - dummy sync flag']
  #allocation19 [shape = 's32[]', space=sflag, size = 0x4, offset = 0, fixed_abs, tag = 'sflag constant byte address 0x0 - dummy sync flag']
  %s0 = inlined_call_operand.vmem [shape: f32[128,256], index: 0, kind: input, shape index: {}]
  %s1 = inlined_call_operand.hbm [shape: bf16[3,768,256], index: 1, kind: input, shape index: {}]
  %s2 = inlined_call_operand.hbm [shape: f32[1,256], index: 2, kind: input, shape index: {}]
  %s3 = inlined_call_operand.hbm [shape: f32[1,256], index: 3, kind: input, shape index: {}]
  %s4 = inlined_call_operand.hbm [shape: bf16[3,768,256], index: 4, kind: input, shape index: {}]
  %s5 = inlined_call_operand.hbm [shape: f32[1,256], index: 5, kind: input, shape index: {}]
  %s6 = inlined_call_operand.hbm [shape: f32[1,256], index: 6, kind: input, shape index: {}]
  %s7 = inlined_call_operand.vmem [shape: f32[128,256], index: 7, kind: output, shape index: {}]
  %s8 = sld [smem:[#allocation0]]
  $region54: #{block_forward.1} parent=0
    _
  %s10 = ssub.s32 1, %s8
  %s11 = scalar_select 0, %s10, %s8
  $region1: #{block_forward.1} parent=0
    #allocation7 [shape = 'u8[1024]{0}', space=vmem, size = 0x400, scoped, tag = 'input window, operand 2, single buffered']
    #allocation8 [shape = 's32[1]{0}', space=sflag, size = 0x4, scoped, tag = 'scoped memory for block_forward.1']
    #allocation9 [shape = 'u8[1024]{0}', space=vmem, size = 0x400, scoped, tag = 'input window, operand 3, single buffered']
    #allocation10 [shape = 's32[1]{0}', space=sflag, size = 0x4, scoped, tag = 'scoped memory for block_forward.1']
    #allocation11 [shape = 'u8[1024]{0}', space=vmem, size = 0x400, scoped, tag = 'input window, operand 5, single buffered']
    #allocation12 [shape = 'u8[1024]{0}', space=vmem, size = 0x400, scoped, tag = 'input window, operand 6, single buffered']
    #allocation13 [shape = 's32[1]{0}', space=sflag, size = 0x4, scoped, tag = 'scoped memory for block_forward.1']
    %12 = vsyncpa [#allocation8], 0
    %13 = vsyncpa [#allocation10], 0
    %14 = vsyncpa [#allocation13], 0
    // Predicated region
    $region2: #{block_forward.1} parent=1 // pred_check
      _
    $region3: #{block_forward.1} parent=1 // pred_check_branch
      %16 = sbr.rel (0) target = $region5
    $region4: #{block_forward.1} parent=1 // pred_region
      _
    $region5: #{block_forward.1} parent=1 // pred_fallthru
      _
    // Predicated region
    $region6: #{block_forward.1} parent=1 // pred_check
      _
    $region7: #{block_forward.1} parent=1 // pred_check_branch
      %18 = sbr.rel (0) target = $region9
    $region8: #{block_forward.1} parent=1 // pred_region
      %s20 = ssub.s32 32, 32
      %21 = vsyncadd [#allocation8], %s20
      %s23 = sshll.u32 [#allocation7], 4
      %s24 = int_to_ptr.vmem [resolvable:$true] %s23
      %26 = dma.hbm_to_vmem [thread:$0]  %s2, 32, %s24, [#allocation8]
    $region9: #{block_forward.1} parent=1 // pred_fallthru
      _
    // Predicated region
    $region10: #{block_forward.1} parent=1 // pred_check
      _
    $region11: #{block_forward.1} parent=1 // pred_check_branch
      %28 = sbr.rel (0) target = $region13
    $region12: #{block_forward.1} parent=1 // pred_region
      %s30 = ssub.s32 32, 32
      %31 = vsyncadd [#allocation10], %s30
      %s33 = sshll.u32 [#allocation9], 4
      %s34 = int_to_ptr.vmem [resolvable:$true] %s33
      %36 = dma.hbm_to_vmem [thread:$0]  %s3, 32, %s34, [#allocation10]
    $region13: #{block_forward.1} parent=1 // pred_fallthru
      _
    // Predicated region
    $region14: #{block_forward.1} parent=1 // pred_check
      _
    $region15: #{block_forward.1} parent=1 // pred_check_branch
      %38 = sbr.rel (0) target = $region17
    $region16: #{block_forward.1} parent=1 // pred_region
      %s40 = ssub.s32 32, 32
      %41 = vsyncadd [#allocation10], %s40
      %s43 = sshll.u32 [#allocation11], 4
      %s44 = int_to_ptr.vmem [resolvable:$true] %s43
      %46 = dma.hbm_to_vmem [thread:$0]  %s5, 32, %s44, [#allocation10]
    $region17: #{block_forward.1} parent=1 // pred_fallthru
      _
    // Predicated region
    $region18: #{block_forward.1} parent=1 // pred_check
      _
    $region19: #{block_forward.1} parent=1 // pred_check_branch
      %48 = sbr.rel (0) target = $region21
    $region20: #{block_forward.1} parent=1 // pred_region
      %s50 = ssub.s32 32, 32
      %51 = vsyncadd [#allocation13], %s50
      %s53 = sshll.u32 [#allocation12], 4
      %s54 = int_to_ptr.vmem [resolvable:$true] %s53
      %56 = dma.hbm_to_vmem [thread:$0]  %s6, 32, %s54, [#allocation13]
    $region21: #{block_forward.1} parent=1 // pred_fallthru
      _
    // Predicated region
    $region22: #{block_forward.1} parent=1 // pred_check
      _
    $region23: #{block_forward.1} parent=1 // pred_check_branch
      %58 = sbr.rel (0) target = $region25
    $region24: #{block_forward.1} parent=1 // pred_region
      %59 = dma.done [#allocation8], 32
    $region25: #{block_forward.1} parent=1 // pred_fallthru
      _
    // Predicated region
    $region26: #{block_forward.1} parent=1 // pred_check
      _
    $region27: #{block_forward.1} parent=1 // pred_check_branch
      %61 = sbr.rel (0) target = $region29
    $region28: #{block_forward.1} parent=1 // pred_region
      %62 = dma.done [#allocation10], 32
    $region29: #{block_forward.1} parent=1 // pred_fallthru
      _
    // Predicated region
    $region30: #{block_forward.1} parent=1 // pred_check
      _
    $region31: #{block_forward.1} parent=1 // pred_check_branch
      %64 = sbr.rel (0) target = $region33
    $region32: #{block_forward.1} parent=1 // pred_region
      %65 = dma.done [#allocation10], 32
    $region33: #{block_forward.1} parent=1 // pred_fallthru
      _
    // Predicated region
    $region34: #{block_forward.1} parent=1 // pred_check
      _
    $region35: #{block_forward.1} parent=1 // pred_check_branch
      %67 = sbr.rel (0) target = $region37
    $region36: #{block_forward.1} parent=1 // pred_region
      %68 = dma.done [#allocation13], 32
    $region37: #{block_forward.1} parent=1 // pred_fallthru
      _
    // Predicated region
    $region38: #{block_forward.1} parent=1 // pred_check
      _
    $region39: #{block_forward.1} parent=1 // pred_check_branch
      %71 = sbr.rel target = $region41
    $region40: #{block_forward.1} parent=1 // pred_region
      %72 = sst [smem:[#allocation16]] [#allocation15]
      %73 = sst [smem:[#allocation17]] [#allocation14]
    $region41: #{block_forward.1} parent=1 // pred_fallthru
      _
    %75 = shalt.err (0)
    %s77 = sshll.u32 [#allocation3], 4
    %s78 = int_to_ptr.vmem [resolvable:$true] %s77
    %80 = dma.hbm_to_vmem [thread:$0]  %s1, 36864, %s78, [#allocation5]
    // Predicated region
    $region42: #{block_forward.1} parent=1 // pred_check
      _
    $region43: #{block_forward.1} parent=1 // pred_check_branch
      %82 = sbr.rel target = $region45
    $region44: #{block_forward.1} parent=1 // pred_region
      %83 = sst [smem:[#allocation16]] [#allocation19]
      %84 = sst [smem:[#allocation17]] [#allocation18]
    $region45: #{block_forward.1} parent=1 // pred_fallthru
      _
    %86 = shalt.err (0)
    %s88 = sshll.u32 [#allocation4], 4
    %s89 = int_to_ptr.vmem [resolvable:$true] %s88
    %91 = dma.hbm_to_vmem [thread:$0]  %s4, 36864, %s89, [#allocation6]
    %v92 = vlaneseq
    %v93 = vshrl.u32 %v92, 7
    %v94 = vadd.s32 %v93, 8
    %v95 = vadd.s32 %v93, 16
    %v96 = vadd.s32 %v93, 24
    %v97 = vadd.s32 %v93, 32
    %v98 = vadd.s32 %v93, 40
    %v99 = vadd.s32 %v93, 48
    %v100 = vadd.s32 %v93, 56
    %v101 = vadd.s32 %v93, 64
    %v102 = vadd.s32 %v93, 72
    %v103 = vadd.s32 %v93, 80
    %v104 = vadd.s32 %v93, 88
    %v105 = vadd.s32 %v93, 96
    %v106 = vadd.s32 %v93, 104
    %v107 = vadd.s32 %v93, 112
    %v108 = vadd.s32 %v93, 120
    %v109 = vand.u32 %v93, 7
    %v110 = vand.u32 %v94, 7
    %v111 = vand.u32 %v95, 7
    %v112 = vand.u32 %v96, 7
    %v113 = vand.u32 %v97, 7
    %v114 = vand.u32 %v98, 7
    %v115 = vand.u32 %v99, 7
    %v116 = vand.u32 %v100, 7
    %v117 = vand.u32 %v101, 7
    %v118 = vand.u32 %v102, 7
    %v119 = vand.u32 %v103, 7
    %v120 = vand.u32 %v104, 7
    %v121 = vand.u32 %v105, 7
    %v122 = vand.u32 %v106, 7
    %v123 = vand.u32 %v107, 7
    %v124 = vand.u32 %v108, 7
    %vm125 = vcmp.eq.s32.totalorder %v109, 0
    %vm126 = vcmp.eq.s32.totalorder %v110, 0
    %vm127 = vcmp.eq.s32.totalorder %v111, 0
    %vm128 = vcmp.eq.s32.totalorder %v112, 0
    %vm129 = vcmp.eq.s32.totalorder %v113, 0
    %vm130 = vcmp.eq.s32.totalorder %v114, 0
    %vm131 = vcmp.eq.s32.totalorder %v115, 0
    %vm132 = vcmp.eq.s32.totalorder %v116, 0
    %vm133 = vcmp.eq.s32.totalorder %v117, 0
    %vm134 = vcmp.eq.s32.totalorder %v118, 0
    %vm135 = vcmp.eq.s32.totalorder %v119, 0
    %vm136 = vcmp.eq.s32.totalorder %v120, 0
    %vm137 = vcmp.eq.s32.totalorder %v121, 0
    %vm138 = vcmp.eq.s32.totalorder %v122, 0
    %vm139 = vcmp.eq.s32.totalorder %v123, 0
    %vm140 = vcmp.eq.s32.totalorder %v124, 0
    %vm141 = vcmp.eq.s32.totalorder %v109, 7
    %vm142 = vcmp.eq.s32.totalorder %v110, 7
    %vm143 = vcmp.eq.s32.totalorder %v111, 7
    %vm144 = vcmp.eq.s32.totalorder %v112, 7
    %vm145 = vcmp.eq.s32.totalorder %v113, 7
    %vm146 = vcmp.eq.s32.totalorder %v114, 7
    %vm147 = vcmp.eq.s32.totalorder %v115, 7
    %vm148 = vcmp.eq.s32.totalorder %v116, 7
    %vm149 = vcmp.eq.s32.totalorder %v117, 7
    %vm150 = vcmp.eq.s32.totalorder %v118, 7
    %vm151 = vcmp.eq.s32.totalorder %v119, 7
    %vm152 = vcmp.eq.s32.totalorder %v120, 7
    %vm153 = vcmp.eq.s32.totalorder %v121, 7
    %vm154 = vcmp.eq.s32.totalorder %v122, 7
    %vm155 = vcmp.eq.s32.totalorder %v123, 7
    %vm156 = vcmp.eq.s32.totalorder %v124, 7
    %157 = vst [vmem:[#allocation2] sm:$0xff] 0
    %158 = vst [vmem:[#allocation2 + $0x8] sm:$0xff] 0
    %159 = vst [vmem:[#allocation2 + $0x10] sm:$0xff] 0
    %160 = vst [vmem:[#allocation2 + $0x18] sm:$0xff] 0
    %161 = vst [vmem:[#allocation2 + $0x20] sm:$0xff] 0
    %162 = vst [vmem:[#allocation2 + $0x28] sm:$0xff] 0
    %163 = vst [vmem:[#allocation2 + $0x1b0] sm:$0xff] 0
    %164 = vst [vmem:[#allocation2 + $0x1b8] sm:$0xff] 0
    %165 = vst [vmem:[#allocation2 + $0x1c0] sm:$0xff] 0
    %166 = vst [vmem:[#allocation2 + $0x1c8] sm:$0xff] 0
    %167 = vst [vmem:[#allocation2 + $0x1d0] sm:$0xff] 0
    %168 = vst [vmem:[#allocation2 + $0x1d8] sm:$0xff] 0
    %v169 = vld [vmem:[%s0] sm:$0xff]
    %v170 = vld [vmem:[%s0 + $0x8] sm:$0xff]
    %v171 = vld [vmem:[%s0 + $0x10] sm:$0xff]
    %v172 = vld [vmem:[%s0 + $0x18] sm:$0xff]
    %v173 = vld [vmem:[%s0 + $0x20] sm:$0xff]
    %v174 = vld [vmem:[%s0 + $0x28] sm:$0xff]
    %v175 = vld [vmem:[%s0 + $0x30] sm:$0xff]
    %v176 = vld [vmem:[%s0 + $0x38] sm:$0xff]
    %v177 = vld [vmem:[%s0 + $0x40] sm:$0xff]
    %v178 = vld [vmem:[%s0 + $0x48] sm:$0xff]
    %v179 = vld [vmem:[%s0 + $0x50] sm:$0xff]
    %v180 = vld [vmem:[%s0 + $0x58] sm:$0xff]
    %v181 = vld [vmem:[%s0 + $0x60] sm:$0xff]
    %v182 = vld [vmem:[%s0 + $0x68] sm:$0xff]
    %v183 = vld [vmem:[%s0 + $0x70] sm:$0xff]
    %v184 = vld [vmem:[%s0 + $0x78] sm:$0xff]
    %v185 = vld [vmem:[%s0 + $0x80] sm:$0xff]
    %v186 = vld [vmem:[%s0 + $0x88] sm:$0xff]
    %v187 = vld [vmem:[%s0 + $0x90] sm:$0xff]
    %v188 = vld [vmem:[%s0 + $0x98] sm:$0xff]
    %v189 = vld [vmem:[%s0 + $0xa0] sm:$0xff]
    %v190 = vld [vmem:[%s0 + $0xa8] sm:$0xff]
    %v191 = vld [vmem:[%s0 + $0xb0] sm:$0xff]
    %v192 = vld [vmem:[%s0 + $0xb8] sm:$0xff]
    %v193 = vld [vmem:[%s0 + $0xc0] sm:$0xff]
    %v194 = vld [vmem:[%s0 + $0xc8] sm:$0xff]
    %v195 = vld [vmem:[%s0 + $0xd0] sm:$0xff]
    %v196 = vld [vmem:[%s0 + $0xd8] sm:$0xff]
    %v197 = vld [vmem:[%s0 + $0xe0] sm:$0xff]
    %v198 = vld [vmem:[%s0 + $0xe8] sm:$0xff]
    %v199 = vld [vmem:[%s0 + $0xf0] sm:$0xff]
    %v200 = vld [vmem:[%s0 + $0xf8] sm:$0xff]
    %v201 = vrot.slane %v169, 7
    %v202 = vrot.slane %v170, 7
    %v203 = vrot.slane %v171, 7
    %v204 = vrot.slane %v172, 7
    %v205 = vrot.slane %v173, 7
    %v206 = vrot.slane %v174, 7
    %v207 = vrot.slane %v175, 7
    %v208 = vrot.slane %v176, 7
    %v209 = vrot.slane %v177, 7
    %v210 = vrot.slane %v178, 7
    %v211 = vrot.slane %v179, 7
    %v212 = vrot.slane %v180, 7
    %v213 = vrot.slane %v181, 7
    %v214 = vrot.slane %v182, 7
    %v215 = vrot.slane %v183, 7
    %v216 = vrot.slane %v184, 7
    %v217 = vrot.slane %v185, 7
    %v218 = vrot.slane %v186, 7
    %v219 = vrot.slane %v187, 7
    %v220 = vrot.slane %v188, 7
    %v221 = vrot.slane %v189, 7
    %v222 = vrot.slane %v190, 7
    %v223 = vrot.slane %v191, 7
    %v224 = vrot.slane %v192, 7
    %v225 = vrot.slane %v193, 7
    %v226 = vrot.slane %v194, 7
    %v227 = vrot.slane %v195, 7
    %v228 = vrot.slane %v196, 7
    %v229 = vrot.slane %v197, 7
    %v230 = vrot.slane %v198, 7
    %v231 = vrot.slane %v199, 7
    %v232 = vrot.slane %v200, 7
    %vm233 = vcmp.lt.s32.totalorder %v93, 1
    %v234 = vsel %vm233, %v229, %v231
    %v235 = vsel %vm233, %v230, %v232
    %v236 = vsel %vm233, %v227, %v229
    %v237 = vsel %vm233, %v228, %v230
    %v238 = vsel %vm233, %v225, %v227
    %v239 = vsel %vm233, %v226, %v228
    %v240 = vsel %vm233, %v223, %v225
    %v241 = vsel %vm233, %v224, %v226
    %v242 = vsel %vm233, %v221, %v223
    %v243 = vsel %vm233, %v222, %v224
    %v244 = vsel %vm233, %v219, %v221
    %v245 = vsel %vm233, %v220, %v222
    %v246 = vsel %vm233, %v217, %v219
    %v247 = vsel %vm233, %v218, %v220
    %v248 = vsel %vm233, %v215, %v217
    %v249 = vsel %vm233, %v216, %v218
    %v250 = vsel %vm233, %v213, %v215
    %v251 = vsel %vm233, %v214, %v216
    %v252 = vsel %vm233, %v211, %v213
    %v253 = vsel %vm233, %v212, %v214
    %v254 = vsel %vm233, %v209, %v211
    %v255 = vsel %vm233, %v210, %v212
    %v256 = vsel %vm233, %v207, %v209
    %v257 = vsel %vm233, %v208, %v210
    %v258 = vsel %vm233, %v205, %v207
    %v259 = vsel %vm233, %v206, %v208
    %v260 = vsel %vm233, %v203, %v205
    %v261 = vsel %vm233, %v204, %v206
    %v262 = vsel %vm233, %v201, %v203
    %v263 = vsel %vm233, %v202, %v204
    %v264 = vsel %vm233, %v231, %v201
    %v265 = vsel %vm233, %v232, %v202
    %v266 = vsel %vm125, 1, 0
    %v267 = vsel %vm126, 1, 0
    %v268 = vsel %vm127, 1, 0
    %v269 = vsel %vm128, 1, 0
    %v270 = vsel %vm129, 1, 0
    %v271 = vsel %vm130, 1, 0
    %v272 = vsel %vm131, 1, 0
    %v273 = vsel %vm132, 1, 0
    %v274 = vsel %vm133, 1, 0
    %v275 = vsel %vm134, 1, 0
    %v276 = vsel %vm135, 1, 0
    %v277 = vsel %vm136, 1, 0
    %v278 = vsel %vm137, 1, 0
    %v279 = vsel %vm138, 1, 0
    %v280 = vsel %vm139, 1, 0
    %v281 = vsel %vm140, 1, 0
    %vm282 = vcmp.eq.s32.totalorder %v266, 1
    %vm283 = vcmp.eq.s32.totalorder %v267, 1
    %vm284 = vcmp.eq.s32.totalorder %v268, 1
    %vm285 = vcmp.eq.s32.totalorder %v269, 1
    %vm286 = vcmp.eq.s32.totalorder %v270, 1
    %vm287 = vcmp.eq.s32.totalorder %v271, 1
    %vm288 = vcmp.eq.s32.totalorder %v272, 1
    %vm289 = vcmp.eq.s32.totalorder %v273, 1
    %vm290 = vcmp.eq.s32.totalorder %v274, 1
    %vm291 = vcmp.eq.s32.totalorder %v275, 1
    %vm292 = vcmp.eq.s32.totalorder %v276, 1
    %vm293 = vcmp.eq.s32.totalorder %v277, 1
    %vm294 = vcmp.eq.s32.totalorder %v278, 1
    %vm295 = vcmp.eq.s32.totalorder %v279, 1
    %vm296 = vcmp.eq.s32.totalorder %v280, 1
    %vm297 = vcmp.eq.s32.totalorder %v281, 1
    %v298 = vsel %vm282, 0.0, %v264
    %v299 = vsel %vm282, 0.0, %v265
    %v300 = vsel %vm283, 0.0, %v262
    %v301 = vsel %vm283, 0.0, %v263
    %v302 = vsel %vm284, 0.0, %v260
    %v303 = vsel %vm284, 0.0, %v261
    %v304 = vsel %vm285, 0.0, %v258
    %v305 = vsel %vm285, 0.0, %v259
    %v306 = vsel %vm286, 0.0, %v256
    %v307 = vsel %vm286, 0.0, %v257
    %v308 = vsel %vm287, 0.0, %v254
    %v309 = vsel %vm287, 0.0, %v255
    %v310 = vsel %vm288, 0.0, %v252
    %v311 = vsel %vm288, 0.0, %v253
    %v312 = vsel %vm289, 0.0, %v250
    %v313 = vsel %vm289, 0.0, %v251
    %v314 = vsel %vm290, 0.0, %v248
    %v315 = vsel %vm290, 0.0, %v249
    %v316 = vsel %vm291, 0.0, %v246
    %v317 = vsel %vm291, 0.0, %v247
    %v318 = vsel %vm292, 0.0, %v244
    %v319 = vsel %vm292, 0.0, %v245
    %v320 = vsel %vm293, 0.0, %v242
    %v321 = vsel %vm293, 0.0, %v243
    %v322 = vsel %vm294, 0.0, %v240
    %v323 = vsel %vm294, 0.0, %v241
    %v324 = vsel %vm295, 0.0, %v238
    %v325 = vsel %vm295, 0.0, %v239
    %v326 = vsel %vm296, 0.0, %v236
    %v327 = vsel %vm296, 0.0, %v237
    %v328 = vsel %vm297, 0.0, %v234
    %v329 = vsel %vm297, 0.0, %v235
    %v330 = vrot.slane %v169, 1
    %v331 = vrot.slane %v170, 1
    %v332 = vrot.slane %v171, 1
    %v333 = vrot.slane %v172, 1
    %v334 = vrot.slane %v173, 1
    %v335 = vrot.slane %v174, 1
    %v336 = vrot.slane %v175, 1
    %v337 = vrot.slane %v176, 1
    %v338 = vrot.slane %v177, 1
    %v339 = vrot.slane %v178, 1
    %v340 = vrot.slane %v179, 1
    %v341 = vrot.slane %v180, 1
    %v342 = vrot.slane %v181, 1
    %v343 = vrot.slane %v182, 1
    %v344 = vrot.slane %v183, 1
    %v345 = vrot.slane %v184, 1
    %v346 = vrot.slane %v185, 1
    %v347 = vrot.slane %v186, 1
    %v348 = vrot.slane %v187, 1
    %v349 = vrot.slane %v188, 1
    %v350 = vrot.slane %v189, 1
    %v351 = vrot.slane %v190, 1
    %v352 = vrot.slane %v191, 1
    %v353 = vrot.slane %v192, 1
    %v354 = vrot.slane %v193, 1
    %v355 = vrot.slane %v194, 1
    %v356 = vrot.slane %v195, 1
    %v357 = vrot.slane %v196, 1
    %v358 = vrot.slane %v197, 1
    %v359 = vrot.slane %v198, 1
    %v360 = vrot.slane %v199, 1
    %v361 = vrot.slane %v200, 1
    %vm362 = vcmp.lt.s32.totalorder %v93, 7
    %v363 = vsel %vm362, %v358, %v360
    %v364 = vsel %vm362, %v359, %v361
    %v365 = vsel %vm362, %v356, %v358
    %v366 = vsel %vm362, %v357, %v359
    %v367 = vsel %vm362, %v354, %v356
    %v368 = vsel %vm362, %v355, %v357
    %v369 = vsel %vm362, %v352, %v354
    %v370 = vsel %vm362, %v353, %v355
    %v371 = vsel %vm362, %v350, %v352
    %v372 = vsel %vm362, %v351, %v353
    %v373 = vsel %vm362, %v348, %v350
    %v374 = vsel %vm362, %v349, %v351
    %v375 = vsel %vm362, %v346, %v348
    %v376 = vsel %vm362, %v347, %v349
    %v377 = vsel %vm362, %v344, %v346
    %v378 = vsel %vm362, %v345, %v347
    %v379 = vsel %vm362, %v342, %v344
    %v380 = vsel %vm362, %v343, %v345
    %v381 = vsel %vm362, %v340, %v342
    %v382 = vsel %vm362, %v341, %v343
    %v383 = vsel %vm362, %v338, %v340
    %v384 = vsel %vm362, %v339, %v341
    %v385 = vsel %vm362, %v336, %v338
    %v386 = vsel %vm362, %v337, %v339
    %v387 = vsel %vm362, %v334, %v336
    %v388 = vsel %vm362, %v335, %v337
    %v389 = vsel %vm362, %v332, %v334
    %v390 = vsel %vm362, %v333, %v335
    %v391 = vsel %vm362, %v330, %v332
    %v392 = vsel %vm362, %v331, %v333
    %v393 = vsel %vm362, %v360, %v330
    %v394 = vsel %vm362, %v361, %v331
    %v395 = vsel %vm141, 1, 0
    %v396 = vsel %vm142, 1, 0
    %v397 = vsel %vm143, 1, 0
    %v398 = vsel %vm144, 1, 0
    %v399 = vsel %vm145, 1, 0
    %v400 = vsel %vm146, 1, 0
    %v401 = vsel %vm147, 1, 0
    %v402 = vsel %vm148, 1, 0
    %v403 = vsel %vm149, 1, 0
    %v404 = vsel %vm150, 1, 0
    %v405 = vsel %vm151, 1, 0
    %v406 = vsel %vm152, 1, 0
    %v407 = vsel %vm153, 1, 0
    %v408 = vsel %vm154, 1, 0
    %v409 = vsel %vm155, 1, 0
    %v410 = vsel %vm156, 1, 0
    %vm411 = vcmp.eq.s32.totalorder %v395, 1
    %vm412 = vcmp.eq.s32.totalorder %v396, 1
    %vm413 = vcmp.eq.s32.totalorder %v397, 1
    %vm414 = vcmp.eq.s32.totalorder %v398, 1
    %vm415 = vcmp.eq.s32.totalorder %v399, 1
    %vm416 = vcmp.eq.s32.totalorder %v400, 1
    %vm417 = vcmp.eq.s32.totalorder %v401, 1
    %vm418 = vcmp.eq.s32.totalorder %v402, 1
    %vm419 = vcmp.eq.s32.totalorder %v403, 1
    %vm420 = vcmp.eq.s32.totalorder %v404, 1
    %vm421 = vcmp.eq.s32.totalorder %v405, 1
    %vm422 = vcmp.eq.s32.totalorder %v406, 1
    %vm423 = vcmp.eq.s32.totalorder %v407, 1
    %vm424 = vcmp.eq.s32.totalorder %v408, 1
    %vm425 = vcmp.eq.s32.totalorder %v409, 1
    %vm426 = vcmp.eq.s32.totalorder %v410, 1
    %v427 = vsel %vm411, 0.0, %v391
    %v428 = vsel %vm411, 0.0, %v392
    %v429 = vsel %vm412, 0.0, %v389
    %v430 = vsel %vm412, 0.0, %v390
    %v431 = vsel %vm413, 0.0, %v387
    %v432 = vsel %vm413, 0.0, %v388
    %v433 = vsel %vm414, 0.0, %v385
    %v434 = vsel %vm414, 0.0, %v386
    %v435 = vsel %vm415, 0.0, %v383
    %v436 = vsel %vm415, 0.0, %v384
    %v437 = vsel %vm416, 0.0, %v381
    %v438 = vsel %vm416, 0.0, %v382
    %v439 = vsel %vm417, 0.0, %v379
    %v440 = vsel %vm417, 0.0, %v380
    %v441 = vsel %vm418, 0.0, %v377
    %v442 = vsel %vm418, 0.0, %v378
    %v443 = vsel %vm419, 0.0, %v375
    %v444 = vsel %vm419, 0.0, %v376
    %v445 = vsel %vm420, 0.0, %v373
    %v446 = vsel %vm420, 0.0, %v374
    %v447 = vsel %vm421, 0.0, %v371
    %v448 = vsel %vm421, 0.0, %v372
    %v449 = vsel %vm422, 0.0, %v369
    %v450 = vsel %vm422, 0.0, %v370
    %v451 = vsel %vm423, 0.0, %v367
    %v452 = vsel %vm423, 0.0, %v368
    %v453 = vsel %vm424, 0.0, %v365
    %v454 = vsel %vm424, 0.0, %v366
    %v455 = vsel %vm425, 0.0, %v363
    %v456 = vsel %vm425, 0.0, %v364
    %v457 = vsel %vm426, 0.0, %v393
    %v458 = vsel %vm426, 0.0, %v394
    %v459 = vpack.c.bf16 %v300, %v298
    %v460 = vpack.c.bf16 %v301, %v299
    %v461 = vpack.c.bf16 %v304, %v302
    %v462 = vpack.c.bf16 %v305, %v303
    %v463 = vpack.c.bf16 %v308, %v306
    %v464 = vpack.c.bf16 %v309, %v307
    %v465 = vpack.c.bf16 %v312, %v310
    %v466 = vpack.c.bf16 %v313, %v311
    %v467 = vpack.c.bf16 %v316, %v314
    %v468 = vpack.c.bf16 %v317, %v315
    %v469 = vpack.c.bf16 %v320, %v318
    %v470 = vpack.c.bf16 %v321, %v319
    %v471 = vpack.c.bf16 %v324, %v322
    %v472 = vpack.c.bf16 %v325, %v323
    %v473 = vpack.c.bf16 %v328, %v326
    %v474 = vpack.c.bf16 %v329, %v327
    %v491 = vunpack.c.l.b16 %v459
    %v492 = vunpack.c.l.b16 %v460
    %v493 = vunpack.c.h.b16 %v459
    %v494 = vunpack.c.h.b16 %v460
    %v495 = vunpack.c.l.b16 %v461
    %v496 = vunpack.c.l.b16 %v462
    %v497 = vunpack.c.h.b16 %v461
    %v498 = vunpack.c.h.b16 %v462
    %v499 = vunpack.c.l.b16 %v463
    %v500 = vunpack.c.l.b16 %v464
    %v501 = vunpack.c.h.b16 %v463
    %v502 = vunpack.c.h.b16 %v464
    %v503 = vunpack.c.l.b16 %v465
    %v504 = vunpack.c.l.b16 %v466
    %v505 = vunpack.c.h.b16 %v465
    %v506 = vunpack.c.h.b16 %v466
    %v507 = vunpack.c.l.b16 %v467
    %v508 = vunpack.c.l.b16 %v468
    %v509 = vunpack.c.h.b16 %v467
    %v510 = vunpack.c.h.b16 %v468
    %v511 = vunpack.c.l.b16 %v469
    %v512 = vunpack.c.l.b16 %v470
    %v513 = vunpack.c.h.b16 %v469
    %v514 = vunpack.c.h.b16 %v470
    %v515 = vunpack.c.l.b16 %v471
    %v516 = vunpack.c.l.b16 %v472
    %v517 = vunpack.c.h.b16 %v471
    %v518 = vunpack.c.h.b16 %v472
    %v519 = vunpack.c.l.b16 %v473
    %v520 = vunpack.c.l.b16 %v474
    %v521 = vunpack.c.h.b16 %v473
    %v522 = vunpack.c.h.b16 %v474
    %v523 = vpack.c.b16 %v492, %v491
    %v524 = vpack.c.b16 %v494, %v493
    %v525 = vpack.c.b16 %v496, %v495
    %v526 = vpack.c.b16 %v498, %v497
    %v527 = vpack.c.b16 %v500, %v499
    %v528 = vpack.c.b16 %v502, %v501
    %v529 = vpack.c.b16 %v504, %v503
    %v530 = vpack.c.b16 %v506, %v505
    %v531 = vpack.c.b16 %v508, %v507
    %v532 = vpack.c.b16 %v510, %v509
    %v533 = vpack.c.b16 %v512, %v511
    %v534 = vpack.c.b16 %v514, %v513
    %v535 = vpack.c.b16 %v516, %v515
    %v536 = vpack.c.b16 %v518, %v517
    %v537 = vpack.c.b16 %v520, %v519
    %v538 = vpack.c.b16 %v522, %v521
    %555 = vst [vmem:[#allocation2 + $0x30] sm:$0xff] %v523
    %556 = vst [vmem:[#allocation2 + $0x48] sm:$0xff] %v524
    %557 = vst [vmem:[#allocation2 + $0x60] sm:$0xff] %v525
    %558 = vst [vmem:[#allocation2 + $0x78] sm:$0xff] %v526
    %559 = vst [vmem:[#allocation2 + $0x90] sm:$0xff] %v527
    %560 = vst [vmem:[#allocation2 + $0xa8] sm:$0xff] %v528
    %561 = vst [vmem:[#allocation2 + $0xc0] sm:$0xff] %v529
    %562 = vst [vmem:[#allocation2 + $0xd8] sm:$0xff] %v530
    %563 = vst [vmem:[#allocation2 + $0xf0] sm:$0xff] %v531
    %564 = vst [vmem:[#allocation2 + $0x108] sm:$0xff] %v532
    %565 = vst [vmem:[#allocation2 + $0x120] sm:$0xff] %v533
    %566 = vst [vmem:[#allocation2 + $0x138] sm:$0xff] %v534
    %567 = vst [vmem:[#allocation2 + $0x150] sm:$0xff] %v535
    %568 = vst [vmem:[#allocation2 + $0x168] sm:$0xff] %v536
    %569 = vst [vmem:[#allocation2 + $0x180] sm:$0xff] %v537
    %570 = vst [vmem:[#allocation2 + $0x198] sm:$0xff] %v538
    %v571 = vpack.c.bf16 %v171, %v169
    %v572 = vpack.c.bf16 %v172, %v170
    %v573 = vpack.c.bf16 %v175, %v173
    %v574 = vpack.c.bf16 %v176, %v174
    %v575 = vpack.c.bf16 %v179, %v177
    %v576 = vpack.c.bf16 %v180, %v178
    %v577 = vpack.c.bf16 %v183, %v181
    %v578 = vpack.c.bf16 %v184, %v182
    %v579 = vpack.c.bf16 %v187, %v185
    %v580 = vpack.c.bf16 %v188, %v186
    %v581 = vpack.c.bf16 %v191, %v189
    %v582 = vpack.c.bf16 %v192, %v190
    %v583 = vpack.c.bf16 %v195, %v193
    %v584 = vpack.c.bf16 %v196, %v194
    %v585 = vpack.c.bf16 %v199, %v197
    %v586 = vpack.c.bf16 %v200, %v198
    %v603 = vunpack.c.l.b16 %v571
    %v604 = vunpack.c.l.b16 %v572
    %v605 = vunpack.c.h.b16 %v571
    %v606 = vunpack.c.h.b16 %v572
    %v607 = vunpack.c.l.b16 %v573
    %v608 = vunpack.c.l.b16 %v574
    %v609 = vunpack.c.h.b16 %v573
    %v610 = vunpack.c.h.b16 %v574
    %v611 = vunpack.c.l.b16 %v575
    %v612 = vunpack.c.l.b16 %v576
    %v613 = vunpack.c.h.b16 %v575
    %v614 = vunpack.c.h.b16 %v576
    %v615 = vunpack.c.l.b16 %v577
    %v616 = vunpack.c.l.b16 %v578
    %v617 = vunpack.c.h.b16 %v577
    %v618 = vunpack.c.h.b16 %v578
    %v619 = vunpack.c.l.b16 %v579
    %v620 = vunpack.c.l.b16 %v580
    %v621 = vunpack.c.h.b16 %v579
    %v622 = vunpack.c.h.b16 %v580
    %v623 = vunpack.c.l.b16 %v581
    %v624 = vunpack.c.l.b16 %v582
    %v625 = vunpack.c.h.b16 %v581
    %v626 = vunpack.c.h.b16 %v582
    %v627 = vunpack.c.l.b16 %v583
    %v628 = vunpack.c.l.b16 %v584
    %v629 = vunpack.c.h.b16 %v583
    %v630 = vunpack.c.h.b16 %v584
    %v631 = vunpack.c.l.b16 %v585
    %v632 = vunpack.c.l.b16 %v586
    %v633 = vunpack.c.h.b16 %v585
    %v634 = vunpack.c.h.b16 %v586
    %v635 = vpack.c.b16 %v604, %v603
    %v636 = vpack.c.b16 %v606, %v605
    %v637 = vpack.c.b16 %v608, %v607
    %v638 = vpack.c.b16 %v610, %v609
    %v639 = vpack.c.b16 %v612, %v611
    %v640 = vpack.c.b16 %v614, %v613
    %v641 = vpack.c.b16 %v616, %v615
    %v642 = vpack.c.b16 %v618, %v617
    %v643 = vpack.c.b16 %v620, %v619
    %v644 = vpack.c.b16 %v622, %v621
    %v645 = vpack.c.b16 %v624, %v623
    %v646 = vpack.c.b16 %v626, %v625
    %v647 = vpack.c.b16 %v628, %v627
    %v648 = vpack.c.b16 %v630, %v629
    %v649 = vpack.c.b16 %v632, %v631
    %v650 = vpack.c.b16 %v634, %v633
    %667 = vst [vmem:[#allocation2 + $0x38] sm:$0xff] %v635
    %668 = vst [vmem:[#allocation2 + $0x50] sm:$0xff] %v636
    %669 = vst [vmem:[#allocation2 + $0x68] sm:$0xff] %v637
    %670 = vst [vmem:[#allocation2 + $0x80] sm:$0xff] %v638
    %671 = vst [vmem:[#allocation2 + $0x98] sm:$0xff] %v639
    %672 = vst [vmem:[#allocation2 + $0xb0] sm:$0xff] %v640
    %673 = vst [vmem:[#allocation2 + $0xc8] sm:$0xff] %v641
    %674 = vst [vmem:[#allocation2 + $0xe0] sm:$0xff] %v642
    %675 = vst [vmem:[#allocation2 + $0xf8] sm:$0xff] %v643
    %676 = vst [vmem:[#allocation2 + $0x110] sm:$0xff] %v644
    %677 = vst [vmem:[#allocation2 + $0x128] sm:$0xff] %v645
    %678 = vst [vmem:[#allocation2 + $0x140] sm:$0xff] %v646
    %679 = vst [vmem:[#allocation2 + $0x158] sm:$0xff] %v647
    %680 = vst [vmem:[#allocation2 + $0x170] sm:$0xff] %v648
    %681 = vst [vmem:[#allocation2 + $0x188] sm:$0xff] %v649
    %682 = vst [vmem:[#allocation2 + $0x1a0] sm:$0xff] %v650
    %v683 = vpack.c.bf16 %v429, %v427
    %v684 = vpack.c.bf16 %v430, %v428
    %v685 = vpack.c.bf16 %v433, %v431
    %v686 = vpack.c.bf16 %v434, %v432
    %v687 = vpack.c.bf16 %v437, %v435
    %v688 = vpack.c.bf16 %v438, %v436
    %v689 = vpack.c.bf16 %v441, %v439
    %v690 = vpack.c.bf16 %v442, %v440
    %v691 = vpack.c.bf16 %v445, %v443
    %v692 = vpack.c.bf16 %v446, %v444
    %v693 = vpack.c.bf16 %v449, %v447
    %v694 = vpack.c.bf16 %v450, %v448
    %v695 = vpack.c.bf16 %v453, %v451
    %v696 = vpack.c.bf16 %v454, %v452
    %v697 = vpack.c.bf16 %v457, %v455
    %v698 = vpack.c.bf16 %v458, %v456
    %v715 = vunpack.c.l.b16 %v683
    %v716 = vunpack.c.l.b16 %v684
    %v717 = vunpack.c.h.b16 %v683
    %v718 = vunpack.c.h.b16 %v684
    %v719 = vunpack.c.l.b16 %v685
    %v720 = vunpack.c.l.b16 %v686
    %v721 = vunpack.c.h.b16 %v685
    %v722 = vunpack.c.h.b16 %v686
    %v723 = vunpack.c.l.b16 %v687
    %v724 = vunpack.c.l.b16 %v688
    %v725 = vunpack.c.h.b16 %v687
    %v726 = vunpack.c.h.b16 %v688
    %v727 = vunpack.c.l.b16 %v689
    %v728 = vunpack.c.l.b16 %v690
    %v729 = vunpack.c.h.b16 %v689
    %v730 = vunpack.c.h.b16 %v690
    %v731 = vunpack.c.l.b16 %v691
    %v732 = vunpack.c.l.b16 %v692
    %v733 = vunpack.c.h.b16 %v691
    %v734 = vunpack.c.h.b16 %v692
    %v735 = vunpack.c.l.b16 %v693
    %v736 = vunpack.c.l.b16 %v694
    %v737 = vunpack.c.h.b16 %v693
    %v738 = vunpack.c.h.b16 %v694
    %v739 = vunpack.c.l.b16 %v695
    %v740 = vunpack.c.l.b16 %v696
    %v741 = vunpack.c.h.b16 %v695
    %v742 = vunpack.c.h.b16 %v696
    %v743 = vunpack.c.l.b16 %v697
    %v744 = vunpack.c.l.b16 %v698
    %v745 = vunpack.c.h.b16 %v697
    %v746 = vunpack.c.h.b16 %v698
    %v747 = vpack.c.b16 %v716, %v715
    %v748 = vpack.c.b16 %v718, %v717
    %v749 = vpack.c.b16 %v720, %v719
    %v750 = vpack.c.b16 %v722, %v721
    %v751 = vpack.c.b16 %v724, %v723
    %v752 = vpack.c.b16 %v726, %v725
    %v753 = vpack.c.b16 %v728, %v727
    %v754 = vpack.c.b16 %v730, %v729
    %v755 = vpack.c.b16 %v732, %v731
    %v756 = vpack.c.b16 %v734, %v733
    %v757 = vpack.c.b16 %v736, %v735
    %v758 = vpack.c.b16 %v738, %v737
    %v759 = vpack.c.b16 %v740, %v739
    %v760 = vpack.c.b16 %v742, %v741
    %v761 = vpack.c.b16 %v744, %v743
    %v762 = vpack.c.b16 %v746, %v745
    %779 = vst [vmem:[#allocation2 + $0x40] sm:$0xff] %v747
    %780 = vst [vmem:[#allocation2 + $0x58] sm:$0xff] %v748
    %781 = vst [vmem:[#allocation2 + $0x70] sm:$0xff] %v749
    %782 = vst [vmem:[#allocation2 + $0x88] sm:$0xff] %v750
    %783 = vst [vmem:[#allocation2 + $0xa0] sm:$0xff] %v751
    %784 = vst [vmem:[#allocation2 + $0xb8] sm:$0xff] %v752
    %785 = vst [vmem:[#allocation2 + $0xd0] sm:$0xff] %v753
    %786 = vst [vmem:[#allocation2 + $0xe8] sm:$0xff] %v754
    %787 = vst [vmem:[#allocation2 + $0x100] sm:$0xff] %v755
    %788 = vst [vmem:[#allocation2 + $0x118] sm:$0xff] %v756
    %789 = vst [vmem:[#allocation2 + $0x130] sm:$0xff] %v757
    %790 = vst [vmem:[#allocation2 + $0x148] sm:$0xff] %v758
    %791 = vst [vmem:[#allocation2 + $0x160] sm:$0xff] %v759
    %792 = vst [vmem:[#allocation2 + $0x178] sm:$0xff] %v760
    %793 = vst [vmem:[#allocation2 + $0x190] sm:$0xff] %v761
    %794 = vst [vmem:[#allocation2 + $0x1a8] sm:$0xff] %v762
    %s795 = smul.u32 4, 3
    %s796 = smul.u32 %s795, 96
    %s797 = smul.u32 %s796, 2
    %s798 = sshll.u32 %s797, 4
    %799 = dma.done [#allocation5], %s798
    %v800 = vld [vmem:[#allocation2] sm:$0xff]
    %v801 = vld [vmem:[#allocation2 + $0x8] sm:$0xff]
    %v802 = vld [vmem:[#allocation2 + $0x10] sm:$0xff]
    %v803 = vld [vmem:[#allocation2 + $0x18] sm:$0xff]
    %v804 = vld [vmem:[#allocation2 + $0x20] sm:$0xff]
    %v805 = vld [vmem:[#allocation2 + $0x28] sm:$0xff]
    %v806 = vld [vmem:[#allocation2 + $0x30] sm:$0xff]
    %v807 = vld [vmem:[#allocation2 + $0x38] sm:$0xff]
    %v808 = vld [vmem:[#allocation2 + $0x40] sm:$0xff]
    %v809 = vld [vmem:[#allocation2 + $0x48] sm:$0xff]
    %v810 = vld [vmem:[#allocation2 + $0x50] sm:$0xff]
    %v811 = vld [vmem:[#allocation2 + $0x58] sm:$0xff]
    %v812 = vld [vmem:[#allocation2 + $0x60] sm:$0xff]
    %v813 = vld [vmem:[#allocation2 + $0x68] sm:$0xff]
    %v814 = vld [vmem:[#allocation2 + $0x70] sm:$0xff]
    %v815 = vld [vmem:[#allocation2 + $0x78] sm:$0xff]
    %v816 = vld [vmem:[#allocation2 + $0x80] sm:$0xff]
    %v817 = vld [vmem:[#allocation2 + $0x88] sm:$0xff]
    %v818 = vld [vmem:[#allocation2 + $0x90] sm:$0xff]
    %v819 = vld [vmem:[#allocation2 + $0x98] sm:$0xff]
    %v820 = vld [vmem:[#allocation2 + $0xa0] sm:$0xff]
    %v821 = vld [vmem:[#allocation2 + $0xa8] sm:$0xff]
    %v822 = vld [vmem:[#allocation2 + $0xb0] sm:$0xff]
    %v823 = vld [vmem:[#allocation2 + $0xb8] sm:$0xff]
    %v824 = vld [vmem:[#allocation2 + $0xc0] sm:$0xff]
    %v825 = vld [vmem:[#allocation2 + $0xc8] sm:$0xff]
    %v826 = vld [vmem:[#allocation2 + $0xd0] sm:$0xff]
    %v827 = vld [vmem:[#allocation2 + $0xd8] sm:$0xff]
    %v828 = vld [vmem:[#allocation2 + $0xe0] sm:$0xff]
    %v829 = vld [vmem:[#allocation2 + $0xe8] sm:$0xff]
    %v830 = vld [vmem:[#allocation2 + $0xf0] sm:$0xff]
    %v831 = vld [vmem:[#allocation2 + $0xf8] sm:$0xff]
    %v832 = vld [vmem:[#allocation2 + $0x100] sm:$0xff]
    %v833 = vld [vmem:[#allocation2 + $0x108] sm:$0xff]
    %v834 = vld [vmem:[#allocation2 + $0x110] sm:$0xff]
    %v835 = vld [vmem:[#allocation2 + $0x118] sm:$0xff]
    %v836 = vld [vmem:[#allocation2 + $0x120] sm:$0xff]
    %v837 = vld [vmem:[#allocation2 + $0x128] sm:$0xff]
    %v838 = vld [vmem:[#allocation2 + $0x130] sm:$0xff]
    %v839 = vld [vmem:[#allocation2 + $0x138] sm:$0xff]
    %v840 = vld [vmem:[#allocation2 + $0x140] sm:$0xff]
    %v841 = vld [vmem:[#allocation2 + $0x148] sm:$0xff]
    %v842 = vld [vmem:[#allocation2 + $0x150] sm:$0xff]
    %v843 = vld [vmem:[#allocation2 + $0x158] sm:$0xff]
    %v844 = vld [vmem:[#allocation2 + $0x160] sm:$0xff]
    %v845 = vld [vmem:[#allocation2 + $0x168] sm:$0xff]
    %v846 = vld [vmem:[#allocation2 + $0x170] sm:$0xff]
    %v847 = vld [vmem:[#allocation2 + $0x178] sm:$0xff]
    %v848 = vld [vmem:[#allocation3] sm:$0xff]
    %v849 = vld [vmem:[#allocation3 + $0x8] sm:$0xff]
    %v850 = vld [vmem:[#allocation3 + $0x10] sm:$0xff]
    %v851 = vld [vmem:[#allocation3 + $0x18] sm:$0xff]
    %v852 = vld [vmem:[#allocation3 + $0x20] sm:$0xff]
    %v853 = vld [vmem:[#allocation3 + $0x28] sm:$0xff]
    %v854 = vld [vmem:[#allocation3 + $0x30] sm:$0xff]
    %v855 = vld [vmem:[#allocation3 + $0x38] sm:$0xff]
    %v856 = vld [vmem:[#allocation3 + $0x40] sm:$0xff]
    %v857 = vld [vmem:[#allocation3 + $0x48] sm:$0xff]
    %v858 = vld [vmem:[#allocation3 + $0x50] sm:$0xff]
    %v859 = vld [vmem:[#allocation3 + $0x58] sm:$0xff]
    %v860 = vld [vmem:[#allocation3 + $0x60] sm:$0xff]
    %v861 = vld [vmem:[#allocation3 + $0x68] sm:$0xff]
    %v862 = vld [vmem:[#allocation3 + $0x70] sm:$0xff]
    %v863 = vld [vmem:[#allocation3 + $0x78] sm:$0xff]
    %v864 = vld [vmem:[#allocation3 + $0x80] sm:$0xff]
    %v865 = vld [vmem:[#allocation3 + $0x88] sm:$0xff]
    %v866 = vld [vmem:[#allocation3 + $0x90] sm:$0xff]
    %v867 = vld [vmem:[#allocation3 + $0x98] sm:$0xff]
    %v868 = vld [vmem:[#allocation3 + $0xa0] sm:$0xff]
    %v869 = vld [vmem:[#allocation3 + $0xa8] sm:$0xff]
    %v870 = vld [vmem:[#allocation3 + $0xb0] sm:$0xff]
    %v871 = vld [vmem:[#allocation3 + $0xb8] sm:$0xff]
    %v872 = vld [vmem:[#allocation3 + $0xc0] sm:$0xff]
    %v873 = vld [vmem:[#allocation3 + $0xc8] sm:$0xff]
    %v874 = vld [vmem:[#allocation3 + $0xd0] sm:$0xff]
    %v875 = vld [vmem:[#allocation3 + $0xd8] sm:$0xff]
    %v876 = vld [vmem:[#allocation3 + $0xe0] sm:$0xff]
    %v877 = vld [vmem:[#allocation3 + $0xe8] sm:$0xff]
    %v878 = vld [vmem:[#allocation3 + $0xf0] sm:$0xff]
    %v879 = vld [vmem:[#allocation3 + $0xf8] sm:$0xff]
    %v880 = vld [vmem:[#allocation3 + $0x100] sm:$0xff]
    %v881 = vld [vmem:[#allocation3 + $0x108] sm:$0xff]
    %v882 = vld [vmem:[#allocation3 + $0x110] sm:$0xff]
    %v883 = vld [vmem:[#allocation3 + $0x118] sm:$0xff]
    %v884 = vld [vmem:[#allocation3 + $0x120] sm:$0xff]
    %v885 = vld [vmem:[#allocation3 + $0x128] sm:$0xff]
    %v886 = vld [vmem:[#allocation3 + $0x130] sm:$0xff]
    %v887 = vld [vmem:[#allocation3 + $0x138] sm:$0xff]
    %v888 = vld [vmem:[#allocation3 + $0x140] sm:$0xff]
    %v889 = vld [vmem:[#allocation3 + $0x148] sm:$0xff]
    %v890 = vld [vmem:[#allocation3 + $0x150] sm:$0xff]
    %v891 = vld [vmem:[#allocation3 + $0x158] sm:$0xff]
    %v892 = vld [vmem:[#allocation3 + $0x160] sm:$0xff]
    %v893 = vld [vmem:[#allocation3 + $0x168] sm:$0xff]
    %v894 = vld [vmem:[#allocation3 + $0x170] sm:$0xff]
    %v895 = vld [vmem:[#allocation3 + $0x178] sm:$0xff]
    %v896 = vld [vmem:[#allocation3 + $0x180] sm:$0xff]
    %v897 = vld [vmem:[#allocation3 + $0x188] sm:$0xff]
    %v898 = vld [vmem:[#allocation3 + $0x190] sm:$0xff]
    %v899 = vld [vmem:[#allocation3 + $0x198] sm:$0xff]
    %v900 = vld [vmem:[#allocation3 + $0x1a0] sm:$0xff]
    %v901 = vld [vmem:[#allocation3 + $0x1a8] sm:$0xff]
    %v902 = vld [vmem:[#allocation3 + $0x1b0] sm:$0xff]
    %v903 = vld [vmem:[#allocation3 + $0x1b8] sm:$0xff]
    %v904 = vld [vmem:[#allocation3 + $0x1c0] sm:$0xff]
    %v905 = vld [vmem:[#allocation3 + $0x1c8] sm:$0xff]
    %v906 = vld [vmem:[#allocation3 + $0x1d0] sm:$0xff]
    %v907 = vld [vmem:[#allocation3 + $0x1d8] sm:$0xff]
    %v908 = vld [vmem:[#allocation3 + $0x1e0] sm:$0xff]
    %v909 = vld [vmem:[#allocation3 + $0x1e8] sm:$0xff]
    %v910 = vld [vmem:[#allocation3 + $0x1f0] sm:$0xff]
    %v911 = vld [vmem:[#allocation3 + $0x1f8] sm:$0xff]
    %v912 = vld [vmem:[#allocation3 + $0x200] sm:$0xff]
    %v913 = vld [vmem:[#allocation3 + $0x208] sm:$0xff]
    %v914 = vld [vmem:[#allocation3 + $0x210] sm:$0xff]
    %v915 = vld [vmem:[#allocation3 + $0x218] sm:$0xff]
    %v916 = vld [vmem:[#allocation3 + $0x220] sm:$0xff]
    %v917 = vld [vmem:[#allocation3 + $0x228] sm:$0xff]
    %v918 = vld [vmem:[#allocation3 + $0x230] sm:$0xff]
    %v919 = vld [vmem:[#allocation3 + $0x238] sm:$0xff]
    %v920 = vld [vmem:[#allocation3 + $0x240] sm:$0xff]
    %v921 = vld [vmem:[#allocation3 + $0x248] sm:$0xff]
    %v922 = vld [vmem:[#allocation3 + $0x250] sm:$0xff]
    %v923 = vld [vmem:[#allocation3 + $0x258] sm:$0xff]
    %v924 = vld [vmem:[#allocation3 + $0x260] sm:$0xff]
    %v925 = vld [vmem:[#allocation3 + $0x268] sm:$0xff]
    %v926 = vld [vmem:[#allocation3 + $0x270] sm:$0xff]
    %v927 = vld [vmem:[#allocation3 + $0x278] sm:$0xff]
    %v928 = vld [vmem:[#allocation3 + $0x280] sm:$0xff]
    %v929 = vld [vmem:[#allocation3 + $0x288] sm:$0xff]
    %v930 = vld [vmem:[#allocation3 + $0x290] sm:$0xff]
    %v931 = vld [vmem:[#allocation3 + $0x298] sm:$0xff]
    %v932 = vld [vmem:[#allocation3 + $0x2a0] sm:$0xff]
    %v933 = vld [vmem:[#allocation3 + $0x2a8] sm:$0xff]
    %v934 = vld [vmem:[#allocation3 + $0x2b0] sm:$0xff]
    %v935 = vld [vmem:[#allocation3 + $0x2b8] sm:$0xff]
    %v936 = vld [vmem:[#allocation3 + $0x2c0] sm:$0xff]
    %v937 = vld [vmem:[#allocation3 + $0x2c8] sm:$0xff]
    %v938 = vld [vmem:[#allocation3 + $0x2d0] sm:$0xff]
    %v939 = vld [vmem:[#allocation3 + $0x2d8] sm:$0xff]
    %v940 = vld [vmem:[#allocation3 + $0x2e0] sm:$0xff]
    %v941 = vld [vmem:[#allocation3 + $0x2e8] sm:$0xff]
    %v942 = vld [vmem:[#allocation3 + $0x2f0] sm:$0xff]
    %v943 = vld [vmem:[#allocation3 + $0x2f8] sm:$0xff]
    %v944 = vld [vmem:[#allocation2 + $0x180] sm:$0xff]
    %v945 = vld [vmem:[#allocation2 + $0x188] sm:$0xff]
    %v946 = vld [vmem:[#allocation2 + $0x190] sm:$0xff]
    %v947 = vld [vmem:[#allocation2 + $0x198] sm:$0xff]
    %v948 = vld [vmem:[#allocation2 + $0x1a0] sm:$0xff]
    %v949 = vld [vmem:[#allocation2 + $0x1a8] sm:$0xff]
    %s950 = scalar_lea.vmem [#allocation3], 768
    %v951 = vld [vmem:[%s950] sm:$0xff]
    %v952 = vld [vmem:[%s950 + $0x8] sm:$0xff]
    %v953 = vld [vmem:[%s950 + $0x10] sm:$0xff]
    %v954 = vld [vmem:[%s950 + $0x18] sm:$0xff]
    %v955 = vld [vmem:[%s950 + $0x20] sm:$0xff]
    %v956 = vld [vmem:[%s950 + $0x28] sm:$0xff]
    %v957 = vld [vmem:[%s950 + $0x30] sm:$0xff]
    %v958 = vld [vmem:[%s950 + $0x38] sm:$0xff]
    %v959 = vld [vmem:[%s950 + $0x40] sm:$0xff]
    %v960 = vld [vmem:[%s950 + $0x48] sm:$0xff]
    %v961 = vld [vmem:[%s950 + $0x50] sm:$0xff]
    %v962 = vld [vmem:[%s950 + $0x58] sm:$0xff]
    %v963 = vld [vmem:[%s950 + $0x60] sm:$0xff]
    %v964 = vld [vmem:[%s950 + $0x68] sm:$0xff]
    %v965 = vld [vmem:[%s950 + $0x70] sm:$0xff]
    %v966 = vld [vmem:[%s950 + $0x78] sm:$0xff]
    %v967 = vld [vmem:[%s950 + $0x80] sm:$0xff]
    %v968 = vld [vmem:[%s950 + $0x88] sm:$0xff]
    %v969 = vld [vmem:[%s950 + $0x90] sm:$0xff]
    %v970 = vld [vmem:[%s950 + $0x98] sm:$0xff]
    %v971 = vld [vmem:[%s950 + $0xa0] sm:$0xff]
    %v972 = vld [vmem:[%s950 + $0xa8] sm:$0xff]
    %v973 = vld [vmem:[%s950 + $0xb0] sm:$0xff]
    %v974 = vld [vmem:[%s950 + $0xb8] sm:$0xff]
    %v975 = vld [vmem:[%s950 + $0xc0] sm:$0xff]
    %v976 = vld [vmem:[%s950 + $0xc8] sm:$0xff]
    %v977 = vld [vmem:[%s950 + $0xd0] sm:$0xff]
    %v978 = vld [vmem:[%s950 + $0xd8] sm:$0xff]
    %v979 = vld [vmem:[%s950 + $0xe0] sm:$0xff]
    %v980 = vld [vmem:[%s950 + $0xe8] sm:$0xff]
    %v981 = vld [vmem:[%s950 + $0xf0] sm:$0xff]
    %v982 = vld [vmem:[%s950 + $0xf8] sm:$0xff]
    %v983 = vld [vmem:[%s950 + $0x100] sm:$0xff]
    %v984 = vld [vmem:[%s950 + $0x108] sm:$0xff]
    %v985 = vld [vmem:[%s950 + $0x110] sm:$0xff]
    %v986 = vld [vmem:[%s950 + $0x118] sm:$0xff]
    %v987 = vld [vmem:[%s950 + $0x120] sm:$0xff]
    %v988 = vld [vmem:[%s950 + $0x128] sm:$0xff]
    %v989 = vld [vmem:[%s950 + $0x130] sm:$0xff]
    %v990 = vld [vmem:[%s950 + $0x138] sm:$0xff]
    %v991 = vld [vmem:[%s950 + $0x140] sm:$0xff]
    %v992 = vld [vmem:[%s950 + $0x148] sm:$0xff]
    %v993 = vld [vmem:[%s950 + $0x150] sm:$0xff]
    %v994 = vld [vmem:[%s950 + $0x158] sm:$0xff]
    %v995 = vld [vmem:[%s950 + $0x160] sm:$0xff]
    %v996 = vld [vmem:[%s950 + $0x168] sm:$0xff]
    %v997 = vld [vmem:[%s950 + $0x170] sm:$0xff]
    %v998 = vld [vmem:[%s950 + $0x178] sm:$0xff]
    %v999 = vld [vmem:[%s950 + $0x180] sm:$0xff]
    %v1000 = vld [vmem:[%s950 + $0x188] sm:$0xff]
    %v1001 = vld [vmem:[%s950 + $0x190] sm:$0xff]
    %v1002 = vld [vmem:[%s950 + $0x198] sm:$0xff]
    %v1003 = vld [vmem:[%s950 + $0x1a0] sm:$0xff]
    %v1004 = vld [vmem:[%s950 + $0x1a8] sm:$0xff]
    %v1005 = vld [vmem:[%s950 + $0x1b0] sm:$0xff]
    %v1006 = vld [vmem:[%s950 + $0x1b8] sm:$0xff]
    %v1007 = vld [vmem:[%s950 + $0x1c0] sm:$0xff]
    %v1008 = vld [vmem:[%s950 + $0x1c8] sm:$0xff]
    %v1009 = vld [vmem:[%s950 + $0x1d0] sm:$0xff]
    %v1010 = vld [vmem:[%s950 + $0x1d8] sm:$0xff]
    %v1011 = vld [vmem:[%s950 + $0x1e0] sm:$0xff]
    %v1012 = vld [vmem:[%s950 + $0x1e8] sm:$0xff]
    %v1013 = vld [vmem:[%s950 + $0x1f0] sm:$0xff]
    %v1014 = vld [vmem:[%s950 + $0x1f8] sm:$0xff]
    %v1015 = vld [vmem:[%s950 + $0x200] sm:$0xff]
    %v1016 = vld [vmem:[%s950 + $0x208] sm:$0xff]
    %v1017 = vld [vmem:[%s950 + $0x210] sm:$0xff]
    %v1018 = vld [vmem:[%s950 + $0x218] sm:$0xff]
    %v1019 = vld [vmem:[%s950 + $0x220] sm:$0xff]
    %v1020 = vld [vmem:[%s950 + $0x228] sm:$0xff]
    %v1021 = vld [vmem:[%s950 + $0x230] sm:$0xff]
    %v1022 = vld [vmem:[%s950 + $0x238] sm:$0xff]
    %v1023 = vld [vmem:[%s950 + $0x240] sm:$0xff]
    %v1024 = vld [vmem:[%s950 + $0x248] sm:$0xff]
    %v1025 = vld [vmem:[%s950 + $0x250] sm:$0xff]
    %v1026 = vld [vmem:[%s950 + $0x258] sm:$0xff]
    %v1027 = vld [vmem:[%s950 + $0x260] sm:$0xff]
    %v1028 = vld [vmem:[%s950 + $0x268] sm:$0xff]
    %v1029 = vld [vmem:[%s950 + $0x270] sm:$0xff]
    %v1030 = vld [vmem:[%s950 + $0x278] sm:$0xff]
    %v1031 = vld [vmem:[%s950 + $0x280] sm:$0xff]
    %v1032 = vld [vmem:[%s950 + $0x288] sm:$0xff]
    %v1033 = vld [vmem:[%s950 + $0x290] sm:$0xff]
    %v1034 = vld [vmem:[%s950 + $0x298] sm:$0xff]
    %v1035 = vld [vmem:[%s950 + $0x2a0] sm:$0xff]
    %v1036 = vld [vmem:[%s950 + $0x2a8] sm:$0xff]
    %v1037 = vld [vmem:[%s950 + $0x2b0] sm:$0xff]
    %v1038 = vld [vmem:[%s950 + $0x2b8] sm:$0xff]
    %v1039 = vld [vmem:[%s950 + $0x2c0] sm:$0xff]
    %v1040 = vld [vmem:[%s950 + $0x2c8] sm:$0xff]
    %v1041 = vld [vmem:[%s950 + $0x2d0] sm:$0xff]
    %v1042 = vld [vmem:[%s950 + $0x2d8] sm:$0xff]
    %v1043 = vld [vmem:[%s950 + $0x2e0] sm:$0xff]
    %v1044 = vld [vmem:[%s950 + $0x2e8] sm:$0xff]
    %v1045 = vld [vmem:[%s950 + $0x2f0] sm:$0xff]
    %v1046 = vld [vmem:[%s950 + $0x2f8] sm:$0xff]
    %v1095 = vunpack.c.l.b16 %v806
    %v1096 = vunpack.c.h.b16 %v806
    %v1097 = vunpack.c.l.b16 %v807
    %v1098 = vunpack.c.h.b16 %v807
    %v1099 = vunpack.c.l.b16 %v808
    %v1100 = vunpack.c.h.b16 %v808
    %v1101 = vunpack.c.l.b16 %v809
    %v1102 = vunpack.c.h.b16 %v809
    %v1103 = vunpack.c.l.b16 %v810
    %v1104 = vunpack.c.h.b16 %v810
    %v1105 = vunpack.c.l.b16 %v811
    %v1106 = vunpack.c.h.b16 %v811
    %v1107 = vunpack.c.l.b16 %v812
    %v1108 = vunpack.c.h.b16 %v812
    %v1109 = vunpack.c.l.b16 %v813
    %v1110 = vunpack.c.h.b16 %v813
    %v1111 = vunpack.c.l.b16 %v814
    %v1112 = vunpack.c.h.b16 %v814
    %v1113 = vunpack.c.l.b16 %v815
    %v1114 = vunpack.c.h.b16 %v815
    %v1115 = vunpack.c.l.b16 %v816
    %v1116 = vunpack.c.h.b16 %v816
    %v1117 = vunpack.c.l.b16 %v817
    %v1118 = vunpack.c.h.b16 %v817
    %v1119 = vunpack.c.l.b16 %v818
    %v1120 = vunpack.c.h.b16 %v818
    %v1121 = vunpack.c.l.b16 %v819
    %v1122 = vunpack.c.h.b16 %v819
    %v1123 = vunpack.c.l.b16 %v820
    %v1124 = vunpack.c.h.b16 %v820
    %v1125 = vunpack.c.l.b16 %v821
    %v1126 = vunpack.c.h.b16 %v821
    %v1127 = vunpack.c.l.b16 %v822
    %v1128 = vunpack.c.h.b16 %v822
    %v1129 = vunpack.c.l.b16 %v823
    %v1130 = vunpack.c.h.b16 %v823
    %v1131 = vunpack.c.l.b16 %v824
    %v1132 = vunpack.c.h.b16 %v824
    %v1133 = vunpack.c.l.b16 %v825
    %v1134 = vunpack.c.h.b16 %v825
    %v1135 = vunpack.c.l.b16 %v826
    %v1136 = vunpack.c.h.b16 %v826
    %v1137 = vunpack.c.l.b16 %v827
    %v1138 = vunpack.c.h.b16 %v827
    %v1139 = vunpack.c.l.b16 %v828
    %v1140 = vunpack.c.h.b16 %v828
    %v1141 = vunpack.c.l.b16 %v829
    %v1142 = vunpack.c.h.b16 %v829
    %v1143 = vunpack.c.l.b16 %v830
    %v1144 = vunpack.c.h.b16 %v830
    %v1145 = vunpack.c.l.b16 %v831
    %v1146 = vunpack.c.h.b16 %v831
    %v1147 = vunpack.c.l.b16 %v832
    %v1148 = vunpack.c.h.b16 %v832
    %v1149 = vunpack.c.l.b16 %v833
    %v1150 = vunpack.c.h.b16 %v833
    %v1151 = vunpack.c.l.b16 %v834
    %v1152 = vunpack.c.h.b16 %v834
    %v1153 = vunpack.c.l.b16 %v835
    %v1154 = vunpack.c.h.b16 %v835
    %v1155 = vunpack.c.l.b16 %v836
    %v1156 = vunpack.c.h.b16 %v836
    %v1157 = vunpack.c.l.b16 %v837
    %v1158 = vunpack.c.h.b16 %v837
    %v1159 = vunpack.c.l.b16 %v838
    %v1160 = vunpack.c.h.b16 %v838
    %v1161 = vunpack.c.l.b16 %v839
    %v1162 = vunpack.c.h.b16 %v839
    %v1163 = vunpack.c.l.b16 %v840
    %v1164 = vunpack.c.h.b16 %v840
    %v1165 = vunpack.c.l.b16 %v841
    %v1166 = vunpack.c.h.b16 %v841
    %v1167 = vunpack.c.l.b16 %v842
    %v1168 = vunpack.c.h.b16 %v842
    %v1169 = vunpack.c.l.b16 %v843
    %v1170 = vunpack.c.h.b16 %v843
    %v1171 = vunpack.c.l.b16 %v844
    %v1172 = vunpack.c.h.b16 %v844
    %v1173 = vunpack.c.l.b16 %v845
    %v1174 = vunpack.c.h.b16 %v845
    %v1175 = vunpack.c.l.b16 %v846
    %v1176 = vunpack.c.h.b16 %v846
    %v1177 = vunpack.c.l.b16 %v847
    %v1178 = vunpack.c.h.b16 %v847
    %v1179 = vunpack.c.l.b16 %v944
    %v1180 = vunpack.c.h.b16 %v944
    %v1181 = vunpack.c.l.b16 %v945
    %v1182 = vunpack.c.h.b16 %v945
    %v1183 = vunpack.c.l.b16 %v946
    %v1184 = vunpack.c.h.b16 %v946
    %v1185 = vunpack.c.l.b16 %v947
    %v1186 = vunpack.c.h.b16 %v947
    %v1187 = vunpack.c.l.b16 %v948
    %v1188 = vunpack.c.h.b16 %v948
    %v1189 = vunpack.c.l.b16 %v949
    %v1190 = vunpack.c.h.b16 %v949
    %v1191 = vpack.c.b16 %v1101, %v1095
    %v1192 = vpack.c.b16 %v1102, %v1096
    %v1193 = vpack.c.b16 %v1103, %v1097
    %v1194 = vpack.c.b16 %v1104, %v1098
    %v1195 = vpack.c.b16 %v1105, %v1099
    %v1196 = vpack.c.b16 %v1106, %v1100
    %v1197 = vpack.c.b16 %v1113, %v1107
    %v1198 = vpack.c.b16 %v1114, %v1108
    %v1199 = vpack.c.b16 %v1115, %v1109
    %v1200 = vpack.c.b16 %v1116, %v1110
    %v1201 = vpack.c.b16 %v1117, %v1111
    %v1202 = vpack.c.b16 %v1118, %v1112
    %v1203 = vpack.c.b16 %v1125, %v1119
    %v1204 = vpack.c.b16 %v1126, %v1120
    %v1205 = vpack.c.b16 %v1127, %v1121
    %v1206 = vpack.c.b16 %v1128, %v1122
    %v1207 = vpack.c.b16 %v1129, %v1123
    %v1208 = vpack.c.b16 %v1130, %v1124
    %v1209 = vpack.c.b16 %v1137, %v1131
    %v1210 = vpack.c.b16 %v1138, %v1132
    %v1211 = vpack.c.b16 %v1139, %v1133
    %v1212 = vpack.c.b16 %v1140, %v1134
    %v1213 = vpack.c.b16 %v1141, %v1135
    %v1214 = vpack.c.b16 %v1142, %v1136
    %v1215 = vpack.c.b16 %v1149, %v1143
    %v1216 = vpack.c.b16 %v1150, %v1144
    %v1217 = vpack.c.b16 %v1151, %v1145
    %v1218 = vpack.c.b16 %v1152, %v1146
    %v1219 = vpack.c.b16 %v1153, %v1147
    %v1220 = vpack.c.b16 %v1154, %v1148
    %v1221 = vpack.c.b16 %v1161, %v1155
    %v1222 = vpack.c.b16 %v1162, %v1156
    %v1223 = vpack.c.b16 %v1163, %v1157
    %v1224 = vpack.c.b16 %v1164, %v1158
    %v1225 = vpack.c.b16 %v1165, %v1159
    %v1226 = vpack.c.b16 %v1166, %v1160
    %v1227 = vpack.c.b16 %v1173, %v1167
    %v1228 = vpack.c.b16 %v1174, %v1168
    %v1229 = vpack.c.b16 %v1175, %v1169
    %v1230 = vpack.c.b16 %v1176, %v1170
    %v1231 = vpack.c.b16 %v1177, %v1171
    %v1232 = vpack.c.b16 %v1178, %v1172
    %v1233 = vpack.c.b16 %v1185, %v1179
    %v1234 = vpack.c.b16 %v1186, %v1180
    %v1235 = vpack.c.b16 %v1187, %v1181
    %v1236 = vpack.c.b16 %v1188, %v1182
    %v1237 = vpack.c.b16 %v1189, %v1183
    %v1238 = vpack.c.b16 %v1190, %v1184
    %v1383 = vunpack.c.l.b16 %v951
    %v1384 = vunpack.c.h.b16 %v951
    %v1385 = vunpack.c.l.b16 %v952
    %v1386 = vunpack.c.h.b16 %v952
    %v1387 = vunpack.c.l.b16 %v953
    %v1388 = vunpack.c.h.b16 %v953
    %v1389 = vunpack.c.l.b16 %v954
    %v1390 = vunpack.c.h.b16 %v954
    %v1391 = vunpack.c.l.b16 %v955
    %v1392 = vunpack.c.h.b16 %v955
    %v1393 = vunpack.c.l.b16 %v956
    %v1394 = vunpack.c.h.b16 %v956
    %v1395 = vunpack.c.l.b16 %v957
    %v1396 = vunpack.c.h.b16 %v957
    %v1397 = vunpack.c.l.b16 %v958
    %v1398 = vunpack.c.h.b16 %v958
    %v1399 = vunpack.c.l.b16 %v959
    %v1400 = vunpack.c.h.b16 %v959
    %v1401 = vunpack.c.l.b16 %v960
    %v1402 = vunpack.c.h.b16 %v960
    %v1403 = vunpack.c.l.b16 %v961
    %v1404 = vunpack.c.h.b16 %v961
    %v1405 = vunpack.c.l.b16 %v962
    %v1406 = vunpack.c.h.b16 %v962
    %v1407 = vunpack.c.l.b16 %v963
    %v1408 = vunpack.c.h.b16 %v963
    %v1409 = vunpack.c.l.b16 %v964
    %v1410 = vunpack.c.h.b16 %v964
    %v1411 = vunpack.c.l.b16 %v965
    %v1412 = vunpack.c.h.b16 %v965
    %v1413 = vunpack.c.l.b16 %v966
    %v1414 = vunpack.c.h.b16 %v966
    %v1415 = vunpack.c.l.b16 %v967
    %v1416 = vunpack.c.h.b16 %v967
    %v1417 = vunpack.c.l.b16 %v968
    %v1418 = vunpack.c.h.b16 %v968
    %v1419 = vunpack.c.l.b16 %v969
    %v1420 = vunpack.c.h.b16 %v969
    %v1421 = vunpack.c.l.b16 %v970
    %v1422 = vunpack.c.h.b16 %v970
    %v1423 = vunpack.c.l.b16 %v971
    %v1424 = vunpack.c.h.b16 %v971
    %v1425 = vunpack.c.l.b16 %v972
    %v1426 = vunpack.c.h.b16 %v972
    %v1427 = vunpack.c.l.b16 %v973
    %v1428 = vunpack.c.h.b16 %v973
    %v1429 = vunpack.c.l.b16 %v974
    %v1430 = vunpack.c.h.b16 %v974
    %v1431 = vunpack.c.l.b16 %v975
    %v1432 = vunpack.c.h.b16 %v975
    %v1433 = vunpack.c.l.b16 %v976
    %v1434 = vunpack.c.h.b16 %v976
    %v1435 = vunpack.c.l.b16 %v977
    %v1436 = vunpack.c.h.b16 %v977
    %v1437 = vunpack.c.l.b16 %v978
    %v1438 = vunpack.c.h.b16 %v978
    %v1439 = vunpack.c.l.b16 %v979
    %v1440 = vunpack.c.h.b16 %v979
    %v1441 = vunpack.c.l.b16 %v980
    %v1442 = vunpack.c.h.b16 %v980
    %v1443 = vunpack.c.l.b16 %v981
    %v1444 = vunpack.c.h.b16 %v981
    %v1445 = vunpack.c.l.b16 %v982
    %v1446 = vunpack.c.h.b16 %v982
    %v1447 = vunpack.c.l.b16 %v983
    %v1448 = vunpack.c.h.b16 %v983
    %v1449 = vunpack.c.l.b16 %v984
    %v1450 = vunpack.c.h.b16 %v984
    %v1451 = vunpack.c.l.b16 %v985
    %v1452 = vunpack.c.h.b16 %v985
    %v1453 = vunpack.c.l.b16 %v986
    %v1454 = vunpack.c.h.b16 %v986
    %v1455 = vunpack.c.l.b16 %v987
    %v1456 = vunpack.c.h.b16 %v987
    %v1457 = vunpack.c.l.b16 %v988
    %v1458 = vunpack.c.h.b16 %v988
    %v1459 = vunpack.c.l.b16 %v989
    %v1460 = vunpack.c.h.b16 %v989
    %v1461 = vunpack.c.l.b16 %v990
    %v1462 = vunpack.c.h.b16 %v990
    %v1463 = vunpack.c.l.b16 %v991
    %v1464 = vunpack.c.h.b16 %v991
    %v1465 = vunpack.c.l.b16 %v992
    %v1466 = vunpack.c.h.b16 %v992
    %v1467 = vunpack.c.l.b16 %v993
    %v1468 = vunpack.c.h.b16 %v993
    %v1469 = vunpack.c.l.b16 %v994
    %v1470 = vunpack.c.h.b16 %v994
    %v1471 = vunpack.c.l.b16 %v995
    %v1472 = vunpack.c.h.b16 %v995
    %v1473 = vunpack.c.l.b16 %v996
    %v1474 = vunpack.c.h.b16 %v996
    %v1475 = vunpack.c.l.b16 %v997
    %v1476 = vunpack.c.h.b16 %v997
    %v1477 = vunpack.c.l.b16 %v998
    %v1478 = vunpack.c.h.b16 %v998
    %v1479 = vunpack.c.l.b16 %v999
    %v1480 = vunpack.c.h.b16 %v999
    %v1481 = vunpack.c.l.b16 %v1000
    %v1482 = vunpack.c.h.b16 %v1000
    %v1483 = vunpack.c.l.b16 %v1001
    %v1484 = vunpack.c.h.b16 %v1001
    %v1485 = vunpack.c.l.b16 %v1002
    %v1486 = vunpack.c.h.b16 %v1002
    %v1487 = vunpack.c.l.b16 %v1003
    %v1488 = vunpack.c.h.b16 %v1003
    %v1489 = vunpack.c.l.b16 %v1004
    %v1490 = vunpack.c.h.b16 %v1004
    %v1491 = vunpack.c.l.b16 %v1005
    %v1492 = vunpack.c.h.b16 %v1005
    %v1493 = vunpack.c.l.b16 %v1006
    %v1494 = vunpack.c.h.b16 %v1006
    %v1495 = vunpack.c.l.b16 %v1007
    %v1496 = vunpack.c.h.b16 %v1007
    %v1497 = vunpack.c.l.b16 %v1008
    %v1498 = vunpack.c.h.b16 %v1008
    %v1499 = vunpack.c.l.b16 %v1009
    %v1500 = vunpack.c.h.b16 %v1009
    %v1501 = vunpack.c.l.b16 %v1010
    %v1502 = vunpack.c.h.b16 %v1010
    %v1503 = vunpack.c.l.b16 %v1011
    %v1504 = vunpack.c.h.b16 %v1011
    %v1505 = vunpack.c.l.b16 %v1012
    %v1506 = vunpack.c.h.b16 %v1012
    %v1507 = vunpack.c.l.b16 %v1013
    %v1508 = vunpack.c.h.b16 %v1013
    %v1509 = vunpack.c.l.b16 %v1014
    %v1510 = vunpack.c.h.b16 %v1014
    %v1511 = vunpack.c.l.b16 %v1015
    %v1512 = vunpack.c.h.b16 %v1015
    %v1513 = vunpack.c.l.b16 %v1016
    %v1514 = vunpack.c.h.b16 %v1016
    %v1515 = vunpack.c.l.b16 %v1017
    %v1516 = vunpack.c.h.b16 %v1017
    %v1517 = vunpack.c.l.b16 %v1018
    %v1518 = vunpack.c.h.b16 %v1018
    %v1519 = vunpack.c.l.b16 %v1019
    %v1520 = vunpack.c.h.b16 %v1019
    %v1521 = vunpack.c.l.b16 %v1020
    %v1522 = vunpack.c.h.b16 %v1020
    %v1523 = vunpack.c.l.b16 %v1021
    %v1524 = vunpack.c.h.b16 %v1021
    %v1525 = vunpack.c.l.b16 %v1022
    %v1526 = vunpack.c.h.b16 %v1022
    %v1527 = vunpack.c.l.b16 %v1023
    %v1528 = vunpack.c.h.b16 %v1023
    %v1529 = vunpack.c.l.b16 %v1024
    %v1530 = vunpack.c.h.b16 %v1024
    %v1531 = vunpack.c.l.b16 %v1025
    %v1532 = vunpack.c.h.b16 %v1025
    %v1533 = vunpack.c.l.b16 %v1026
    %v1534 = vunpack.c.h.b16 %v1026
    %v1535 = vunpack.c.l.b16 %v1027
    %v1536 = vunpack.c.h.b16 %v1027
    %v1537 = vunpack.c.l.b16 %v1028
    %v1538 = vunpack.c.h.b16 %v1028
    %v1539 = vunpack.c.l.b16 %v1029
    %v1540 = vunpack.c.h.b16 %v1029
    %v1541 = vunpack.c.l.b16 %v1030
    %v1542 = vunpack.c.h.b16 %v1030
    %v1543 = vunpack.c.l.b16 %v1031
    %v1544 = vunpack.c.h.b16 %v1031
    %v1545 = vunpack.c.l.b16 %v1032
    %v1546 = vunpack.c.h.b16 %v1032
    %v1547 = vunpack.c.l.b16 %v1033
    %v1548 = vunpack.c.h.b16 %v1033
    %v1549 = vunpack.c.l.b16 %v1034
    %v1550 = vunpack.c.h.b16 %v1034
    %v1551 = vunpack.c.l.b16 %v1035
    %v1552 = vunpack.c.h.b16 %v1035
    %v1553 = vunpack.c.l.b16 %v1036
    %v1554 = vunpack.c.h.b16 %v1036
    %v1555 = vunpack.c.l.b16 %v1037
    %v1556 = vunpack.c.h.b16 %v1037
    %v1557 = vunpack.c.l.b16 %v1038
    %v1558 = vunpack.c.h.b16 %v1038
    %v1559 = vunpack.c.l.b16 %v1039
    %v1560 = vunpack.c.h.b16 %v1039
    %v1561 = vunpack.c.l.b16 %v1040
    %v1562 = vunpack.c.h.b16 %v1040
    %v1563 = vunpack.c.l.b16 %v1041
    %v1564 = vunpack.c.h.b16 %v1041
    %v1565 = vunpack.c.l.b16 %v1042
    %v1566 = vunpack.c.h.b16 %v1042
    %v1567 = vunpack.c.l.b16 %v1043
    %v1568 = vunpack.c.h.b16 %v1043
    %v1569 = vunpack.c.l.b16 %v1044
    %v1570 = vunpack.c.h.b16 %v1044
    %v1571 = vunpack.c.l.b16 %v1045
    %v1572 = vunpack.c.h.b16 %v1045
    %v1573 = vunpack.c.l.b16 %v1046
    %v1574 = vunpack.c.h.b16 %v1046
    %v1575 = vpack.c.b16 %v1385, %v1383
    %v1576 = vpack.c.b16 %v1386, %v1384
    %v1577 = vpack.c.b16 %v1389, %v1387
    %v1578 = vpack.c.b16 %v1390, %v1388
    %v1579 = vpack.c.b16 %v1393, %v1391
    %v1580 = vpack.c.b16 %v1394, %v1392
    %v1581 = vpack.c.b16 %v1397, %v1395
    %v1582 = vpack.c.b16 %v1398, %v1396
    %v1583 = vpack.c.b16 %v1401, %v1399
    %v1584 = vpack.c.b16 %v1402, %v1400
    %v1585 = vpack.c.b16 %v1405, %v1403
    %v1586 = vpack.c.b16 %v1406, %v1404
    %v1587 = vpack.c.b16 %v1409, %v1407
    %v1588 = vpack.c.b16 %v1410, %v1408
    %v1589 = vpack.c.b16 %v1413, %v1411
    %v1590 = vpack.c.b16 %v1414, %v1412
    %v1591 = vpack.c.b16 %v1417, %v1415
    %v1592 = vpack.c.b16 %v1418, %v1416
    %v1593 = vpack.c.b16 %v1421, %v1419
    %v1594 = vpack.c.b16 %v1422, %v1420
    %v1595 = vpack.c.b16 %v1425, %v1423
    %v1596 = vpack.c.b16 %v1426, %v1424
    %v1597 = vpack.c.b16 %v1429, %v1427
    %v1598 = vpack.c.b16 %v1430, %v1428
    %v1599 = vpack.c.b16 %v1433, %v1431
    %v1600 = vpack.c.b16 %v1434, %v1432
    %v1601 = vpack.c.b16 %v1437, %v1435
    %v1602 = vpack.c.b16 %v1438, %v1436
    %v1603 = vpack.c.b16 %v1441, %v1439
    %v1604 = vpack.c.b16 %v1442, %v1440
    %v1605 = vpack.c.b16 %v1445, %v1443
    %v1606 = vpack.c.b16 %v1446, %v1444
    %v1607 = vpack.c.b16 %v1449, %v1447
    %v1608 = vpack.c.b16 %v1450, %v1448
    %v1609 = vpack.c.b16 %v1453, %v1451
    %v1610 = vpack.c.b16 %v1454, %v1452
    %v1611 = vpack.c.b16 %v1457, %v1455
    %v1612 = vpack.c.b16 %v1458, %v1456
    %v1613 = vpack.c.b16 %v1461, %v1459
    %v1614 = vpack.c.b16 %v1462, %v1460
    %v1615 = vpack.c.b16 %v1465, %v1463
    %v1616 = vpack.c.b16 %v1466, %v1464
    %v1617 = vpack.c.b16 %v1469, %v1467
    %v1618 = vpack.c.b16 %v1470, %v1468
    %v1619 = vpack.c.b16 %v1473, %v1471
    %v1620 = vpack.c.b16 %v1474, %v1472
    %v1621 = vpack.c.b16 %v1477, %v1475
    %v1622 = vpack.c.b16 %v1478, %v1476
    %v1623 = vpack.c.b16 %v1481, %v1479
    %v1624 = vpack.c.b16 %v1482, %v1480
    %v1625 = vpack.c.b16 %v1485, %v1483
    %v1626 = vpack.c.b16 %v1486, %v1484
    %v1627 = vpack.c.b16 %v1489, %v1487
    %v1628 = vpack.c.b16 %v1490, %v1488
    %v1629 = vpack.c.b16 %v1493, %v1491
    %v1630 = vpack.c.b16 %v1494, %v1492
    %v1631 = vpack.c.b16 %v1497, %v1495
    %v1632 = vpack.c.b16 %v1498, %v1496
    %v1633 = vpack.c.b16 %v1501, %v1499
    %v1634 = vpack.c.b16 %v1502, %v1500
    %v1635 = vpack.c.b16 %v1505, %v1503
    %v1636 = vpack.c.b16 %v1506, %v1504
    %v1637 = vpack.c.b16 %v1509, %v1507
    %v1638 = vpack.c.b16 %v1510, %v1508
    %v1639 = vpack.c.b16 %v1513, %v1511
    %v1640 = vpack.c.b16 %v1514, %v1512
    %v1641 = vpack.c.b16 %v1517, %v1515
    %v1642 = vpack.c.b16 %v1518, %v1516
    %v1643 = vpack.c.b16 %v1521, %v1519
    %v1644 = vpack.c.b16 %v1522, %v1520
    %v1645 = vpack.c.b16 %v1525, %v1523
    %v1646 = vpack.c.b16 %v1526, %v1524
    %v1647 = vpack.c.b16 %v1529, %v1527
    %v1648 = vpack.c.b16 %v1530, %v1528
    %v1649 = vpack.c.b16 %v1533, %v1531
    %v1650 = vpack.c.b16 %v1534, %v1532
    %v1651 = vpack.c.b16 %v1537, %v1535
    %v1652 = vpack.c.b16 %v1538, %v1536
    %v1653 = vpack.c.b16 %v1541, %v1539
    %v1654 = vpack.c.b16 %v1542, %v1540
    %v1655 = vpack.c.b16 %v1545, %v1543
    %v1656 = vpack.c.b16 %v1546, %v1544
    %v1657 = vpack.c.b16 %v1549, %v1547
    %v1658 = vpack.c.b16 %v1550, %v1548
    %v1659 = vpack.c.b16 %v1553, %v1551
    %v1660 = vpack.c.b16 %v1554, %v1552
    %v1661 = vpack.c.b16 %v1557, %v1555
    %v1662 = vpack.c.b16 %v1558, %v1556
    %v1663 = vpack.c.b16 %v1561, %v1559
    %v1664 = vpack.c.b16 %v1562, %v1560
    %v1665 = vpack.c.b16 %v1565, %v1563
    %v1666 = vpack.c.b16 %v1566, %v1564
    %v1667 = vpack.c.b16 %v1569, %v1567
    %v1668 = vpack.c.b16 %v1570, %v1568
    %v1669 = vpack.c.b16 %v1573, %v1571
    %v1670 = vpack.c.b16 %v1574, %v1572
    %1767 = vmatprep.subr.bf16.mxu0 %v1590
    %1768 = vmatpush1.bf16.msra.mxu0 %v1589
    %1769 = vmatprep.subr.bf16.mxu0 %v1588
    %1770 = vmatpush1.bf16.msra.mxu0 %v1587
    %1771 = vmatprep.subr.bf16.mxu0 %v1586
    %1772 = vmatpush1.bf16.msra.mxu0 %v1585
    %1773 = vmatprep.subr.bf16.mxu0 %v1584
    %1774 = vmatpush1.bf16.msra.mxu0 %v1583
    %1775 = vmatprep.subr.bf16.mxu0 %v1582
    %1776 = vmatpush1.bf16.msra.mxu0 %v1581
    %1777 = vmatprep.subr.bf16.mxu0 %v1580
    %1778 = vmatpush1.bf16.msra.mxu0 %v1579
    %1779 = vmatprep.subr.bf16.mxu0 %v1578
    %1780 = vmatpush1.bf16.msra.mxu0 %v1577
    %1781 = vmatprep.subr.bf16.mxu0 %v1576
    %1782 = vmatpush1.bf16.msra.mxu0 %v1575
    %1783 = vmatprep.subr.bf16.mxu0 %v1606
    %1784 = vmatpush2.bf16.msra.mxu0 %v1605
    %1785 = vmatprep.subr.bf16.mxu0 %v1604
    %1786 = vmatpush2.bf16.msra.mxu0 %v1603
    %1787 = vmatprep.subr.bf16.mxu0 %v1602
    %1788 = vmatpush2.bf16.msra.mxu0 %v1601
    %1789 = vmatprep.subr.bf16.mxu0 %v1600
    %1790 = vmatpush2.bf16.msra.mxu0 %v1599
    %1791 = vmatprep.subr.bf16.mxu0 %v1598
    %1792 = vmatpush2.bf16.msra.mxu0 %v1597
    %1793 = vmatprep.subr.bf16.mxu0 %v1596
    %1794 = vmatpush2.bf16.msra.mxu0 %v1595
    %1795 = vmatprep.subr.bf16.mxu0 %v1594
    %1796 = vmatpush2.bf16.msra.mxu0 %v1593
    %1797 = vmatprep.subr.bf16.mxu0 %v1592
    %1798 = vmatpush2.bf16.msra.mxu0 %v1591
    %1799 = vmatprep.mubr.bf16.mxu0 %v1192
    %1800 = vmatmul.mubr.bf16.gmra.mxu0 %v1191
    %v1801 = vpop.f32.mrf.mxu0
    %v1802 = vadd.f32 0.0, %v1801
    %v1803 = vpop.f32.mrf.mxu0
    %v1804 = vadd.f32 0.0, %v1803
    %v1805 = vpop.f32.mrf.mxu0
    %v1806 = vadd.f32 0.0, %v1805
    %v1807 = vpop.f32.mrf.mxu0
    %v1808 = vadd.f32 0.0, %v1807
    %1809 = vmatprep.mubr.bf16.mxu0 %v1198
    %1810 = vmatmul.mubr.bf16.gmra.mxu0 %v1197
    %v1811 = vpop.f32.mrf.mxu0
    %v1812 = vadd.f32 0.0, %v1811
    %v1813 = vpop.f32.mrf.mxu0
    %v1814 = vadd.f32 0.0, %v1813
    %v1815 = vpop.f32.mrf.mxu0
    %v1816 = vadd.f32 0.0, %v1815
    %v1817 = vpop.f32.mrf.mxu0
    %v1818 = vadd.f32 0.0, %v1817
    %1819 = vmatprep.mubr.bf16.mxu0 %v1204
    %1820 = vmatmul.mubr.bf16.gmra.mxu0 %v1203
    %v1821 = vpop.f32.mrf.mxu0
    %v1822 = vadd.f32 0.0, %v1821
    %v1823 = vpop.f32.mrf.mxu0
    %v1824 = vadd.f32 0.0, %v1823
    %v1825 = vpop.f32.mrf.mxu0
    %v1826 = vadd.f32 0.0, %v1825
    %v1827 = vpop.f32.mrf.mxu0
    %v1828 = vadd.f32 0.0, %v1827
    %1829 = vmatprep.mubr.bf16.mxu0 %v1210
    %1830 = vmatmul.mubr.bf16.gmra.mxu0 %v1209
    %v1831 = vpop.f32.mrf.mxu0
    %v1832 = vadd.f32 0.0, %v1831
    %v1833 = vpop.f32.mrf.mxu0
    %v1834 = vadd.f32 0.0, %v1833
    %v1835 = vpop.f32.mrf.mxu0
    %v1836 = vadd.f32 0.0, %v1835
    %v1837 = vpop.f32.mrf.mxu0
    %v1838 = vadd.f32 0.0, %v1837
    %1839 = vmatprep.mubr.bf16.mxu0 %v1216
    %1840 = vmatmul.mubr.bf16.gmra.mxu0 %v1215
    %v1841 = vpop.f32.mrf.mxu0
    %v1842 = vadd.f32 0.0, %v1841
    %v1843 = vpop.f32.mrf.mxu0
    %v1844 = vadd.f32 0.0, %v1843
    %v1845 = vpop.f32.mrf.mxu0
    %v1846 = vadd.f32 0.0, %v1845
    %v1847 = vpop.f32.mrf.mxu0
    %v1848 = vadd.f32 0.0, %v1847
    %1849 = vmatprep.mubr.bf16.mxu0 %v1222
    %1850 = vmatmul.mubr.bf16.gmra.mxu0 %v1221
    %v1851 = vpop.f32.mrf.mxu0
    %v1852 = vadd.f32 0.0, %v1851
    %v1853 = vpop.f32.mrf.mxu0
    %v1854 = vadd.f32 0.0, %v1853
    %v1855 = vpop.f32.mrf.mxu0
    %v1856 = vadd.f32 0.0, %v1855
    %v1857 = vpop.f32.mrf.mxu0
    %v1858 = vadd.f32 0.0, %v1857
    %1859 = vmatprep.mubr.bf16.mxu0 %v1228
    %1860 = vmatmul.mubr.bf16.gmra.mxu0 %v1227
    %v1861 = vpop.f32.mrf.mxu0
    %v1862 = vadd.f32 0.0, %v1861
    %v1863 = vpop.f32.mrf.mxu0
    %v1864 = vadd.f32 0.0, %v1863
    %v1865 = vpop.f32.mrf.mxu0
    %v1866 = vadd.f32 0.0, %v1865
    %v1867 = vpop.f32.mrf.mxu0
    %v1868 = vadd.f32 0.0, %v1867
    %1869 = vmatprep.mubr.bf16.mxu0 %v1234
    %1870 = vmatmul.mubr.bf16.gmra.mxu0 %v1233
    %v1871 = vpop.f32.mrf.mxu0
    %v1872 = vadd.f32 0.0, %v1871
    %v1873 = vpop.f32.mrf.mxu0
    %v1874 = vadd.f32 0.0, %v1873
    %v1875 = vpop.f32.mrf.mxu0
    %v1876 = vadd.f32 0.0, %v1875
    %v1877 = vpop.f32.mrf.mxu0
    %v1878 = vadd.f32 0.0, %v1877
    %1879 = vdwg.mxu0
    %1880 = vmatprep.subr.bf16.mxu0 %v1622
    %1881 = vmatpush1.bf16.msra.mxu0 %v1621
    %1882 = vmatprep.subr.bf16.mxu0 %v1620
    %1883 = vmatpush1.bf16.msra.mxu0 %v1619
    %1884 = vmatprep.subr.bf16.mxu0 %v1618
    %1885 = vmatpush1.bf16.msra.mxu0 %v1617
    %1886 = vmatprep.subr.bf16.mxu0 %v1616
    %1887 = vmatpush1.bf16.msra.mxu0 %v1615
    %1888 = vmatprep.subr.bf16.mxu0 %v1614
    %1889 = vmatpush1.bf16.msra.mxu0 %v1613
    %1890 = vmatprep.subr.bf16.mxu0 %v1612
    %1891 = vmatpush1.bf16.msra.mxu0 %v1611
    %1892 = vmatprep.subr.bf16.mxu0 %v1610
    %1893 = vmatpush1.bf16.msra.mxu0 %v1609
    %1894 = vmatprep.subr.bf16.mxu0 %v1608
    %1895 = vmatpush1.bf16.msra.mxu0 %v1607
    %1896 = vmatprep.subr.bf16.mxu0 %v1638
    %1897 = vmatpush2.bf16.msra.mxu0 %v1637
    %1898 = vmatprep.subr.bf16.mxu0 %v1636
    %1899 = vmatpush2.bf16.msra.mxu0 %v1635
    %1900 = vmatprep.subr.bf16.mxu0 %v1634
    %1901 = vmatpush2.bf16.msra.mxu0 %v1633
    %1902 = vmatprep.subr.bf16.mxu0 %v1632
    %1903 = vmatpush2.bf16.msra.mxu0 %v1631
    %1904 = vmatprep.subr.bf16.mxu0 %v1630
    %1905 = vmatpush2.bf16.msra.mxu0 %v1629
    %1906 = vmatprep.subr.bf16.mxu0 %v1628
    %1907 = vmatpush2.bf16.msra.mxu0 %v1627
    %1908 = vmatprep.subr.bf16.mxu0 %v1626
    %1909 = vmatpush2.bf16.msra.mxu0 %v1625
    %1910 = vmatprep.subr.bf16.mxu0 %v1624
    %1911 = vmatpush2.bf16.msra.mxu0 %v1623
    %1912 = vmatprep.mubr.bf16.mxu0 %v1194
    %1913 = vmatmul.mubr.bf16.gmra.mxu0 %v1193
    %v1914 = vpop.f32.mrf.mxu0
    %v1915 = vadd.f32 %v1802, %v1914
    %v1916 = vpop.f32.mrf.mxu0
    %v1917 = vadd.f32 %v1804, %v1916
    %v1918 = vpop.f32.mrf.mxu0
    %v1919 = vadd.f32 %v1806, %v1918
    %v1920 = vpop.f32.mrf.mxu0
    %v1921 = vadd.f32 %v1808, %v1920
    %1922 = vmatprep.mubr.bf16.mxu0 %v1200
    %1923 = vmatmul.mubr.bf16.gmra.mxu0 %v1199
    %v1924 = vpop.f32.mrf.mxu0
    %v1925 = vadd.f32 %v1812, %v1924
    %v1926 = vpop.f32.mrf.mxu0
    %v1927 = vadd.f32 %v1814, %v1926
    %v1928 = vpop.f32.mrf.mxu0
    %v1929 = vadd.f32 %v1816, %v1928
    %v1930 = vpop.f32.mrf.mxu0
    %v1931 = vadd.f32 %v1818, %v1930
    %1932 = vmatprep.mubr.bf16.mxu0 %v1206
    %1933 = vmatmul.mubr.bf16.gmra.mxu0 %v1205
    %v1934 = vpop.f32.mrf.mxu0
    %v1935 = vadd.f32 %v1822, %v1934
    %v1936 = vpop.f32.mrf.mxu0
    %v1937 = vadd.f32 %v1824, %v1936
    %v1938 = vpop.f32.mrf.mxu0
    %v1939 = vadd.f32 %v1826, %v1938
    %v1940 = vpop.f32.mrf.mxu0
    %v1941 = vadd.f32 %v1828, %v1940
    %1942 = vmatprep.mubr.bf16.mxu0 %v1212
    %1943 = vmatmul.mubr.bf16.gmra.mxu0 %v1211
    %v1944 = vpop.f32.mrf.mxu0
    %v1945 = vadd.f32 %v1832, %v1944
    %v1946 = vpop.f32.mrf.mxu0
    %v1947 = vadd.f32 %v1834, %v1946
    %v1948 = vpop.f32.mrf.mxu0
    %v1949 = vadd.f32 %v1836, %v1948
    %v1950 = vpop.f32.mrf.mxu0
    %v1951 = vadd.f32 %v1838, %v1950
    %1952 = vmatprep.mubr.bf16.mxu0 %v1218
    %1953 = vmatmul.mubr.bf16.gmra.mxu0 %v1217
    %v1954 = vpop.f32.mrf.mxu0
    %v1955 = vadd.f32 %v1842, %v1954
    %v1956 = vpop.f32.mrf.mxu0
    %v1957 = vadd.f32 %v1844, %v1956
    %v1958 = vpop.f32.mrf.mxu0
    %v1959 = vadd.f32 %v1846, %v1958
    %v1960 = vpop.f32.mrf.mxu0
    %v1961 = vadd.f32 %v1848, %v1960
    %1962 = vmatprep.mubr.bf16.mxu0 %v1224
    %1963 = vmatmul.mubr.bf16.gmra.mxu0 %v1223
    %v1964 = vpop.f32.mrf.mxu0
    %v1965 = vadd.f32 %v1852, %v1964
    %v1966 = vpop.f32.mrf.mxu0
    %v1967 = vadd.f32 %v1854, %v1966
    %v1968 = vpop.f32.mrf.mxu0
    %v1969 = vadd.f32 %v1856, %v1968
    %v1970 = vpop.f32.mrf.mxu0
    %v1971 = vadd.f32 %v1858, %v1970
    %1972 = vmatprep.mubr.bf16.mxu0 %v1230
    %1973 = vmatmul.mubr.bf16.gmra.mxu0 %v1229
    %v1974 = vpop.f32.mrf.mxu0
    %v1975 = vadd.f32 %v1862, %v1974
    %v1976 = vpop.f32.mrf.mxu0
    %v1977 = vadd.f32 %v1864, %v1976
    %v1978 = vpop.f32.mrf.mxu0
    %v1979 = vadd.f32 %v1866, %v1978
    %v1980 = vpop.f32.mrf.mxu0
    %v1981 = vadd.f32 %v1868, %v1980
    %1982 = vmatprep.mubr.bf16.mxu0 %v1236
    %1983 = vmatmul.mubr.bf16.gmra.mxu0 %v1235
    %v1984 = vpop.f32.mrf.mxu0
    %v1985 = vadd.f32 %v1872, %v1984
    %v1986 = vpop.f32.mrf.mxu0
    %v1987 = vadd.f32 %v1874, %v1986
    %v1988 = vpop.f32.mrf.mxu0
    %v1989 = vadd.f32 %v1876, %v1988
    %v1990 = vpop.f32.mrf.mxu0
    %v1991 = vadd.f32 %v1878, %v1990
    %1992 = vdwg.mxu0
    %1993 = vmatprep.subr.bf16.mxu0 %v1654
    %1994 = vmatpush1.bf16.msra.mxu0 %v1653
    %1995 = vmatprep.subr.bf16.mxu0 %v1652
    %1996 = vmatpush1.bf16.msra.mxu0 %v1651
    %1997 = vmatprep.subr.bf16.mxu0 %v1650
    %1998 = vmatpush1.bf16.msra.mxu0 %v1649
    %1999 = vmatprep.subr.bf16.mxu0 %v1648
    %2000 = vmatpush1.bf16.msra.mxu0 %v1647
    %2001 = vmatprep.subr.bf16.mxu0 %v1646
    %2002 = vmatpush1.bf16.msra.mxu0 %v1645
    %2003 = vmatprep.subr.bf16.mxu0 %v1644
    %2004 = vmatpush1.bf16.msra.mxu0 %v1643
    %2005 = vmatprep.subr.bf16.mxu0 %v1642
    %2006 = vmatpush1.bf16.msra.mxu0 %v1641
    %2007 = vmatprep.subr.bf16.mxu0 %v1640
    %2008 = vmatpush1.bf16.msra.mxu0 %v1639
    %2009 = vmatprep.subr.bf16.mxu0 %v1670
    %2010 = vmatpush2.bf16.msra.mxu0 %v1669
    %2011 = vmatprep.subr.bf16.mxu0 %v1668
    %2012 = vmatpush2.bf16.msra.mxu0 %v1667
    %2013 = vmatprep.subr.bf16.mxu0 %v1666
    %2014 = vmatpush2.bf16.msra.mxu0 %v1665
    %2015 = vmatprep.subr.bf16.mxu0 %v1664
    %2016 = vmatpush2.bf16.msra.mxu0 %v1663
    %2017 = vmatprep.subr.bf16.mxu0 %v1662
    %2018 = vmatpush2.bf16.msra.mxu0 %v1661
    %2019 = vmatprep.subr.bf16.mxu0 %v1660
    %2020 = vmatpush2.bf16.msra.mxu0 %v1659
    %2021 = vmatprep.subr.bf16.mxu0 %v1658
    %2022 = vmatpush2.bf16.msra.mxu0 %v1657
    %2023 = vmatprep.subr.bf16.mxu0 %v1656
    %2024 = vmatpush2.bf16.msra.mxu0 %v1655
    %2025 = vmatprep.mubr.bf16.mxu0 %v1196
    %2026 = vmatmul.mubr.bf16.gmra.mxu0 %v1195
    %v2027 = vpop.f32.mrf.mxu0
    %v2028 = vadd.f32 %v1915, %v2027
    %v2029 = vpop.f32.mrf.mxu0
    %v2030 = vadd.f32 %v1917, %v2029
    %v2031 = vpop.f32.mrf.mxu0
    %v2032 = vadd.f32 %v1919, %v2031
    %v2033 = vpop.f32.mrf.mxu0
    %v2034 = vadd.f32 %v1921, %v2033
    %2035 = vmatprep.mubr.bf16.mxu0 %v1202
    %2036 = vmatmul.mubr.bf16.gmra.mxu0 %v1201
    %v2037 = vpop.f32.mrf.mxu0
    %v2038 = vadd.f32 %v1925, %v2037
    %v2039 = vpop.f32.mrf.mxu0
    %v2040 = vadd.f32 %v1927, %v2039
    %v2041 = vpop.f32.mrf.mxu0
    %v2042 = vadd.f32 %v1929, %v2041
    %v2043 = vpop.f32.mrf.mxu0
    %v2044 = vadd.f32 %v1931, %v2043
    %2045 = vmatprep.mubr.bf16.mxu0 %v1208
    %2046 = vmatmul.mubr.bf16.gmra.mxu0 %v1207
    %v2047 = vpop.f32.mrf.mxu0
    %v2048 = vadd.f32 %v1935, %v2047
    %v2049 = vpop.f32.mrf.mxu0
    %v2050 = vadd.f32 %v1937, %v2049
    %v2051 = vpop.f32.mrf.mxu0
    %v2052 = vadd.f32 %v1939, %v2051
    %v2053 = vpop.f32.mrf.mxu0
    %v2054 = vadd.f32 %v1941, %v2053
    %2055 = vmatprep.mubr.bf16.mxu0 %v1214
    %2056 = vmatmul.mubr.bf16.gmra.mxu0 %v1213
    %v2057 = vpop.f32.mrf.mxu0
    %v2058 = vadd.f32 %v1945, %v2057
    %v2059 = vpop.f32.mrf.mxu0
    %v2060 = vadd.f32 %v1947, %v2059
    %v2061 = vpop.f32.mrf.mxu0
    %v2062 = vadd.f32 %v1949, %v2061
    %v2063 = vpop.f32.mrf.mxu0
    %v2064 = vadd.f32 %v1951, %v2063
    %2065 = vmatprep.mubr.bf16.mxu0 %v1220
    %2066 = vmatmul.mubr.bf16.gmra.mxu0 %v1219
    %v2067 = vpop.f32.mrf.mxu0
    %v2068 = vadd.f32 %v1955, %v2067
    %v2069 = vpop.f32.mrf.mxu0
    %v2070 = vadd.f32 %v1957, %v2069
    %v2071 = vpop.f32.mrf.mxu0
    %v2072 = vadd.f32 %v1959, %v2071
    %v2073 = vpop.f32.mrf.mxu0
    %v2074 = vadd.f32 %v1961, %v2073
    %2075 = vmatprep.mubr.bf16.mxu0 %v1226
    %2076 = vmatmul.mubr.bf16.gmra.mxu0 %v1225
    %v2077 = vpop.f32.mrf.mxu0
    %v2078 = vadd.f32 %v1965, %v2077
    %v2079 = vpop.f32.mrf.mxu0
    %v2080 = vadd.f32 %v1967, %v2079
    %v2081 = vpop.f32.mrf.mxu0
    %v2082 = vadd.f32 %v1969, %v2081
    %v2083 = vpop.f32.mrf.mxu0
    %v2084 = vadd.f32 %v1971, %v2083
    %2085 = vmatprep.mubr.bf16.mxu0 %v1232
    %2086 = vmatmul.mubr.bf16.gmra.mxu0 %v1231
    %v2087 = vpop.f32.mrf.mxu0
    %v2088 = vadd.f32 %v1975, %v2087
    %v2089 = vpop.f32.mrf.mxu0
    %v2090 = vadd.f32 %v1977, %v2089
    %v2091 = vpop.f32.mrf.mxu0
    %v2092 = vadd.f32 %v1979, %v2091
    %v2093 = vpop.f32.mrf.mxu0
    %v2094 = vadd.f32 %v1981, %v2093
    %2095 = vmatprep.mubr.bf16.mxu0 %v1238
    %2096 = vmatmul.mubr.bf16.gmra.mxu0 %v1237
    %v2097 = vpop.f32.mrf.mxu0
    %v2098 = vadd.f32 %v1985, %v2097
    %v2099 = vpop.f32.mrf.mxu0
    %v2100 = vadd.f32 %v1987, %v2099
    %v2101 = vpop.f32.mrf.mxu0
    %v2102 = vadd.f32 %v1989, %v2101
    %v2103 = vpop.f32.mrf.mxu0
    %v2104 = vadd.f32 %v1991, %v2103
    %2105 = vdwg.mxu0
    %v2112 = vunpack.c.l.b16 %v800
    %v2113 = vunpack.c.h.b16 %v800
    %v2114 = vunpack.c.l.b16 %v801
    %v2115 = vunpack.c.h.b16 %v801
    %v2116 = vunpack.c.l.b16 %v802
    %v2117 = vunpack.c.h.b16 %v802
    %v2118 = vunpack.c.l.b16 %v803
    %v2119 = vunpack.c.h.b16 %v803
    %v2120 = vunpack.c.l.b16 %v804
    %v2121 = vunpack.c.h.b16 %v804
    %v2122 = vunpack.c.l.b16 %v805
    %v2123 = vunpack.c.h.b16 %v805
    %v2124 = vpack.c.b16 %v2118, %v2112
    %v2125 = vpack.c.b16 %v2119, %v2113
    %v2126 = vpack.c.b16 %v2120, %v2114
    %v2127 = vpack.c.b16 %v2121, %v2115
    %v2128 = vpack.c.b16 %v2122, %v2116
    %v2129 = vpack.c.b16 %v2123, %v2117
    %v2232 = vunpack.c.l.b16 %v848
    %v2233 = vunpack.c.h.b16 %v848
    %v2234 = vunpack.c.l.b16 %v849
    %v2235 = vunpack.c.h.b16 %v849
    %v2236 = vunpack.c.l.b16 %v850
    %v2237 = vunpack.c.h.b16 %v850
    %v2238 = vunpack.c.l.b16 %v851
    %v2239 = vunpack.c.h.b16 %v851
    %v2240 = vunpack.c.l.b16 %v852
    %v2241 = vunpack.c.h.b16 %v852
    %v2242 = vunpack.c.l.b16 %v853
    %v2243 = vunpack.c.h.b16 %v853
    %v2244 = vunpack.c.l.b16 %v854
    %v2245 = vunpack.c.h.b16 %v854
    %v2246 = vunpack.c.l.b16 %v855
    %v2247 = vunpack.c.h.b16 %v855
    %v2248 = vunpack.c.l.b16 %v856
    %v2249 = vunpack.c.h.b16 %v856
    %v2250 = vunpack.c.l.b16 %v857
    %v2251 = vunpack.c.h.b16 %v857
    %v2252 = vunpack.c.l.b16 %v858
    %v2253 = vunpack.c.h.b16 %v858
    %v2254 = vunpack.c.l.b16 %v859
    %v2255 = vunpack.c.h.b16 %v859
    %v2256 = vunpack.c.l.b16 %v860
    %v2257 = vunpack.c.h.b16 %v860
    %v2258 = vunpack.c.l.b16 %v861
    %v2259 = vunpack.c.h.b16 %v861
    %v2260 = vunpack.c.l.b16 %v862
    %v2261 = vunpack.c.h.b16 %v862
    %v2262 = vunpack.c.l.b16 %v863
    %v2263 = vunpack.c.h.b16 %v863
    %v2264 = vunpack.c.l.b16 %v864
    %v2265 = vunpack.c.h.b16 %v864
    %v2266 = vunpack.c.l.b16 %v865
    %v2267 = vunpack.c.h.b16 %v865
    %v2268 = vunpack.c.l.b16 %v866
    %v2269 = vunpack.c.h.b16 %v866
    %v2270 = vunpack.c.l.b16 %v867
    %v2271 = vunpack.c.h.b16 %v867
    %v2272 = vunpack.c.l.b16 %v868
    %v2273 = vunpack.c.h.b16 %v868
    %v2274 = vunpack.c.l.b16 %v869
    %v2275 = vunpack.c.h.b16 %v869
    %v2276 = vunpack.c.l.b16 %v870
    %v2277 = vunpack.c.h.b16 %v870
    %v2278 = vunpack.c.l.b16 %v871
    %v2279 = vunpack.c.h.b16 %v871
    %v2280 = vunpack.c.l.b16 %v872
    %v2281 = vunpack.c.h.b16 %v872
    %v2282 = vunpack.c.l.b16 %v873
    %v2283 = vunpack.c.h.b16 %v873
    %v2284 = vunpack.c.l.b16 %v874
    %v2285 = vunpack.c.h.b16 %v874
    %v2286 = vunpack.c.l.b16 %v875
    %v2287 = vunpack.c.h.b16 %v875
    %v2288 = vunpack.c.l.b16 %v876
    %v2289 = vunpack.c.h.b16 %v876
    %v2290 = vunpack.c.l.b16 %v877
    %v2291 = vunpack.c.h.b16 %v877
    %v2292 = vunpack.c.l.b16 %v878
    %v2293 = vunpack.c.h.b16 %v878
    %v2294 = vunpack.c.l.b16 %v879
    %v2295 = vunpack.c.h.b16 %v879
    %v2296 = vunpack.c.l.b16 %v880
    %v2297 = vunpack.c.h.b16 %v880
    %v2298 = vunpack.c.l.b16 %v881
    %v2299 = vunpack.c.h.b16 %v881
    %v2300 = vunpack.c.l.b16 %v882
    %v2301 = vunpack.c.h.b16 %v882
    %v2302 = vunpack.c.l.b16 %v883
    %v2303 = vunpack.c.h.b16 %v883
    %v2304 = vunpack.c.l.b16 %v884
    %v2305 = vunpack.c.h.b16 %v884
    %v2306 = vunpack.c.l.b16 %v885
    %v2307 = vunpack.c.h.b16 %v885
    %v2308 = vunpack.c.l.b16 %v886
    %v2309 = vunpack.c.h.b16 %v886
    %v2310 = vunpack.c.l.b16 %v887
    %v2311 = vunpack.c.h.b16 %v887
    %v2312 = vunpack.c.l.b16 %v888
    %v2313 = vunpack.c.h.b16 %v888
    %v2314 = vunpack.c.l.b16 %v889
    %v2315 = vunpack.c.h.b16 %v889
    %v2316 = vunpack.c.l.b16 %v890
    %v2317 = vunpack.c.h.b16 %v890
    %v2318 = vunpack.c.l.b16 %v891
    %v2319 = vunpack.c.h.b16 %v891
    %v2320 = vunpack.c.l.b16 %v892
    %v2321 = vunpack.c.h.b16 %v892
    %v2322 = vunpack.c.l.b16 %v893
    %v2323 = vunpack.c.h.b16 %v893
    %v2324 = vunpack.c.l.b16 %v894
    %v2325 = vunpack.c.h.b16 %v894
    %v2326 = vunpack.c.l.b16 %v895
    %v2327 = vunpack.c.h.b16 %v895
    %v2328 = vunpack.c.l.b16 %v896
    %v2329 = vunpack.c.h.b16 %v896
    %v2330 = vunpack.c.l.b16 %v897
    %v2331 = vunpack.c.h.b16 %v897
    %v2332 = vunpack.c.l.b16 %v898
    %v2333 = vunpack.c.h.b16 %v898
    %v2334 = vunpack.c.l.b16 %v899
    %v2335 = vunpack.c.h.b16 %v899
    %v2336 = vunpack.c.l.b16 %v900
    %v2337 = vunpack.c.h.b16 %v900
    %v2338 = vunpack.c.l.b16 %v901
    %v2339 = vunpack.c.h.b16 %v901
    %v2340 = vunpack.c.l.b16 %v902
    %v2341 = vunpack.c.h.b16 %v902
    %v2342 = vunpack.c.l.b16 %v903
    %v2343 = vunpack.c.h.b16 %v903
    %v2344 = vunpack.c.l.b16 %v904
    %v2345 = vunpack.c.h.b16 %v904
    %v2346 = vunpack.c.l.b16 %v905
    %v2347 = vunpack.c.h.b16 %v905
    %v2348 = vunpack.c.l.b16 %v906
    %v2349 = vunpack.c.h.b16 %v906
    %v2350 = vunpack.c.l.b16 %v907
    %v2351 = vunpack.c.h.b16 %v907
    %v2352 = vunpack.c.l.b16 %v908
    %v2353 = vunpack.c.h.b16 %v908
    %v2354 = vunpack.c.l.b16 %v909
    %v2355 = vunpack.c.h.b16 %v909
    %v2356 = vunpack.c.l.b16 %v910
    %v2357 = vunpack.c.h.b16 %v910
    %v2358 = vunpack.c.l.b16 %v911
    %v2359 = vunpack.c.h.b16 %v911
    %v2360 = vunpack.c.l.b16 %v912
    %v2361 = vunpack.c.h.b16 %v912
    %v2362 = vunpack.c.l.b16 %v913
    %v2363 = vunpack.c.h.b16 %v913
    %v2364 = vunpack.c.l.b16 %v914
    %v2365 = vunpack.c.h.b16 %v914
    %v2366 = vunpack.c.l.b16 %v915
    %v2367 = vunpack.c.h.b16 %v915
    %v2368 = vunpack.c.l.b16 %v916
    %v2369 = vunpack.c.h.b16 %v916
    %v2370 = vunpack.c.l.b16 %v917
    %v2371 = vunpack.c.h.b16 %v917
    %v2372 = vunpack.c.l.b16 %v918
    %v2373 = vunpack.c.h.b16 %v918
    %v2374 = vunpack.c.l.b16 %v919
    %v2375 = vunpack.c.h.b16 %v919
    %v2376 = vunpack.c.l.b16 %v920
    %v2377 = vunpack.c.h.b16 %v920
    %v2378 = vunpack.c.l.b16 %v921
    %v2379 = vunpack.c.h.b16 %v921
    %v2380 = vunpack.c.l.b16 %v922
    %v2381 = vunpack.c.h.b16 %v922
    %v2382 = vunpack.c.l.b16 %v923
    %v2383 = vunpack.c.h.b16 %v923
    %v2384 = vunpack.c.l.b16 %v924
    %v2385 = vunpack.c.h.b16 %v924
    %v2386 = vunpack.c.l.b16 %v925
    %v2387 = vunpack.c.h.b16 %v925
    %v2388 = vunpack.c.l.b16 %v926
    %v2389 = vunpack.c.h.b16 %v926
    %v2390 = vunpack.c.l.b16 %v927
    %v2391 = vunpack.c.h.b16 %v927
    %v2392 = vunpack.c.l.b16 %v928
    %v2393 = vunpack.c.h.b16 %v928
    %v2394 = vunpack.c.l.b16 %v929
    %v2395 = vunpack.c.h.b16 %v929
    %v2396 = vunpack.c.l.b16 %v930
    %v2397 = vunpack.c.h.b16 %v930
    %v2398 = vunpack.c.l.b16 %v931
    %v2399 = vunpack.c.h.b16 %v931
    %v2400 = vunpack.c.l.b16 %v932
    %v2401 = vunpack.c.h.b16 %v932
    %v2402 = vunpack.c.l.b16 %v933
    %v2403 = vunpack.c.h.b16 %v933
    %v2404 = vunpack.c.l.b16 %v934
    %v2405 = vunpack.c.h.b16 %v934
    %v2406 = vunpack.c.l.b16 %v935
    %v2407 = vunpack.c.h.b16 %v935
    %v2408 = vunpack.c.l.b16 %v936
    %v2409 = vunpack.c.h.b16 %v936
    %v2410 = vunpack.c.l.b16 %v937
    %v2411 = vunpack.c.h.b16 %v937
    %v2412 = vunpack.c.l.b16 %v938
    %v2413 = vunpack.c.h.b16 %v938
    %v2414 = vunpack.c.l.b16 %v939
    %v2415 = vunpack.c.h.b16 %v939
    %v2416 = vunpack.c.l.b16 %v940
    %v2417 = vunpack.c.h.b16 %v940
    %v2418 = vunpack.c.l.b16 %v941
    %v2419 = vunpack.c.h.b16 %v941
    %v2420 = vunpack.c.l.b16 %v942
    %v2421 = vunpack.c.h.b16 %v942
    %v2422 = vunpack.c.l.b16 %v943
    %v2423 = vunpack.c.h.b16 %v943
    %v2424 = vpack.c.b16 %v2234, %v2232
    %v2425 = vpack.c.b16 %v2235, %v2233
    %v2426 = vpack.c.b16 %v2238, %v2236
    %v2427 = vpack.c.b16 %v2239, %v2237
    %v2428 = vpack.c.b16 %v2242, %v2240
    %v2429 = vpack.c.b16 %v2243, %v2241
    %v2430 = vpack.c.b16 %v2246, %v2244
    %v2431 = vpack.c.b16 %v2247, %v2245
    %v2432 = vpack.c.b16 %v2250, %v2248
    %v2433 = vpack.c.b16 %v2251, %v2249
    %v2434 = vpack.c.b16 %v2254, %v2252
    %v2435 = vpack.c.b16 %v2255, %v2253
    %v2436 = vpack.c.b16 %v2258, %v2256
    %v2437 = vpack.c.b16 %v2259, %v2257
    %v2438 = vpack.c.b16 %v2262, %v2260
    %v2439 = vpack.c.b16 %v2263, %v2261
    %v2440 = vpack.c.b16 %v2266, %v2264
    %v2441 = vpack.c.b16 %v2267, %v2265
    %v2442 = vpack.c.b16 %v2270, %v2268
    %v2443 = vpack.c.b16 %v2271, %v2269
    %v2444 = vpack.c.b16 %v2274, %v2272
    %v2445 = vpack.c.b16 %v2275, %v2273
    %v2446 = vpack.c.b16 %v2278, %v2276
    %v2447 = vpack.c.b16 %v2279, %v2277
    %v2448 = vpack.c.b16 %v2282, %v2280
    %v2449 = vpack.c.b16 %v2283, %v2281
    %v2450 = vpack.c.b16 %v2286, %v2284
    %v2451 = vpack.c.b16 %v2287, %v2285
    %v2452 = vpack.c.b16 %v2290, %v2288
    %v2453 = vpack.c.b16 %v2291, %v2289
    %v2454 = vpack.c.b16 %v2294, %v2292
    %v2455 = vpack.c.b16 %v2295, %v2293
    %v2456 = vpack.c.b16 %v2298, %v2296
    %v2457 = vpack.c.b16 %v2299, %v2297
    %v2458 = vpack.c.b16 %v2302, %v2300
    %v2459 = vpack.c.b16 %v2303, %v2301
    %v2460 = vpack.c.b16 %v2306, %v2304
    %v2461 = vpack.c.b16 %v2307, %v2305
    %v2462 = vpack.c.b16 %v2310, %v2308
    %v2463 = vpack.c.b16 %v2311, %v2309
    %v2464 = vpack.c.b16 %v2314, %v2312
    %v2465 = vpack.c.b16 %v2315, %v2313
    %v2466 = vpack.c.b16 %v2318, %v2316
    %v2467 = vpack.c.b16 %v2319, %v2317
    %v2468 = vpack.c.b16 %v2322, %v2320
    %v2469 = vpack.c.b16 %v2323, %v2321
    %v2470 = vpack.c.b16 %v2326, %v2324
    %v2471 = vpack.c.b16 %v2327, %v2325
    %v2472 = vpack.c.b16 %v2330, %v2328
    %v2473 = vpack.c.b16 %v2331, %v2329
    %v2474 = vpack.c.b16 %v2334, %v2332
    %v2475 = vpack.c.b16 %v2335, %v2333
    %v2476 = vpack.c.b16 %v2338, %v2336
    %v2477 = vpack.c.b16 %v2339, %v2337
    %v2478 = vpack.c.b16 %v2342, %v2340
    %v2479 = vpack.c.b16 %v2343, %v2341
    %v2480 = vpack.c.b16 %v2346, %v2344
    %v2481 = vpack.c.b16 %v2347, %v2345
    %v2482 = vpack.c.b16 %v2350, %v2348
    %v2483 = vpack.c.b16 %v2351, %v2349
    %v2484 = vpack.c.b16 %v2354, %v2352
    %v2485 = vpack.c.b16 %v2355, %v2353
    %v2486 = vpack.c.b16 %v2358, %v2356
    %v2487 = vpack.c.b16 %v2359, %v2357
    %v2488 = vpack.c.b16 %v2362, %v2360
    %v2489 = vpack.c.b16 %v2363, %v2361
    %v2490 = vpack.c.b16 %v2366, %v2364
    %v2491 = vpack.c.b16 %v2367, %v2365
    %v2492 = vpack.c.b16 %v2370, %v2368
    %v2493 = vpack.c.b16 %v2371, %v2369
    %v2494 = vpack.c.b16 %v2374, %v2372
    %v2495 = vpack.c.b16 %v2375, %v2373
    %v2496 = vpack.c.b16 %v2378, %v2376
    %v2497 = vpack.c.b16 %v2379, %v2377
    %v2498 = vpack.c.b16 %v2382, %v2380
    %v2499 = vpack.c.b16 %v2383, %v2381
    %v2500 = vpack.c.b16 %v2386, %v2384
    %v2501 = vpack.c.b16 %v2387, %v2385
    %v2502 = vpack.c.b16 %v2390, %v2388
    %v2503 = vpack.c.b16 %v2391, %v2389
    %v2504 = vpack.c.b16 %v2394, %v2392
    %v2505 = vpack.c.b16 %v2395, %v2393
    %v2506 = vpack.c.b16 %v2398, %v2396
    %v2507 = vpack.c.b16 %v2399, %v2397
    %v2508 = vpack.c.b16 %v2402, %v2400
    %v2509 = vpack.c.b16 %v2403, %v2401
    %v2510 = vpack.c.b16 %v2406, %v2404
    %v2511 = vpack.c.b16 %v2407, %v2405
    %v2512 = vpack.c.b16 %v2410, %v2408
    %v2513 = vpack.c.b16 %v2411, %v2409
    %v2514 = vpack.c.b16 %v2414, %v2412
    %v2515 = vpack.c.b16 %v2415, %v2413
    %v2516 = vpack.c.b16 %v2418, %v2416
    %v2517 = vpack.c.b16 %v2419, %v2417
    %v2518 = vpack.c.b16 %v2422, %v2420
    %v2519 = vpack.c.b16 %v2423, %v2421
    %2616 = vmatprep.subr.bf16.mxu0 %v2439
    %2617 = vmatpush1.bf16.msra.mxu0 %v2438
    %2618 = vmatprep.subr.bf16.mxu0 %v2437
    %2619 = vmatpush1.bf16.msra.mxu0 %v2436
    %2620 = vmatprep.subr.bf16.mxu0 %v2435
    %2621 = vmatpush1.bf16.msra.mxu0 %v2434
    %2622 = vmatprep.subr.bf16.mxu0 %v2433
    %2623 = vmatpush1.bf16.msra.mxu0 %v2432
    %2624 = vmatprep.subr.bf16.mxu0 %v2431
    %2625 = vmatpush1.bf16.msra.mxu0 %v2430
    %2626 = vmatprep.subr.bf16.mxu0 %v2429
    %2627 = vmatpush1.bf16.msra.mxu0 %v2428
    %2628 = vmatprep.subr.bf16.mxu0 %v2427
    %2629 = vmatpush1.bf16.msra.mxu0 %v2426
    %2630 = vmatprep.subr.bf16.mxu0 %v2425
    %2631 = vmatpush1.bf16.msra.mxu0 %v2424
    %2632 = vmatprep.subr.bf16.mxu0 %v2455
    %2633 = vmatpush2.bf16.msra.mxu0 %v2454
    %2634 = vmatprep.subr.bf16.mxu0 %v2453
    %2635 = vmatpush2.bf16.msra.mxu0 %v2452
    %2636 = vmatprep.subr.bf16.mxu0 %v2451
    %2637 = vmatpush2.bf16.msra.mxu0 %v2450
    %2638 = vmatprep.subr.bf16.mxu0 %v2449
    %2639 = vmatpush2.bf16.msra.mxu0 %v2448
    %2640 = vmatprep.subr.bf16.mxu0 %v2447
    %2641 = vmatpush2.bf16.msra.mxu0 %v2446
    %2642 = vmatprep.subr.bf16.mxu0 %v2445
    %2643 = vmatpush2.bf16.msra.mxu0 %v2444
    %2644 = vmatprep.subr.bf16.mxu0 %v2443
    %2645 = vmatpush2.bf16.msra.mxu0 %v2442
    %2646 = vmatprep.subr.bf16.mxu0 %v2441
    %2647 = vmatpush2.bf16.msra.mxu0 %v2440
    %2648 = vmatprep.mubr.bf16.mxu0 %v2125
    %2649 = vmatmul.mubr.bf16.gmra.mxu0 %v2124
    %v2650 = vpop.f32.mrf.mxu0
    %v2651 = vadd.f32 %v2028, %v2650
    %v2652 = vpop.f32.mrf.mxu0
    %v2653 = vadd.f32 %v2030, %v2652
    %v2654 = vpop.f32.mrf.mxu0
    %v2655 = vadd.f32 %v2032, %v2654
    %v2656 = vpop.f32.mrf.mxu0
    %v2657 = vadd.f32 %v2034, %v2656
    %2658 = vmatprep.mubr.bf16.mxu0 %v1192
    %2659 = vmatmul.mubr.bf16.gmra.mxu0 %v1191
    %v2660 = vpop.f32.mrf.mxu0
    %v2661 = vadd.f32 %v2038, %v2660
    %v2662 = vpop.f32.mrf.mxu0
    %v2663 = vadd.f32 %v2040, %v2662
    %v2664 = vpop.f32.mrf.mxu0
    %v2665 = vadd.f32 %v2042, %v2664
    %v2666 = vpop.f32.mrf.mxu0
    %v2667 = vadd.f32 %v2044, %v2666
    %2668 = vmatprep.mubr.bf16.mxu0 %v1198
    %2669 = vmatmul.mubr.bf16.gmra.mxu0 %v1197
    %v2670 = vpop.f32.mrf.mxu0
    %v2671 = vadd.f32 %v2048, %v2670
    %v2672 = vpop.f32.mrf.mxu0
    %v2673 = vadd.f32 %v2050, %v2672
    %v2674 = vpop.f32.mrf.mxu0
    %v2675 = vadd.f32 %v2052, %v2674
    %v2676 = vpop.f32.mrf.mxu0
    %v2677 = vadd.f32 %v2054, %v2676
    %2678 = vmatprep.mubr.bf16.mxu0 %v1204
    %2679 = vmatmul.mubr.bf16.gmra.mxu0 %v1203
    %v2680 = vpop.f32.mrf.mxu0
    %v2681 = vadd.f32 %v2058, %v2680
    %v2682 = vpop.f32.mrf.mxu0
    %v2683 = vadd.f32 %v2060, %v2682
    %v2684 = vpop.f32.mrf.mxu0
    %v2685 = vadd.f32 %v2062, %v2684
    %v2686 = vpop.f32.mrf.mxu0
    %v2687 = vadd.f32 %v2064, %v2686
    %2688 = vmatprep.mubr.bf16.mxu0 %v1210
    %2689 = vmatmul.mubr.bf16.gmra.mxu0 %v1209
    %v2690 = vpop.f32.mrf.mxu0
    %v2691 = vadd.f32 %v2068, %v2690
    %v2692 = vpop.f32.mrf.mxu0
    %v2693 = vadd.f32 %v2070, %v2692
    %v2694 = vpop.f32.mrf.mxu0
    %v2695 = vadd.f32 %v2072, %v2694
    %v2696 = vpop.f32.mrf.mxu0
    %v2697 = vadd.f32 %v2074, %v2696
    %2698 = vmatprep.mubr.bf16.mxu0 %v1216
    %2699 = vmatmul.mubr.bf16.gmra.mxu0 %v1215
    %v2700 = vpop.f32.mrf.mxu0
    %v2701 = vadd.f32 %v2078, %v2700
    %v2702 = vpop.f32.mrf.mxu0
    %v2703 = vadd.f32 %v2080, %v2702
    %v2704 = vpop.f32.mrf.mxu0
    %v2705 = vadd.f32 %v2082, %v2704
    %v2706 = vpop.f32.mrf.mxu0
    %v2707 = vadd.f32 %v2084, %v2706
    %2708 = vmatprep.mubr.bf16.mxu0 %v1222
    %2709 = vmatmul.mubr.bf16.gmra.mxu0 %v1221
    %v2710 = vpop.f32.mrf.mxu0
    %v2711 = vadd.f32 %v2088, %v2710
    %v2712 = vpop.f32.mrf.mxu0
    %v2713 = vadd.f32 %v2090, %v2712
    %v2714 = vpop.f32.mrf.mxu0
    %v2715 = vadd.f32 %v2092, %v2714
    %v2716 = vpop.f32.mrf.mxu0
    %v2717 = vadd.f32 %v2094, %v2716
    %2718 = vmatprep.mubr.bf16.mxu0 %v1228
    %2719 = vmatmul.mubr.bf16.gmra.mxu0 %v1227
    %v2720 = vpop.f32.mrf.mxu0
    %v2721 = vadd.f32 %v2098, %v2720
    %v2722 = vpop.f32.mrf.mxu0
    %v2723 = vadd.f32 %v2100, %v2722
    %v2724 = vpop.f32.mrf.mxu0
    %v2725 = vadd.f32 %v2102, %v2724
    %v2726 = vpop.f32.mrf.mxu0
    %v2727 = vadd.f32 %v2104, %v2726
    %2728 = vdwg.mxu0
    %2729 = vmatprep.subr.bf16.mxu0 %v2471
    %2730 = vmatpush1.bf16.msra.mxu0 %v2470
    %2731 = vmatprep.subr.bf16.mxu0 %v2469
    %2732 = vmatpush1.bf16.msra.mxu0 %v2468
    %2733 = vmatprep.subr.bf16.mxu0 %v2467
    %2734 = vmatpush1.bf16.msra.mxu0 %v2466
    %2735 = vmatprep.subr.bf16.mxu0 %v2465
    %2736 = vmatpush1.bf16.msra.mxu0 %v2464
    %2737 = vmatprep.subr.bf16.mxu0 %v2463
    %2738 = vmatpush1.bf16.msra.mxu0 %v2462
    %2739 = vmatprep.subr.bf16.mxu0 %v2461
    %2740 = vmatpush1.bf16.msra.mxu0 %v2460
    %2741 = vmatprep.subr.bf16.mxu0 %v2459
    %2742 = vmatpush1.bf16.msra.mxu0 %v2458
    %2743 = vmatprep.subr.bf16.mxu0 %v2457
    %2744 = vmatpush1.bf16.msra.mxu0 %v2456
    %2745 = vmatprep.subr.bf16.mxu0 %v2487
    %2746 = vmatpush2.bf16.msra.mxu0 %v2486
    %2747 = vmatprep.subr.bf16.mxu0 %v2485
    %2748 = vmatpush2.bf16.msra.mxu0 %v2484
    %2749 = vmatprep.subr.bf16.mxu0 %v2483
    %2750 = vmatpush2.bf16.msra.mxu0 %v2482
    %2751 = vmatprep.subr.bf16.mxu0 %v2481
    %2752 = vmatpush2.bf16.msra.mxu0 %v2480
    %2753 = vmatprep.subr.bf16.mxu0 %v2479
    %2754 = vmatpush2.bf16.msra.mxu0 %v2478
    %2755 = vmatprep.subr.bf16.mxu0 %v2477
    %2756 = vmatpush2.bf16.msra.mxu0 %v2476
    %2757 = vmatprep.subr.bf16.mxu0 %v2475
    %2758 = vmatpush2.bf16.msra.mxu0 %v2474
    %2759 = vmatprep.subr.bf16.mxu0 %v2473
    %2760 = vmatpush2.bf16.msra.mxu0 %v2472
    %2761 = vmatprep.mubr.bf16.mxu0 %v2127
    %2762 = vmatmul.mubr.bf16.gmra.mxu0 %v2126
    %v2763 = vpop.f32.mrf.mxu0
    %v2764 = vadd.f32 %v2651, %v2763
    %v2765 = vpop.f32.mrf.mxu0
    %v2766 = vadd.f32 %v2653, %v2765
    %v2767 = vpop.f32.mrf.mxu0
    %v2768 = vadd.f32 %v2655, %v2767
    %v2769 = vpop.f32.mrf.mxu0
    %v2770 = vadd.f32 %v2657, %v2769
    %2771 = vmatprep.mubr.bf16.mxu0 %v1194
    %2772 = vmatmul.mubr.bf16.gmra.mxu0 %v1193
    %v2773 = vpop.f32.mrf.mxu0
    %v2774 = vadd.f32 %v2661, %v2773
    %v2775 = vpop.f32.mrf.mxu0
    %v2776 = vadd.f32 %v2663, %v2775
    %v2777 = vpop.f32.mrf.mxu0
    %v2778 = vadd.f32 %v2665, %v2777
    %v2779 = vpop.f32.mrf.mxu0
    %v2780 = vadd.f32 %v2667, %v2779
    %2781 = vmatprep.mubr.bf16.mxu0 %v1200
    %2782 = vmatmul.mubr.bf16.gmra.mxu0 %v1199
    %v2783 = vpop.f32.mrf.mxu0
    %v2784 = vadd.f32 %v2671, %v2783
    %v2785 = vpop.f32.mrf.mxu0
    %v2786 = vadd.f32 %v2673, %v2785
    %v2787 = vpop.f32.mrf.mxu0
    %v2788 = vadd.f32 %v2675, %v2787
    %v2789 = vpop.f32.mrf.mxu0
    %v2790 = vadd.f32 %v2677, %v2789
    %2791 = vmatprep.mubr.bf16.mxu0 %v1206
    %2792 = vmatmul.mubr.bf16.gmra.mxu0 %v1205
    %v2793 = vpop.f32.mrf.mxu0
    %v2794 = vadd.f32 %v2681, %v2793
    %v2795 = vpop.f32.mrf.mxu0
    %v2796 = vadd.f32 %v2683, %v2795
    %v2797 = vpop.f32.mrf.mxu0
    %v2798 = vadd.f32 %v2685, %v2797
    %v2799 = vpop.f32.mrf.mxu0
    %v2800 = vadd.f32 %v2687, %v2799
    %2801 = vmatprep.mubr.bf16.mxu0 %v1212
    %2802 = vmatmul.mubr.bf16.gmra.mxu0 %v1211
    %v2803 = vpop.f32.mrf.mxu0
    %v2804 = vadd.f32 %v2691, %v2803
    %v2805 = vpop.f32.mrf.mxu0
    %v2806 = vadd.f32 %v2693, %v2805
    %v2807 = vpop.f32.mrf.mxu0
    %v2808 = vadd.f32 %v2695, %v2807
    %v2809 = vpop.f32.mrf.mxu0
    %v2810 = vadd.f32 %v2697, %v2809
    %2811 = vmatprep.mubr.bf16.mxu0 %v1218
    %2812 = vmatmul.mubr.bf16.gmra.mxu0 %v1217
    %v2813 = vpop.f32.mrf.mxu0
    %v2814 = vadd.f32 %v2701, %v2813
    %v2815 = vpop.f32.mrf.mxu0
    %v2816 = vadd.f32 %v2703, %v2815
    %v2817 = vpop.f32.mrf.mxu0
    %v2818 = vadd.f32 %v2705, %v2817
    %v2819 = vpop.f32.mrf.mxu0
    %v2820 = vadd.f32 %v2707, %v2819
    %2821 = vmatprep.mubr.bf16.mxu0 %v1224
    %2822 = vmatmul.mubr.bf16.gmra.mxu0 %v1223
    %v2823 = vpop.f32.mrf.mxu0
    %v2824 = vadd.f32 %v2711, %v2823
    %v2825 = vpop.f32.mrf.mxu0
    %v2826 = vadd.f32 %v2713, %v2825
    %v2827 = vpop.f32.mrf.mxu0
    %v2828 = vadd.f32 %v2715, %v2827
    %v2829 = vpop.f32.mrf.mxu0
    %v2830 = vadd.f32 %v2717, %v2829
    %2831 = vmatprep.mubr.bf16.mxu0 %v1230
    %2832 = vmatmul.mubr.bf16.gmra.mxu0 %v1229
    %v2833 = vpop.f32.mrf.mxu0
    %v2834 = vadd.f32 %v2721, %v2833
    %v2835 = vpop.f32.mrf.mxu0
    %v2836 = vadd.f32 %v2723, %v2835
    %v2837 = vpop.f32.mrf.mxu0
    %v2838 = vadd.f32 %v2725, %v2837
    %v2839 = vpop.f32.mrf.mxu0
    %v2840 = vadd.f32 %v2727, %v2839
    %2841 = vdwg.mxu0
    %2842 = vmatprep.subr.bf16.mxu0 %v2503
    %2843 = vmatpush1.bf16.msra.mxu0 %v2502
    %2844 = vmatprep.subr.bf16.mxu0 %v2501
    %2845 = vmatpush1.bf16.msra.mxu0 %v2500
    %2846 = vmatprep.subr.bf16.mxu0 %v2499
    %2847 = vmatpush1.bf16.msra.mxu0 %v2498
    %2848 = vmatprep.subr.bf16.mxu0 %v2497
    %2849 = vmatpush1.bf16.msra.mxu0 %v2496
    %2850 = vmatprep.subr.bf16.mxu0 %v2495
    %2851 = vmatpush1.bf16.msra.mxu0 %v2494
    %2852 = vmatprep.subr.bf16.mxu0 %v2493
    %2853 = vmatpush1.bf16.msra.mxu0 %v2492
    %2854 = vmatprep.subr.bf16.mxu0 %v2491
    %2855 = vmatpush1.bf16.msra.mxu0 %v2490
    %2856 = vmatprep.subr.bf16.mxu0 %v2489
    %2857 = vmatpush1.bf16.msra.mxu0 %v2488
    %2858 = vmatprep.subr.bf16.mxu0 %v2519
    %2859 = vmatpush2.bf16.msra.mxu0 %v2518
    %2860 = vmatprep.subr.bf16.mxu0 %v2517
    %2861 = vmatpush2.bf16.msra.mxu0 %v2516
    %2862 = vmatprep.subr.bf16.mxu0 %v2515
    %2863 = vmatpush2.bf16.msra.mxu0 %v2514
    %2864 = vmatprep.subr.bf16.mxu0 %v2513
    %2865 = vmatpush2.bf16.msra.mxu0 %v2512
    %2866 = vmatprep.subr.bf16.mxu0 %v2511
    %2867 = vmatpush2.bf16.msra.mxu0 %v2510
    %2868 = vmatprep.subr.bf16.mxu0 %v2509
    %2869 = vmatpush2.bf16.msra.mxu0 %v2508
    %2870 = vmatprep.subr.bf16.mxu0 %v2507
    %2871 = vmatpush2.bf16.msra.mxu0 %v2506
    %2872 = vmatprep.subr.bf16.mxu0 %v2505
    %2873 = vmatpush2.bf16.msra.mxu0 %v2504
    %2874 = vmatprep.mubr.bf16.mxu0 %v2129
    %2875 = vmatmul.mubr.bf16.gmra.mxu0 %v2128
    %v2876 = vpop.f32.mrf.mxu0
    %v2877 = vadd.f32 %v2764, %v2876
    %v2878 = vpop.f32.mrf.mxu0
    %v2879 = vadd.f32 %v2766, %v2878
    %v2880 = vpop.f32.mrf.mxu0
    %v2881 = vadd.f32 %v2768, %v2880
    %v2882 = vpop.f32.mrf.mxu0
    %v2883 = vadd.f32 %v2770, %v2882
    %2884 = vmatprep.mubr.bf16.mxu0 %v1196
    %2885 = vmatmul.mubr.bf16.gmra.mxu0 %v1195
    %v2886 = vpop.f32.mrf.mxu0
    %v2887 = vadd.f32 %v2774, %v2886
    %v2888 = vpop.f32.mrf.mxu0
    %v2889 = vadd.f32 %v2776, %v2888
    %v2890 = vpop.f32.mrf.mxu0
    %v2891 = vadd.f32 %v2778, %v2890
    %v2892 = vpop.f32.mrf.mxu0
    %v2893 = vadd.f32 %v2780, %v2892
    %2894 = vmatprep.mubr.bf16.mxu0 %v1202
    %2895 = vmatmul.mubr.bf16.gmra.mxu0 %v1201
    %v2896 = vpop.f32.mrf.mxu0
    %v2897 = vadd.f32 %v2784, %v2896
    %v2898 = vpop.f32.mrf.mxu0
    %v2899 = vadd.f32 %v2786, %v2898
    %v2900 = vpop.f32.mrf.mxu0
    %v2901 = vadd.f32 %v2788, %v2900
    %v2902 = vpop.f32.mrf.mxu0
    %v2903 = vadd.f32 %v2790, %v2902
    %2904 = vmatprep.mubr.bf16.mxu0 %v1208
    %2905 = vmatmul.mubr.bf16.gmra.mxu0 %v1207
    %v2906 = vpop.f32.mrf.mxu0
    %v2907 = vadd.f32 %v2794, %v2906
    %v2908 = vpop.f32.mrf.mxu0
    %v2909 = vadd.f32 %v2796, %v2908
    %v2910 = vpop.f32.mrf.mxu0
    %v2911 = vadd.f32 %v2798, %v2910
    %v2912 = vpop.f32.mrf.mxu0
    %v2913 = vadd.f32 %v2800, %v2912
    %2914 = vmatprep.mubr.bf16.mxu0 %v1214
    %2915 = vmatmul.mubr.bf16.gmra.mxu0 %v1213
    %v2916 = vpop.f32.mrf.mxu0
    %v2917 = vadd.f32 %v2804, %v2916
    %v2918 = vpop.f32.mrf.mxu0
    %v2919 = vadd.f32 %v2806, %v2918
    %v2920 = vpop.f32.mrf.mxu0
    %v2921 = vadd.f32 %v2808, %v2920
    %v2922 = vpop.f32.mrf.mxu0
    %v2923 = vadd.f32 %v2810, %v2922
    %2924 = vmatprep.mubr.bf16.mxu0 %v1220
    %2925 = vmatmul.mubr.bf16.gmra.mxu0 %v1219
    %v2926 = vpop.f32.mrf.mxu0
    %v2927 = vadd.f32 %v2814, %v2926
    %v2928 = vpop.f32.mrf.mxu0
    %v2929 = vadd.f32 %v2816, %v2928
    %v2930 = vpop.f32.mrf.mxu0
    %v2931 = vadd.f32 %v2818, %v2930
    %v2932 = vpop.f32.mrf.mxu0
    %v2933 = vadd.f32 %v2820, %v2932
    %2934 = vmatprep.mubr.bf16.mxu0 %v1226
    %2935 = vmatmul.mubr.bf16.gmra.mxu0 %v1225
    %v2936 = vpop.f32.mrf.mxu0
    %v2937 = vadd.f32 %v2824, %v2936
    %v2938 = vpop.f32.mrf.mxu0
    %v2939 = vadd.f32 %v2826, %v2938
    %v2940 = vpop.f32.mrf.mxu0
    %v2941 = vadd.f32 %v2828, %v2940
    %v2942 = vpop.f32.mrf.mxu0
    %v2943 = vadd.f32 %v2830, %v2942
    %2944 = vmatprep.mubr.bf16.mxu0 %v1232
    %2945 = vmatmul.mubr.bf16.gmra.mxu0 %v1231
    %v2946 = vpop.f32.mrf.mxu0
    %v2947 = vadd.f32 %v2834, %v2946
    %v2948 = vpop.f32.mrf.mxu0
    %v2949 = vadd.f32 %v2836, %v2948
    %v2950 = vpop.f32.mrf.mxu0
    %v2951 = vadd.f32 %v2838, %v2950
    %v2952 = vpop.f32.mrf.mxu0
    %v2953 = vadd.f32 %v2840, %v2952
    %2954 = vdwg.mxu0
    %v2955 = vld [vmem:[#allocation2 + $0x60] sm:$0xff]
    %v2956 = vld [vmem:[#allocation2 + $0x68] sm:$0xff]
    %v2957 = vld [vmem:[#allocation2 + $0x70] sm:$0xff]
    %v2958 = vld [vmem:[#allocation2 + $0x78] sm:$0xff]
    %v2959 = vld [vmem:[#allocation2 + $0x80] sm:$0xff]
    %v2960 = vld [vmem:[#allocation2 + $0x88] sm:$0xff]
    %v2961 = vld [vmem:[#allocation2 + $0x90] sm:$0xff]
    %v2962 = vld [vmem:[#allocation2 + $0x98] sm:$0xff]
    %v2963 = vld [vmem:[#allocation2 + $0xa0] sm:$0xff]
    %v2964 = vld [vmem:[#allocation2 + $0xa8] sm:$0xff]
    %v2965 = vld [vmem:[#allocation2 + $0xb0] sm:$0xff]
    %v2966 = vld [vmem:[#allocation2 + $0xb8] sm:$0xff]
    %v2967 = vld [vmem:[#allocation2 + $0xc0] sm:$0xff]
    %v2968 = vld [vmem:[#allocation2 + $0xc8] sm:$0xff]
    %v2969 = vld [vmem:[#allocation2 + $0xd0] sm:$0xff]
    %v2970 = vld [vmem:[#allocation2 + $0xd8] sm:$0xff]
    %v2971 = vld [vmem:[#allocation2 + $0xe0] sm:$0xff]
    %v2972 = vld [vmem:[#allocation2 + $0xe8] sm:$0xff]
    %v2973 = vld [vmem:[#allocation2 + $0xf0] sm:$0xff]
    %v2974 = vld [vmem:[#allocation2 + $0xf8] sm:$0xff]
    %v2975 = vld [vmem:[#allocation2 + $0x100] sm:$0xff]
    %v2976 = vld [vmem:[#allocation2 + $0x108] sm:$0xff]
    %v2977 = vld [vmem:[#allocation2 + $0x110] sm:$0xff]
    %v2978 = vld [vmem:[#allocation2 + $0x118] sm:$0xff]
    %v2979 = vld [vmem:[#allocation2 + $0x120] sm:$0xff]
    %v2980 = vld [vmem:[#allocation2 + $0x128] sm:$0xff]
    %v2981 = vld [vmem:[#allocation2 + $0x130] sm:$0xff]
    %v2982 = vld [vmem:[#allocation2 + $0x138] sm:$0xff]
    %v2983 = vld [vmem:[#allocation2 + $0x140] sm:$0xff]
    %v2984 = vld [vmem:[#allocation2 + $0x148] sm:$0xff]
    %v2985 = vld [vmem:[#allocation2 + $0x150] sm:$0xff]
    %v2986 = vld [vmem:[#allocation2 + $0x158] sm:$0xff]
    %v2987 = vld [vmem:[#allocation2 + $0x160] sm:$0xff]
    %v2988 = vld [vmem:[#allocation2 + $0x168] sm:$0xff]
    %v2989 = vld [vmem:[#allocation2 + $0x170] sm:$0xff]
    %v2990 = vld [vmem:[#allocation2 + $0x178] sm:$0xff]
    %v2991 = vld [vmem:[#allocation2 + $0x180] sm:$0xff]
    %v2992 = vld [vmem:[#allocation2 + $0x188] sm:$0xff]
    %v2993 = vld [vmem:[#allocation2 + $0x190] sm:$0xff]
    %v2994 = vld [vmem:[#allocation2 + $0x198] sm:$0xff]
    %v2995 = vld [vmem:[#allocation2 + $0x1a0] sm:$0xff]
    %v2996 = vld [vmem:[#allocation2 + $0x1a8] sm:$0xff]
    %v2997 = vld [vmem:[#allocation2 + $0x1b0] sm:$0xff]
    %v2998 = vld [vmem:[#allocation2 + $0x1b8] sm:$0xff]
    %v2999 = vld [vmem:[#allocation2 + $0x1c0] sm:$0xff]
    %v3000 = vld [vmem:[#allocation2 + $0x1c8] sm:$0xff]
    %v3001 = vld [vmem:[#allocation2 + $0x1d0] sm:$0xff]
    %v3002 = vld [vmem:[#allocation2 + $0x1d8] sm:$0xff]
    %s3003 = scalar_lea.vmem [#allocation3], 1536
    %v3004 = vld [vmem:[%s3003] sm:$0xff]
    %v3005 = vld [vmem:[%s3003 + $0x8] sm:$0xff]
    %v3006 = vld [vmem:[%s3003 + $0x10] sm:$0xff]
    %v3007 = vld [vmem:[%s3003 + $0x18] sm:$0xff]
    %v3008 = vld [vmem:[%s3003 + $0x20] sm:$0xff]
    %v3009 = vld [vmem:[%s3003 + $0x28] sm:$0xff]
    %v3010 = vld [vmem:[%s3003 + $0x30] sm:$0xff]
    %v3011 = vld [vmem:[%s3003 + $0x38] sm:$0xff]
    %v3012 = vld [vmem:[%s3003 + $0x40] sm:$0xff]
    %v3013 = vld [vmem:[%s3003 + $0x48] sm:$0xff]
    %v3014 = vld [vmem:[%s3003 + $0x50] sm:$0xff]
    %v3015 = vld [vmem:[%s3003 + $0x58] sm:$0xff]
    %v3016 = vld [vmem:[%s3003 + $0x60] sm:$0xff]
    %v3017 = vld [vmem:[%s3003 + $0x68] sm:$0xff]
    %v3018 = vld [vmem:[%s3003 + $0x70] sm:$0xff]
    %v3019 = vld [vmem:[%s3003 + $0x78] sm:$0xff]
    %v3020 = vld [vmem:[%s3003 + $0x80] sm:$0xff]
    %v3021 = vld [vmem:[%s3003 + $0x88] sm:$0xff]
    %v3022 = vld [vmem:[%s3003 + $0x90] sm:$0xff]
    %v3023 = vld [vmem:[%s3003 + $0x98] sm:$0xff]
    %v3024 = vld [vmem:[%s3003 + $0xa0] sm:$0xff]
    %v3025 = vld [vmem:[%s3003 + $0xa8] sm:$0xff]
    %v3026 = vld [vmem:[%s3003 + $0xb0] sm:$0xff]
    %v3027 = vld [vmem:[%s3003 + $0xb8] sm:$0xff]
    %v3028 = vld [vmem:[%s3003 + $0xc0] sm:$0xff]
    %v3029 = vld [vmem:[%s3003 + $0xc8] sm:$0xff]
    %v3030 = vld [vmem:[%s3003 + $0xd0] sm:$0xff]
    %v3031 = vld [vmem:[%s3003 + $0xd8] sm:$0xff]
    %v3032 = vld [vmem:[%s3003 + $0xe0] sm:$0xff]
    %v3033 = vld [vmem:[%s3003 + $0xe8] sm:$0xff]
    %v3034 = vld [vmem:[%s3003 + $0xf0] sm:$0xff]
    %v3035 = vld [vmem:[%s3003 + $0xf8] sm:$0xff]
    %v3036 = vld [vmem:[%s3003 + $0x100] sm:$0xff]
    %v3037 = vld [vmem:[%s3003 + $0x108] sm:$0xff]
    %v3038 = vld [vmem:[%s3003 + $0x110] sm:$0xff]
    %v3039 = vld [vmem:[%s3003 + $0x118] sm:$0xff]
    %v3040 = vld [vmem:[%s3003 + $0x120] sm:$0xff]
    %v3041 = vld [vmem:[%s3003 + $0x128] sm:$0xff]
    %v3042 = vld [vmem:[%s3003 + $0x130] sm:$0xff]
    %v3043 = vld [vmem:[%s3003 + $0x138] sm:$0xff]
    %v3044 = vld [vmem:[%s3003 + $0x140] sm:$0xff]
    %v3045 = vld [vmem:[%s3003 + $0x148] sm:$0xff]
    %v3046 = vld [vmem:[%s3003 + $0x150] sm:$0xff]
    %v3047 = vld [vmem:[%s3003 + $0x158] sm:$0xff]
    %v3048 = vld [vmem:[%s3003 + $0x160] sm:$0xff]
    %v3049 = vld [vmem:[%s3003 + $0x168] sm:$0xff]
    %v3050 = vld [vmem:[%s3003 + $0x170] sm:$0xff]
    %v3051 = vld [vmem:[%s3003 + $0x178] sm:$0xff]
    %v3052 = vld [vmem:[%s3003 + $0x180] sm:$0xff]
    %v3053 = vld [vmem:[%s3003 + $0x188] sm:$0xff]
    %v3054 = vld [vmem:[%s3003 + $0x190] sm:$0xff]
    %v3055 = vld [vmem:[%s3003 + $0x198] sm:$0xff]
    %v3056 = vld [vmem:[%s3003 + $0x1a0] sm:$0xff]
    %v3057 = vld [vmem:[%s3003 + $0x1a8] sm:$0xff]
    %v3058 = vld [vmem:[%s3003 + $0x1b0] sm:$0xff]
    %v3059 = vld [vmem:[%s3003 + $0x1b8] sm:$0xff]
    %v3060 = vld [vmem:[%s3003 + $0x1c0] sm:$0xff]
    %v3061 = vld [vmem:[%s3003 + $0x1c8] sm:$0xff]
    %v3062 = vld [vmem:[%s3003 + $0x1d0] sm:$0xff]
    %v3063 = vld [vmem:[%s3003 + $0x1d8] sm:$0xff]
    %v3064 = vld [vmem:[%s3003 + $0x1e0] sm:$0xff]
    %v3065 = vld [vmem:[%s3003 + $0x1e8] sm:$0xff]
    %v3066 = vld [vmem:[%s3003 + $0x1f0] sm:$0xff]
    %v3067 = vld [vmem:[%s3003 + $0x1f8] sm:$0xff]
    %v3068 = vld [vmem:[%s3003 + $0x200] sm:$0xff]
    %v3069 = vld [vmem:[%s3003 + $0x208] sm:$0xff]
    %v3070 = vld [vmem:[%s3003 + $0x210] sm:$0xff]
    %v3071 = vld [vmem:[%s3003 + $0x218] sm:$0xff]
    %v3072 = vld [vmem:[%s3003 + $0x220] sm:$0xff]
    %v3073 = vld [vmem:[%s3003 + $0x228] sm:$0xff]
    %v3074 = vld [vmem:[%s3003 + $0x230] sm:$0xff]
    %v3075 = vld [vmem:[%s3003 + $0x238] sm:$0xff]
    %v3076 = vld [vmem:[%s3003 + $0x240] sm:$0xff]
    %v3077 = vld [vmem:[%s3003 + $0x248] sm:$0xff]
    %v3078 = vld [vmem:[%s3003 + $0x250] sm:$0xff]
    %v3079 = vld [vmem:[%s3003 + $0x258] sm:$0xff]
    %v3080 = vld [vmem:[%s3003 + $0x260] sm:$0xff]
    %v3081 = vld [vmem:[%s3003 + $0x268] sm:$0xff]
    %v3082 = vld [vmem:[%s3003 + $0x270] sm:$0xff]
    %v3083 = vld [vmem:[%s3003 + $0x278] sm:$0xff]
    %v3084 = vld [vmem:[%s3003 + $0x280] sm:$0xff]
    %v3085 = vld [vmem:[%s3003 + $0x288] sm:$0xff]
    %v3086 = vld [vmem:[%s3003 + $0x290] sm:$0xff]
    %v3087 = vld [vmem:[%s3003 + $0x298] sm:$0xff]
    %v3088 = vld [vmem:[%s3003 + $0x2a0] sm:$0xff]
    %v3089 = vld [vmem:[%s3003 + $0x2a8] sm:$0xff]
    %v3090 = vld [vmem:[%s3003 + $0x2b0] sm:$0xff]
    %v3091 = vld [vmem:[%s3003 + $0x2b8] sm:$0xff]
    %v3092 = vld [vmem:[%s3003 + $0x2c0] sm:$0xff]
    %v3093 = vld [vmem:[%s3003 + $0x2c8] sm:$0xff]
    %v3094 = vld [vmem:[%s3003 + $0x2d0] sm:$0xff]
    %v3095 = vld [vmem:[%s3003 + $0x2d8] sm:$0xff]
    %v3096 = vld [vmem:[%s3003 + $0x2e0] sm:$0xff]
    %v3097 = vld [vmem:[%s3003 + $0x2e8] sm:$0xff]
    %v3098 = vld [vmem:[%s3003 + $0x2f0] sm:$0xff]
    %v3099 = vld [vmem:[%s3003 + $0x2f8] sm:$0xff]
    %v3148 = vunpack.c.l.b16 %v2955
    %v3149 = vunpack.c.h.b16 %v2955
    %v3150 = vunpack.c.l.b16 %v2956
    %v3151 = vunpack.c.h.b16 %v2956
    %v3152 = vunpack.c.l.b16 %v2957
    %v3153 = vunpack.c.h.b16 %v2957
    %v3154 = vunpack.c.l.b16 %v2958
    %v3155 = vunpack.c.h.b16 %v2958
    %v3156 = vunpack.c.l.b16 %v2959
    %v3157 = vunpack.c.h.b16 %v2959
    %v3158 = vunpack.c.l.b16 %v2960
    %v3159 = vunpack.c.h.b16 %v2960
    %v3160 = vunpack.c.l.b16 %v2961
    %v3161 = vunpack.c.h.b16 %v2961
    %v3162 = vunpack.c.l.b16 %v2962
    %v3163 = vunpack.c.h.b16 %v2962
    %v3164 = vunpack.c.l.b16 %v2963
    %v3165 = vunpack.c.h.b16 %v2963
    %v3166 = vunpack.c.l.b16 %v2964
    %v3167 = vunpack.c.h.b16 %v2964
    %v3168 = vunpack.c.l.b16 %v2965
    %v3169 = vunpack.c.h.b16 %v2965
    %v3170 = vunpack.c.l.b16 %v2966
    %v3171 = vunpack.c.h.b16 %v2966
    %v3172 = vunpack.c.l.b16 %v2967
    %v3173 = vunpack.c.h.b16 %v2967
    %v3174 = vunpack.c.l.b16 %v2968
    %v3175 = vunpack.c.h.b16 %v2968
    %v3176 = vunpack.c.l.b16 %v2969
    %v3177 = vunpack.c.h.b16 %v2969
    %v3178 = vunpack.c.l.b16 %v2970
    %v3179 = vunpack.c.h.b16 %v2970
    %v3180 = vunpack.c.l.b16 %v2971
    %v3181 = vunpack.c.h.b16 %v2971
    %v3182 = vunpack.c.l.b16 %v2972
    %v3183 = vunpack.c.h.b16 %v2972
    %v3184 = vunpack.c.l.b16 %v2973
    %v3185 = vunpack.c.h.b16 %v2973
    %v3186 = vunpack.c.l.b16 %v2974
    %v3187 = vunpack.c.h.b16 %v2974
    %v3188 = vunpack.c.l.b16 %v2975
    %v3189 = vunpack.c.h.b16 %v2975
    %v3190 = vunpack.c.l.b16 %v2976
    %v3191 = vunpack.c.h.b16 %v2976
    %v3192 = vunpack.c.l.b16 %v2977
    %v3193 = vunpack.c.h.b16 %v2977
    %v3194 = vunpack.c.l.b16 %v2978
    %v3195 = vunpack.c.h.b16 %v2978
    %v3196 = vunpack.c.l.b16 %v2979
    %v3197 = vunpack.c.h.b16 %v2979
    %v3198 = vunpack.c.l.b16 %v2980
    %v3199 = vunpack.c.h.b16 %v2980
    %v3200 = vunpack.c.l.b16 %v2981
    %v3201 = vunpack.c.h.b16 %v2981
    %v3202 = vunpack.c.l.b16 %v2982
    %v3203 = vunpack.c.h.b16 %v2982
    %v3204 = vunpack.c.l.b16 %v2983
    %v3205 = vunpack.c.h.b16 %v2983
    %v3206 = vunpack.c.l.b16 %v2984
    %v3207 = vunpack.c.h.b16 %v2984
    %v3208 = vunpack.c.l.b16 %v2985
    %v3209 = vunpack.c.h.b16 %v2985
    %v3210 = vunpack.c.l.b16 %v2986
    %v3211 = vunpack.c.h.b16 %v2986
    %v3212 = vunpack.c.l.b16 %v2987
    %v3213 = vunpack.c.h.b16 %v2987
    %v3214 = vunpack.c.l.b16 %v2988
    %v3215 = vunpack.c.h.b16 %v2988
    %v3216 = vunpack.c.l.b16 %v2989
    %v3217 = vunpack.c.h.b16 %v2989
    %v3218 = vunpack.c.l.b16 %v2990
    %v3219 = vunpack.c.h.b16 %v2990
    %v3220 = vunpack.c.l.b16 %v2991
    %v3221 = vunpack.c.h.b16 %v2991
    %v3222 = vunpack.c.l.b16 %v2992
    %v3223 = vunpack.c.h.b16 %v2992
    %v3224 = vunpack.c.l.b16 %v2993
    %v3225 = vunpack.c.h.b16 %v2993
    %v3226 = vunpack.c.l.b16 %v2994
    %v3227 = vunpack.c.h.b16 %v2994
    %v3228 = vunpack.c.l.b16 %v2995
    %v3229 = vunpack.c.h.b16 %v2995
    %v3230 = vunpack.c.l.b16 %v2996
    %v3231 = vunpack.c.h.b16 %v2996
    %v3232 = vunpack.c.l.b16 %v2997
    %v3233 = vunpack.c.h.b16 %v2997
    %v3234 = vunpack.c.l.b16 %v2998
    %v3235 = vunpack.c.h.b16 %v2998
    %v3236 = vunpack.c.l.b16 %v2999
    %v3237 = vunpack.c.h.b16 %v2999
    %v3238 = vunpack.c.l.b16 %v3000
    %v3239 = vunpack.c.h.b16 %v3000
    %v3240 = vunpack.c.l.b16 %v3001
    %v3241 = vunpack.c.h.b16 %v3001
    %v3242 = vunpack.c.l.b16 %v3002
    %v3243 = vunpack.c.h.b16 %v3002
    %v3244 = vpack.c.b16 %v3154, %v3148
    %v3245 = vpack.c.b16 %v3155, %v3149
    %v3246 = vpack.c.b16 %v3156, %v3150
    %v3247 = vpack.c.b16 %v3157, %v3151
    %v3248 = vpack.c.b16 %v3158, %v3152
    %v3249 = vpack.c.b16 %v3159, %v3153
    %v3250 = vpack.c.b16 %v3166, %v3160
    %v3251 = vpack.c.b16 %v3167, %v3161
    %v3252 = vpack.c.b16 %v3168, %v3162
    %v3253 = vpack.c.b16 %v3169, %v3163
    %v3254 = vpack.c.b16 %v3170, %v3164
    %v3255 = vpack.c.b16 %v3171, %v3165
    %v3256 = vpack.c.b16 %v3178, %v3172
    %v3257 = vpack.c.b16 %v3179, %v3173
    %v3258 = vpack.c.b16 %v3180, %v3174
    %v3259 = vpack.c.b16 %v3181, %v3175
    %v3260 = vpack.c.b16 %v3182, %v3176
    %v3261 = vpack.c.b16 %v3183, %v3177
    %v3262 = vpack.c.b16 %v3190, %v3184
    %v3263 = vpack.c.b16 %v3191, %v3185
    %v3264 = vpack.c.b16 %v3192, %v3186
    %v3265 = vpack.c.b16 %v3193, %v3187
    %v3266 = vpack.c.b16 %v3194, %v3188
    %v3267 = vpack.c.b16 %v3195, %v3189
    %v3268 = vpack.c.b16 %v3202, %v3196
    %v3269 = vpack.c.b16 %v3203, %v3197
    %v3270 = vpack.c.b16 %v3204, %v3198
    %v3271 = vpack.c.b16 %v3205, %v3199
    %v3272 = vpack.c.b16 %v3206, %v3200
    %v3273 = vpack.c.b16 %v3207, %v3201
    %v3274 = vpack.c.b16 %v3214, %v3208
    %v3275 = vpack.c.b16 %v3215, %v3209
    %v3276 = vpack.c.b16 %v3216, %v3210
    %v3277 = vpack.c.b16 %v3217, %v3211
    %v3278 = vpack.c.b16 %v3218, %v3212
    %v3279 = vpack.c.b16 %v3219, %v3213
    %v3280 = vpack.c.b16 %v3226, %v3220
    %v3281 = vpack.c.b16 %v3227, %v3221
    %v3282 = vpack.c.b16 %v3228, %v3222
    %v3283 = vpack.c.b16 %v3229, %v3223
    %v3284 = vpack.c.b16 %v3230, %v3224
    %v3285 = vpack.c.b16 %v3231, %v3225
    %v3286 = vpack.c.b16 %v3238, %v3232
    %v3287 = vpack.c.b16 %v3239, %v3233
    %v3288 = vpack.c.b16 %v3240, %v3234
    %v3289 = vpack.c.b16 %v3241, %v3235
    %v3290 = vpack.c.b16 %v3242, %v3236
    %v3291 = vpack.c.b16 %v3243, %v3237
    %v3436 = vunpack.c.l.b16 %v3004
    %v3437 = vunpack.c.h.b16 %v3004
    %v3438 = vunpack.c.l.b16 %v3005
    %v3439 = vunpack.c.h.b16 %v3005
    %v3440 = vunpack.c.l.b16 %v3006
    %v3441 = vunpack.c.h.b16 %v3006
    %v3442 = vunpack.c.l.b16 %v3007
    %v3443 = vunpack.c.h.b16 %v3007
    %v3444 = vunpack.c.l.b16 %v3008
    %v3445 = vunpack.c.h.b16 %v3008
    %v3446 = vunpack.c.l.b16 %v3009
    %v3447 = vunpack.c.h.b16 %v3009
    %v3448 = vunpack.c.l.b16 %v3010
    %v3449 = vunpack.c.h.b16 %v3010
    %v3450 = vunpack.c.l.b16 %v3011
    %v3451 = vunpack.c.h.b16 %v3011
    %v3452 = vunpack.c.l.b16 %v3012
    %v3453 = vunpack.c.h.b16 %v3012
    %v3454 = vunpack.c.l.b16 %v3013
    %v3455 = vunpack.c.h.b16 %v3013
    %v3456 = vunpack.c.l.b16 %v3014
    %v3457 = vunpack.c.h.b16 %v3014
    %v3458 = vunpack.c.l.b16 %v3015
    %v3459 = vunpack.c.h.b16 %v3015
    %v3460 = vunpack.c.l.b16 %v3016
    %v3461 = vunpack.c.h.b16 %v3016
    %v3462 = vunpack.c.l.b16 %v3017
    %v3463 = vunpack.c.h.b16 %v3017
    %v3464 = vunpack.c.l.b16 %v3018
    %v3465 = vunpack.c.h.b16 %v3018
    %v3466 = vunpack.c.l.b16 %v3019
    %v3467 = vunpack.c.h.b16 %v3019
    %v3468 = vunpack.c.l.b16 %v3020
    %v3469 = vunpack.c.h.b16 %v3020
    %v3470 = vunpack.c.l.b16 %v3021
    %v3471 = vunpack.c.h.b16 %v3021
    %v3472 = vunpack.c.l.b16 %v3022
    %v3473 = vunpack.c.h.b16 %v3022
    %v3474 = vunpack.c.l.b16 %v3023
    %v3475 = vunpack.c.h.b16 %v3023
    %v3476 = vunpack.c.l.b16 %v3024
    %v3477 = vunpack.c.h.b16 %v3024
    %v3478 = vunpack.c.l.b16 %v3025
    %v3479 = vunpack.c.h.b16 %v3025
    %v3480 = vunpack.c.l.b16 %v3026
    %v3481 = vunpack.c.h.b16 %v3026
    %v3482 = vunpack.c.l.b16 %v3027
    %v3483 = vunpack.c.h.b16 %v3027
    %v3484 = vunpack.c.l.b16 %v3028
    %v3485 = vunpack.c.h.b16 %v3028
    %v3486 = vunpack.c.l.b16 %v3029
    %v3487 = vunpack.c.h.b16 %v3029
    %v3488 = vunpack.c.l.b16 %v3030
    %v3489 = vunpack.c.h.b16 %v3030
    %v3490 = vunpack.c.l.b16 %v3031
    %v3491 = vunpack.c.h.b16 %v3031
    %v3492 = vunpack.c.l.b16 %v3032
    %v3493 = vunpack.c.h.b16 %v3032
    %v3494 = vunpack.c.l.b16 %v3033
    %v3495 = vunpack.c.h.b16 %v3033
    %v3496 = vunpack.c.l.b16 %v3034
    %v3497 = vunpack.c.h.b16 %v3034
    %v3498 = vunpack.c.l.b16 %v3035
    %v3499 = vunpack.c.h.b16 %v3035
    %v3500 = vunpack.c.l.b16 %v3036
    %v3501 = vunpack.c.h.b16 %v3036
    %v3502 = vunpack.c.l.b16 %v3037
    %v3503 = vunpack.c.h.b16 %v3037
    %v3504 = vunpack.c.l.b16 %v3038
    %v3505 = vunpack.c.h.b16 %v3038
    %v3506 = vunpack.c.l.b16 %v3039
    %v3507 = vunpack.c.h.b16 %v3039
    %v3508 = vunpack.c.l.b16 %v3040
    %v3509 = vunpack.c.h.b16 %v3040
    %v3510 = vunpack.c.l.b16 %v3041
    %v3511 = vunpack.c.h.b16 %v3041
    %v3512 = vunpack.c.l.b16 %v3042
    %v3513 = vunpack.c.h.b16 %v3042
    %v3514 = vunpack.c.l.b16 %v3043
    %v3515 = vunpack.c.h.b16 %v3043
    %v3516 = vunpack.c.l.b16 %v3044
    %v3517 = vunpack.c.h.b16 %v3044
    %v3518 = vunpack.c.l.b16 %v3045
    %v3519 = vunpack.c.h.b16 %v3045
    %v3520 = vunpack.c.l.b16 %v3046
    %v3521 = vunpack.c.h.b16 %v3046
    %v3522 = vunpack.c.l.b16 %v3047
    %v3523 = vunpack.c.h.b16 %v3047
    %v3524 = vunpack.c.l.b16 %v3048
    %v3525 = vunpack.c.h.b16 %v3048
    %v3526 = vunpack.c.l.b16 %v3049
    %v3527 = vunpack.c.h.b16 %v3049
    %v3528 = vunpack.c.l.b16 %v3050
    %v3529 = vunpack.c.h.b16 %v3050
    %v3530 = vunpack.c.l.b16 %v3051
    %v3531 = vunpack.c.h.b16 %v3051
    %v3532 = vunpack.c.l.b16 %v3052
    %v3533 = vunpack.c.h.b16 %v3052
    %v3534 = vunpack.c.l.b16 %v3053
    %v3535 = vunpack.c.h.b16 %v3053
    %v3536 = vunpack.c.l.b16 %v3054
    %v3537 = vunpack.c.h.b16 %v3054
    %v3538 = vunpack.c.l.b16 %v3055
    %v3539 = vunpack.c.h.b16 %v3055
    %v3540 = vunpack.c.l.b16 %v3056
    %v3541 = vunpack.c.h.b16 %v3056
    %v3542 = vunpack.c.l.b16 %v3057
    %v3543 = vunpack.c.h.b16 %v3057
    %v3544 = vunpack.c.l.b16 %v3058
    %v3545 = vunpack.c.h.b16 %v3058
    %v3546 = vunpack.c.l.b16 %v3059
    %v3547 = vunpack.c.h.b16 %v3059
    %v3548 = vunpack.c.l.b16 %v3060
    %v3549 = vunpack.c.h.b16 %v3060
    %v3550 = vunpack.c.l.b16 %v3061
    %v3551 = vunpack.c.h.b16 %v3061
    %v3552 = vunpack.c.l.b16 %v3062
    %v3553 = vunpack.c.h.b16 %v3062
    %v3554 = vunpack.c.l.b16 %v3063
    %v3555 = vunpack.c.h.b16 %v3063
    %v3556 = vunpack.c.l.b16 %v3064
    %v3557 = vunpack.c.h.b16 %v3064
    %v3558 = vunpack.c.l.b16 %v3065
    %v3559 = vunpack.c.h.b16 %v3065
    %v3560 = vunpack.c.l.b16 %v3066
    %v3561 = vunpack.c.h.b16 %v3066
    %v3562 = vunpack.c.l.b16 %v3067
    %v3563 = vunpack.c.h.b16 %v3067
    %v3564 = vunpack.c.l.b16 %v3068
    %v3565 = vunpack.c.h.b16 %v3068
    %v3566 = vunpack.c.l.b16 %v3069
    %v3567 = vunpack.c.h.b16 %v3069
    %v3568 = vunpack.c.l.b16 %v3070
    %v3569 = vunpack.c.h.b16 %v3070
    %v3570 = vunpack.c.l.b16 %v3071
    %v3571 = vunpack.c.h.b16 %v3071
    %v3572 = vunpack.c.l.b16 %v3072
    %v3573 = vunpack.c.h.b16 %v3072
    %v3574 = vunpack.c.l.b16 %v3073
    %v3575 = vunpack.c.h.b16 %v3073
    %v3576 = vunpack.c.l.b16 %v3074
    %v3577 = vunpack.c.h.b16 %v3074
    %v3578 = vunpack.c.l.b16 %v3075
    %v3579 = vunpack.c.h.b16 %v3075
    %v3580 = vunpack.c.l.b16 %v3076
    %v3581 = vunpack.c.h.b16 %v3076
    %v3582 = vunpack.c.l.b16 %v3077
    %v3583 = vunpack.c.h.b16 %v3077
    %v3584 = vunpack.c.l.b16 %v3078
    %v3585 = vunpack.c.h.b16 %v3078
    %v3586 = vunpack.c.l.b16 %v3079
    %v3587 = vunpack.c.h.b16 %v3079
    %v3588 = vunpack.c.l.b16 %v3080
    %v3589 = vunpack.c.h.b16 %v3080
    %v3590 = vunpack.c.l.b16 %v3081
    %v3591 = vunpack.c.h.b16 %v3081
    %v3592 = vunpack.c.l.b16 %v3082
    %v3593 = vunpack.c.h.b16 %v3082
    %v3594 = vunpack.c.l.b16 %v3083
    %v3595 = vunpack.c.h.b16 %v3083
    %v3596 = vunpack.c.l.b16 %v3084
    %v3597 = vunpack.c.h.b16 %v3084
    %v3598 = vunpack.c.l.b16 %v3085
    %v3599 = vunpack.c.h.b16 %v3085
    %v3600 = vunpack.c.l.b16 %v3086
    %v3601 = vunpack.c.h.b16 %v3086
    %v3602 = vunpack.c.l.b16 %v3087
    %v3603 = vunpack.c.h.b16 %v3087
    %v3604 = vunpack.c.l.b16 %v3088
    %v3605 = vunpack.c.h.b16 %v3088
    %v3606 = vunpack.c.l.b16 %v3089
    %v3607 = vunpack.c.h.b16 %v3089
    %v3608 = vunpack.c.l.b16 %v3090
    %v3609 = vunpack.c.h.b16 %v3090
    %v3610 = vunpack.c.l.b16 %v3091
    %v3611 = vunpack.c.h.b16 %v3091
    %v3612 = vunpack.c.l.b16 %v3092
    %v3613 = vunpack.c.h.b16 %v3092
    %v3614 = vunpack.c.l.b16 %v3093
    %v3615 = vunpack.c.h.b16 %v3093
    %v3616 = vunpack.c.l.b16 %v3094
    %v3617 = vunpack.c.h.b16 %v3094
    %v3618 = vunpack.c.l.b16 %v3095
    %v3619 = vunpack.c.h.b16 %v3095
    %v3620 = vunpack.c.l.b16 %v3096
    %v3621 = vunpack.c.h.b16 %v3096
    %v3622 = vunpack.c.l.b16 %v3097
    %v3623 = vunpack.c.h.b16 %v3097
    %v3624 = vunpack.c.l.b16 %v3098
    %v3625 = vunpack.c.h.b16 %v3098
    %v3626 = vunpack.c.l.b16 %v3099
    %v3627 = vunpack.c.h.b16 %v3099
    %v3628 = vpack.c.b16 %v3438, %v3436
    %v3629 = vpack.c.b16 %v3439, %v3437
    %v3630 = vpack.c.b16 %v3442, %v3440
    %v3631 = vpack.c.b16 %v3443, %v3441
    %v3632 = vpack.c.b16 %v3446, %v3444
    %v3633 = vpack.c.b16 %v3447, %v3445
    %v3634 = vpack.c.b16 %v3450, %v3448
    %v3635 = vpack.c.b16 %v3451, %v3449
    %v3636 = vpack.c.b16 %v3454, %v3452
    %v3637 = vpack.c.b16 %v3455, %v3453
    %v3638 = vpack.c.b16 %v3458, %v3456
    %v3639 = vpack.c.b16 %v3459, %v3457
    %v3640 = vpack.c.b16 %v3462, %v3460
    %v3641 = vpack.c.b16 %v3463, %v3461
    %v3642 = vpack.c.b16 %v3466, %v3464
    %v3643 = vpack.c.b16 %v3467, %v3465
    %v3644 = vpack.c.b16 %v3470, %v3468
    %v3645 = vpack.c.b16 %v3471, %v3469
    %v3646 = vpack.c.b16 %v3474, %v3472
    %v3647 = vpack.c.b16 %v3475, %v3473
    %v3648 = vpack.c.b16 %v3478, %v3476
    %v3649 = vpack.c.b16 %v3479, %v3477
    %v3650 = vpack.c.b16 %v3482, %v3480
    %v3651 = vpack.c.b16 %v3483, %v3481
    %v3652 = vpack.c.b16 %v3486, %v3484
    %v3653 = vpack.c.b16 %v3487, %v3485
    %v3654 = vpack.c.b16 %v3490, %v3488
    %v3655 = vpack.c.b16 %v3491, %v3489
    %v3656 = vpack.c.b16 %v3494, %v3492
    %v3657 = vpack.c.b16 %v3495, %v3493
    %v3658 = vpack.c.b16 %v3498, %v3496
    %v3659 = vpack.c.b16 %v3499, %v3497
    %v3660 = vpack.c.b16 %v3502, %v3500
    %v3661 = vpack.c.b16 %v3503, %v3501
    %v3662 = vpack.c.b16 %v3506, %v3504
    %v3663 = vpack.c.b16 %v3507, %v3505
    %v3664 = vpack.c.b16 %v3510, %v3508
    %v3665 = vpack.c.b16 %v3511, %v3509
    %v3666 = vpack.c.b16 %v3514, %v3512
    %v3667 = vpack.c.b16 %v3515, %v3513
    %v3668 = vpack.c.b16 %v3518, %v3516
    %v3669 = vpack.c.b16 %v3519, %v3517
    %v3670 = vpack.c.b16 %v3522, %v3520
    %v3671 = vpack.c.b16 %v3523, %v3521
    %v3672 = vpack.c.b16 %v3526, %v3524
    %v3673 = vpack.c.b16 %v3527, %v3525
    %v3674 = vpack.c.b16 %v3530, %v3528
    %v3675 = vpack.c.b16 %v3531, %v3529
    %v3676 = vpack.c.b16 %v3534, %v3532
    %v3677 = vpack.c.b16 %v3535, %v3533
    %v3678 = vpack.c.b16 %v3538, %v3536
    %v3679 = vpack.c.b16 %v3539, %v3537
    %v3680 = vpack.c.b16 %v3542, %v3540
    %v3681 = vpack.c.b16 %v3543, %v3541
    %v3682 = vpack.c.b16 %v3546, %v3544
    %v3683 = vpack.c.b16 %v3547, %v3545
    %v3684 = vpack.c.b16 %v3550, %v3548
    %v3685 = vpack.c.b16 %v3551, %v3549
    %v3686 = vpack.c.b16 %v3554, %v3552
    %v3687 = vpack.c.b16 %v3555, %v3553
    %v3688 = vpack.c.b16 %v3558, %v3556
    %v3689 = vpack.c.b16 %v3559, %v3557
    %v3690 = vpack.c.b16 %v3562, %v3560
    %v3691 = vpack.c.b16 %v3563, %v3561
    %v3692 = vpack.c.b16 %v3566, %v3564
    %v3693 = vpack.c.b16 %v3567, %v3565
    %v3694 = vpack.c.b16 %v3570, %v3568
    %v3695 = vpack.c.b16 %v3571, %v3569
    %v3696 = vpack.c.b16 %v3574, %v3572
    %v3697 = vpack.c.b16 %v3575, %v3573
    %v3698 = vpack.c.b16 %v3578, %v3576
    %v3699 = vpack.c.b16 %v3579, %v3577
    %v3700 = vpack.c.b16 %v3582, %v3580
    %v3701 = vpack.c.b16 %v3583, %v3581
    %v3702 = vpack.c.b16 %v3586, %v3584
    %v3703 = vpack.c.b16 %v3587, %v3585
    %v3704 = vpack.c.b16 %v3590, %v3588
    %v3705 = vpack.c.b16 %v3591, %v3589
    %v3706 = vpack.c.b16 %v3594, %v3592
    %v3707 = vpack.c.b16 %v3595, %v3593
    %v3708 = vpack.c.b16 %v3598, %v3596
    %v3709 = vpack.c.b16 %v3599, %v3597
    %v3710 = vpack.c.b16 %v3602, %v3600
    %v3711 = vpack.c.b16 %v3603, %v3601
    %v3712 = vpack.c.b16 %v3606, %v3604
    %v3713 = vpack.c.b16 %v3607, %v3605
    %v3714 = vpack.c.b16 %v3610, %v3608
    %v3715 = vpack.c.b16 %v3611, %v3609
    %v3716 = vpack.c.b16 %v3614, %v3612
    %v3717 = vpack.c.b16 %v3615, %v3613
    %v3718 = vpack.c.b16 %v3618, %v3616
    %v3719 = vpack.c.b16 %v3619, %v3617
    %v3720 = vpack.c.b16 %v3622, %v3620
    %v3721 = vpack.c.b16 %v3623, %v3621
    %v3722 = vpack.c.b16 %v3626, %v3624
    %v3723 = vpack.c.b16 %v3627, %v3625
    %3820 = vmatprep.subr.bf16.mxu0 %v3643
    %3821 = vmatpush1.bf16.msra.mxu0 %v3642
    %3822 = vmatprep.subr.bf16.mxu0 %v3641
    %3823 = vmatpush1.bf16.msra.mxu0 %v3640
    %3824 = vmatprep.subr.bf16.mxu0 %v3639
    %3825 = vmatpush1.bf16.msra.mxu0 %v3638
    %3826 = vmatprep.subr.bf16.mxu0 %v3637
    %3827 = vmatpush1.bf16.msra.mxu0 %v3636
    %3828 = vmatprep.subr.bf16.mxu0 %v3635
    %3829 = vmatpush1.bf16.msra.mxu0 %v3634
    %3830 = vmatprep.subr.bf16.mxu0 %v3633
    %3831 = vmatpush1.bf16.msra.mxu0 %v3632
    %3832 = vmatprep.subr.bf16.mxu0 %v3631
    %3833 = vmatpush1.bf16.msra.mxu0 %v3630
    %3834 = vmatprep.subr.bf16.mxu0 %v3629
    %3835 = vmatpush1.bf16.msra.mxu0 %v3628
    %3836 = vmatprep.subr.bf16.mxu0 %v3659
    %3837 = vmatpush2.bf16.msra.mxu0 %v3658
    %3838 = vmatprep.subr.bf16.mxu0 %v3657
    %3839 = vmatpush2.bf16.msra.mxu0 %v3656
    %3840 = vmatprep.subr.bf16.mxu0 %v3655
    %3841 = vmatpush2.bf16.msra.mxu0 %v3654
    %3842 = vmatprep.subr.bf16.mxu0 %v3653
    %3843 = vmatpush2.bf16.msra.mxu0 %v3652
    %3844 = vmatprep.subr.bf16.mxu0 %v3651
    %3845 = vmatpush2.bf16.msra.mxu0 %v3650
    %3846 = vmatprep.subr.bf16.mxu0 %v3649
    %3847 = vmatpush2.bf16.msra.mxu0 %v3648
    %3848 = vmatprep.subr.bf16.mxu0 %v3647
    %3849 = vmatpush2.bf16.msra.mxu0 %v3646
    %3850 = vmatprep.subr.bf16.mxu0 %v3645
    %3851 = vmatpush2.bf16.msra.mxu0 %v3644
    %3852 = vmatprep.mubr.bf16.mxu0 %v3245
    %3853 = vmatmul.mubr.bf16.gmra.mxu0 %v3244
    %v3854 = vpop.f32.mrf.mxu0
    %v3855 = vadd.f32 0.0, %v3854
    %v3856 = vpop.f32.mrf.mxu0
    %v3857 = vadd.f32 0.0, %v3856
    %v3858 = vpop.f32.mrf.mxu0
    %v3859 = vadd.f32 0.0, %v3858
    %v3860 = vpop.f32.mrf.mxu0
    %v3861 = vadd.f32 0.0, %v3860
    %3862 = vmatprep.mubr.bf16.mxu0 %v3251
    %3863 = vmatmul.mubr.bf16.gmra.mxu0 %v3250
    %v3864 = vpop.f32.mrf.mxu0
    %v3865 = vadd.f32 0.0, %v3864
    %v3866 = vpop.f32.mrf.mxu0
    %v3867 = vadd.f32 0.0, %v3866
    %v3868 = vpop.f32.mrf.mxu0
    %v3869 = vadd.f32 0.0, %v3868
    %v3870 = vpop.f32.mrf.mxu0
    %v3871 = vadd.f32 0.0, %v3870
    %3872 = vmatprep.mubr.bf16.mxu0 %v3257
    %3873 = vmatmul.mubr.bf16.gmra.mxu0 %v3256
    %v3874 = vpop.f32.mrf.mxu0
    %v3875 = vadd.f32 0.0, %v3874
    %v3876 = vpop.f32.mrf.mxu0
    %v3877 = vadd.f32 0.0, %v3876
    %v3878 = vpop.f32.mrf.mxu0
    %v3879 = vadd.f32 0.0, %v3878
    %v3880 = vpop.f32.mrf.mxu0
    %v3881 = vadd.f32 0.0, %v3880
    %3882 = vmatprep.mubr.bf16.mxu0 %v3263
    %3883 = vmatmul.mubr.bf16.gmra.mxu0 %v3262
    %v3884 = vpop.f32.mrf.mxu0
    %v3885 = vadd.f32 0.0, %v3884
    %v3886 = vpop.f32.mrf.mxu0
    %v3887 = vadd.f32 0.0, %v3886
    %v3888 = vpop.f32.mrf.mxu0
    %v3889 = vadd.f32 0.0, %v3888
    %v3890 = vpop.f32.mrf.mxu0
    %v3891 = vadd.f32 0.0, %v3890
    %3892 = vmatprep.mubr.bf16.mxu0 %v3269
    %3893 = vmatmul.mubr.bf16.gmra.mxu0 %v3268
    %v3894 = vpop.f32.mrf.mxu0
    %v3895 = vadd.f32 0.0, %v3894
    %v3896 = vpop.f32.mrf.mxu0
    %v3897 = vadd.f32 0.0, %v3896
    %v3898 = vpop.f32.mrf.mxu0
    %v3899 = vadd.f32 0.0, %v3898
    %v3900 = vpop.f32.mrf.mxu0
    %v3901 = vadd.f32 0.0, %v3900
    %3902 = vmatprep.mubr.bf16.mxu0 %v3275
    %3903 = vmatmul.mubr.bf16.gmra.mxu0 %v3274
    %v3904 = vpop.f32.mrf.mxu0
    %v3905 = vadd.f32 0.0, %v3904
    %v3906 = vpop.f32.mrf.mxu0
    %v3907 = vadd.f32 0.0, %v3906
    %v3908 = vpop.f32.mrf.mxu0
    %v3909 = vadd.f32 0.0, %v3908
    %v3910 = vpop.f32.mrf.mxu0
    %v3911 = vadd.f32 0.0, %v3910
    %3912 = vmatprep.mubr.bf16.mxu0 %v3281
    %3913 = vmatmul.mubr.bf16.gmra.mxu0 %v3280
    %v3914 = vpop.f32.mrf.mxu0
    %v3915 = vadd.f32 0.0, %v3914
    %v3916 = vpop.f32.mrf.mxu0
    %v3917 = vadd.f32 0.0, %v3916
    %v3918 = vpop.f32.mrf.mxu0
    %v3919 = vadd.f32 0.0, %v3918
    %v3920 = vpop.f32.mrf.mxu0
    %v3921 = vadd.f32 0.0, %v3920
    %3922 = vmatprep.mubr.bf16.mxu0 %v3287
    %3923 = vmatmul.mubr.bf16.gmra.mxu0 %v3286
    %v3924 = vpop.f32.mrf.mxu0
    %v3925 = vadd.f32 0.0, %v3924
    %v3926 = vpop.f32.mrf.mxu0
    %v3927 = vadd.f32 0.0, %v3926
    %v3928 = vpop.f32.mrf.mxu0
    %v3929 = vadd.f32 0.0, %v3928
    %v3930 = vpop.f32.mrf.mxu0
    %v3931 = vadd.f32 0.0, %v3930
    %3932 = vdwg.mxu0
    %3933 = vmatprep.subr.bf16.mxu0 %v3675
    %3934 = vmatpush1.bf16.msra.mxu0 %v3674
    %3935 = vmatprep.subr.bf16.mxu0 %v3673
    %3936 = vmatpush1.bf16.msra.mxu0 %v3672
    %3937 = vmatprep.subr.bf16.mxu0 %v3671
    %3938 = vmatpush1.bf16.msra.mxu0 %v3670
    %3939 = vmatprep.subr.bf16.mxu0 %v3669
    %3940 = vmatpush1.bf16.msra.mxu0 %v3668
    %3941 = vmatprep.subr.bf16.mxu0 %v3667
    %3942 = vmatpush1.bf16.msra.mxu0 %v3666
    %3943 = vmatprep.subr.bf16.mxu0 %v3665
    %3944 = vmatpush1.bf16.msra.mxu0 %v3664
    %3945 = vmatprep.subr.bf16.mxu0 %v3663
    %3946 = vmatpush1.bf16.msra.mxu0 %v3662
    %3947 = vmatprep.subr.bf16.mxu0 %v3661
    %3948 = vmatpush1.bf16.msra.mxu0 %v3660
    %3949 = vmatprep.subr.bf16.mxu0 %v3691
    %3950 = vmatpush2.bf16.msra.mxu0 %v3690
    %3951 = vmatprep.subr.bf16.mxu0 %v3689
    %3952 = vmatpush2.bf16.msra.mxu0 %v3688
    %3953 = vmatprep.subr.bf16.mxu0 %v3687
    %3954 = vmatpush2.bf16.msra.mxu0 %v3686
    %3955 = vmatprep.subr.bf16.mxu0 %v3685
    %3956 = vmatpush2.bf16.msra.mxu0 %v3684
    %3957 = vmatprep.subr.bf16.mxu0 %v3683
    %3958 = vmatpush2.bf16.msra.mxu0 %v3682
    %3959 = vmatprep.subr.bf16.mxu0 %v3681
    %3960 = vmatpush2.bf16.msra.mxu0 %v3680
    %3961 = vmatprep.subr.bf16.mxu0 %v3679
    %3962 = vmatpush2.bf16.msra.mxu0 %v3678
    %3963 = vmatprep.subr.bf16.mxu0 %v3677
    %3964 = vmatpush2.bf16.msra.mxu0 %v3676
    %3965 = vmatprep.mubr.bf16.mxu0 %v3247
    %3966 = vmatmul.mubr.bf16.gmra.mxu0 %v3246
    %v3967 = vpop.f32.mrf.mxu0
    %v3968 = vadd.f32 %v3855, %v3967
    %v3969 = vpop.f32.mrf.mxu0
    %v3970 = vadd.f32 %v3857, %v3969
    %v3971 = vpop.f32.mrf.mxu0
    %v3972 = vadd.f32 %v3859, %v3971
    %v3973 = vpop.f32.mrf.mxu0
    %v3974 = vadd.f32 %v3861, %v3973
    %3975 = vmatprep.mubr.bf16.mxu0 %v3253
    %3976 = vmatmul.mubr.bf16.gmra.mxu0 %v3252
    %v3977 = vpop.f32.mrf.mxu0
    %v3978 = vadd.f32 %v3865, %v3977
    %v3979 = vpop.f32.mrf.mxu0
    %v3980 = vadd.f32 %v3867, %v3979
    %v3981 = vpop.f32.mrf.mxu0
    %v3982 = vadd.f32 %v3869, %v3981
    %v3983 = vpop.f32.mrf.mxu0
    %v3984 = vadd.f32 %v3871, %v3983
    %3985 = vmatprep.mubr.bf16.mxu0 %v3259
    %3986 = vmatmul.mubr.bf16.gmra.mxu0 %v3258
    %v3987 = vpop.f32.mrf.mxu0
    %v3988 = vadd.f32 %v3875, %v3987
    %v3989 = vpop.f32.mrf.mxu0
    %v3990 = vadd.f32 %v3877, %v3989
    %v3991 = vpop.f32.mrf.mxu0
    %v3992 = vadd.f32 %v3879, %v3991
    %v3993 = vpop.f32.mrf.mxu0
    %v3994 = vadd.f32 %v3881, %v3993
    %3995 = vmatprep.mubr.bf16.mxu0 %v3265
    %3996 = vmatmul.mubr.bf16.gmra.mxu0 %v3264
    %v3997 = vpop.f32.mrf.mxu0
    %v3998 = vadd.f32 %v3885, %v3997
    %v3999 = vpop.f32.mrf.mxu0
    %v4000 = vadd.f32 %v3887, %v3999
    %v4001 = vpop.f32.mrf.mxu0
    %v4002 = vadd.f32 %v3889, %v4001
    %v4003 = vpop.f32.mrf.mxu0
    %v4004 = vadd.f32 %v3891, %v4003
    %4005 = vmatprep.mubr.bf16.mxu0 %v3271
    %4006 = vmatmul.mubr.bf16.gmra.mxu0 %v3270
    %v4007 = vpop.f32.mrf.mxu0
    %v4008 = vadd.f32 %v3895, %v4007
    %v4009 = vpop.f32.mrf.mxu0
    %v4010 = vadd.f32 %v3897, %v4009
    %v4011 = vpop.f32.mrf.mxu0
    %v4012 = vadd.f32 %v3899, %v4011
    %v4013 = vpop.f32.mrf.mxu0
    %v4014 = vadd.f32 %v3901, %v4013
    %4015 = vmatprep.mubr.bf16.mxu0 %v3277
    %4016 = vmatmul.mubr.bf16.gmra.mxu0 %v3276
    %v4017 = vpop.f32.mrf.mxu0
    %v4018 = vadd.f32 %v3905, %v4017
    %v4019 = vpop.f32.mrf.mxu0
    %v4020 = vadd.f32 %v3907, %v4019
    %v4021 = vpop.f32.mrf.mxu0
    %v4022 = vadd.f32 %v3909, %v4021
    %v4023 = vpop.f32.mrf.mxu0
    %v4024 = vadd.f32 %v3911, %v4023
    %4025 = vmatprep.mubr.bf16.mxu0 %v3283
    %4026 = vmatmul.mubr.bf16.gmra.mxu0 %v3282
    %v4027 = vpop.f32.mrf.mxu0
    %v4028 = vadd.f32 %v3915, %v4027
    %v4029 = vpop.f32.mrf.mxu0
    %v4030 = vadd.f32 %v3917, %v4029
    %v4031 = vpop.f32.mrf.mxu0
    %v4032 = vadd.f32 %v3919, %v4031
    %v4033 = vpop.f32.mrf.mxu0
    %v4034 = vadd.f32 %v3921, %v4033
    %4035 = vmatprep.mubr.bf16.mxu0 %v3289
    %4036 = vmatmul.mubr.bf16.gmra.mxu0 %v3288
    %v4037 = vpop.f32.mrf.mxu0
    %v4038 = vadd.f32 %v3925, %v4037
    %v4039 = vpop.f32.mrf.mxu0
    %v4040 = vadd.f32 %v3927, %v4039
    %v4041 = vpop.f32.mrf.mxu0
    %v4042 = vadd.f32 %v3929, %v4041
    %v4043 = vpop.f32.mrf.mxu0
    %v4044 = vadd.f32 %v3931, %v4043
    %4045 = vdwg.mxu0
    %4046 = vmatprep.subr.bf16.mxu0 %v3707
    %4047 = vmatpush1.bf16.msra.mxu0 %v3706
    %4048 = vmatprep.subr.bf16.mxu0 %v3705
    %4049 = vmatpush1.bf16.msra.mxu0 %v3704
    %4050 = vmatprep.subr.bf16.mxu0 %v3703
    %4051 = vmatpush1.bf16.msra.mxu0 %v3702
    %4052 = vmatprep.subr.bf16.mxu0 %v3701
    %4053 = vmatpush1.bf16.msra.mxu0 %v3700
    %4054 = vmatprep.subr.bf16.mxu0 %v3699
    %4055 = vmatpush1.bf16.msra.mxu0 %v3698
    %4056 = vmatprep.subr.bf16.mxu0 %v3697
    %4057 = vmatpush1.bf16.msra.mxu0 %v3696
    %4058 = vmatprep.subr.bf16.mxu0 %v3695
    %4059 = vmatpush1.bf16.msra.mxu0 %v3694
    %4060 = vmatprep.subr.bf16.mxu0 %v3693
    %4061 = vmatpush1.bf16.msra.mxu0 %v3692
    %4062 = vmatprep.subr.bf16.mxu0 %v3723
    %4063 = vmatpush2.bf16.msra.mxu0 %v3722
    %4064 = vmatprep.subr.bf16.mxu0 %v3721
    %4065 = vmatpush2.bf16.msra.mxu0 %v3720
    %4066 = vmatprep.subr.bf16.mxu0 %v3719
    %4067 = vmatpush2.bf16.msra.mxu0 %v3718
    %4068 = vmatprep.subr.bf16.mxu0 %v3717
    %4069 = vmatpush2.bf16.msra.mxu0 %v3716
    %4070 = vmatprep.subr.bf16.mxu0 %v3715
    %4071 = vmatpush2.bf16.msra.mxu0 %v3714
    %4072 = vmatprep.subr.bf16.mxu0 %v3713
    %4073 = vmatpush2.bf16.msra.mxu0 %v3712
    %4074 = vmatprep.subr.bf16.mxu0 %v3711
    %4075 = vmatpush2.bf16.msra.mxu0 %v3710
    %4076 = vmatprep.subr.bf16.mxu0 %v3709
    %4077 = vmatpush2.bf16.msra.mxu0 %v3708
    %4078 = vmatprep.mubr.bf16.mxu0 %v3249
    %4079 = vmatmul.mubr.bf16.gmra.mxu0 %v3248
    %v4080 = vpop.f32.mrf.mxu0
    %v4081 = vadd.f32 %v3968, %v4080
    %v4082 = vpop.f32.mrf.mxu0
    %v4083 = vadd.f32 %v3970, %v4082
    %v4084 = vpop.f32.mrf.mxu0
    %v4085 = vadd.f32 %v3972, %v4084
    %v4086 = vpop.f32.mrf.mxu0
    %v4087 = vadd.f32 %v3974, %v4086
    %4088 = vmatprep.mubr.bf16.mxu0 %v3255
    %4089 = vmatmul.mubr.bf16.gmra.mxu0 %v3254
    %v4090 = vpop.f32.mrf.mxu0
    %v4091 = vadd.f32 %v3978, %v4090
    %v4092 = vpop.f32.mrf.mxu0
    %v4093 = vadd.f32 %v3980, %v4092
    %v4094 = vpop.f32.mrf.mxu0
    %v4095 = vadd.f32 %v3982, %v4094
    %v4096 = vpop.f32.mrf.mxu0
    %v4097 = vadd.f32 %v3984, %v4096
    %4098 = vmatprep.mubr.bf16.mxu0 %v3261
    %4099 = vmatmul.mubr.bf16.gmra.mxu0 %v3260
    %v4100 = vpop.f32.mrf.mxu0
    %v4101 = vadd.f32 %v3988, %v4100
    %v4102 = vpop.f32.mrf.mxu0
    %v4103 = vadd.f32 %v3990, %v4102
    %v4104 = vpop.f32.mrf.mxu0
    %v4105 = vadd.f32 %v3992, %v4104
    %v4106 = vpop.f32.mrf.mxu0
    %v4107 = vadd.f32 %v3994, %v4106
    %4108 = vmatprep.mubr.bf16.mxu0 %v3267
    %4109 = vmatmul.mubr.bf16.gmra.mxu0 %v3266
    %v4110 = vpop.f32.mrf.mxu0
    %v4111 = vadd.f32 %v3998, %v4110
    %v4112 = vpop.f32.mrf.mxu0
    %v4113 = vadd.f32 %v4000, %v4112
    %v4114 = vpop.f32.mrf.mxu0
    %v4115 = vadd.f32 %v4002, %v4114
    %v4116 = vpop.f32.mrf.mxu0
    %v4117 = vadd.f32 %v4004, %v4116
    %4118 = vmatprep.mubr.bf16.mxu0 %v3273
    %4119 = vmatmul.mubr.bf16.gmra.mxu0 %v3272
    %v4120 = vpop.f32.mrf.mxu0
    %v4121 = vadd.f32 %v4008, %v4120
    %v4122 = vpop.f32.mrf.mxu0
    %v4123 = vadd.f32 %v4010, %v4122
    %v4124 = vpop.f32.mrf.mxu0
    %v4125 = vadd.f32 %v4012, %v4124
    %v4126 = vpop.f32.mrf.mxu0
    %v4127 = vadd.f32 %v4014, %v4126
    %4128 = vmatprep.mubr.bf16.mxu0 %v3279
    %4129 = vmatmul.mubr.bf16.gmra.mxu0 %v3278
    %v4130 = vpop.f32.mrf.mxu0
    %v4131 = vadd.f32 %v4018, %v4130
    %v4132 = vpop.f32.mrf.mxu0
    %v4133 = vadd.f32 %v4020, %v4132
    %v4134 = vpop.f32.mrf.mxu0
    %v4135 = vadd.f32 %v4022, %v4134
    %v4136 = vpop.f32.mrf.mxu0
    %v4137 = vadd.f32 %v4024, %v4136
    %4138 = vmatprep.mubr.bf16.mxu0 %v3285
    %4139 = vmatmul.mubr.bf16.gmra.mxu0 %v3284
    %v4140 = vpop.f32.mrf.mxu0
    %v4141 = vadd.f32 %v4028, %v4140
    %v4142 = vpop.f32.mrf.mxu0
    %v4143 = vadd.f32 %v4030, %v4142
    %v4144 = vpop.f32.mrf.mxu0
    %v4145 = vadd.f32 %v4032, %v4144
    %v4146 = vpop.f32.mrf.mxu0
    %v4147 = vadd.f32 %v4034, %v4146
    %4148 = vmatprep.mubr.bf16.mxu0 %v3291
    %4149 = vmatmul.mubr.bf16.gmra.mxu0 %v3290
    %v4150 = vpop.f32.mrf.mxu0
    %v4151 = vadd.f32 %v4038, %v4150
    %v4152 = vpop.f32.mrf.mxu0
    %v4153 = vadd.f32 %v4040, %v4152
    %v4154 = vpop.f32.mrf.mxu0
    %v4155 = vadd.f32 %v4042, %v4154
    %v4156 = vpop.f32.mrf.mxu0
    %v4157 = vadd.f32 %v4044, %v4156
    %4158 = vdwg.mxu0
    %v4159 = vadd.f32 %v2877, %v4081
    %v4160 = vadd.f32 %v2879, %v4083
    %v4161 = vadd.f32 %v2881, %v4085
    %v4162 = vadd.f32 %v2883, %v4087
    %v4163 = vadd.f32 %v2887, %v4091
    %v4164 = vadd.f32 %v2889, %v4093
    %v4165 = vadd.f32 %v2891, %v4095
    %v4166 = vadd.f32 %v2893, %v4097
    %v4167 = vadd.f32 %v2897, %v4101
    %v4168 = vadd.f32 %v2899, %v4103
    %v4169 = vadd.f32 %v2901, %v4105
    %v4170 = vadd.f32 %v2903, %v4107
    %v4171 = vadd.f32 %v2907, %v4111
    %v4172 = vadd.f32 %v2909, %v4113
    %v4173 = vadd.f32 %v2911, %v4115
    %v4174 = vadd.f32 %v2913, %v4117
    %v4175 = vadd.f32 %v2917, %v4121
    %v4176 = vadd.f32 %v2919, %v4123
    %v4177 = vadd.f32 %v2921, %v4125
    %v4178 = vadd.f32 %v2923, %v4127
    %v4179 = vadd.f32 %v2927, %v4131
    %v4180 = vadd.f32 %v2929, %v4133
    %v4181 = vadd.f32 %v2931, %v4135
    %v4182 = vadd.f32 %v2933, %v4137
    %v4183 = vadd.f32 %v2937, %v4141
    %v4184 = vadd.f32 %v2939, %v4143
    %v4185 = vadd.f32 %v2941, %v4145
    %v4186 = vadd.f32 %v2943, %v4147
    %v4187 = vadd.f32 %v2947, %v4151
    %v4188 = vadd.f32 %v2949, %v4153
    %v4189 = vadd.f32 %v2951, %v4155
    %v4190 = vadd.f32 %v2953, %v4157
    %v4191 = vmul.f32 %v4159, %v4159
    %v4192 = vmul.f32 %v4160, %v4160
    %v4193 = vmul.f32 %v4161, %v4161
    %v4194 = vmul.f32 %v4162, %v4162
    %v4195 = vmul.f32 %v4163, %v4163
    %v4196 = vmul.f32 %v4164, %v4164
    %v4197 = vmul.f32 %v4165, %v4165
    %v4198 = vmul.f32 %v4166, %v4166
    %v4199 = vmul.f32 %v4167, %v4167
    %v4200 = vmul.f32 %v4168, %v4168
    %v4201 = vmul.f32 %v4169, %v4169
    %v4202 = vmul.f32 %v4170, %v4170
    %v4203 = vmul.f32 %v4171, %v4171
    %v4204 = vmul.f32 %v4172, %v4172
    %v4205 = vmul.f32 %v4173, %v4173
    %v4206 = vmul.f32 %v4174, %v4174
    %v4207 = vmul.f32 %v4175, %v4175
    %v4208 = vmul.f32 %v4176, %v4176
    %v4209 = vmul.f32 %v4177, %v4177
    %v4210 = vmul.f32 %v4178, %v4178
    %v4211 = vmul.f32 %v4179, %v4179
    %v4212 = vmul.f32 %v4180, %v4180
    %v4213 = vmul.f32 %v4181, %v4181
    %v4214 = vmul.f32 %v4182, %v4182
    %v4215 = vmul.f32 %v4183, %v4183
    %v4216 = vmul.f32 %v4184, %v4184
    %v4217 = vmul.f32 %v4185, %v4185
    %v4218 = vmul.f32 %v4186, %v4186
    %v4219 = vmul.f32 %v4187, %v4187
    %v4220 = vmul.f32 %v4188, %v4188
    %v4221 = vmul.f32 %v4189, %v4189
    %v4222 = vmul.f32 %v4190, %v4190
    %v4223 = vadd.f32 %v4159, %v4161
    %v4224 = vadd.f32 %v4223, %v4163
    %v4225 = vadd.f32 %v4224, %v4165
    %v4226 = vadd.f32 %v4225, %v4167
    %v4227 = vadd.f32 %v4226, %v4169
    %v4228 = vadd.f32 %v4227, %v4171
    %v4229 = vadd.f32 %v4228, %v4173
    %v4230 = vadd.f32 %v4229, %v4175
    %v4231 = vadd.f32 %v4230, %v4177
    %v4232 = vadd.f32 %v4231, %v4179
    %v4233 = vadd.f32 %v4232, %v4181
    %v4234 = vadd.f32 %v4233, %v4183
    %v4235 = vadd.f32 %v4234, %v4185
    %v4236 = vadd.f32 %v4235, %v4187
    %v4237 = vadd.f32 %v4236, %v4189
    %v4238 = vrot.slane %v4237, 4
    %v4239 = vadd.f32 %v4237, %v4238
    %v4240 = vrot.slane %v4239, 2
    %v4241 = vadd.f32 %v4239, %v4240
    %v4242 = vrot.slane %v4241, 1
    %v4243 = vadd.f32 %v4241, %v4242
    %v4244 = vadd.f32 %v4160, %v4162
    %v4245 = vadd.f32 %v4244, %v4164
    %v4246 = vadd.f32 %v4245, %v4166
    %v4247 = vadd.f32 %v4246, %v4168
    %v4248 = vadd.f32 %v4247, %v4170
    %v4249 = vadd.f32 %v4248, %v4172
    %v4250 = vadd.f32 %v4249, %v4174
    %v4251 = vadd.f32 %v4250, %v4176
    %v4252 = vadd.f32 %v4251, %v4178
    %v4253 = vadd.f32 %v4252, %v4180
    %v4254 = vadd.f32 %v4253, %v4182
    %v4255 = vadd.f32 %v4254, %v4184
    %v4256 = vadd.f32 %v4255, %v4186
    %v4257 = vadd.f32 %v4256, %v4188
    %v4258 = vadd.f32 %v4257, %v4190
    %v4259 = vrot.slane %v4258, 4
    %v4260 = vadd.f32 %v4258, %v4259
    %v4261 = vrot.slane %v4260, 2
    %v4262 = vadd.f32 %v4260, %v4261
    %v4263 = vrot.slane %v4262, 1
    %v4264 = vadd.f32 %v4262, %v4263
    %v4265 = vadd.f32 %v4191, %v4193
    %v4266 = vadd.f32 %v4265, %v4195
    %v4267 = vadd.f32 %v4266, %v4197
    %v4268 = vadd.f32 %v4267, %v4199
    %v4269 = vadd.f32 %v4268, %v4201
    %v4270 = vadd.f32 %v4269, %v4203
    %v4271 = vadd.f32 %v4270, %v4205
    %v4272 = vadd.f32 %v4271, %v4207
    %v4273 = vadd.f32 %v4272, %v4209
    %v4274 = vadd.f32 %v4273, %v4211
    %v4275 = vadd.f32 %v4274, %v4213
    %v4276 = vadd.f32 %v4275, %v4215
    %v4277 = vadd.f32 %v4276, %v4217
    %v4278 = vadd.f32 %v4277, %v4219
    %v4279 = vadd.f32 %v4278, %v4221
    %v4280 = vrot.slane %v4279, 4
    %v4281 = vadd.f32 %v4279, %v4280
    %v4282 = vrot.slane %v4281, 2
    %v4283 = vadd.f32 %v4281, %v4282
    %v4284 = vrot.slane %v4283, 1
    %v4285 = vadd.f32 %v4283, %v4284
    %v4286 = vadd.f32 %v4192, %v4194
    %v4287 = vadd.f32 %v4286, %v4196
    %v4288 = vadd.f32 %v4287, %v4198
    %v4289 = vadd.f32 %v4288, %v4200
    %v4290 = vadd.f32 %v4289, %v4202
    %v4291 = vadd.f32 %v4290, %v4204
    %v4292 = vadd.f32 %v4291, %v4206
    %v4293 = vadd.f32 %v4292, %v4208
    %v4294 = vadd.f32 %v4293, %v4210
    %v4295 = vadd.f32 %v4294, %v4212
    %v4296 = vadd.f32 %v4295, %v4214
    %v4297 = vadd.f32 %v4296, %v4216
    %v4298 = vadd.f32 %v4297, %v4218
    %v4299 = vadd.f32 %v4298, %v4220
    %v4300 = vadd.f32 %v4299, %v4222
    %v4301 = vrot.slane %v4300, 4
    %v4302 = vadd.f32 %v4300, %v4301
    %v4303 = vrot.slane %v4302, 2
    %v4304 = vadd.f32 %v4302, %v4303
    %v4305 = vrot.slane %v4304, 1
    %v4306 = vadd.f32 %v4304, %v4305
    %v4307 = vmul.f32 %v4243, 0.0078125
    %v4308 = vmul.f32 %v4264, 0.0078125
    %v4309 = vmul.f32 %v4285, 0.0078125
    %v4310 = vmul.f32 %v4306, 0.0078125
    %v4311 = vmul.f32 %v4307, %v4307
    %v4312 = vmul.f32 %v4308, %v4308
    %v4313 = vsub.f32 %v4309, %v4311
    %v4314 = vsub.f32 %v4310, %v4312
    %v4315 = vld [vmem:[#allocation7] sm:$0x3]
    %v4316 = vadd.f32 %v4313, 1e-05
    %v4317 = vadd.f32 %v4314, 1e-05
    %v4318 = vrsqrt.pop %v4316
    %v4319 = vrsqrt.pop %v4317
    %v4322 = vcombine.low %v4318, %v4319
    %v4324 = vunpack.c.l.s4 1966171168
    %v4325 = vunpack.c.0.s8 %v4324
    %v4326 = vlaneseq
    %v4327 = vshrl.u32 %v4326, 7
    %v4328 = vsub.s32 %v4325, %v4327
    %v4329 = vrot.slane %v4322, %v4328
    %v4331 = vunpack.c.l.s4 1966171168
    %v4332 = vunpack.c.0.s8 %v4331
    %v4333 = vlaneseq
    %v4334 = vshrl.u32 %v4333, 7
    %v4335 = vsub.s32 %v4332, %v4334
    %v4336 = vrot.slane %v4329, %v4335
    %v4338 = vmul.f32 %v4315, %v4336
    %v4339 = vld [vmem:[#allocation9] sm:$0x3]
    %v4341 = vlaneseq
    %v4342 = vshrl.u32 %v4341, 7
    %v4343 = vsub.s32 0, %v4342
    %v4344 = vrot.slane %v4338, %v4343
    %v4345 = vlaneseq
    %v4346 = vshrl.u32 %v4345, 7
    %v4347 = vsub.s32 1, %v4346
    %v4348 = vrot.slane %v4338, %v4347
    %v4351 = vmul.f32 %v4307, %v4344
    %v4352 = vmul.f32 %v4308, %v4348
    %v4355 = vcombine.low %v4351, %v4352
    %v4357 = vunpack.c.l.s4 1966171168
    %v4358 = vunpack.c.0.s8 %v4357
    %v4359 = vlaneseq
    %v4360 = vshrl.u32 %v4359, 7
    %v4361 = vsub.s32 %v4358, %v4360
    %v4362 = vrot.slane %v4355, %v4361
    %v4364 = vunpack.c.l.s4 1966171168
    %v4365 = vunpack.c.0.s8 %v4364
    %v4366 = vlaneseq
    %v4367 = vshrl.u32 %v4366, 7
    %v4368 = vsub.s32 %v4365, %v4367
    %v4369 = vrot.slane %v4362, %v4368
    %v4371 = vsub.f32 %v4339, %v4369
    %v4372 = vmul.f32 %v4159, %v4344
    %v4373 = vmul.f32 %v4160, %v4348
    %v4374 = vmul.f32 %v4161, %v4344
    %v4375 = vmul.f32 %v4162, %v4348
    %v4376 = vmul.f32 %v4163, %v4344
    %v4377 = vmul.f32 %v4164, %v4348
    %v4378 = vmul.f32 %v4165, %v4344
    %v4379 = vmul.f32 %v4166, %v4348
    %v4380 = vmul.f32 %v4167, %v4344
    %v4381 = vmul.f32 %v4168, %v4348
    %v4382 = vmul.f32 %v4169, %v4344
    %v4383 = vmul.f32 %v4170, %v4348
    %v4384 = vmul.f32 %v4171, %v4344
    %v4385 = vmul.f32 %v4172, %v4348
    %v4386 = vmul.f32 %v4173, %v4344
    %v4387 = vmul.f32 %v4174, %v4348
    %v4388 = vmul.f32 %v4175, %v4344
    %v4389 = vmul.f32 %v4176, %v4348
    %v4390 = vmul.f32 %v4177, %v4344
    %v4391 = vmul.f32 %v4178, %v4348
    %v4392 = vmul.f32 %v4179, %v4344
    %v4393 = vmul.f32 %v4180, %v4348
    %v4394 = vmul.f32 %v4181, %v4344
    %v4395 = vmul.f32 %v4182, %v4348
    %v4396 = vmul.f32 %v4183, %v4344
    %v4397 = vmul.f32 %v4184, %v4348
    %v4398 = vmul.f32 %v4185, %v4344
    %v4399 = vmul.f32 %v4186, %v4348
    %v4400 = vmul.f32 %v4187, %v4344
    %v4401 = vmul.f32 %v4188, %v4348
    %v4402 = vmul.f32 %v4189, %v4344
    %v4403 = vmul.f32 %v4190, %v4348
    %v4405 = vlaneseq
    %v4406 = vshrl.u32 %v4405, 7
    %v4407 = vsub.s32 0, %v4406
    %v4408 = vrot.slane %v4371, %v4407
    %v4409 = vlaneseq
    %v4410 = vshrl.u32 %v4409, 7
    %v4411 = vsub.s32 1, %v4410
    %v4412 = vrot.slane %v4371, %v4411
    %v4415 = vadd.f32 %v4372, %v4408
    %v4416 = vadd.f32 %v4373, %v4412
    %v4417 = vadd.f32 %v4374, %v4408
    %v4418 = vadd.f32 %v4375, %v4412
    %v4419 = vadd.f32 %v4376, %v4408
    %v4420 = vadd.f32 %v4377, %v4412
    %v4421 = vadd.f32 %v4378, %v4408
    %v4422 = vadd.f32 %v4379, %v4412
    %v4423 = vadd.f32 %v4380, %v4408
    %v4424 = vadd.f32 %v4381, %v4412
    %v4425 = vadd.f32 %v4382, %v4408
    %v4426 = vadd.f32 %v4383, %v4412
    %v4427 = vadd.f32 %v4384, %v4408
    %v4428 = vadd.f32 %v4385, %v4412
    %v4429 = vadd.f32 %v4386, %v4408
    %v4430 = vadd.f32 %v4387, %v4412
    %v4431 = vadd.f32 %v4388, %v4408
    %v4432 = vadd.f32 %v4389, %v4412
    %v4433 = vadd.f32 %v4390, %v4408
    %v4434 = vadd.f32 %v4391, %v4412
    %v4435 = vadd.f32 %v4392, %v4408
    %v4436 = vadd.f32 %v4393, %v4412
    %v4437 = vadd.f32 %v4394, %v4408
    %v4438 = vadd.f32 %v4395, %v4412
    %v4439 = vadd.f32 %v4396, %v4408
    %v4440 = vadd.f32 %v4397, %v4412
    %v4441 = vadd.f32 %v4398, %v4408
    %v4442 = vadd.f32 %v4399, %v4412
    %v4443 = vadd.f32 %v4400, %v4408
    %v4444 = vadd.f32 %v4401, %v4412
    %v4445 = vadd.f32 %v4402, %v4408
    %v4446 = vadd.f32 %v4403, %v4412
    %v4447 = vmax.f32 %v4415, 0.0
    %v4448 = vmax.f32 %v4416, 0.0
    %v4449 = vmax.f32 %v4417, 0.0
    %v4450 = vmax.f32 %v4418, 0.0
    %v4451 = vmax.f32 %v4419, 0.0
    %v4452 = vmax.f32 %v4420, 0.0
    %v4453 = vmax.f32 %v4421, 0.0
    %v4454 = vmax.f32 %v4422, 0.0
    %v4455 = vmax.f32 %v4423, 0.0
    %v4456 = vmax.f32 %v4424, 0.0
    %v4457 = vmax.f32 %v4425, 0.0
    %v4458 = vmax.f32 %v4426, 0.0
    %v4459 = vmax.f32 %v4427, 0.0
    %v4460 = vmax.f32 %v4428, 0.0
    %v4461 = vmax.f32 %v4429, 0.0
    %v4462 = vmax.f32 %v4430, 0.0
    %v4463 = vmax.f32 %v4431, 0.0
    %v4464 = vmax.f32 %v4432, 0.0
    %v4465 = vmax.f32 %v4433, 0.0
    %v4466 = vmax.f32 %v4434, 0.0
    %v4467 = vmax.f32 %v4435, 0.0
    %v4468 = vmax.f32 %v4436, 0.0
    %v4469 = vmax.f32 %v4437, 0.0
    %v4470 = vmax.f32 %v4438, 0.0
    %v4471 = vmax.f32 %v4439, 0.0
    %v4472 = vmax.f32 %v4440, 0.0
    %v4473 = vmax.f32 %v4441, 0.0
    %v4474 = vmax.f32 %v4442, 0.0
    %v4475 = vmax.f32 %v4443, 0.0
    %v4476 = vmax.f32 %v4444, 0.0
    %v4477 = vmax.f32 %v4445, 0.0
    %v4478 = vmax.f32 %v4446, 0.0
    %v4479 = vrot.slane %v4447, 7
    %v4480 = vrot.slane %v4448, 7
    %v4481 = vrot.slane %v4449, 7
    %v4482 = vrot.slane %v4450, 7
    %v4483 = vrot.slane %v4451, 7
    %v4484 = vrot.slane %v4452, 7
    %v4485 = vrot.slane %v4453, 7
    %v4486 = vrot.slane %v4454, 7
    %v4487 = vrot.slane %v4455, 7
    %v4488 = vrot.slane %v4456, 7
    %v4489 = vrot.slane %v4457, 7
    %v4490 = vrot.slane %v4458, 7
    %v4491 = vrot.slane %v4459, 7
    %v4492 = vrot.slane %v4460, 7
    %v4493 = vrot.slane %v4461, 7
    %v4494 = vrot.slane %v4462, 7
    %v4495 = vrot.slane %v4463, 7
    %v4496 = vrot.slane %v4464, 7
    %v4497 = vrot.slane %v4465, 7
    %v4498 = vrot.slane %v4466, 7
    %v4499 = vrot.slane %v4467, 7
    %v4500 = vrot.slane %v4468, 7
    %v4501 = vrot.slane %v4469, 7
    %v4502 = vrot.slane %v4470, 7
    %v4503 = vrot.slane %v4471, 7
    %v4504 = vrot.slane %v4472, 7
    %v4505 = vrot.slane %v4473, 7
    %v4506 = vrot.slane %v4474, 7
    %v4507 = vrot.slane %v4475, 7
    %v4508 = vrot.slane %v4476, 7
    %v4509 = vrot.slane %v4477, 7
    %v4510 = vrot.slane %v4478, 7
    %v4511 = vsel %vm233, %v4507, %v4509
    %v4512 = vsel %vm233, %v4508, %v4510
    %v4513 = vsel %vm233, %v4505, %v4507
    %v4514 = vsel %vm233, %v4506, %v4508
    %v4515 = vsel %vm233, %v4503, %v4505
    %v4516 = vsel %vm233, %v4504, %v4506
    %v4517 = vsel %vm233, %v4501, %v4503
    %v4518 = vsel %vm233, %v4502, %v4504
    %v4519 = vsel %vm233, %v4499, %v4501
    %v4520 = vsel %vm233, %v4500, %v4502
    %v4521 = vsel %vm233, %v4497, %v4499
    %v4522 = vsel %vm233, %v4498, %v4500
    %v4523 = vsel %vm233, %v4495, %v4497
    %v4524 = vsel %vm233, %v4496, %v4498
    %v4525 = vsel %vm233, %v4493, %v4495
    %v4526 = vsel %vm233, %v4494, %v4496
    %v4527 = vsel %vm233, %v4491, %v4493
    %v4528 = vsel %vm233, %v4492, %v4494
    %v4529 = vsel %vm233, %v4489, %v4491
    %v4530 = vsel %vm233, %v4490, %v4492
    %v4531 = vsel %vm233, %v4487, %v4489
    %v4532 = vsel %vm233, %v4488, %v4490
    %v4533 = vsel %vm233, %v4485, %v4487
    %v4534 = vsel %vm233, %v4486, %v4488
    %v4535 = vsel %vm233, %v4483, %v4485
    %v4536 = vsel %vm233, %v4484, %v4486
    %v4537 = vsel %vm233, %v4481, %v4483
    %v4538 = vsel %vm233, %v4482, %v4484
    %v4539 = vsel %vm233, %v4479, %v4481
    %v4540 = vsel %vm233, %v4480, %v4482
    %v4541 = vsel %vm233, %v4509, %v4479
    %v4542 = vsel %vm233, %v4510, %v4480
    %v4543 = vsel %vm282, 0.0, %v4541
    %v4544 = vsel %vm282, 0.0, %v4542
    %v4545 = vsel %vm283, 0.0, %v4539
    %v4546 = vsel %vm283, 0.0, %v4540
    %v4547 = vsel %vm284, 0.0, %v4537
    %v4548 = vsel %vm284, 0.0, %v4538
    %v4549 = vsel %vm285, 0.0, %v4535
    %v4550 = vsel %vm285, 0.0, %v4536
    %v4551 = vsel %vm286, 0.0, %v4533
    %v4552 = vsel %vm286, 0.0, %v4534
    %v4553 = vsel %vm287, 0.0, %v4531
    %v4554 = vsel %vm287, 0.0, %v4532
    %v4555 = vsel %vm288, 0.0, %v4529
    %v4556 = vsel %vm288, 0.0, %v4530
    %v4557 = vsel %vm289, 0.0, %v4527
    %v4558 = vsel %vm289, 0.0, %v4528
    %v4559 = vsel %vm290, 0.0, %v4525
    %v4560 = vsel %vm290, 0.0, %v4526
    %v4561 = vsel %vm291, 0.0, %v4523
    %v4562 = vsel %vm291, 0.0, %v4524
    %v4563 = vsel %vm292, 0.0, %v4521
    %v4564 = vsel %vm292, 0.0, %v4522
    %v4565 = vsel %vm293, 0.0, %v4519
    %v4566 = vsel %vm293, 0.0, %v4520
    %v4567 = vsel %vm294, 0.0, %v4517
    %v4568 = vsel %vm294, 0.0, %v4518
    %v4569 = vsel %vm295, 0.0, %v4515
    %v4570 = vsel %vm295, 0.0, %v4516
    %v4571 = vsel %vm296, 0.0, %v4513
    %v4572 = vsel %vm296, 0.0, %v4514
    %v4573 = vsel %vm297, 0.0, %v4511
    %v4574 = vsel %vm297, 0.0, %v4512
    %v4575 = vrot.slane %v4447, 1
    %v4576 = vrot.slane %v4448, 1
    %v4577 = vrot.slane %v4449, 1
    %v4578 = vrot.slane %v4450, 1
    %v4579 = vrot.slane %v4451, 1
    %v4580 = vrot.slane %v4452, 1
    %v4581 = vrot.slane %v4453, 1
    %v4582 = vrot.slane %v4454, 1
    %v4583 = vrot.slane %v4455, 1
    %v4584 = vrot.slane %v4456, 1
    %v4585 = vrot.slane %v4457, 1
    %v4586 = vrot.slane %v4458, 1
    %v4587 = vrot.slane %v4459, 1
    %v4588 = vrot.slane %v4460, 1
    %v4589 = vrot.slane %v4461, 1
    %v4590 = vrot.slane %v4462, 1
    %v4591 = vrot.slane %v4463, 1
    %v4592 = vrot.slane %v4464, 1
    %v4593 = vrot.slane %v4465, 1
    %v4594 = vrot.slane %v4466, 1
    %v4595 = vrot.slane %v4467, 1
    %v4596 = vrot.slane %v4468, 1
    %v4597 = vrot.slane %v4469, 1
    %v4598 = vrot.slane %v4470, 1
    %v4599 = vrot.slane %v4471, 1
    %v4600 = vrot.slane %v4472, 1
    %v4601 = vrot.slane %v4473, 1
    %v4602 = vrot.slane %v4474, 1
    %v4603 = vrot.slane %v4475, 1
    %v4604 = vrot.slane %v4476, 1
    %v4605 = vrot.slane %v4477, 1
    %v4606 = vrot.slane %v4478, 1
    %v4607 = vsel %vm362, %v4603, %v4605
    %v4608 = vsel %vm362, %v4604, %v4606
    %v4609 = vsel %vm362, %v4601, %v4603
    %v4610 = vsel %vm362, %v4602, %v4604
    %v4611 = vsel %vm362, %v4599, %v4601
    %v4612 = vsel %vm362, %v4600, %v4602
    %v4613 = vsel %vm362, %v4597, %v4599
    %v4614 = vsel %vm362, %v4598, %v4600
    %v4615 = vsel %vm362, %v4595, %v4597
    %v4616 = vsel %vm362, %v4596, %v4598
    %v4617 = vsel %vm362, %v4593, %v4595
    %v4618 = vsel %vm362, %v4594, %v4596
    %v4619 = vsel %vm362, %v4591, %v4593
    %v4620 = vsel %vm362, %v4592, %v4594
    %v4621 = vsel %vm362, %v4589, %v4591
    %v4622 = vsel %vm362, %v4590, %v4592
    %v4623 = vsel %vm362, %v4587, %v4589
    %v4624 = vsel %vm362, %v4588, %v4590
    %v4625 = vsel %vm362, %v4585, %v4587
    %v4626 = vsel %vm362, %v4586, %v4588
    %v4627 = vsel %vm362, %v4583, %v4585
    %v4628 = vsel %vm362, %v4584, %v4586
    %v4629 = vsel %vm362, %v4581, %v4583
    %v4630 = vsel %vm362, %v4582, %v4584
    %v4631 = vsel %vm362, %v4579, %v4581
    %v4632 = vsel %vm362, %v4580, %v4582
    %v4633 = vsel %vm362, %v4577, %v4579
    %v4634 = vsel %vm362, %v4578, %v4580
    %v4635 = vsel %vm362, %v4575, %v4577
    %v4636 = vsel %vm362, %v4576, %v4578
    %v4637 = vsel %vm362, %v4605, %v4575
    %v4638 = vsel %vm362, %v4606, %v4576
    %v4639 = vsel %vm411, 0.0, %v4635
    %v4640 = vsel %vm411, 0.0, %v4636
    %v4641 = vsel %vm412, 0.0, %v4633
    %v4642 = vsel %vm412, 0.0, %v4634
    %v4643 = vsel %vm413, 0.0, %v4631
    %v4644 = vsel %vm413, 0.0, %v4632
    %v4645 = vsel %vm414, 0.0, %v4629
    %v4646 = vsel %vm414, 0.0, %v4630
    %v4647 = vsel %vm415, 0.0, %v4627
    %v4648 = vsel %vm415, 0.0, %v4628
    %v4649 = vsel %vm416, 0.0, %v4625
    %v4650 = vsel %vm416, 0.0, %v4626
    %v4651 = vsel %vm417, 0.0, %v4623
    %v4652 = vsel %vm417, 0.0, %v4624
    %v4653 = vsel %vm418, 0.0, %v4621
    %v4654 = vsel %vm418, 0.0, %v4622
    %v4655 = vsel %vm419, 0.0, %v4619
    %v4656 = vsel %vm419, 0.0, %v4620
    %v4657 = vsel %vm420, 0.0, %v4617
    %v4658 = vsel %vm420, 0.0, %v4618
    %v4659 = vsel %vm421, 0.0, %v4615
    %v4660 = vsel %vm421, 0.0, %v4616
    %v4661 = vsel %vm422, 0.0, %v4613
    %v4662 = vsel %vm422, 0.0, %v4614
    %v4663 = vsel %vm423, 0.0, %v4611
    %v4664 = vsel %vm423, 0.0, %v4612
    %v4665 = vsel %vm424, 0.0, %v4609
    %v4666 = vsel %vm424, 0.0, %v4610
    %v4667 = vsel %vm425, 0.0, %v4607
    %v4668 = vsel %vm425, 0.0, %v4608
    %v4669 = vsel %vm426, 0.0, %v4637
    %v4670 = vsel %vm426, 0.0, %v4638
    %v4671 = vpack.c.bf16 %v4545, %v4543
    %v4672 = vpack.c.bf16 %v4546, %v4544
    %v4673 = vpack.c.bf16 %v4549, %v4547
    %v4674 = vpack.c.bf16 %v4550, %v4548
    %v4675 = vpack.c.bf16 %v4553, %v4551
    %v4676 = vpack.c.bf16 %v4554, %v4552
    %v4677 = vpack.c.bf16 %v4557, %v4555
    %v4678 = vpack.c.bf16 %v4558, %v4556
    %v4679 = vpack.c.bf16 %v4561, %v4559
    %v4680 = vpack.c.bf16 %v4562, %v4560
    %v4681 = vpack.c.bf16 %v4565, %v4563
    %v4682 = vpack.c.bf16 %v4566, %v4564
    %v4683 = vpack.c.bf16 %v4569, %v4567
    %v4684 = vpack.c.bf16 %v4570, %v4568
    %v4685 = vpack.c.bf16 %v4573, %v4571
    %v4686 = vpack.c.bf16 %v4574, %v4572
    %v4703 = vunpack.c.l.b16 %v4671
    %v4704 = vunpack.c.l.b16 %v4672
    %v4705 = vunpack.c.h.b16 %v4671
    %v4706 = vunpack.c.h.b16 %v4672
    %v4707 = vunpack.c.l.b16 %v4673
    %v4708 = vunpack.c.l.b16 %v4674
    %v4709 = vunpack.c.h.b16 %v4673
    %v4710 = vunpack.c.h.b16 %v4674
    %v4711 = vunpack.c.l.b16 %v4675
    %v4712 = vunpack.c.l.b16 %v4676
    %v4713 = vunpack.c.h.b16 %v4675
    %v4714 = vunpack.c.h.b16 %v4676
    %v4715 = vunpack.c.l.b16 %v4677
    %v4716 = vunpack.c.l.b16 %v4678
    %v4717 = vunpack.c.h.b16 %v4677
    %v4718 = vunpack.c.h.b16 %v4678
    %v4719 = vunpack.c.l.b16 %v4679
    %v4720 = vunpack.c.l.b16 %v4680
    %v4721 = vunpack.c.h.b16 %v4679
    %v4722 = vunpack.c.h.b16 %v4680
    %v4723 = vunpack.c.l.b16 %v4681
    %v4724 = vunpack.c.l.b16 %v4682
    %v4725 = vunpack.c.h.b16 %v4681
    %v4726 = vunpack.c.h.b16 %v4682
    %v4727 = vunpack.c.l.b16 %v4683
    %v4728 = vunpack.c.l.b16 %v4684
    %v4729 = vunpack.c.h.b16 %v4683
    %v4730 = vunpack.c.h.b16 %v4684
    %v4731 = vunpack.c.l.b16 %v4685
    %v4732 = vunpack.c.l.b16 %v4686
    %v4733 = vunpack.c.h.b16 %v4685
    %v4734 = vunpack.c.h.b16 %v4686
    %v4735 = vpack.c.b16 %v4704, %v4703
    %v4736 = vpack.c.b16 %v4706, %v4705
    %v4737 = vpack.c.b16 %v4708, %v4707
    %v4738 = vpack.c.b16 %v4710, %v4709
    %v4739 = vpack.c.b16 %v4712, %v4711
    %v4740 = vpack.c.b16 %v4714, %v4713
    %v4741 = vpack.c.b16 %v4716, %v4715
    %v4742 = vpack.c.b16 %v4718, %v4717
    %v4743 = vpack.c.b16 %v4720, %v4719
    %v4744 = vpack.c.b16 %v4722, %v4721
    %v4745 = vpack.c.b16 %v4724, %v4723
    %v4746 = vpack.c.b16 %v4726, %v4725
    %v4747 = vpack.c.b16 %v4728, %v4727
    %v4748 = vpack.c.b16 %v4730, %v4729
    %v4749 = vpack.c.b16 %v4732, %v4731
    %v4750 = vpack.c.b16 %v4734, %v4733
    %4767 = vst [vmem:[#allocation2 + $0x30] sm:$0xff] %v4735
    %4768 = vst [vmem:[#allocation2 + $0x48] sm:$0xff] %v4736
    %4769 = vst [vmem:[#allocation2 + $0x60] sm:$0xff] %v4737
    %4770 = vst [vmem:[#allocation2 + $0x78] sm:$0xff] %v4738
    %4771 = vst [vmem:[#allocation2 + $0x90] sm:$0xff] %v4739
    %4772 = vst [vmem:[#allocation2 + $0xa8] sm:$0xff] %v4740
    %4773 = vst [vmem:[#allocation2 + $0xc0] sm:$0xff] %v4741
    %4774 = vst [vmem:[#allocation2 + $0xd8] sm:$0xff] %v4742
    %4775 = vst [vmem:[#allocation2 + $0xf0] sm:$0xff] %v4743
    %4776 = vst [vmem:[#allocation2 + $0x108] sm:$0xff] %v4744
    %4777 = vst [vmem:[#allocation2 + $0x120] sm:$0xff] %v4745
    %4778 = vst [vmem:[#allocation2 + $0x138] sm:$0xff] %v4746
    %4779 = vst [vmem:[#allocation2 + $0x150] sm:$0xff] %v4747
    %4780 = vst [vmem:[#allocation2 + $0x168] sm:$0xff] %v4748
    %4781 = vst [vmem:[#allocation2 + $0x180] sm:$0xff] %v4749
    %4782 = vst [vmem:[#allocation2 + $0x198] sm:$0xff] %v4750
    %v4783 = vpack.c.bf16 %v4449, %v4447
    %v4784 = vpack.c.bf16 %v4450, %v4448
    %v4785 = vpack.c.bf16 %v4453, %v4451
    %v4786 = vpack.c.bf16 %v4454, %v4452
    %v4787 = vpack.c.bf16 %v4457, %v4455
    %v4788 = vpack.c.bf16 %v4458, %v4456
    %v4789 = vpack.c.bf16 %v4461, %v4459
    %v4790 = vpack.c.bf16 %v4462, %v4460
    %v4791 = vpack.c.bf16 %v4465, %v4463
    %v4792 = vpack.c.bf16 %v4466, %v4464
    %v4793 = vpack.c.bf16 %v4469, %v4467
    %v4794 = vpack.c.bf16 %v4470, %v4468
    %v4795 = vpack.c.bf16 %v4473, %v4471
    %v4796 = vpack.c.bf16 %v4474, %v4472
    %v4797 = vpack.c.bf16 %v4477, %v4475
    %v4798 = vpack.c.bf16 %v4478, %v4476
    %v4815 = vunpack.c.l.b16 %v4783
    %v4816 = vunpack.c.l.b16 %v4784
    %v4817 = vunpack.c.h.b16 %v4783
    %v4818 = vunpack.c.h.b16 %v4784
    %v4819 = vunpack.c.l.b16 %v4785
    %v4820 = vunpack.c.l.b16 %v4786
    %v4821 = vunpack.c.h.b16 %v4785
    %v4822 = vunpack.c.h.b16 %v4786
    %v4823 = vunpack.c.l.b16 %v4787
    %v4824 = vunpack.c.l.b16 %v4788
    %v4825 = vunpack.c.h.b16 %v4787
    %v4826 = vunpack.c.h.b16 %v4788
    %v4827 = vunpack.c.l.b16 %v4789
    %v4828 = vunpack.c.l.b16 %v4790
    %v4829 = vunpack.c.h.b16 %v4789
    %v4830 = vunpack.c.h.b16 %v4790
    %v4831 = vunpack.c.l.b16 %v4791
    %v4832 = vunpack.c.l.b16 %v4792
    %v4833 = vunpack.c.h.b16 %v4791
    %v4834 = vunpack.c.h.b16 %v4792
    %v4835 = vunpack.c.l.b16 %v4793
    %v4836 = vunpack.c.l.b16 %v4794
    %v4837 = vunpack.c.h.b16 %v4793
    %v4838 = vunpack.c.h.b16 %v4794
    %v4839 = vunpack.c.l.b16 %v4795
    %v4840 = vunpack.c.l.b16 %v4796
    %v4841 = vunpack.c.h.b16 %v4795
    %v4842 = vunpack.c.h.b16 %v4796
    %v4843 = vunpack.c.l.b16 %v4797
    %v4844 = vunpack.c.l.b16 %v4798
    %v4845 = vunpack.c.h.b16 %v4797
    %v4846 = vunpack.c.h.b16 %v4798
    %v4847 = vpack.c.b16 %v4816, %v4815
    %v4848 = vpack.c.b16 %v4818, %v4817
    %v4849 = vpack.c.b16 %v4820, %v4819
    %v4850 = vpack.c.b16 %v4822, %v4821
    %v4851 = vpack.c.b16 %v4824, %v4823
    %v4852 = vpack.c.b16 %v4826, %v4825
    %v4853 = vpack.c.b16 %v4828, %v4827
    %v4854 = vpack.c.b16 %v4830, %v4829
    %v4855 = vpack.c.b16 %v4832, %v4831
    %v4856 = vpack.c.b16 %v4834, %v4833
    %v4857 = vpack.c.b16 %v4836, %v4835
    %v4858 = vpack.c.b16 %v4838, %v4837
    %v4859 = vpack.c.b16 %v4840, %v4839
    %v4860 = vpack.c.b16 %v4842, %v4841
    %v4861 = vpack.c.b16 %v4844, %v4843
    %v4862 = vpack.c.b16 %v4846, %v4845
    %4879 = vst [vmem:[#allocation2 + $0x38] sm:$0xff] %v4847
    %4880 = vst [vmem:[#allocation2 + $0x50] sm:$0xff] %v4848
    %4881 = vst [vmem:[#allocation2 + $0x68] sm:$0xff] %v4849
    %4882 = vst [vmem:[#allocation2 + $0x80] sm:$0xff] %v4850
    %4883 = vst [vmem:[#allocation2 + $0x98] sm:$0xff] %v4851
    %4884 = vst [vmem:[#allocation2 + $0xb0] sm:$0xff] %v4852
    %4885 = vst [vmem:[#allocation2 + $0xc8] sm:$0xff] %v4853
    %4886 = vst [vmem:[#allocation2 + $0xe0] sm:$0xff] %v4854
    %4887 = vst [vmem:[#allocation2 + $0xf8] sm:$0xff] %v4855
    %4888 = vst [vmem:[#allocation2 + $0x110] sm:$0xff] %v4856
    %4889 = vst [vmem:[#allocation2 + $0x128] sm:$0xff] %v4857
    %4890 = vst [vmem:[#allocation2 + $0x140] sm:$0xff] %v4858
    %4891 = vst [vmem:[#allocation2 + $0x158] sm:$0xff] %v4859
    %4892 = vst [vmem:[#allocation2 + $0x170] sm:$0xff] %v4860
    %4893 = vst [vmem:[#allocation2 + $0x188] sm:$0xff] %v4861
    %4894 = vst [vmem:[#allocation2 + $0x1a0] sm:$0xff] %v4862
    %v4895 = vpack.c.bf16 %v4641, %v4639
    %v4896 = vpack.c.bf16 %v4642, %v4640
    %v4897 = vpack.c.bf16 %v4645, %v4643
    %v4898 = vpack.c.bf16 %v4646, %v4644
    %v4899 = vpack.c.bf16 %v4649, %v4647
    %v4900 = vpack.c.bf16 %v4650, %v4648
    %v4901 = vpack.c.bf16 %v4653, %v4651
    %v4902 = vpack.c.bf16 %v4654, %v4652
    %v4903 = vpack.c.bf16 %v4657, %v4655
    %v4904 = vpack.c.bf16 %v4658, %v4656
    %v4905 = vpack.c.bf16 %v4661, %v4659
    %v4906 = vpack.c.bf16 %v4662, %v4660
    %v4907 = vpack.c.bf16 %v4665, %v4663
    %v4908 = vpack.c.bf16 %v4666, %v4664
    %v4909 = vpack.c.bf16 %v4669, %v4667
    %v4910 = vpack.c.bf16 %v4670, %v4668
    %v4927 = vunpack.c.l.b16 %v4895
    %v4928 = vunpack.c.l.b16 %v4896
    %v4929 = vunpack.c.h.b16 %v4895
    %v4930 = vunpack.c.h.b16 %v4896
    %v4931 = vunpack.c.l.b16 %v4897
    %v4932 = vunpack.c.l.b16 %v4898
    %v4933 = vunpack.c.h.b16 %v4897
    %v4934 = vunpack.c.h.b16 %v4898
    %v4935 = vunpack.c.l.b16 %v4899
    %v4936 = vunpack.c.l.b16 %v4900
    %v4937 = vunpack.c.h.b16 %v4899
    %v4938 = vunpack.c.h.b16 %v4900
    %v4939 = vunpack.c.l.b16 %v4901
    %v4940 = vunpack.c.l.b16 %v4902
    %v4941 = vunpack.c.h.b16 %v4901
    %v4942 = vunpack.c.h.b16 %v4902
    %v4943 = vunpack.c.l.b16 %v4903
    %v4944 = vunpack.c.l.b16 %v4904
    %v4945 = vunpack.c.h.b16 %v4903
    %v4946 = vunpack.c.h.b16 %v4904
    %v4947 = vunpack.c.l.b16 %v4905
    %v4948 = vunpack.c.l.b16 %v4906
    %v4949 = vunpack.c.h.b16 %v4905
    %v4950 = vunpack.c.h.b16 %v4906
    %v4951 = vunpack.c.l.b16 %v4907
    %v4952 = vunpack.c.l.b16 %v4908
    %v4953 = vunpack.c.h.b16 %v4907
    %v4954 = vunpack.c.h.b16 %v4908
    %v4955 = vunpack.c.l.b16 %v4909
    %v4956 = vunpack.c.l.b16 %v4910
    %v4957 = vunpack.c.h.b16 %v4909
    %v4958 = vunpack.c.h.b16 %v4910
    %v4959 = vpack.c.b16 %v4928, %v4927
    %v4960 = vpack.c.b16 %v4930, %v4929
    %v4961 = vpack.c.b16 %v4932, %v4931
    %v4962 = vpack.c.b16 %v4934, %v4933
    %v4963 = vpack.c.b16 %v4936, %v4935
    %v4964 = vpack.c.b16 %v4938, %v4937
    %v4965 = vpack.c.b16 %v4940, %v4939
    %v4966 = vpack.c.b16 %v4942, %v4941
    %v4967 = vpack.c.b16 %v4944, %v4943
    %v4968 = vpack.c.b16 %v4946, %v4945
    %v4969 = vpack.c.b16 %v4948, %v4947
    %v4970 = vpack.c.b16 %v4950, %v4949
    %v4971 = vpack.c.b16 %v4952, %v4951
    %v4972 = vpack.c.b16 %v4954, %v4953
    %v4973 = vpack.c.b16 %v4956, %v4955
    %v4974 = vpack.c.b16 %v4958, %v4957
    %4991 = vst [vmem:[#allocation2 + $0x40] sm:$0xff] %v4959
    %4992 = vst [vmem:[#allocation2 + $0x58] sm:$0xff] %v4960
    %4993 = vst [vmem:[#allocation2 + $0x70] sm:$0xff] %v4961
    %4994 = vst [vmem:[#allocation2 + $0x88] sm:$0xff] %v4962
    %4995 = vst [vmem:[#allocation2 + $0xa0] sm:$0xff] %v4963
    %4996 = vst [vmem:[#allocation2 + $0xb8] sm:$0xff] %v4964
    %4997 = vst [vmem:[#allocation2 + $0xd0] sm:$0xff] %v4965
    %4998 = vst [vmem:[#allocation2 + $0xe8] sm:$0xff] %v4966
    %4999 = vst [vmem:[#allocation2 + $0x100] sm:$0xff] %v4967
    %5000 = vst [vmem:[#allocation2 + $0x118] sm:$0xff] %v4968
    %5001 = vst [vmem:[#allocation2 + $0x130] sm:$0xff] %v4969
    %5002 = vst [vmem:[#allocation2 + $0x148] sm:$0xff] %v4970
    %5003 = vst [vmem:[#allocation2 + $0x160] sm:$0xff] %v4971
    %5004 = vst [vmem:[#allocation2 + $0x178] sm:$0xff] %v4972
    %5005 = vst [vmem:[#allocation2 + $0x190] sm:$0xff] %v4973
    %5006 = vst [vmem:[#allocation2 + $0x1a8] sm:$0xff] %v4974
    %s5007 = sshll.u32 %s797, 4
    %5008 = dma.done [#allocation6], %s5007
    %v5009 = vld [vmem:[#allocation2] sm:$0xff]
    %v5010 = vld [vmem:[#allocation2 + $0x8] sm:$0xff]
    %v5011 = vld [vmem:[#allocation2 + $0x10] sm:$0xff]
    %v5012 = vld [vmem:[#allocation2 + $0x18] sm:$0xff]
    %v5013 = vld [vmem:[#allocation2 + $0x20] sm:$0xff]
    %v5014 = vld [vmem:[#allocation2 + $0x28] sm:$0xff]
    %v5015 = vld [vmem:[#allocation2 + $0x30] sm:$0xff]
    %v5016 = vld [vmem:[#allocation2 + $0x38] sm:$0xff]
    %v5017 = vld [vmem:[#allocation2 + $0x40] sm:$0xff]
    %v5018 = vld [vmem:[#allocation2 + $0x48] sm:$0xff]
    %v5019 = vld [vmem:[#allocation2 + $0x50] sm:$0xff]
    %v5020 = vld [vmem:[#allocation2 + $0x58] sm:$0xff]
    %v5021 = vld [vmem:[#allocation2 + $0x60] sm:$0xff]
    %v5022 = vld [vmem:[#allocation2 + $0x68] sm:$0xff]
    %v5023 = vld [vmem:[#allocation2 + $0x70] sm:$0xff]
    %v5024 = vld [vmem:[#allocation2 + $0x78] sm:$0xff]
    %v5025 = vld [vmem:[#allocation2 + $0x80] sm:$0xff]
    %v5026 = vld [vmem:[#allocation2 + $0x88] sm:$0xff]
    %v5027 = vld [vmem:[#allocation2 + $0x90] sm:$0xff]
    %v5028 = vld [vmem:[#allocation2 + $0x98] sm:$0xff]
    %v5029 = vld [vmem:[#allocation2 + $0xa0] sm:$0xff]
    %v5030 = vld [vmem:[#allocation2 + $0xa8] sm:$0xff]
    %v5031 = vld [vmem:[#allocation2 + $0xb0] sm:$0xff]
    %v5032 = vld [vmem:[#allocation2 + $0xb8] sm:$0xff]
    %v5033 = vld [vmem:[#allocation2 + $0xc0] sm:$0xff]
    %v5034 = vld [vmem:[#allocation2 + $0xc8] sm:$0xff]
    %v5035 = vld [vmem:[#allocation2 + $0xd0] sm:$0xff]
    %v5036 = vld [vmem:[#allocation2 + $0xd8] sm:$0xff]
    %v5037 = vld [vmem:[#allocation2 + $0xe0] sm:$0xff]
    %v5038 = vld [vmem:[#allocation2 + $0xe8] sm:$0xff]
    %v5039 = vld [vmem:[#allocation2 + $0xf0] sm:$0xff]
    %v5040 = vld [vmem:[#allocation2 + $0xf8] sm:$0xff]
    %v5041 = vld [vmem:[#allocation2 + $0x100] sm:$0xff]
    %v5042 = vld [vmem:[#allocation2 + $0x108] sm:$0xff]
    %v5043 = vld [vmem:[#allocation2 + $0x110] sm:$0xff]
    %v5044 = vld [vmem:[#allocation2 + $0x118] sm:$0xff]
    %v5045 = vld [vmem:[#allocation2 + $0x120] sm:$0xff]
    %v5046 = vld [vmem:[#allocation2 + $0x128] sm:$0xff]
    %v5047 = vld [vmem:[#allocation2 + $0x130] sm:$0xff]
    %v5048 = vld [vmem:[#allocation2 + $0x138] sm:$0xff]
    %v5049 = vld [vmem:[#allocation2 + $0x140] sm:$0xff]
    %v5050 = vld [vmem:[#allocation2 + $0x148] sm:$0xff]
    %v5051 = vld [vmem:[#allocation2 + $0x150] sm:$0xff]
    %v5052 = vld [vmem:[#allocation2 + $0x158] sm:$0xff]
    %v5053 = vld [vmem:[#allocation2 + $0x160] sm:$0xff]
    %v5054 = vld [vmem:[#allocation2 + $0x168] sm:$0xff]
    %v5055 = vld [vmem:[#allocation2 + $0x170] sm:$0xff]
    %v5056 = vld [vmem:[#allocation2 + $0x178] sm:$0xff]
    %v5057 = vld [vmem:[#allocation4] sm:$0xff]
    %v5058 = vld [vmem:[#allocation4 + $0x8] sm:$0xff]
    %v5059 = vld [vmem:[#allocation4 + $0x10] sm:$0xff]
    %v5060 = vld [vmem:[#allocation4 + $0x18] sm:$0xff]
    %v5061 = vld [vmem:[#allocation4 + $0x20] sm:$0xff]
    %v5062 = vld [vmem:[#allocation4 + $0x28] sm:$0xff]
    %v5063 = vld [vmem:[#allocation4 + $0x30] sm:$0xff]
    %v5064 = vld [vmem:[#allocation4 + $0x38] sm:$0xff]
    %v5065 = vld [vmem:[#allocation4 + $0x40] sm:$0xff]
    %v5066 = vld [vmem:[#allocation4 + $0x48] sm:$0xff]
    %v5067 = vld [vmem:[#allocation4 + $0x50] sm:$0xff]
    %v5068 = vld [vmem:[#allocation4 + $0x58] sm:$0xff]
    %v5069 = vld [vmem:[#allocation4 + $0x60] sm:$0xff]
    %v5070 = vld [vmem:[#allocation4 + $0x68] sm:$0xff]
    %v5071 = vld [vmem:[#allocation4 + $0x70] sm:$0xff]
    %v5072 = vld [vmem:[#allocation4 + $0x78] sm:$0xff]
    %v5073 = vld [vmem:[#allocation4 + $0x80] sm:$0xff]
    %v5074 = vld [vmem:[#allocation4 + $0x88] sm:$0xff]
    %v5075 = vld [vmem:[#allocation4 + $0x90] sm:$0xff]
    %v5076 = vld [vmem:[#allocation4 + $0x98] sm:$0xff]
    %v5077 = vld [vmem:[#allocation4 + $0xa0] sm:$0xff]
    %v5078 = vld [vmem:[#allocation4 + $0xa8] sm:$0xff]
    %v5079 = vld [vmem:[#allocation4 + $0xb0] sm:$0xff]
    %v5080 = vld [vmem:[#allocation4 + $0xb8] sm:$0xff]
    %v5081 = vld [vmem:[#allocation4 + $0xc0] sm:$0xff]
    %v5082 = vld [vmem:[#allocation4 + $0xc8] sm:$0xff]
    %v5083 = vld [vmem:[#allocation4 + $0xd0] sm:$0xff]
    %v5084 = vld [vmem:[#allocation4 + $0xd8] sm:$0xff]
    %v5085 = vld [vmem:[#allocation4 + $0xe0] sm:$0xff]
    %v5086 = vld [vmem:[#allocation4 + $0xe8] sm:$0xff]
    %v5087 = vld [vmem:[#allocation4 + $0xf0] sm:$0xff]
    %v5088 = vld [vmem:[#allocation4 + $0xf8] sm:$0xff]
    %v5089 = vld [vmem:[#allocation4 + $0x100] sm:$0xff]
    %v5090 = vld [vmem:[#allocation4 + $0x108] sm:$0xff]
    %v5091 = vld [vmem:[#allocation4 + $0x110] sm:$0xff]
    %v5092 = vld [vmem:[#allocation4 + $0x118] sm:$0xff]
    %v5093 = vld [vmem:[#allocation4 + $0x120] sm:$0xff]
    %v5094 = vld [vmem:[#allocation4 + $0x128] sm:$0xff]
    %v5095 = vld [vmem:[#allocation4 + $0x130] sm:$0xff]
    %v5096 = vld [vmem:[#allocation4 + $0x138] sm:$0xff]
    %v5097 = vld [vmem:[#allocation4 + $0x140] sm:$0xff]
    %v5098 = vld [vmem:[#allocation4 + $0x148] sm:$0xff]
    %v5099 = vld [vmem:[#allocation4 + $0x150] sm:$0xff]
    %v5100 = vld [vmem:[#allocation4 + $0x158] sm:$0xff]
    %v5101 = vld [vmem:[#allocation4 + $0x160] sm:$0xff]
    %v5102 = vld [vmem:[#allocation4 + $0x168] sm:$0xff]
    %v5103 = vld [vmem:[#allocation4 + $0x170] sm:$0xff]
    %v5104 = vld [vmem:[#allocation4 + $0x178] sm:$0xff]
    %v5105 = vld [vmem:[#allocation4 + $0x180] sm:$0xff]
    %v5106 = vld [vmem:[#allocation4 + $0x188] sm:$0xff]
    %v5107 = vld [vmem:[#allocation4 + $0x190] sm:$0xff]
    %v5108 = vld [vmem:[#allocation4 + $0x198] sm:$0xff]
    %v5109 = vld [vmem:[#allocation4 + $0x1a0] sm:$0xff]
    %v5110 = vld [vmem:[#allocation4 + $0x1a8] sm:$0xff]
    %v5111 = vld [vmem:[#allocation4 + $0x1b0] sm:$0xff]
    %v5112 = vld [vmem:[#allocation4 + $0x1b8] sm:$0xff]
    %v5113 = vld [vmem:[#allocation4 + $0x1c0] sm:$0xff]
    %v5114 = vld [vmem:[#allocation4 + $0x1c8] sm:$0xff]
    %v5115 = vld [vmem:[#allocation4 + $0x1d0] sm:$0xff]
    %v5116 = vld [vmem:[#allocation4 + $0x1d8] sm:$0xff]
    %v5117 = vld [vmem:[#allocation4 + $0x1e0] sm:$0xff]
    %v5118 = vld [vmem:[#allocation4 + $0x1e8] sm:$0xff]
    %v5119 = vld [vmem:[#allocation4 + $0x1f0] sm:$0xff]
    %v5120 = vld [vmem:[#allocation4 + $0x1f8] sm:$0xff]
    %v5121 = vld [vmem:[#allocation4 + $0x200] sm:$0xff]
    %v5122 = vld [vmem:[#allocation4 + $0x208] sm:$0xff]
    %v5123 = vld [vmem:[#allocation4 + $0x210] sm:$0xff]
    %v5124 = vld [vmem:[#allocation4 + $0x218] sm:$0xff]
    %v5125 = vld [vmem:[#allocation4 + $0x220] sm:$0xff]
    %v5126 = vld [vmem:[#allocation4 + $0x228] sm:$0xff]
    %v5127 = vld [vmem:[#allocation4 + $0x230] sm:$0xff]
    %v5128 = vld [vmem:[#allocation4 + $0x238] sm:$0xff]
    %v5129 = vld [vmem:[#allocation4 + $0x240] sm:$0xff]
    %v5130 = vld [vmem:[#allocation4 + $0x248] sm:$0xff]
    %v5131 = vld [vmem:[#allocation4 + $0x250] sm:$0xff]
    %v5132 = vld [vmem:[#allocation4 + $0x258] sm:$0xff]
    %v5133 = vld [vmem:[#allocation4 + $0x260] sm:$0xff]
    %v5134 = vld [vmem:[#allocation4 + $0x268] sm:$0xff]
    %v5135 = vld [vmem:[#allocation4 + $0x270] sm:$0xff]
    %v5136 = vld [vmem:[#allocation4 + $0x278] sm:$0xff]
    %v5137 = vld [vmem:[#allocation4 + $0x280] sm:$0xff]
    %v5138 = vld [vmem:[#allocation4 + $0x288] sm:$0xff]
    %v5139 = vld [vmem:[#allocation4 + $0x290] sm:$0xff]
    %v5140 = vld [vmem:[#allocation4 + $0x298] sm:$0xff]
    %v5141 = vld [vmem:[#allocation4 + $0x2a0] sm:$0xff]
    %v5142 = vld [vmem:[#allocation4 + $0x2a8] sm:$0xff]
    %v5143 = vld [vmem:[#allocation4 + $0x2b0] sm:$0xff]
    %v5144 = vld [vmem:[#allocation4 + $0x2b8] sm:$0xff]
    %v5145 = vld [vmem:[#allocation4 + $0x2c0] sm:$0xff]
    %v5146 = vld [vmem:[#allocation4 + $0x2c8] sm:$0xff]
    %v5147 = vld [vmem:[#allocation4 + $0x2d0] sm:$0xff]
    %v5148 = vld [vmem:[#allocation4 + $0x2d8] sm:$0xff]
    %v5149 = vld [vmem:[#allocation4 + $0x2e0] sm:$0xff]
    %v5150 = vld [vmem:[#allocation4 + $0x2e8] sm:$0xff]
    %v5151 = vld [vmem:[#allocation4 + $0x2f0] sm:$0xff]
    %v5152 = vld [vmem:[#allocation4 + $0x2f8] sm:$0xff]
    %v5153 = vld [vmem:[#allocation2 + $0x180] sm:$0xff]
    %v5154 = vld [vmem:[#allocation2 + $0x188] sm:$0xff]
    %v5155 = vld [vmem:[#allocation2 + $0x190] sm:$0xff]
    %v5156 = vld [vmem:[#allocation2 + $0x198] sm:$0xff]
    %v5157 = vld [vmem:[#allocation2 + $0x1a0] sm:$0xff]
    %v5158 = vld [vmem:[#allocation2 + $0x1a8] sm:$0xff]
    %s5159 = scalar_lea.vmem [#allocation4], 768
    %v5160 = vld [vmem:[%s5159] sm:$0xff]
    %v5161 = vld [vmem:[%s5159 + $0x8] sm:$0xff]
    %v5162 = vld [vmem:[%s5159 + $0x10] sm:$0xff]
    %v5163 = vld [vmem:[%s5159 + $0x18] sm:$0xff]
    %v5164 = vld [vmem:[%s5159 + $0x20] sm:$0xff]
    %v5165 = vld [vmem:[%s5159 + $0x28] sm:$0xff]
    %v5166 = vld [vmem:[%s5159 + $0x30] sm:$0xff]
    %v5167 = vld [vmem:[%s5159 + $0x38] sm:$0xff]
    %v5168 = vld [vmem:[%s5159 + $0x40] sm:$0xff]
    %v5169 = vld [vmem:[%s5159 + $0x48] sm:$0xff]
    %v5170 = vld [vmem:[%s5159 + $0x50] sm:$0xff]
    %v5171 = vld [vmem:[%s5159 + $0x58] sm:$0xff]
    %v5172 = vld [vmem:[%s5159 + $0x60] sm:$0xff]
    %v5173 = vld [vmem:[%s5159 + $0x68] sm:$0xff]
    %v5174 = vld [vmem:[%s5159 + $0x70] sm:$0xff]
    %v5175 = vld [vmem:[%s5159 + $0x78] sm:$0xff]
    %v5176 = vld [vmem:[%s5159 + $0x80] sm:$0xff]
    %v5177 = vld [vmem:[%s5159 + $0x88] sm:$0xff]
    %v5178 = vld [vmem:[%s5159 + $0x90] sm:$0xff]
    %v5179 = vld [vmem:[%s5159 + $0x98] sm:$0xff]
    %v5180 = vld [vmem:[%s5159 + $0xa0] sm:$0xff]
    %v5181 = vld [vmem:[%s5159 + $0xa8] sm:$0xff]
    %v5182 = vld [vmem:[%s5159 + $0xb0] sm:$0xff]
    %v5183 = vld [vmem:[%s5159 + $0xb8] sm:$0xff]
    %v5184 = vld [vmem:[%s5159 + $0xc0] sm:$0xff]
    %v5185 = vld [vmem:[%s5159 + $0xc8] sm:$0xff]
    %v5186 = vld [vmem:[%s5159 + $0xd0] sm:$0xff]
    %v5187 = vld [vmem:[%s5159 + $0xd8] sm:$0xff]
    %v5188 = vld [vmem:[%s5159 + $0xe0] sm:$0xff]
    %v5189 = vld [vmem:[%s5159 + $0xe8] sm:$0xff]
    %v5190 = vld [vmem:[%s5159 + $0xf0] sm:$0xff]
    %v5191 = vld [vmem:[%s5159 + $0xf8] sm:$0xff]
    %v5192 = vld [vmem:[%s5159 + $0x100] sm:$0xff]
    %v5193 = vld [vmem:[%s5159 + $0x108] sm:$0xff]
    %v5194 = vld [vmem:[%s5159 + $0x110] sm:$0xff]
    %v5195 = vld [vmem:[%s5159 + $0x118] sm:$0xff]
    %v5196 = vld [vmem:[%s5159 + $0x120] sm:$0xff]
    %v5197 = vld [vmem:[%s5159 + $0x128] sm:$0xff]
    %v5198 = vld [vmem:[%s5159 + $0x130] sm:$0xff]
    %v5199 = vld [vmem:[%s5159 + $0x138] sm:$0xff]
    %v5200 = vld [vmem:[%s5159 + $0x140] sm:$0xff]
    %v5201 = vld [vmem:[%s5159 + $0x148] sm:$0xff]
    %v5202 = vld [vmem:[%s5159 + $0x150] sm:$0xff]
    %v5203 = vld [vmem:[%s5159 + $0x158] sm:$0xff]
    %v5204 = vld [vmem:[%s5159 + $0x160] sm:$0xff]
    %v5205 = vld [vmem:[%s5159 + $0x168] sm:$0xff]
    %v5206 = vld [vmem:[%s5159 + $0x170] sm:$0xff]
    %v5207 = vld [vmem:[%s5159 + $0x178] sm:$0xff]
    %v5208 = vld [vmem:[%s5159 + $0x180] sm:$0xff]
    %v5209 = vld [vmem:[%s5159 + $0x188] sm:$0xff]
    %v5210 = vld [vmem:[%s5159 + $0x190] sm:$0xff]
    %v5211 = vld [vmem:[%s5159 + $0x198] sm:$0xff]
    %v5212 = vld [vmem:[%s5159 + $0x1a0] sm:$0xff]
    %v5213 = vld [vmem:[%s5159 + $0x1a8] sm:$0xff]
    %v5214 = vld [vmem:[%s5159 + $0x1b0] sm:$0xff]
    %v5215 = vld [vmem:[%s5159 + $0x1b8] sm:$0xff]
    %v5216 = vld [vmem:[%s5159 + $0x1c0] sm:$0xff]
    %v5217 = vld [vmem:[%s5159 + $0x1c8] sm:$0xff]
    %v5218 = vld [vmem:[%s5159 + $0x1d0] sm:$0xff]
    %v5219 = vld [vmem:[%s5159 + $0x1d8] sm:$0xff]
    %v5220 = vld [vmem:[%s5159 + $0x1e0] sm:$0xff]
    %v5221 = vld [vmem:[%s5159 + $0x1e8] sm:$0xff]
    %v5222 = vld [vmem:[%s5159 + $0x1f0] sm:$0xff]
    %v5223 = vld [vmem:[%s5159 + $0x1f8] sm:$0xff]
    %v5224 = vld [vmem:[%s5159 + $0x200] sm:$0xff]
    %v5225 = vld [vmem:[%s5159 + $0x208] sm:$0xff]
    %v5226 = vld [vmem:[%s5159 + $0x210] sm:$0xff]
    %v5227 = vld [vmem:[%s5159 + $0x218] sm:$0xff]
    %v5228 = vld [vmem:[%s5159 + $0x220] sm:$0xff]
    %v5229 = vld [vmem:[%s5159 + $0x228] sm:$0xff]
    %v5230 = vld [vmem:[%s5159 + $0x230] sm:$0xff]
    %v5231 = vld [vmem:[%s5159 + $0x238] sm:$0xff]
    %v5232 = vld [vmem:[%s5159 + $0x240] sm:$0xff]
    %v5233 = vld [vmem:[%s5159 + $0x248] sm:$0xff]
    %v5234 = vld [vmem:[%s5159 + $0x250] sm:$0xff]
    %v5235 = vld [vmem:[%s5159 + $0x258] sm:$0xff]
    %v5236 = vld [vmem:[%s5159 + $0x260] sm:$0xff]
    %v5237 = vld [vmem:[%s5159 + $0x268] sm:$0xff]
    %v5238 = vld [vmem:[%s5159 + $0x270] sm:$0xff]
    %v5239 = vld [vmem:[%s5159 + $0x278] sm:$0xff]
    %v5240 = vld [vmem:[%s5159 + $0x280] sm:$0xff]
    %v5241 = vld [vmem:[%s5159 + $0x288] sm:$0xff]
    %v5242 = vld [vmem:[%s5159 + $0x290] sm:$0xff]
    %v5243 = vld [vmem:[%s5159 + $0x298] sm:$0xff]
    %v5244 = vld [vmem:[%s5159 + $0x2a0] sm:$0xff]
    %v5245 = vld [vmem:[%s5159 + $0x2a8] sm:$0xff]
    %v5246 = vld [vmem:[%s5159 + $0x2b0] sm:$0xff]
    %v5247 = vld [vmem:[%s5159 + $0x2b8] sm:$0xff]
    %v5248 = vld [vmem:[%s5159 + $0x2c0] sm:$0xff]
    %v5249 = vld [vmem:[%s5159 + $0x2c8] sm:$0xff]
    %v5250 = vld [vmem:[%s5159 + $0x2d0] sm:$0xff]
    %v5251 = vld [vmem:[%s5159 + $0x2d8] sm:$0xff]
    %v5252 = vld [vmem:[%s5159 + $0x2e0] sm:$0xff]
    %v5253 = vld [vmem:[%s5159 + $0x2e8] sm:$0xff]
    %v5254 = vld [vmem:[%s5159 + $0x2f0] sm:$0xff]
    %v5255 = vld [vmem:[%s5159 + $0x2f8] sm:$0xff]
    %v5304 = vunpack.c.l.b16 %v5015
    %v5305 = vunpack.c.h.b16 %v5015
    %v5306 = vunpack.c.l.b16 %v5016
    %v5307 = vunpack.c.h.b16 %v5016
    %v5308 = vunpack.c.l.b16 %v5017
    %v5309 = vunpack.c.h.b16 %v5017
    %v5310 = vunpack.c.l.b16 %v5018
    %v5311 = vunpack.c.h.b16 %v5018
    %v5312 = vunpack.c.l.b16 %v5019
    %v5313 = vunpack.c.h.b16 %v5019
    %v5314 = vunpack.c.l.b16 %v5020
    %v5315 = vunpack.c.h.b16 %v5020
    %v5316 = vunpack.c.l.b16 %v5021
    %v5317 = vunpack.c.h.b16 %v5021
    %v5318 = vunpack.c.l.b16 %v5022
    %v5319 = vunpack.c.h.b16 %v5022
    %v5320 = vunpack.c.l.b16 %v5023
    %v5321 = vunpack.c.h.b16 %v5023
    %v5322 = vunpack.c.l.b16 %v5024
    %v5323 = vunpack.c.h.b16 %v5024
    %v5324 = vunpack.c.l.b16 %v5025
    %v5325 = vunpack.c.h.b16 %v5025
    %v5326 = vunpack.c.l.b16 %v5026
    %v5327 = vunpack.c.h.b16 %v5026
    %v5328 = vunpack.c.l.b16 %v5027
    %v5329 = vunpack.c.h.b16 %v5027
    %v5330 = vunpack.c.l.b16 %v5028
    %v5331 = vunpack.c.h.b16 %v5028
    %v5332 = vunpack.c.l.b16 %v5029
    %v5333 = vunpack.c.h.b16 %v5029
    %v5334 = vunpack.c.l.b16 %v5030
    %v5335 = vunpack.c.h.b16 %v5030
    %v5336 = vunpack.c.l.b16 %v5031
    %v5337 = vunpack.c.h.b16 %v5031
    %v5338 = vunpack.c.l.b16 %v5032
    %v5339 = vunpack.c.h.b16 %v5032
    %v5340 = vunpack.c.l.b16 %v5033
    %v5341 = vunpack.c.h.b16 %v5033
    %v5342 = vunpack.c.l.b16 %v5034
    %v5343 = vunpack.c.h.b16 %v5034
    %v5344 = vunpack.c.l.b16 %v5035
    %v5345 = vunpack.c.h.b16 %v5035
    %v5346 = vunpack.c.l.b16 %v5036
    %v5347 = vunpack.c.h.b16 %v5036
    %v5348 = vunpack.c.l.b16 %v5037
    %v5349 = vunpack.c.h.b16 %v5037
    %v5350 = vunpack.c.l.b16 %v5038
    %v5351 = vunpack.c.h.b16 %v5038
    %v5352 = vunpack.c.l.b16 %v5039
    %v5353 = vunpack.c.h.b16 %v5039
    %v5354 = vunpack.c.l.b16 %v5040
    %v5355 = vunpack.c.h.b16 %v5040
    %v5356 = vunpack.c.l.b16 %v5041
    %v5357 = vunpack.c.h.b16 %v5041
    %v5358 = vunpack.c.l.b16 %v5042
    %v5359 = vunpack.c.h.b16 %v5042
    %v5360 = vunpack.c.l.b16 %v5043
    %v5361 = vunpack.c.h.b16 %v5043
    %v5362 = vunpack.c.l.b16 %v5044
    %v5363 = vunpack.c.h.b16 %v5044
    %v5364 = vunpack.c.l.b16 %v5045
    %v5365 = vunpack.c.h.b16 %v5045
    %v5366 = vunpack.c.l.b16 %v5046
    %v5367 = vunpack.c.h.b16 %v5046
    %v5368 = vunpack.c.l.b16 %v5047
    %v5369 = vunpack.c.h.b16 %v5047
    %v5370 = vunpack.c.l.b16 %v5048
    %v5371 = vunpack.c.h.b16 %v5048
    %v5372 = vunpack.c.l.b16 %v5049
    %v5373 = vunpack.c.h.b16 %v5049
    %v5374 = vunpack.c.l.b16 %v5050
    %v5375 = vunpack.c.h.b16 %v5050
    %v5376 = vunpack.c.l.b16 %v5051
    %v5377 = vunpack.c.h.b16 %v5051
    %v5378 = vunpack.c.l.b16 %v5052
    %v5379 = vunpack.c.h.b16 %v5052
    %v5380 = vunpack.c.l.b16 %v5053
    %v5381 = vunpack.c.h.b16 %v5053
    %v5382 = vunpack.c.l.b16 %v5054
    %v5383 = vunpack.c.h.b16 %v5054
    %v5384 = vunpack.c.l.b16 %v5055
    %v5385 = vunpack.c.h.b16 %v5055
    %v5386 = vunpack.c.l.b16 %v5056
    %v5387 = vunpack.c.h.b16 %v5056
    %v5388 = vunpack.c.l.b16 %v5153
    %v5389 = vunpack.c.h.b16 %v5153
    %v5390 = vunpack.c.l.b16 %v5154
    %v5391 = vunpack.c.h.b16 %v5154
    %v5392 = vunpack.c.l.b16 %v5155
    %v5393 = vunpack.c.h.b16 %v5155
    %v5394 = vunpack.c.l.b16 %v5156
    %v5395 = vunpack.c.h.b16 %v5156
    %v5396 = vunpack.c.l.b16 %v5157
    %v5397 = vunpack.c.h.b16 %v5157
    %v5398 = vunpack.c.l.b16 %v5158
    %v5399 = vunpack.c.h.b16 %v5158
    %v5400 = vpack.c.b16 %v5310, %v5304
    %v5401 = vpack.c.b16 %v5311, %v5305
    %v5402 = vpack.c.b16 %v5312, %v5306
    %v5403 = vpack.c.b16 %v5313, %v5307
    %v5404 = vpack.c.b16 %v5314, %v5308
    %v5405 = vpack.c.b16 %v5315, %v5309
    %v5406 = vpack.c.b16 %v5322, %v5316
    %v5407 = vpack.c.b16 %v5323, %v5317
    %v5408 = vpack.c.b16 %v5324, %v5318
    %v5409 = vpack.c.b16 %v5325, %v5319
    %v5410 = vpack.c.b16 %v5326, %v5320
    %v5411 = vpack.c.b16 %v5327, %v5321
    %v5412 = vpack.c.b16 %v5334, %v5328
    %v5413 = vpack.c.b16 %v5335, %v5329
    %v5414 = vpack.c.b16 %v5336, %v5330
    %v5415 = vpack.c.b16 %v5337, %v5331
    %v5416 = vpack.c.b16 %v5338, %v5332
    %v5417 = vpack.c.b16 %v5339, %v5333
    %v5418 = vpack.c.b16 %v5346, %v5340
    %v5419 = vpack.c.b16 %v5347, %v5341
    %v5420 = vpack.c.b16 %v5348, %v5342
    %v5421 = vpack.c.b16 %v5349, %v5343
    %v5422 = vpack.c.b16 %v5350, %v5344
    %v5423 = vpack.c.b16 %v5351, %v5345
    %v5424 = vpack.c.b16 %v5358, %v5352
    %v5425 = vpack.c.b16 %v5359, %v5353
    %v5426 = vpack.c.b16 %v5360, %v5354
    %v5427 = vpack.c.b16 %v5361, %v5355
    %v5428 = vpack.c.b16 %v5362, %v5356
    %v5429 = vpack.c.b16 %v5363, %v5357
    %v5430 = vpack.c.b16 %v5370, %v5364
    %v5431 = vpack.c.b16 %v5371, %v5365
    %v5432 = vpack.c.b16 %v5372, %v5366
    %v5433 = vpack.c.b16 %v5373, %v5367
    %v5434 = vpack.c.b16 %v5374, %v5368
    %v5435 = vpack.c.b16 %v5375, %v5369
    %v5436 = vpack.c.b16 %v5382, %v5376
    %v5437 = vpack.c.b16 %v5383, %v5377
    %v5438 = vpack.c.b16 %v5384, %v5378
    %v5439 = vpack.c.b16 %v5385, %v5379
    %v5440 = vpack.c.b16 %v5386, %v5380
    %v5441 = vpack.c.b16 %v5387, %v5381
    %v5442 = vpack.c.b16 %v5394, %v5388
    %v5443 = vpack.c.b16 %v5395, %v5389
    %v5444 = vpack.c.b16 %v5396, %v5390
    %v5445 = vpack.c.b16 %v5397, %v5391
    %v5446 = vpack.c.b16 %v5398, %v5392
    %v5447 = vpack.c.b16 %v5399, %v5393
    %v5592 = vunpack.c.l.b16 %v5160
    %v5593 = vunpack.c.h.b16 %v5160
    %v5594 = vunpack.c.l.b16 %v5161
    %v5595 = vunpack.c.h.b16 %v5161
    %v5596 = vunpack.c.l.b16 %v5162
    %v5597 = vunpack.c.h.b16 %v5162
    %v5598 = vunpack.c.l.b16 %v5163
    %v5599 = vunpack.c.h.b16 %v5163
    %v5600 = vunpack.c.l.b16 %v5164
    %v5601 = vunpack.c.h.b16 %v5164
    %v5602 = vunpack.c.l.b16 %v5165
    %v5603 = vunpack.c.h.b16 %v5165
    %v5604 = vunpack.c.l.b16 %v5166
    %v5605 = vunpack.c.h.b16 %v5166
    %v5606 = vunpack.c.l.b16 %v5167
    %v5607 = vunpack.c.h.b16 %v5167
    %v5608 = vunpack.c.l.b16 %v5168
    %v5609 = vunpack.c.h.b16 %v5168
    %v5610 = vunpack.c.l.b16 %v5169
    %v5611 = vunpack.c.h.b16 %v5169
    %v5612 = vunpack.c.l.b16 %v5170
    %v5613 = vunpack.c.h.b16 %v5170
    %v5614 = vunpack.c.l.b16 %v5171
    %v5615 = vunpack.c.h.b16 %v5171
    %v5616 = vunpack.c.l.b16 %v5172
    %v5617 = vunpack.c.h.b16 %v5172
    %v5618 = vunpack.c.l.b16 %v5173
    %v5619 = vunpack.c.h.b16 %v5173
    %v5620 = vunpack.c.l.b16 %v5174
    %v5621 = vunpack.c.h.b16 %v5174
    %v5622 = vunpack.c.l.b16 %v5175
    %v5623 = vunpack.c.h.b16 %v5175
    %v5624 = vunpack.c.l.b16 %v5176
    %v5625 = vunpack.c.h.b16 %v5176
    %v5626 = vunpack.c.l.b16 %v5177
    %v5627 = vunpack.c.h.b16 %v5177
    %v5628 = vunpack.c.l.b16 %v5178
    %v5629 = vunpack.c.h.b16 %v5178
    %v5630 = vunpack.c.l.b16 %v5179
    %v5631 = vunpack.c.h.b16 %v5179
    %v5632 = vunpack.c.l.b16 %v5180
    %v5633 = vunpack.c.h.b16 %v5180
    %v5634 = vunpack.c.l.b16 %v5181
    %v5635 = vunpack.c.h.b16 %v5181
    %v5636 = vunpack.c.l.b16 %v5182
    %v5637 = vunpack.c.h.b16 %v5182
    %v5638 = vunpack.c.l.b16 %v5183
    %v5639 = vunpack.c.h.b16 %v5183
    %v5640 = vunpack.c.l.b16 %v5184
    %v5641 = vunpack.c.h.b16 %v5184
    %v5642 = vunpack.c.l.b16 %v5185
    %v5643 = vunpack.c.h.b16 %v5185
    %v5644 = vunpack.c.l.b16 %v5186
    %v5645 = vunpack.c.h.b16 %v5186
    %v5646 = vunpack.c.l.b16 %v5187
    %v5647 = vunpack.c.h.b16 %v5187
    %v5648 = vunpack.c.l.b16 %v5188
    %v5649 = vunpack.c.h.b16 %v5188
    %v5650 = vunpack.c.l.b16 %v5189
    %v5651 = vunpack.c.h.b16 %v5189
    %v5652 = vunpack.c.l.b16 %v5190
    %v5653 = vunpack.c.h.b16 %v5190
    %v5654 = vunpack.c.l.b16 %v5191
    %v5655 = vunpack.c.h.b16 %v5191
    %v5656 = vunpack.c.l.b16 %v5192
    %v5657 = vunpack.c.h.b16 %v5192
    %v5658 = vunpack.c.l.b16 %v5193
    %v5659 = vunpack.c.h.b16 %v5193
    %v5660 = vunpack.c.l.b16 %v5194
    %v5661 = vunpack.c.h.b16 %v5194
    %v5662 = vunpack.c.l.b16 %v5195
    %v5663 = vunpack.c.h.b16 %v5195
    %v5664 = vunpack.c.l.b16 %v5196
    %v5665 = vunpack.c.h.b16 %v5196
    %v5666 = vunpack.c.l.b16 %v5197
    %v5667 = vunpack.c.h.b16 %v5197
    %v5668 = vunpack.c.l.b16 %v5198
    %v5669 = vunpack.c.h.b16 %v5198
    %v5670 = vunpack.c.l.b16 %v5199
    %v5671 = vunpack.c.h.b16 %v5199
    %v5672 = vunpack.c.l.b16 %v5200
    %v5673 = vunpack.c.h.b16 %v5200
    %v5674 = vunpack.c.l.b16 %v5201
    %v5675 = vunpack.c.h.b16 %v5201
    %v5676 = vunpack.c.l.b16 %v5202
    %v5677 = vunpack.c.h.b16 %v5202
    %v5678 = vunpack.c.l.b16 %v5203
    %v5679 = vunpack.c.h.b16 %v5203
    %v5680 = vunpack.c.l.b16 %v5204
    %v5681 = vunpack.c.h.b16 %v5204
    %v5682 = vunpack.c.l.b16 %v5205
    %v5683 = vunpack.c.h.b16 %v5205
    %v5684 = vunpack.c.l.b16 %v5206
    %v5685 = vunpack.c.h.b16 %v5206
    %v5686 = vunpack.c.l.b16 %v5207
    %v5687 = vunpack.c.h.b16 %v5207
    %v5688 = vunpack.c.l.b16 %v5208
    %v5689 = vunpack.c.h.b16 %v5208
    %v5690 = vunpack.c.l.b16 %v5209
    %v5691 = vunpack.c.h.b16 %v5209
    %v5692 = vunpack.c.l.b16 %v5210
    %v5693 = vunpack.c.h.b16 %v5210
    %v5694 = vunpack.c.l.b16 %v5211
    %v5695 = vunpack.c.h.b16 %v5211
    %v5696 = vunpack.c.l.b16 %v5212
    %v5697 = vunpack.c.h.b16 %v5212
    %v5698 = vunpack.c.l.b16 %v5213
    %v5699 = vunpack.c.h.b16 %v5213
    %v5700 = vunpack.c.l.b16 %v5214
    %v5701 = vunpack.c.h.b16 %v5214
    %v5702 = vunpack.c.l.b16 %v5215
    %v5703 = vunpack.c.h.b16 %v5215
    %v5704 = vunpack.c.l.b16 %v5216
    %v5705 = vunpack.c.h.b16 %v5216
    %v5706 = vunpack.c.l.b16 %v5217
    %v5707 = vunpack.c.h.b16 %v5217
    %v5708 = vunpack.c.l.b16 %v5218
    %v5709 = vunpack.c.h.b16 %v5218
    %v5710 = vunpack.c.l.b16 %v5219
    %v5711 = vunpack.c.h.b16 %v5219
    %v5712 = vunpack.c.l.b16 %v5220
    %v5713 = vunpack.c.h.b16 %v5220
    %v5714 = vunpack.c.l.b16 %v5221
    %v5715 = vunpack.c.h.b16 %v5221
    %v5716 = vunpack.c.l.b16 %v5222
    %v5717 = vunpack.c.h.b16 %v5222
    %v5718 = vunpack.c.l.b16 %v5223
    %v5719 = vunpack.c.h.b16 %v5223
    %v5720 = vunpack.c.l.b16 %v5224
    %v5721 = vunpack.c.h.b16 %v5224
    %v5722 = vunpack.c.l.b16 %v5225
    %v5723 = vunpack.c.h.b16 %v5225
    %v5724 = vunpack.c.l.b16 %v5226
    %v5725 = vunpack.c.h.b16 %v5226
    %v5726 = vunpack.c.l.b16 %v5227
    %v5727 = vunpack.c.h.b16 %v5227
    %v5728 = vunpack.c.l.b16 %v5228
    %v5729 = vunpack.c.h.b16 %v5228
    %v5730 = vunpack.c.l.b16 %v5229
    %v5731 = vunpack.c.h.b16 %v5229
    %v5732 = vunpack.c.l.b16 %v5230
    %v5733 = vunpack.c.h.b16 %v5230
    %v5734 = vunpack.c.l.b16 %v5231
    %v5735 = vunpack.c.h.b16 %v5231
    %v5736 = vunpack.c.l.b16 %v5232
    %v5737 = vunpack.c.h.b16 %v5232
    %v5738 = vunpack.c.l.b16 %v5233
    %v5739 = vunpack.c.h.b16 %v5233
    %v5740 = vunpack.c.l.b16 %v5234
    %v5741 = vunpack.c.h.b16 %v5234
    %v5742 = vunpack.c.l.b16 %v5235
    %v5743 = vunpack.c.h.b16 %v5235
    %v5744 = vunpack.c.l.b16 %v5236
    %v5745 = vunpack.c.h.b16 %v5236
    %v5746 = vunpack.c.l.b16 %v5237
    %v5747 = vunpack.c.h.b16 %v5237
    %v5748 = vunpack.c.l.b16 %v5238
    %v5749 = vunpack.c.h.b16 %v5238
    %v5750 = vunpack.c.l.b16 %v5239
    %v5751 = vunpack.c.h.b16 %v5239
    %v5752 = vunpack.c.l.b16 %v5240
    %v5753 = vunpack.c.h.b16 %v5240
    %v5754 = vunpack.c.l.b16 %v5241
    %v5755 = vunpack.c.h.b16 %v5241
    %v5756 = vunpack.c.l.b16 %v5242
    %v5757 = vunpack.c.h.b16 %v5242
    %v5758 = vunpack.c.l.b16 %v5243
    %v5759 = vunpack.c.h.b16 %v5243
    %v5760 = vunpack.c.l.b16 %v5244
    %v5761 = vunpack.c.h.b16 %v5244
    %v5762 = vunpack.c.l.b16 %v5245
    %v5763 = vunpack.c.h.b16 %v5245
    %v5764 = vunpack.c.l.b16 %v5246
    %v5765 = vunpack.c.h.b16 %v5246
    %v5766 = vunpack.c.l.b16 %v5247
    %v5767 = vunpack.c.h.b16 %v5247
    %v5768 = vunpack.c.l.b16 %v5248
    %v5769 = vunpack.c.h.b16 %v5248
    %v5770 = vunpack.c.l.b16 %v5249
    %v5771 = vunpack.c.h.b16 %v5249
    %v5772 = vunpack.c.l.b16 %v5250
    %v5773 = vunpack.c.h.b16 %v5250
    %v5774 = vunpack.c.l.b16 %v5251
    %v5775 = vunpack.c.h.b16 %v5251
    %v5776 = vunpack.c.l.b16 %v5252
    %v5777 = vunpack.c.h.b16 %v5252
    %v5778 = vunpack.c.l.b16 %v5253
    %v5779 = vunpack.c.h.b16 %v5253
    %v5780 = vunpack.c.l.b16 %v5254
    %v5781 = vunpack.c.h.b16 %v5254
    %v5782 = vunpack.c.l.b16 %v5255
    %v5783 = vunpack.c.h.b16 %v5255
    %v5784 = vpack.c.b16 %v5594, %v5592
    %v5785 = vpack.c.b16 %v5595, %v5593
    %v5786 = vpack.c.b16 %v5598, %v5596
    %v5787 = vpack.c.b16 %v5599, %v5597
    %v5788 = vpack.c.b16 %v5602, %v5600
    %v5789 = vpack.c.b16 %v5603, %v5601
    %v5790 = vpack.c.b16 %v5606, %v5604
    %v5791 = vpack.c.b16 %v5607, %v5605
    %v5792 = vpack.c.b16 %v5610, %v5608
    %v5793 = vpack.c.b16 %v5611, %v5609
    %v5794 = vpack.c.b16 %v5614, %v5612
    %v5795 = vpack.c.b16 %v5615, %v5613
    %v5796 = vpack.c.b16 %v5618, %v5616
    %v5797 = vpack.c.b16 %v5619, %v5617
    %v5798 = vpack.c.b16 %v5622, %v5620
    %v5799 = vpack.c.b16 %v5623, %v5621
    %v5800 = vpack.c.b16 %v5626, %v5624
    %v5801 = vpack.c.b16 %v5627, %v5625
    %v5802 = vpack.c.b16 %v5630, %v5628
    %v5803 = vpack.c.b16 %v5631, %v5629
    %v5804 = vpack.c.b16 %v5634, %v5632
    %v5805 = vpack.c.b16 %v5635, %v5633
    %v5806 = vpack.c.b16 %v5638, %v5636
    %v5807 = vpack.c.b16 %v5639, %v5637
    %v5808 = vpack.c.b16 %v5642, %v5640
    %v5809 = vpack.c.b16 %v5643, %v5641
    %v5810 = vpack.c.b16 %v5646, %v5644
    %v5811 = vpack.c.b16 %v5647, %v5645
    %v5812 = vpack.c.b16 %v5650, %v5648
    %v5813 = vpack.c.b16 %v5651, %v5649
    %v5814 = vpack.c.b16 %v5654, %v5652
    %v5815 = vpack.c.b16 %v5655, %v5653
    %v5816 = vpack.c.b16 %v5658, %v5656
    %v5817 = vpack.c.b16 %v5659, %v5657
    %v5818 = vpack.c.b16 %v5662, %v5660
    %v5819 = vpack.c.b16 %v5663, %v5661
    %v5820 = vpack.c.b16 %v5666, %v5664
    %v5821 = vpack.c.b16 %v5667, %v5665
    %v5822 = vpack.c.b16 %v5670, %v5668
    %v5823 = vpack.c.b16 %v5671, %v5669
    %v5824 = vpack.c.b16 %v5674, %v5672
    %v5825 = vpack.c.b16 %v5675, %v5673
    %v5826 = vpack.c.b16 %v5678, %v5676
    %v5827 = vpack.c.b16 %v5679, %v5677
    %v5828 = vpack.c.b16 %v5682, %v5680
    %v5829 = vpack.c.b16 %v5683, %v5681
    %v5830 = vpack.c.b16 %v5686, %v5684
    %v5831 = vpack.c.b16 %v5687, %v5685
    %v5832 = vpack.c.b16 %v5690, %v5688
    %v5833 = vpack.c.b16 %v5691, %v5689
    %v5834 = vpack.c.b16 %v5694, %v5692
    %v5835 = vpack.c.b16 %v5695, %v5693
    %v5836 = vpack.c.b16 %v5698, %v5696
    %v5837 = vpack.c.b16 %v5699, %v5697
    %v5838 = vpack.c.b16 %v5702, %v5700
    %v5839 = vpack.c.b16 %v5703, %v5701
    %v5840 = vpack.c.b16 %v5706, %v5704
    %v5841 = vpack.c.b16 %v5707, %v5705
    %v5842 = vpack.c.b16 %v5710, %v5708
    %v5843 = vpack.c.b16 %v5711, %v5709
    %v5844 = vpack.c.b16 %v5714, %v5712
    %v5845 = vpack.c.b16 %v5715, %v5713
    %v5846 = vpack.c.b16 %v5718, %v5716
    %v5847 = vpack.c.b16 %v5719, %v5717
    %v5848 = vpack.c.b16 %v5722, %v5720
    %v5849 = vpack.c.b16 %v5723, %v5721
    %v5850 = vpack.c.b16 %v5726, %v5724
    %v5851 = vpack.c.b16 %v5727, %v5725
    %v5852 = vpack.c.b16 %v5730, %v5728
    %v5853 = vpack.c.b16 %v5731, %v5729
    %v5854 = vpack.c.b16 %v5734, %v5732
    %v5855 = vpack.c.b16 %v5735, %v5733
    %v5856 = vpack.c.b16 %v5738, %v5736
    %v5857 = vpack.c.b16 %v5739, %v5737
    %v5858 = vpack.c.b16 %v5742, %v5740
    %v5859 = vpack.c.b16 %v5743, %v5741
    %v5860 = vpack.c.b16 %v5746, %v5744
    %v5861 = vpack.c.b16 %v5747, %v5745
    %v5862 = vpack.c.b16 %v5750, %v5748
    %v5863 = vpack.c.b16 %v5751, %v5749
    %v5864 = vpack.c.b16 %v5754, %v5752
    %v5865 = vpack.c.b16 %v5755, %v5753
    %v5866 = vpack.c.b16 %v5758, %v5756
    %v5867 = vpack.c.b16 %v5759, %v5757
    %v5868 = vpack.c.b16 %v5762, %v5760
    %v5869 = vpack.c.b16 %v5763, %v5761
    %v5870 = vpack.c.b16 %v5766, %v5764
    %v5871 = vpack.c.b16 %v5767, %v5765
    %v5872 = vpack.c.b16 %v5770, %v5768
    %v5873 = vpack.c.b16 %v5771, %v5769
    %v5874 = vpack.c.b16 %v5774, %v5772
    %v5875 = vpack.c.b16 %v5775, %v5773
    %v5876 = vpack.c.b16 %v5778, %v5776
    %v5877 = vpack.c.b16 %v5779, %v5777
    %v5878 = vpack.c.b16 %v5782, %v5780
    %v5879 = vpack.c.b16 %v5783, %v5781
    %5976 = vmatprep.subr.bf16.mxu0 %v5799
    %5977 = vmatpush1.bf16.msra.mxu0 %v5798
    %5978 = vmatprep.subr.bf16.mxu0 %v5797
    %5979 = vmatpush1.bf16.msra.mxu0 %v5796
    %5980 = vmatprep.subr.bf16.mxu0 %v5795
    %5981 = vmatpush1.bf16.msra.mxu0 %v5794
    %5982 = vmatprep.subr.bf16.mxu0 %v5793
    %5983 = vmatpush1.bf16.msra.mxu0 %v5792
    %5984 = vmatprep.subr.bf16.mxu0 %v5791
    %5985 = vmatpush1.bf16.msra.mxu0 %v5790
    %5986 = vmatprep.subr.bf16.mxu0 %v5789
    %5987 = vmatpush1.bf16.msra.mxu0 %v5788
    %5988 = vmatprep.subr.bf16.mxu0 %v5787
    %5989 = vmatpush1.bf16.msra.mxu0 %v5786
    %5990 = vmatprep.subr.bf16.mxu0 %v5785
    %5991 = vmatpush1.bf16.msra.mxu0 %v5784
    %5992 = vmatprep.subr.bf16.mxu0 %v5815
    %5993 = vmatpush2.bf16.msra.mxu0 %v5814
    %5994 = vmatprep.subr.bf16.mxu0 %v5813
    %5995 = vmatpush2.bf16.msra.mxu0 %v5812
    %5996 = vmatprep.subr.bf16.mxu0 %v5811
    %5997 = vmatpush2.bf16.msra.mxu0 %v5810
    %5998 = vmatprep.subr.bf16.mxu0 %v5809
    %5999 = vmatpush2.bf16.msra.mxu0 %v5808
    %6000 = vmatprep.subr.bf16.mxu0 %v5807
    %6001 = vmatpush2.bf16.msra.mxu0 %v5806
    %6002 = vmatprep.subr.bf16.mxu0 %v5805
    %6003 = vmatpush2.bf16.msra.mxu0 %v5804
    %6004 = vmatprep.subr.bf16.mxu0 %v5803
    %6005 = vmatpush2.bf16.msra.mxu0 %v5802
    %6006 = vmatprep.subr.bf16.mxu0 %v5801
    %6007 = vmatpush2.bf16.msra.mxu0 %v5800
    %6008 = vmatprep.mubr.bf16.mxu0 %v5401
    %6009 = vmatmul.mubr.bf16.gmra.mxu0 %v5400
    %v6010 = vpop.f32.mrf.mxu0
    %v6011 = vadd.f32 0.0, %v6010
    %v6012 = vpop.f32.mrf.mxu0
    %v6013 = vadd.f32 0.0, %v6012
    %v6014 = vpop.f32.mrf.mxu0
    %v6015 = vadd.f32 0.0, %v6014
    %v6016 = vpop.f32.mrf.mxu0
    %v6017 = vadd.f32 0.0, %v6016
    %6018 = vmatprep.mubr.bf16.mxu0 %v5407
    %6019 = vmatmul.mubr.bf16.gmra.mxu0 %v5406
    %v6020 = vpop.f32.mrf.mxu0
    %v6021 = vadd.f32 0.0, %v6020
    %v6022 = vpop.f32.mrf.mxu0
    %v6023 = vadd.f32 0.0, %v6022
    %v6024 = vpop.f32.mrf.mxu0
    %v6025 = vadd.f32 0.0, %v6024
    %v6026 = vpop.f32.mrf.mxu0
    %v6027 = vadd.f32 0.0, %v6026
    %6028 = vmatprep.mubr.bf16.mxu0 %v5413
    %6029 = vmatmul.mubr.bf16.gmra.mxu0 %v5412
    %v6030 = vpop.f32.mrf.mxu0
    %v6031 = vadd.f32 0.0, %v6030
    %v6032 = vpop.f32.mrf.mxu0
    %v6033 = vadd.f32 0.0, %v6032
    %v6034 = vpop.f32.mrf.mxu0
    %v6035 = vadd.f32 0.0, %v6034
    %v6036 = vpop.f32.mrf.mxu0
    %v6037 = vadd.f32 0.0, %v6036
    %6038 = vmatprep.mubr.bf16.mxu0 %v5419
    %6039 = vmatmul.mubr.bf16.gmra.mxu0 %v5418
    %v6040 = vpop.f32.mrf.mxu0
    %v6041 = vadd.f32 0.0, %v6040
    %v6042 = vpop.f32.mrf.mxu0
    %v6043 = vadd.f32 0.0, %v6042
    %v6044 = vpop.f32.mrf.mxu0
    %v6045 = vadd.f32 0.0, %v6044
    %v6046 = vpop.f32.mrf.mxu0
    %v6047 = vadd.f32 0.0, %v6046
    %6048 = vmatprep.mubr.bf16.mxu0 %v5425
    %6049 = vmatmul.mubr.bf16.gmra.mxu0 %v5424
    %v6050 = vpop.f32.mrf.mxu0
    %v6051 = vadd.f32 0.0, %v6050
    %v6052 = vpop.f32.mrf.mxu0
    %v6053 = vadd.f32 0.0, %v6052
    %v6054 = vpop.f32.mrf.mxu0
    %v6055 = vadd.f32 0.0, %v6054
    %v6056 = vpop.f32.mrf.mxu0
    %v6057 = vadd.f32 0.0, %v6056
    %6058 = vmatprep.mubr.bf16.mxu0 %v5431
    %6059 = vmatmul.mubr.bf16.gmra.mxu0 %v5430
    %v6060 = vpop.f32.mrf.mxu0
    %v6061 = vadd.f32 0.0, %v6060
    %v6062 = vpop.f32.mrf.mxu0
    %v6063 = vadd.f32 0.0, %v6062
    %v6064 = vpop.f32.mrf.mxu0
    %v6065 = vadd.f32 0.0, %v6064
    %v6066 = vpop.f32.mrf.mxu0
    %v6067 = vadd.f32 0.0, %v6066
    %6068 = vmatprep.mubr.bf16.mxu0 %v5437
    %6069 = vmatmul.mubr.bf16.gmra.mxu0 %v5436
    %v6070 = vpop.f32.mrf.mxu0
    %v6071 = vadd.f32 0.0, %v6070
    %v6072 = vpop.f32.mrf.mxu0
    %v6073 = vadd.f32 0.0, %v6072
    %v6074 = vpop.f32.mrf.mxu0
    %v6075 = vadd.f32 0.0, %v6074
    %v6076 = vpop.f32.mrf.mxu0
    %v6077 = vadd.f32 0.0, %v6076
    %6078 = vmatprep.mubr.bf16.mxu0 %v5443
    %6079 = vmatmul.mubr.bf16.gmra.mxu0 %v5442
    %v6080 = vpop.f32.mrf.mxu0
    %v6081 = vadd.f32 0.0, %v6080
    %v6082 = vpop.f32.mrf.mxu0
    %v6083 = vadd.f32 0.0, %v6082
    %v6084 = vpop.f32.mrf.mxu0
    %v6085 = vadd.f32 0.0, %v6084
    %v6086 = vpop.f32.mrf.mxu0
    %v6087 = vadd.f32 0.0, %v6086
    %6088 = vdwg.mxu0
    %6089 = vmatprep.subr.bf16.mxu0 %v5831
    %6090 = vmatpush1.bf16.msra.mxu0 %v5830
    %6091 = vmatprep.subr.bf16.mxu0 %v5829
    %6092 = vmatpush1.bf16.msra.mxu0 %v5828
    %6093 = vmatprep.subr.bf16.mxu0 %v5827
    %6094 = vmatpush1.bf16.msra.mxu0 %v5826
    %6095 = vmatprep.subr.bf16.mxu0 %v5825
    %6096 = vmatpush1.bf16.msra.mxu0 %v5824
    %6097 = vmatprep.subr.bf16.mxu0 %v5823
    %6098 = vmatpush1.bf16.msra.mxu0 %v5822
    %6099 = vmatprep.subr.bf16.mxu0 %v5821
    %6100 = vmatpush1.bf16.msra.mxu0 %v5820
    %6101 = vmatprep.subr.bf16.mxu0 %v5819
    %6102 = vmatpush1.bf16.msra.mxu0 %v5818
    %6103 = vmatprep.subr.bf16.mxu0 %v5817
    %6104 = vmatpush1.bf16.msra.mxu0 %v5816
    %6105 = vmatprep.subr.bf16.mxu0 %v5847
    %6106 = vmatpush2.bf16.msra.mxu0 %v5846
    %6107 = vmatprep.subr.bf16.mxu0 %v5845
    %6108 = vmatpush2.bf16.msra.mxu0 %v5844
    %6109 = vmatprep.subr.bf16.mxu0 %v5843
    %6110 = vmatpush2.bf16.msra.mxu0 %v5842
    %6111 = vmatprep.subr.bf16.mxu0 %v5841
    %6112 = vmatpush2.bf16.msra.mxu0 %v5840
    %6113 = vmatprep.subr.bf16.mxu0 %v5839
    %6114 = vmatpush2.bf16.msra.mxu0 %v5838
    %6115 = vmatprep.subr.bf16.mxu0 %v5837
    %6116 = vmatpush2.bf16.msra.mxu0 %v5836
    %6117 = vmatprep.subr.bf16.mxu0 %v5835
    %6118 = vmatpush2.bf16.msra.mxu0 %v5834
    %6119 = vmatprep.subr.bf16.mxu0 %v5833
    %6120 = vmatpush2.bf16.msra.mxu0 %v5832
    %6121 = vmatprep.mubr.bf16.mxu0 %v5403
    %6122 = vmatmul.mubr.bf16.gmra.mxu0 %v5402
    %v6123 = vpop.f32.mrf.mxu0
    %v6124 = vadd.f32 %v6011, %v6123
    %v6125 = vpop.f32.mrf.mxu0
    %v6126 = vadd.f32 %v6013, %v6125
    %v6127 = vpop.f32.mrf.mxu0
    %v6128 = vadd.f32 %v6015, %v6127
    %v6129 = vpop.f32.mrf.mxu0
    %v6130 = vadd.f32 %v6017, %v6129
    %6131 = vmatprep.mubr.bf16.mxu0 %v5409
    %6132 = vmatmul.mubr.bf16.gmra.mxu0 %v5408
    %v6133 = vpop.f32.mrf.mxu0
    %v6134 = vadd.f32 %v6021, %v6133
    %v6135 = vpop.f32.mrf.mxu0
    %v6136 = vadd.f32 %v6023, %v6135
    %v6137 = vpop.f32.mrf.mxu0
    %v6138 = vadd.f32 %v6025, %v6137
    %v6139 = vpop.f32.mrf.mxu0
    %v6140 = vadd.f32 %v6027, %v6139
    %6141 = vmatprep.mubr.bf16.mxu0 %v5415
    %6142 = vmatmul.mubr.bf16.gmra.mxu0 %v5414
    %v6143 = vpop.f32.mrf.mxu0
    %v6144 = vadd.f32 %v6031, %v6143
    %v6145 = vpop.f32.mrf.mxu0
    %v6146 = vadd.f32 %v6033, %v6145
    %v6147 = vpop.f32.mrf.mxu0
    %v6148 = vadd.f32 %v6035, %v6147
    %v6149 = vpop.f32.mrf.mxu0
    %v6150 = vadd.f32 %v6037, %v6149
    %6151 = vmatprep.mubr.bf16.mxu0 %v5421
    %6152 = vmatmul.mubr.bf16.gmra.mxu0 %v5420
    %v6153 = vpop.f32.mrf.mxu0
    %v6154 = vadd.f32 %v6041, %v6153
    %v6155 = vpop.f32.mrf.mxu0
    %v6156 = vadd.f32 %v6043, %v6155
    %v6157 = vpop.f32.mrf.mxu0
    %v6158 = vadd.f32 %v6045, %v6157
    %v6159 = vpop.f32.mrf.mxu0
    %v6160 = vadd.f32 %v6047, %v6159
    %6161 = vmatprep.mubr.bf16.mxu0 %v5427
    %6162 = vmatmul.mubr.bf16.gmra.mxu0 %v5426
    %v6163 = vpop.f32.mrf.mxu0
    %v6164 = vadd.f32 %v6051, %v6163
    %v6165 = vpop.f32.mrf.mxu0
    %v6166 = vadd.f32 %v6053, %v6165
    %v6167 = vpop.f32.mrf.mxu0
    %v6168 = vadd.f32 %v6055, %v6167
    %v6169 = vpop.f32.mrf.mxu0
    %v6170 = vadd.f32 %v6057, %v6169
    %6171 = vmatprep.mubr.bf16.mxu0 %v5433
    %6172 = vmatmul.mubr.bf16.gmra.mxu0 %v5432
    %v6173 = vpop.f32.mrf.mxu0
    %v6174 = vadd.f32 %v6061, %v6173
    %v6175 = vpop.f32.mrf.mxu0
    %v6176 = vadd.f32 %v6063, %v6175
    %v6177 = vpop.f32.mrf.mxu0
    %v6178 = vadd.f32 %v6065, %v6177
    %v6179 = vpop.f32.mrf.mxu0
    %v6180 = vadd.f32 %v6067, %v6179
    %6181 = vmatprep.mubr.bf16.mxu0 %v5439
    %6182 = vmatmul.mubr.bf16.gmra.mxu0 %v5438
    %v6183 = vpop.f32.mrf.mxu0
    %v6184 = vadd.f32 %v6071, %v6183
    %v6185 = vpop.f32.mrf.mxu0
    %v6186 = vadd.f32 %v6073, %v6185
    %v6187 = vpop.f32.mrf.mxu0
    %v6188 = vadd.f32 %v6075, %v6187
    %v6189 = vpop.f32.mrf.mxu0
    %v6190 = vadd.f32 %v6077, %v6189
    %6191 = vmatprep.mubr.bf16.mxu0 %v5445
    %6192 = vmatmul.mubr.bf16.gmra.mxu0 %v5444
    %v6193 = vpop.f32.mrf.mxu0
    %v6194 = vadd.f32 %v6081, %v6193
    %v6195 = vpop.f32.mrf.mxu0
    %v6196 = vadd.f32 %v6083, %v6195
    %v6197 = vpop.f32.mrf.mxu0
    %v6198 = vadd.f32 %v6085, %v6197
    %v6199 = vpop.f32.mrf.mxu0
    %v6200 = vadd.f32 %v6087, %v6199
    %6201 = vdwg.mxu0
    %6202 = vmatprep.subr.bf16.mxu0 %v5863
    %6203 = vmatpush1.bf16.msra.mxu0 %v5862
    %6204 = vmatprep.subr.bf16.mxu0 %v5861
    %6205 = vmatpush1.bf16.msra.mxu0 %v5860
    %6206 = vmatprep.subr.bf16.mxu0 %v5859
    %6207 = vmatpush1.bf16.msra.mxu0 %v5858
    %6208 = vmatprep.subr.bf16.mxu0 %v5857
    %6209 = vmatpush1.bf16.msra.mxu0 %v5856
    %6210 = vmatprep.subr.bf16.mxu0 %v5855
    %6211 = vmatpush1.bf16.msra.mxu0 %v5854
    %6212 = vmatprep.subr.bf16.mxu0 %v5853
    %6213 = vmatpush1.bf16.msra.mxu0 %v5852
    %6214 = vmatprep.subr.bf16.mxu0 %v5851
    %6215 = vmatpush1.bf16.msra.mxu0 %v5850
    %6216 = vmatprep.subr.bf16.mxu0 %v5849
    %6217 = vmatpush1.bf16.msra.mxu0 %v5848
    %6218 = vmatprep.subr.bf16.mxu0 %v5879
    %6219 = vmatpush2.bf16.msra.mxu0 %v5878
    %6220 = vmatprep.subr.bf16.mxu0 %v5877
    %6221 = vmatpush2.bf16.msra.mxu0 %v5876
    %6222 = vmatprep.subr.bf16.mxu0 %v5875
    %6223 = vmatpush2.bf16.msra.mxu0 %v5874
    %6224 = vmatprep.subr.bf16.mxu0 %v5873
    %6225 = vmatpush2.bf16.msra.mxu0 %v5872
    %6226 = vmatprep.subr.bf16.mxu0 %v5871
    %6227 = vmatpush2.bf16.msra.mxu0 %v5870
    %6228 = vmatprep.subr.bf16.mxu0 %v5869
    %6229 = vmatpush2.bf16.msra.mxu0 %v5868
    %6230 = vmatprep.subr.bf16.mxu0 %v5867
    %6231 = vmatpush2.bf16.msra.mxu0 %v5866
    %6232 = vmatprep.subr.bf16.mxu0 %v5865
    %6233 = vmatpush2.bf16.msra.mxu0 %v5864
    %6234 = vmatprep.mubr.bf16.mxu0 %v5405
    %6235 = vmatmul.mubr.bf16.gmra.mxu0 %v5404
    %v6236 = vpop.f32.mrf.mxu0
    %v6237 = vadd.f32 %v6124, %v6236
    %v6238 = vpop.f32.mrf.mxu0
    %v6239 = vadd.f32 %v6126, %v6238
    %v6240 = vpop.f32.mrf.mxu0
    %v6241 = vadd.f32 %v6128, %v6240
    %v6242 = vpop.f32.mrf.mxu0
    %v6243 = vadd.f32 %v6130, %v6242
    %6244 = vmatprep.mubr.bf16.mxu0 %v5411
    %6245 = vmatmul.mubr.bf16.gmra.mxu0 %v5410
    %v6246 = vpop.f32.mrf.mxu0
    %v6247 = vadd.f32 %v6134, %v6246
    %v6248 = vpop.f32.mrf.mxu0
    %v6249 = vadd.f32 %v6136, %v6248
    %v6250 = vpop.f32.mrf.mxu0
    %v6251 = vadd.f32 %v6138, %v6250
    %v6252 = vpop.f32.mrf.mxu0
    %v6253 = vadd.f32 %v6140, %v6252
    %6254 = vmatprep.mubr.bf16.mxu0 %v5417
    %6255 = vmatmul.mubr.bf16.gmra.mxu0 %v5416
    %v6256 = vpop.f32.mrf.mxu0
    %v6257 = vadd.f32 %v6144, %v6256
    %v6258 = vpop.f32.mrf.mxu0
    %v6259 = vadd.f32 %v6146, %v6258
    %v6260 = vpop.f32.mrf.mxu0
    %v6261 = vadd.f32 %v6148, %v6260
    %v6262 = vpop.f32.mrf.mxu0
    %v6263 = vadd.f32 %v6150, %v6262
    %6264 = vmatprep.mubr.bf16.mxu0 %v5423
    %6265 = vmatmul.mubr.bf16.gmra.mxu0 %v5422
    %v6266 = vpop.f32.mrf.mxu0
    %v6267 = vadd.f32 %v6154, %v6266
    %v6268 = vpop.f32.mrf.mxu0
    %v6269 = vadd.f32 %v6156, %v6268
    %v6270 = vpop.f32.mrf.mxu0
    %v6271 = vadd.f32 %v6158, %v6270
    %v6272 = vpop.f32.mrf.mxu0
    %v6273 = vadd.f32 %v6160, %v6272
    %6274 = vmatprep.mubr.bf16.mxu0 %v5429
    %6275 = vmatmul.mubr.bf16.gmra.mxu0 %v5428
    %v6276 = vpop.f32.mrf.mxu0
    %v6277 = vadd.f32 %v6164, %v6276
    %v6278 = vpop.f32.mrf.mxu0
    %v6279 = vadd.f32 %v6166, %v6278
    %v6280 = vpop.f32.mrf.mxu0
    %v6281 = vadd.f32 %v6168, %v6280
    %v6282 = vpop.f32.mrf.mxu0
    %v6283 = vadd.f32 %v6170, %v6282
    %6284 = vmatprep.mubr.bf16.mxu0 %v5435
    %6285 = vmatmul.mubr.bf16.gmra.mxu0 %v5434
    %v6286 = vpop.f32.mrf.mxu0
    %v6287 = vadd.f32 %v6174, %v6286
    %v6288 = vpop.f32.mrf.mxu0
    %v6289 = vadd.f32 %v6176, %v6288
    %v6290 = vpop.f32.mrf.mxu0
    %v6291 = vadd.f32 %v6178, %v6290
    %v6292 = vpop.f32.mrf.mxu0
    %v6293 = vadd.f32 %v6180, %v6292
    %6294 = vmatprep.mubr.bf16.mxu0 %v5441
    %6295 = vmatmul.mubr.bf16.gmra.mxu0 %v5440
    %v6296 = vpop.f32.mrf.mxu0
    %v6297 = vadd.f32 %v6184, %v6296
    %v6298 = vpop.f32.mrf.mxu0
    %v6299 = vadd.f32 %v6186, %v6298
    %v6300 = vpop.f32.mrf.mxu0
    %v6301 = vadd.f32 %v6188, %v6300
    %v6302 = vpop.f32.mrf.mxu0
    %v6303 = vadd.f32 %v6190, %v6302
    %6304 = vmatprep.mubr.bf16.mxu0 %v5447
    %6305 = vmatmul.mubr.bf16.gmra.mxu0 %v5446
    %v6306 = vpop.f32.mrf.mxu0
    %v6307 = vadd.f32 %v6194, %v6306
    %v6308 = vpop.f32.mrf.mxu0
    %v6309 = vadd.f32 %v6196, %v6308
    %v6310 = vpop.f32.mrf.mxu0
    %v6311 = vadd.f32 %v6198, %v6310
    %v6312 = vpop.f32.mrf.mxu0
    %v6313 = vadd.f32 %v6200, %v6312
    %6314 = vdwg.mxu0
    %v6321 = vunpack.c.l.b16 %v5009
    %v6322 = vunpack.c.h.b16 %v5009
    %v6323 = vunpack.c.l.b16 %v5010
    %v6324 = vunpack.c.h.b16 %v5010
    %v6325 = vunpack.c.l.b16 %v5011
    %v6326 = vunpack.c.h.b16 %v5011
    %v6327 = vunpack.c.l.b16 %v5012
    %v6328 = vunpack.c.h.b16 %v5012
    %v6329 = vunpack.c.l.b16 %v5013
    %v6330 = vunpack.c.h.b16 %v5013
    %v6331 = vunpack.c.l.b16 %v5014
    %v6332 = vunpack.c.h.b16 %v5014
    %v6333 = vpack.c.b16 %v6327, %v6321
    %v6334 = vpack.c.b16 %v6328, %v6322
    %v6335 = vpack.c.b16 %v6329, %v6323
    %v6336 = vpack.c.b16 %v6330, %v6324
    %v6337 = vpack.c.b16 %v6331, %v6325
    %v6338 = vpack.c.b16 %v6332, %v6326
    %v6441 = vunpack.c.l.b16 %v5057
    %v6442 = vunpack.c.h.b16 %v5057
    %v6443 = vunpack.c.l.b16 %v5058
    %v6444 = vunpack.c.h.b16 %v5058
    %v6445 = vunpack.c.l.b16 %v5059
    %v6446 = vunpack.c.h.b16 %v5059
    %v6447 = vunpack.c.l.b16 %v5060
    %v6448 = vunpack.c.h.b16 %v5060
    %v6449 = vunpack.c.l.b16 %v5061
    %v6450 = vunpack.c.h.b16 %v5061
    %v6451 = vunpack.c.l.b16 %v5062
    %v6452 = vunpack.c.h.b16 %v5062
    %v6453 = vunpack.c.l.b16 %v5063
    %v6454 = vunpack.c.h.b16 %v5063
    %v6455 = vunpack.c.l.b16 %v5064
    %v6456 = vunpack.c.h.b16 %v5064
    %v6457 = vunpack.c.l.b16 %v5065
    %v6458 = vunpack.c.h.b16 %v5065
    %v6459 = vunpack.c.l.b16 %v5066
    %v6460 = vunpack.c.h.b16 %v5066
    %v6461 = vunpack.c.l.b16 %v5067
    %v6462 = vunpack.c.h.b16 %v5067
    %v6463 = vunpack.c.l.b16 %v5068
    %v6464 = vunpack.c.h.b16 %v5068
    %v6465 = vunpack.c.l.b16 %v5069
    %v6466 = vunpack.c.h.b16 %v5069
    %v6467 = vunpack.c.l.b16 %v5070
    %v6468 = vunpack.c.h.b16 %v5070
    %v6469 = vunpack.c.l.b16 %v5071
    %v6470 = vunpack.c.h.b16 %v5071
    %v6471 = vunpack.c.l.b16 %v5072
    %v6472 = vunpack.c.h.b16 %v5072
    %v6473 = vunpack.c.l.b16 %v5073
    %v6474 = vunpack.c.h.b16 %v5073
    %v6475 = vunpack.c.l.b16 %v5074
    %v6476 = vunpack.c.h.b16 %v5074
    %v6477 = vunpack.c.l.b16 %v5075
    %v6478 = vunpack.c.h.b16 %v5075
    %v6479 = vunpack.c.l.b16 %v5076
    %v6480 = vunpack.c.h.b16 %v5076
    %v6481 = vunpack.c.l.b16 %v5077
    %v6482 = vunpack.c.h.b16 %v5077
    %v6483 = vunpack.c.l.b16 %v5078
    %v6484 = vunpack.c.h.b16 %v5078
    %v6485 = vunpack.c.l.b16 %v5079
    %v6486 = vunpack.c.h.b16 %v5079
    %v6487 = vunpack.c.l.b16 %v5080
    %v6488 = vunpack.c.h.b16 %v5080
    %v6489 = vunpack.c.l.b16 %v5081
    %v6490 = vunpack.c.h.b16 %v5081
    %v6491 = vunpack.c.l.b16 %v5082
    %v6492 = vunpack.c.h.b16 %v5082
    %v6493 = vunpack.c.l.b16 %v5083
    %v6494 = vunpack.c.h.b16 %v5083
    %v6495 = vunpack.c.l.b16 %v5084
    %v6496 = vunpack.c.h.b16 %v5084
    %v6497 = vunpack.c.l.b16 %v5085
    %v6498 = vunpack.c.h.b16 %v5085
    %v6499 = vunpack.c.l.b16 %v5086
    %v6500 = vunpack.c.h.b16 %v5086
    %v6501 = vunpack.c.l.b16 %v5087
    %v6502 = vunpack.c.h.b16 %v5087
    %v6503 = vunpack.c.l.b16 %v5088
    %v6504 = vunpack.c.h.b16 %v5088
    %v6505 = vunpack.c.l.b16 %v5089
    %v6506 = vunpack.c.h.b16 %v5089
    %v6507 = vunpack.c.l.b16 %v5090
    %v6508 = vunpack.c.h.b16 %v5090
    %v6509 = vunpack.c.l.b16 %v5091
    %v6510 = vunpack.c.h.b16 %v5091
    %v6511 = vunpack.c.l.b16 %v5092
    %v6512 = vunpack.c.h.b16 %v5092
    %v6513 = vunpack.c.l.b16 %v5093
    %v6514 = vunpack.c.h.b16 %v5093
    %v6515 = vunpack.c.l.b16 %v5094
    %v6516 = vunpack.c.h.b16 %v5094
    %v6517 = vunpack.c.l.b16 %v5095
    %v6518 = vunpack.c.h.b16 %v5095
    %v6519 = vunpack.c.l.b16 %v5096
    %v6520 = vunpack.c.h.b16 %v5096
    %v6521 = vunpack.c.l.b16 %v5097
    %v6522 = vunpack.c.h.b16 %v5097
    %v6523 = vunpack.c.l.b16 %v5098
    %v6524 = vunpack.c.h.b16 %v5098
    %v6525 = vunpack.c.l.b16 %v5099
    %v6526 = vunpack.c.h.b16 %v5099
    %v6527 = vunpack.c.l.b16 %v5100
    %v6528 = vunpack.c.h.b16 %v5100
    %v6529 = vunpack.c.l.b16 %v5101
    %v6530 = vunpack.c.h.b16 %v5101
    %v6531 = vunpack.c.l.b16 %v5102
    %v6532 = vunpack.c.h.b16 %v5102
    %v6533 = vunpack.c.l.b16 %v5103
    %v6534 = vunpack.c.h.b16 %v5103
    %v6535 = vunpack.c.l.b16 %v5104
    %v6536 = vunpack.c.h.b16 %v5104
    %v6537 = vunpack.c.l.b16 %v5105
    %v6538 = vunpack.c.h.b16 %v5105
    %v6539 = vunpack.c.l.b16 %v5106
    %v6540 = vunpack.c.h.b16 %v5106
    %v6541 = vunpack.c.l.b16 %v5107
    %v6542 = vunpack.c.h.b16 %v5107
    %v6543 = vunpack.c.l.b16 %v5108
    %v6544 = vunpack.c.h.b16 %v5108
    %v6545 = vunpack.c.l.b16 %v5109
    %v6546 = vunpack.c.h.b16 %v5109
    %v6547 = vunpack.c.l.b16 %v5110
    %v6548 = vunpack.c.h.b16 %v5110
    %v6549 = vunpack.c.l.b16 %v5111
    %v6550 = vunpack.c.h.b16 %v5111
    %v6551 = vunpack.c.l.b16 %v5112
    %v6552 = vunpack.c.h.b16 %v5112
    %v6553 = vunpack.c.l.b16 %v5113
    %v6554 = vunpack.c.h.b16 %v5113
    %v6555 = vunpack.c.l.b16 %v5114
    %v6556 = vunpack.c.h.b16 %v5114
    %v6557 = vunpack.c.l.b16 %v5115
    %v6558 = vunpack.c.h.b16 %v5115
    %v6559 = vunpack.c.l.b16 %v5116
    %v6560 = vunpack.c.h.b16 %v5116
    %v6561 = vunpack.c.l.b16 %v5117
    %v6562 = vunpack.c.h.b16 %v5117
    %v6563 = vunpack.c.l.b16 %v5118
    %v6564 = vunpack.c.h.b16 %v5118
    %v6565 = vunpack.c.l.b16 %v5119
    %v6566 = vunpack.c.h.b16 %v5119
    %v6567 = vunpack.c.l.b16 %v5120
    %v6568 = vunpack.c.h.b16 %v5120
    %v6569 = vunpack.c.l.b16 %v5121
    %v6570 = vunpack.c.h.b16 %v5121
    %v6571 = vunpack.c.l.b16 %v5122
    %v6572 = vunpack.c.h.b16 %v5122
    %v6573 = vunpack.c.l.b16 %v5123
    %v6574 = vunpack.c.h.b16 %v5123
    %v6575 = vunpack.c.l.b16 %v5124
    %v6576 = vunpack.c.h.b16 %v5124
    %v6577 = vunpack.c.l.b16 %v5125
    %v6578 = vunpack.c.h.b16 %v5125
    %v6579 = vunpack.c.l.b16 %v5126
    %v6580 = vunpack.c.h.b16 %v5126
    %v6581 = vunpack.c.l.b16 %v5127
    %v6582 = vunpack.c.h.b16 %v5127
    %v6583 = vunpack.c.l.b16 %v5128
    %v6584 = vunpack.c.h.b16 %v5128
    %v6585 = vunpack.c.l.b16 %v5129
    %v6586 = vunpack.c.h.b16 %v5129
    %v6587 = vunpack.c.l.b16 %v5130
    %v6588 = vunpack.c.h.b16 %v5130
    %v6589 = vunpack.c.l.b16 %v5131
    %v6590 = vunpack.c.h.b16 %v5131
    %v6591 = vunpack.c.l.b16 %v5132
    %v6592 = vunpack.c.h.b16 %v5132
    %v6593 = vunpack.c.l.b16 %v5133
    %v6594 = vunpack.c.h.b16 %v5133
    %v6595 = vunpack.c.l.b16 %v5134
    %v6596 = vunpack.c.h.b16 %v5134
    %v6597 = vunpack.c.l.b16 %v5135
    %v6598 = vunpack.c.h.b16 %v5135
    %v6599 = vunpack.c.l.b16 %v5136
    %v6600 = vunpack.c.h.b16 %v5136
    %v6601 = vunpack.c.l.b16 %v5137
    %v6602 = vunpack.c.h.b16 %v5137
    %v6603 = vunpack.c.l.b16 %v5138
    %v6604 = vunpack.c.h.b16 %v5138
    %v6605 = vunpack.c.l.b16 %v5139
    %v6606 = vunpack.c.h.b16 %v5139
    %v6607 = vunpack.c.l.b16 %v5140
    %v6608 = vunpack.c.h.b16 %v5140
    %v6609 = vunpack.c.l.b16 %v5141
    %v6610 = vunpack.c.h.b16 %v5141
    %v6611 = vunpack.c.l.b16 %v5142
    %v6612 = vunpack.c.h.b16 %v5142
    %v6613 = vunpack.c.l.b16 %v5143
    %v6614 = vunpack.c.h.b16 %v5143
    %v6615 = vunpack.c.l.b16 %v5144
    %v6616 = vunpack.c.h.b16 %v5144
    %v6617 = vunpack.c.l.b16 %v5145
    %v6618 = vunpack.c.h.b16 %v5145
    %v6619 = vunpack.c.l.b16 %v5146
    %v6620 = vunpack.c.h.b16 %v5146
    %v6621 = vunpack.c.l.b16 %v5147
    %v6622 = vunpack.c.h.b16 %v5147
    %v6623 = vunpack.c.l.b16 %v5148
    %v6624 = vunpack.c.h.b16 %v5148
    %v6625 = vunpack.c.l.b16 %v5149
    %v6626 = vunpack.c.h.b16 %v5149
    %v6627 = vunpack.c.l.b16 %v5150
    %v6628 = vunpack.c.h.b16 %v5150
    %v6629 = vunpack.c.l.b16 %v5151
    %v6630 = vunpack.c.h.b16 %v5151
    %v6631 = vunpack.c.l.b16 %v5152
    %v6632 = vunpack.c.h.b16 %v5152
    %v6633 = vpack.c.b16 %v6443, %v6441
    %v6634 = vpack.c.b16 %v6444, %v6442
    %v6635 = vpack.c.b16 %v6447, %v6445
    %v6636 = vpack.c.b16 %v6448, %v6446
    %v6637 = vpack.c.b16 %v6451, %v6449
    %v6638 = vpack.c.b16 %v6452, %v6450
    %v6639 = vpack.c.b16 %v6455, %v6453
    %v6640 = vpack.c.b16 %v6456, %v6454
    %v6641 = vpack.c.b16 %v6459, %v6457
    %v6642 = vpack.c.b16 %v6460, %v6458
    %v6643 = vpack.c.b16 %v6463, %v6461
    %v6644 = vpack.c.b16 %v6464, %v6462
    %v6645 = vpack.c.b16 %v6467, %v6465
    %v6646 = vpack.c.b16 %v6468, %v6466
    %v6647 = vpack.c.b16 %v6471, %v6469
    %v6648 = vpack.c.b16 %v6472, %v6470
    %v6649 = vpack.c.b16 %v6475, %v6473
    %v6650 = vpack.c.b16 %v6476, %v6474
    %v6651 = vpack.c.b16 %v6479, %v6477
    %v6652 = vpack.c.b16 %v6480, %v6478
    %v6653 = vpack.c.b16 %v6483, %v6481
    %v6654 = vpack.c.b16 %v6484, %v6482
    %v6655 = vpack.c.b16 %v6487, %v6485
    %v6656 = vpack.c.b16 %v6488, %v6486
    %v6657 = vpack.c.b16 %v6491, %v6489
    %v6658 = vpack.c.b16 %v6492, %v6490
    %v6659 = vpack.c.b16 %v6495, %v6493
    %v6660 = vpack.c.b16 %v6496, %v6494
    %v6661 = vpack.c.b16 %v6499, %v6497
    %v6662 = vpack.c.b16 %v6500, %v6498
    %v6663 = vpack.c.b16 %v6503, %v6501
    %v6664 = vpack.c.b16 %v6504, %v6502
    %v6665 = vpack.c.b16 %v6507, %v6505
    %v6666 = vpack.c.b16 %v6508, %v6506
    %v6667 = vpack.c.b16 %v6511, %v6509
    %v6668 = vpack.c.b16 %v6512, %v6510
    %v6669 = vpack.c.b16 %v6515, %v6513
    %v6670 = vpack.c.b16 %v6516, %v6514
    %v6671 = vpack.c.b16 %v6519, %v6517
    %v6672 = vpack.c.b16 %v6520, %v6518
    %v6673 = vpack.c.b16 %v6523, %v6521
    %v6674 = vpack.c.b16 %v6524, %v6522
    %v6675 = vpack.c.b16 %v6527, %v6525
    %v6676 = vpack.c.b16 %v6528, %v6526
    %v6677 = vpack.c.b16 %v6531, %v6529
    %v6678 = vpack.c.b16 %v6532, %v6530
    %v6679 = vpack.c.b16 %v6535, %v6533
    %v6680 = vpack.c.b16 %v6536, %v6534
    %v6681 = vpack.c.b16 %v6539, %v6537
    %v6682 = vpack.c.b16 %v6540, %v6538
    %v6683 = vpack.c.b16 %v6543, %v6541
    %v6684 = vpack.c.b16 %v6544, %v6542
    %v6685 = vpack.c.b16 %v6547, %v6545
    %v6686 = vpack.c.b16 %v6548, %v6546
    %v6687 = vpack.c.b16 %v6551, %v6549
    %v6688 = vpack.c.b16 %v6552, %v6550
    %v6689 = vpack.c.b16 %v6555, %v6553
    %v6690 = vpack.c.b16 %v6556, %v6554
    %v6691 = vpack.c.b16 %v6559, %v6557
    %v6692 = vpack.c.b16 %v6560, %v6558
    %v6693 = vpack.c.b16 %v6563, %v6561
    %v6694 = vpack.c.b16 %v6564, %v6562
    %v6695 = vpack.c.b16 %v6567, %v6565
    %v6696 = vpack.c.b16 %v6568, %v6566
    %v6697 = vpack.c.b16 %v6571, %v6569
    %v6698 = vpack.c.b16 %v6572, %v6570
    %v6699 = vpack.c.b16 %v6575, %v6573
    %v6700 = vpack.c.b16 %v6576, %v6574
    %v6701 = vpack.c.b16 %v6579, %v6577
    %v6702 = vpack.c.b16 %v6580, %v6578
    %v6703 = vpack.c.b16 %v6583, %v6581
    %v6704 = vpack.c.b16 %v6584, %v6582
    %v6705 = vpack.c.b16 %v6587, %v6585
    %v6706 = vpack.c.b16 %v6588, %v6586
    %v6707 = vpack.c.b16 %v6591, %v6589
    %v6708 = vpack.c.b16 %v6592, %v6590
    %v6709 = vpack.c.b16 %v6595, %v6593
    %v6710 = vpack.c.b16 %v6596, %v6594
    %v6711 = vpack.c.b16 %v6599, %v6597
    %v6712 = vpack.c.b16 %v6600, %v6598
    %v6713 = vpack.c.b16 %v6603, %v6601
    %v6714 = vpack.c.b16 %v6604, %v6602
    %v6715 = vpack.c.b16 %v6607, %v6605
    %v6716 = vpack.c.b16 %v6608, %v6606
    %v6717 = vpack.c.b16 %v6611, %v6609
    %v6718 = vpack.c.b16 %v6612, %v6610
    %v6719 = vpack.c.b16 %v6615, %v6613
    %v6720 = vpack.c.b16 %v6616, %v6614
    %v6721 = vpack.c.b16 %v6619, %v6617
    %v6722 = vpack.c.b16 %v6620, %v6618
    %v6723 = vpack.c.b16 %v6623, %v6621
    %v6724 = vpack.c.b16 %v6624, %v6622
    %v6725 = vpack.c.b16 %v6627, %v6625
    %v6726 = vpack.c.b16 %v6628, %v6626
    %v6727 = vpack.c.b16 %v6631, %v6629
    %v6728 = vpack.c.b16 %v6632, %v6630
    %6825 = vmatprep.subr.bf16.mxu0 %v6648
    %6826 = vmatpush1.bf16.msra.mxu0 %v6647
    %6827 = vmatprep.subr.bf16.mxu0 %v6646
    %6828 = vmatpush1.bf16.msra.mxu0 %v6645
    %6829 = vmatprep.subr.bf16.mxu0 %v6644
    %6830 = vmatpush1.bf16.msra.mxu0 %v6643
    %6831 = vmatprep.subr.bf16.mxu0 %v6642
    %6832 = vmatpush1.bf16.msra.mxu0 %v6641
    %6833 = vmatprep.subr.bf16.mxu0 %v6640
    %6834 = vmatpush1.bf16.msra.mxu0 %v6639
    %6835 = vmatprep.subr.bf16.mxu0 %v6638
    %6836 = vmatpush1.bf16.msra.mxu0 %v6637
    %6837 = vmatprep.subr.bf16.mxu0 %v6636
    %6838 = vmatpush1.bf16.msra.mxu0 %v6635
    %6839 = vmatprep.subr.bf16.mxu0 %v6634
    %6840 = vmatpush1.bf16.msra.mxu0 %v6633
    %6841 = vmatprep.subr.bf16.mxu0 %v6664
    %6842 = vmatpush2.bf16.msra.mxu0 %v6663
    %6843 = vmatprep.subr.bf16.mxu0 %v6662
    %6844 = vmatpush2.bf16.msra.mxu0 %v6661
    %6845 = vmatprep.subr.bf16.mxu0 %v6660
    %6846 = vmatpush2.bf16.msra.mxu0 %v6659
    %6847 = vmatprep.subr.bf16.mxu0 %v6658
    %6848 = vmatpush2.bf16.msra.mxu0 %v6657
    %6849 = vmatprep.subr.bf16.mxu0 %v6656
    %6850 = vmatpush2.bf16.msra.mxu0 %v6655
    %6851 = vmatprep.subr.bf16.mxu0 %v6654
    %6852 = vmatpush2.bf16.msra.mxu0 %v6653
    %6853 = vmatprep.subr.bf16.mxu0 %v6652
    %6854 = vmatpush2.bf16.msra.mxu0 %v6651
    %6855 = vmatprep.subr.bf16.mxu0 %v6650
    %6856 = vmatpush2.bf16.msra.mxu0 %v6649
    %6857 = vmatprep.mubr.bf16.mxu0 %v6334
    %6858 = vmatmul.mubr.bf16.gmra.mxu0 %v6333
    %v6859 = vpop.f32.mrf.mxu0
    %v6860 = vadd.f32 %v6237, %v6859
    %v6861 = vpop.f32.mrf.mxu0
    %v6862 = vadd.f32 %v6239, %v6861
    %v6863 = vpop.f32.mrf.mxu0
    %v6864 = vadd.f32 %v6241, %v6863
    %v6865 = vpop.f32.mrf.mxu0
    %v6866 = vadd.f32 %v6243, %v6865
    %6867 = vmatprep.mubr.bf16.mxu0 %v5401
    %6868 = vmatmul.mubr.bf16.gmra.mxu0 %v5400
    %v6869 = vpop.f32.mrf.mxu0
    %v6870 = vadd.f32 %v6247, %v6869
    %v6871 = vpop.f32.mrf.mxu0
    %v6872 = vadd.f32 %v6249, %v6871
    %v6873 = vpop.f32.mrf.mxu0
    %v6874 = vadd.f32 %v6251, %v6873
    %v6875 = vpop.f32.mrf.mxu0
    %v6876 = vadd.f32 %v6253, %v6875
    %6877 = vmatprep.mubr.bf16.mxu0 %v5407
    %6878 = vmatmul.mubr.bf16.gmra.mxu0 %v5406
    %v6879 = vpop.f32.mrf.mxu0
    %v6880 = vadd.f32 %v6257, %v6879
    %v6881 = vpop.f32.mrf.mxu0
    %v6882 = vadd.f32 %v6259, %v6881
    %v6883 = vpop.f32.mrf.mxu0
    %v6884 = vadd.f32 %v6261, %v6883
    %v6885 = vpop.f32.mrf.mxu0
    %v6886 = vadd.f32 %v6263, %v6885
    %6887 = vmatprep.mubr.bf16.mxu0 %v5413
    %6888 = vmatmul.mubr.bf16.gmra.mxu0 %v5412
    %v6889 = vpop.f32.mrf.mxu0
    %v6890 = vadd.f32 %v6267, %v6889
    %v6891 = vpop.f32.mrf.mxu0
    %v6892 = vadd.f32 %v6269, %v6891
    %v6893 = vpop.f32.mrf.mxu0
    %v6894 = vadd.f32 %v6271, %v6893
    %v6895 = vpop.f32.mrf.mxu0
    %v6896 = vadd.f32 %v6273, %v6895
    %6897 = vmatprep.mubr.bf16.mxu0 %v5419
    %6898 = vmatmul.mubr.bf16.gmra.mxu0 %v5418
    %v6899 = vpop.f32.mrf.mxu0
    %v6900 = vadd.f32 %v6277, %v6899
    %v6901 = vpop.f32.mrf.mxu0
    %v6902 = vadd.f32 %v6279, %v6901
    %v6903 = vpop.f32.mrf.mxu0
    %v6904 = vadd.f32 %v6281, %v6903
    %v6905 = vpop.f32.mrf.mxu0
    %v6906 = vadd.f32 %v6283, %v6905
    %6907 = vmatprep.mubr.bf16.mxu0 %v5425
    %6908 = vmatmul.mubr.bf16.gmra.mxu0 %v5424
    %v6909 = vpop.f32.mrf.mxu0
    %v6910 = vadd.f32 %v6287, %v6909
    %v6911 = vpop.f32.mrf.mxu0
    %v6912 = vadd.f32 %v6289, %v6911
    %v6913 = vpop.f32.mrf.mxu0
    %v6914 = vadd.f32 %v6291, %v6913
    %v6915 = vpop.f32.mrf.mxu0
    %v6916 = vadd.f32 %v6293, %v6915
    %6917 = vmatprep.mubr.bf16.mxu0 %v5431
    %6918 = vmatmul.mubr.bf16.gmra.mxu0 %v5430
    %v6919 = vpop.f32.mrf.mxu0
    %v6920 = vadd.f32 %v6297, %v6919
    %v6921 = vpop.f32.mrf.mxu0
    %v6922 = vadd.f32 %v6299, %v6921
    %v6923 = vpop.f32.mrf.mxu0
    %v6924 = vadd.f32 %v6301, %v6923
    %v6925 = vpop.f32.mrf.mxu0
    %v6926 = vadd.f32 %v6303, %v6925
    %6927 = vmatprep.mubr.bf16.mxu0 %v5437
    %6928 = vmatmul.mubr.bf16.gmra.mxu0 %v5436
    %v6929 = vpop.f32.mrf.mxu0
    %v6930 = vadd.f32 %v6307, %v6929
    %v6931 = vpop.f32.mrf.mxu0
    %v6932 = vadd.f32 %v6309, %v6931
    %v6933 = vpop.f32.mrf.mxu0
    %v6934 = vadd.f32 %v6311, %v6933
    %v6935 = vpop.f32.mrf.mxu0
    %v6936 = vadd.f32 %v6313, %v6935
    %6937 = vdwg.mxu0
    %6938 = vmatprep.subr.bf16.mxu0 %v6680
    %6939 = vmatpush1.bf16.msra.mxu0 %v6679
    %6940 = vmatprep.subr.bf16.mxu0 %v6678
    %6941 = vmatpush1.bf16.msra.mxu0 %v6677
    %6942 = vmatprep.subr.bf16.mxu0 %v6676
    %6943 = vmatpush1.bf16.msra.mxu0 %v6675
    %6944 = vmatprep.subr.bf16.mxu0 %v6674
    %6945 = vmatpush1.bf16.msra.mxu0 %v6673
    %6946 = vmatprep.subr.bf16.mxu0 %v6672
    %6947 = vmatpush1.bf16.msra.mxu0 %v6671
    %6948 = vmatprep.subr.bf16.mxu0 %v6670
    %6949 = vmatpush1.bf16.msra.mxu0 %v6669
    %6950 = vmatprep.subr.bf16.mxu0 %v6668
    %6951 = vmatpush1.bf16.msra.mxu0 %v6667
    %6952 = vmatprep.subr.bf16.mxu0 %v6666
    %6953 = vmatpush1.bf16.msra.mxu0 %v6665
    %6954 = vmatprep.subr.bf16.mxu0 %v6696
    %6955 = vmatpush2.bf16.msra.mxu0 %v6695
    %6956 = vmatprep.subr.bf16.mxu0 %v6694
    %6957 = vmatpush2.bf16.msra.mxu0 %v6693
    %6958 = vmatprep.subr.bf16.mxu0 %v6692
    %6959 = vmatpush2.bf16.msra.mxu0 %v6691
    %6960 = vmatprep.subr.bf16.mxu0 %v6690
    %6961 = vmatpush2.bf16.msra.mxu0 %v6689
    %6962 = vmatprep.subr.bf16.mxu0 %v6688
    %6963 = vmatpush2.bf16.msra.mxu0 %v6687
    %6964 = vmatprep.subr.bf16.mxu0 %v6686
    %6965 = vmatpush2.bf16.msra.mxu0 %v6685
    %6966 = vmatprep.subr.bf16.mxu0 %v6684
    %6967 = vmatpush2.bf16.msra.mxu0 %v6683
    %6968 = vmatprep.subr.bf16.mxu0 %v6682
    %6969 = vmatpush2.bf16.msra.mxu0 %v6681
    %6970 = vmatprep.mubr.bf16.mxu0 %v6336
    %6971 = vmatmul.mubr.bf16.gmra.mxu0 %v6335
    %v6972 = vpop.f32.mrf.mxu0
    %v6973 = vadd.f32 %v6860, %v6972
    %v6974 = vpop.f32.mrf.mxu0
    %v6975 = vadd.f32 %v6862, %v6974
    %v6976 = vpop.f32.mrf.mxu0
    %v6977 = vadd.f32 %v6864, %v6976
    %v6978 = vpop.f32.mrf.mxu0
    %v6979 = vadd.f32 %v6866, %v6978
    %6980 = vmatprep.mubr.bf16.mxu0 %v5403
    %6981 = vmatmul.mubr.bf16.gmra.mxu0 %v5402
    %v6982 = vpop.f32.mrf.mxu0
    %v6983 = vadd.f32 %v6870, %v6982
    %v6984 = vpop.f32.mrf.mxu0
    %v6985 = vadd.f32 %v6872, %v6984
    %v6986 = vpop.f32.mrf.mxu0
    %v6987 = vadd.f32 %v6874, %v6986
    %v6988 = vpop.f32.mrf.mxu0
    %v6989 = vadd.f32 %v6876, %v6988
    %6990 = vmatprep.mubr.bf16.mxu0 %v5409
    %6991 = vmatmul.mubr.bf16.gmra.mxu0 %v5408
    %v6992 = vpop.f32.mrf.mxu0
    %v6993 = vadd.f32 %v6880, %v6992
    %v6994 = vpop.f32.mrf.mxu0
    %v6995 = vadd.f32 %v6882, %v6994
    %v6996 = vpop.f32.mrf.mxu0
    %v6997 = vadd.f32 %v6884, %v6996
    %v6998 = vpop.f32.mrf.mxu0
    %v6999 = vadd.f32 %v6886, %v6998
    %7000 = vmatprep.mubr.bf16.mxu0 %v5415
    %7001 = vmatmul.mubr.bf16.gmra.mxu0 %v5414
    %v7002 = vpop.f32.mrf.mxu0
    %v7003 = vadd.f32 %v6890, %v7002
    %v7004 = vpop.f32.mrf.mxu0
    %v7005 = vadd.f32 %v6892, %v7004
    %v7006 = vpop.f32.mrf.mxu0
    %v7007 = vadd.f32 %v6894, %v7006
    %v7008 = vpop.f32.mrf.mxu0
    %v7009 = vadd.f32 %v6896, %v7008
    %7010 = vmatprep.mubr.bf16.mxu0 %v5421
    %7011 = vmatmul.mubr.bf16.gmra.mxu0 %v5420
    %v7012 = vpop.f32.mrf.mxu0
    %v7013 = vadd.f32 %v6900, %v7012
    %v7014 = vpop.f32.mrf.mxu0
    %v7015 = vadd.f32 %v6902, %v7014
    %v7016 = vpop.f32.mrf.mxu0
    %v7017 = vadd.f32 %v6904, %v7016
    %v7018 = vpop.f32.mrf.mxu0
    %v7019 = vadd.f32 %v6906, %v7018
    %7020 = vmatprep.mubr.bf16.mxu0 %v5427
    %7021 = vmatmul.mubr.bf16.gmra.mxu0 %v5426
    %v7022 = vpop.f32.mrf.mxu0
    %v7023 = vadd.f32 %v6910, %v7022
    %v7024 = vpop.f32.mrf.mxu0
    %v7025 = vadd.f32 %v6912, %v7024
    %v7026 = vpop.f32.mrf.mxu0
    %v7027 = vadd.f32 %v6914, %v7026
    %v7028 = vpop.f32.mrf.mxu0
    %v7029 = vadd.f32 %v6916, %v7028
    %7030 = vmatprep.mubr.bf16.mxu0 %v5433
    %7031 = vmatmul.mubr.bf16.gmra.mxu0 %v5432
    %v7032 = vpop.f32.mrf.mxu0
    %v7033 = vadd.f32 %v6920, %v7032
    %v7034 = vpop.f32.mrf.mxu0
    %v7035 = vadd.f32 %v6922, %v7034
    %v7036 = vpop.f32.mrf.mxu0
    %v7037 = vadd.f32 %v6924, %v7036
    %v7038 = vpop.f32.mrf.mxu0
    %v7039 = vadd.f32 %v6926, %v7038
    %7040 = vmatprep.mubr.bf16.mxu0 %v5439
    %7041 = vmatmul.mubr.bf16.gmra.mxu0 %v5438
    %v7042 = vpop.f32.mrf.mxu0
    %v7043 = vadd.f32 %v6930, %v7042
    %v7044 = vpop.f32.mrf.mxu0
    %v7045 = vadd.f32 %v6932, %v7044
    %v7046 = vpop.f32.mrf.mxu0
    %v7047 = vadd.f32 %v6934, %v7046
    %v7048 = vpop.f32.mrf.mxu0
    %v7049 = vadd.f32 %v6936, %v7048
    %7050 = vdwg.mxu0
    %7051 = vmatprep.subr.bf16.mxu0 %v6712
    %7052 = vmatpush1.bf16.msra.mxu0 %v6711
    %7053 = vmatprep.subr.bf16.mxu0 %v6710
    %7054 = vmatpush1.bf16.msra.mxu0 %v6709
    %7055 = vmatprep.subr.bf16.mxu0 %v6708
    %7056 = vmatpush1.bf16.msra.mxu0 %v6707
    %7057 = vmatprep.subr.bf16.mxu0 %v6706
    %7058 = vmatpush1.bf16.msra.mxu0 %v6705
    %7059 = vmatprep.subr.bf16.mxu0 %v6704
    %7060 = vmatpush1.bf16.msra.mxu0 %v6703
    %7061 = vmatprep.subr.bf16.mxu0 %v6702
    %7062 = vmatpush1.bf16.msra.mxu0 %v6701
    %7063 = vmatprep.subr.bf16.mxu0 %v6700
    %7064 = vmatpush1.bf16.msra.mxu0 %v6699
    %7065 = vmatprep.subr.bf16.mxu0 %v6698
    %7066 = vmatpush1.bf16.msra.mxu0 %v6697
    %7067 = vmatprep.subr.bf16.mxu0 %v6728
    %7068 = vmatpush2.bf16.msra.mxu0 %v6727
    %7069 = vmatprep.subr.bf16.mxu0 %v6726
    %7070 = vmatpush2.bf16.msra.mxu0 %v6725
    %7071 = vmatprep.subr.bf16.mxu0 %v6724
    %7072 = vmatpush2.bf16.msra.mxu0 %v6723
    %7073 = vmatprep.subr.bf16.mxu0 %v6722
    %7074 = vmatpush2.bf16.msra.mxu0 %v6721
    %7075 = vmatprep.subr.bf16.mxu0 %v6720
    %7076 = vmatpush2.bf16.msra.mxu0 %v6719
    %7077 = vmatprep.subr.bf16.mxu0 %v6718
    %7078 = vmatpush2.bf16.msra.mxu0 %v6717
    %7079 = vmatprep.subr.bf16.mxu0 %v6716
    %7080 = vmatpush2.bf16.msra.mxu0 %v6715
    %7081 = vmatprep.subr.bf16.mxu0 %v6714
    %7082 = vmatpush2.bf16.msra.mxu0 %v6713
    %7083 = vmatprep.mubr.bf16.mxu0 %v6338
    %7084 = vmatmul.mubr.bf16.gmra.mxu0 %v6337
    %v7085 = vpop.f32.mrf.mxu0
    %v7086 = vadd.f32 %v6973, %v7085
    %v7087 = vpop.f32.mrf.mxu0
    %v7088 = vadd.f32 %v6975, %v7087
    %v7089 = vpop.f32.mrf.mxu0
    %v7090 = vadd.f32 %v6977, %v7089
    %v7091 = vpop.f32.mrf.mxu0
    %v7092 = vadd.f32 %v6979, %v7091
    %7093 = vmatprep.mubr.bf16.mxu0 %v5405
    %7094 = vmatmul.mubr.bf16.gmra.mxu0 %v5404
    %v7095 = vpop.f32.mrf.mxu0
    %v7096 = vadd.f32 %v6983, %v7095
    %v7097 = vpop.f32.mrf.mxu0
    %v7098 = vadd.f32 %v6985, %v7097
    %v7099 = vpop.f32.mrf.mxu0
    %v7100 = vadd.f32 %v6987, %v7099
    %v7101 = vpop.f32.mrf.mxu0
    %v7102 = vadd.f32 %v6989, %v7101
    %7103 = vmatprep.mubr.bf16.mxu0 %v5411
    %7104 = vmatmul.mubr.bf16.gmra.mxu0 %v5410
    %v7105 = vpop.f32.mrf.mxu0
    %v7106 = vadd.f32 %v6993, %v7105
    %v7107 = vpop.f32.mrf.mxu0
    %v7108 = vadd.f32 %v6995, %v7107
    %v7109 = vpop.f32.mrf.mxu0
    %v7110 = vadd.f32 %v6997, %v7109
    %v7111 = vpop.f32.mrf.mxu0
    %v7112 = vadd.f32 %v6999, %v7111
    %7113 = vmatprep.mubr.bf16.mxu0 %v5417
    %7114 = vmatmul.mubr.bf16.gmra.mxu0 %v5416
    %v7115 = vpop.f32.mrf.mxu0
    %v7116 = vadd.f32 %v7003, %v7115
    %v7117 = vpop.f32.mrf.mxu0
    %v7118 = vadd.f32 %v7005, %v7117
    %v7119 = vpop.f32.mrf.mxu0
    %v7120 = vadd.f32 %v7007, %v7119
    %v7121 = vpop.f32.mrf.mxu0
    %v7122 = vadd.f32 %v7009, %v7121
    %7123 = vmatprep.mubr.bf16.mxu0 %v5423
    %7124 = vmatmul.mubr.bf16.gmra.mxu0 %v5422
    %v7125 = vpop.f32.mrf.mxu0
    %v7126 = vadd.f32 %v7013, %v7125
    %v7127 = vpop.f32.mrf.mxu0
    %v7128 = vadd.f32 %v7015, %v7127
    %v7129 = vpop.f32.mrf.mxu0
    %v7130 = vadd.f32 %v7017, %v7129
    %v7131 = vpop.f32.mrf.mxu0
    %v7132 = vadd.f32 %v7019, %v7131
    %7133 = vmatprep.mubr.bf16.mxu0 %v5429
    %7134 = vmatmul.mubr.bf16.gmra.mxu0 %v5428
    %v7135 = vpop.f32.mrf.mxu0
    %v7136 = vadd.f32 %v7023, %v7135
    %v7137 = vpop.f32.mrf.mxu0
    %v7138 = vadd.f32 %v7025, %v7137
    %v7139 = vpop.f32.mrf.mxu0
    %v7140 = vadd.f32 %v7027, %v7139
    %v7141 = vpop.f32.mrf.mxu0
    %v7142 = vadd.f32 %v7029, %v7141
    %7143 = vmatprep.mubr.bf16.mxu0 %v5435
    %7144 = vmatmul.mubr.bf16.gmra.mxu0 %v5434
    %v7145 = vpop.f32.mrf.mxu0
    %v7146 = vadd.f32 %v7033, %v7145
    %v7147 = vpop.f32.mrf.mxu0
    %v7148 = vadd.f32 %v7035, %v7147
    %v7149 = vpop.f32.mrf.mxu0
    %v7150 = vadd.f32 %v7037, %v7149
    %v7151 = vpop.f32.mrf.mxu0
    %v7152 = vadd.f32 %v7039, %v7151
    %7153 = vmatprep.mubr.bf16.mxu0 %v5441
    %7154 = vmatmul.mubr.bf16.gmra.mxu0 %v5440
    %v7155 = vpop.f32.mrf.mxu0
    %v7156 = vadd.f32 %v7043, %v7155
    %v7157 = vpop.f32.mrf.mxu0
    %v7158 = vadd.f32 %v7045, %v7157
    %v7159 = vpop.f32.mrf.mxu0
    %v7160 = vadd.f32 %v7047, %v7159
    %v7161 = vpop.f32.mrf.mxu0
    %v7162 = vadd.f32 %v7049, %v7161
    %7163 = vdwg.mxu0
    %v7164 = vld [vmem:[#allocation2 + $0x60] sm:$0xff]
    %v7165 = vld [vmem:[#allocation2 + $0x68] sm:$0xff]
    %v7166 = vld [vmem:[#allocation2 + $0x70] sm:$0xff]
    %v7167 = vld [vmem:[#allocation2 + $0x78] sm:$0xff]
    %v7168 = vld [vmem:[#allocation2 + $0x80] sm:$0xff]
    %v7169 = vld [vmem:[#allocation2 + $0x88] sm:$0xff]
    %v7170 = vld [vmem:[#allocation2 + $0x90] sm:$0xff]
    %v7171 = vld [vmem:[#allocation2 + $0x98] sm:$0xff]
    %v7172 = vld [vmem:[#allocation2 + $0xa0] sm:$0xff]
    %v7173 = vld [vmem:[#allocation2 + $0xa8] sm:$0xff]
    %v7174 = vld [vmem:[#allocation2 + $0xb0] sm:$0xff]
    %v7175 = vld [vmem:[#allocation2 + $0xb8] sm:$0xff]
    %v7176 = vld [vmem:[#allocation2 + $0xc0] sm:$0xff]
    %v7177 = vld [vmem:[#allocation2 + $0xc8] sm:$0xff]
    %v7178 = vld [vmem:[#allocation2 + $0xd0] sm:$0xff]
    %v7179 = vld [vmem:[#allocation2 + $0xd8] sm:$0xff]
    %v7180 = vld [vmem:[#allocation2 + $0xe0] sm:$0xff]
    %v7181 = vld [vmem:[#allocation2 + $0xe8] sm:$0xff]
    %v7182 = vld [vmem:[#allocation2 + $0xf0] sm:$0xff]
    %v7183 = vld [vmem:[#allocation2 + $0xf8] sm:$0xff]
    %v7184 = vld [vmem:[#allocation2 + $0x100] sm:$0xff]
    %v7185 = vld [vmem:[#allocation2 + $0x108] sm:$0xff]
    %v7186 = vld [vmem:[#allocation2 + $0x110] sm:$0xff]
    %v7187 = vld [vmem:[#allocation2 + $0x118] sm:$0xff]
    %v7188 = vld [vmem:[#allocation2 + $0x120] sm:$0xff]
    %v7189 = vld [vmem:[#allocation2 + $0x128] sm:$0xff]
    %v7190 = vld [vmem:[#allocation2 + $0x130] sm:$0xff]
    %v7191 = vld [vmem:[#allocation2 + $0x138] sm:$0xff]
    %v7192 = vld [vmem:[#allocation2 + $0x140] sm:$0xff]
    %v7193 = vld [vmem:[#allocation2 + $0x148] sm:$0xff]
    %v7194 = vld [vmem:[#allocation2 + $0x150] sm:$0xff]
    %v7195 = vld [vmem:[#allocation2 + $0x158] sm:$0xff]
    %v7196 = vld [vmem:[#allocation2 + $0x160] sm:$0xff]
    %v7197 = vld [vmem:[#allocation2 + $0x168] sm:$0xff]
    %v7198 = vld [vmem:[#allocation2 + $0x170] sm:$0xff]
    %v7199 = vld [vmem:[#allocation2 + $0x178] sm:$0xff]
    %v7200 = vld [vmem:[#allocation2 + $0x180] sm:$0xff]
    %v7201 = vld [vmem:[#allocation2 + $0x188] sm:$0xff]
    %v7202 = vld [vmem:[#allocation2 + $0x190] sm:$0xff]
    %v7203 = vld [vmem:[#allocation2 + $0x198] sm:$0xff]
    %v7204 = vld [vmem:[#allocation2 + $0x1a0] sm:$0xff]
    %v7205 = vld [vmem:[#allocation2 + $0x1a8] sm:$0xff]
    %v7206 = vld [vmem:[#allocation2 + $0x1b0] sm:$0xff]
    %v7207 = vld [vmem:[#allocation2 + $0x1b8] sm:$0xff]
    %v7208 = vld [vmem:[#allocation2 + $0x1c0] sm:$0xff]
    %v7209 = vld [vmem:[#allocation2 + $0x1c8] sm:$0xff]
    %v7210 = vld [vmem:[#allocation2 + $0x1d0] sm:$0xff]
    %v7211 = vld [vmem:[#allocation2 + $0x1d8] sm:$0xff]
    %s7212 = scalar_lea.vmem [#allocation4], 1536
    %v7213 = vld [vmem:[%s7212] sm:$0xff]
    %v7214 = vld [vmem:[%s7212 + $0x8] sm:$0xff]
    %v7215 = vld [vmem:[%s7212 + $0x10] sm:$0xff]
    %v7216 = vld [vmem:[%s7212 + $0x18] sm:$0xff]
    %v7217 = vld [vmem:[%s7212 + $0x20] sm:$0xff]
    %v7218 = vld [vmem:[%s7212 + $0x28] sm:$0xff]
    %v7219 = vld [vmem:[%s7212 + $0x30] sm:$0xff]
    %v7220 = vld [vmem:[%s7212 + $0x38] sm:$0xff]
    %v7221 = vld [vmem:[%s7212 + $0x40] sm:$0xff]
    %v7222 = vld [vmem:[%s7212 + $0x48] sm:$0xff]
    %v7223 = vld [vmem:[%s7212 + $0x50] sm:$0xff]
    %v7224 = vld [vmem:[%s7212 + $0x58] sm:$0xff]
    %v7225 = vld [vmem:[%s7212 + $0x60] sm:$0xff]
    %v7226 = vld [vmem:[%s7212 + $0x68] sm:$0xff]
    %v7227 = vld [vmem:[%s7212 + $0x70] sm:$0xff]
    %v7228 = vld [vmem:[%s7212 + $0x78] sm:$0xff]
    %v7229 = vld [vmem:[%s7212 + $0x80] sm:$0xff]
    %v7230 = vld [vmem:[%s7212 + $0x88] sm:$0xff]
    %v7231 = vld [vmem:[%s7212 + $0x90] sm:$0xff]
    %v7232 = vld [vmem:[%s7212 + $0x98] sm:$0xff]
    %v7233 = vld [vmem:[%s7212 + $0xa0] sm:$0xff]
    %v7234 = vld [vmem:[%s7212 + $0xa8] sm:$0xff]
    %v7235 = vld [vmem:[%s7212 + $0xb0] sm:$0xff]
    %v7236 = vld [vmem:[%s7212 + $0xb8] sm:$0xff]
    %v7237 = vld [vmem:[%s7212 + $0xc0] sm:$0xff]
    %v7238 = vld [vmem:[%s7212 + $0xc8] sm:$0xff]
    %v7239 = vld [vmem:[%s7212 + $0xd0] sm:$0xff]
    %v7240 = vld [vmem:[%s7212 + $0xd8] sm:$0xff]
    %v7241 = vld [vmem:[%s7212 + $0xe0] sm:$0xff]
    %v7242 = vld [vmem:[%s7212 + $0xe8] sm:$0xff]
    %v7243 = vld [vmem:[%s7212 + $0xf0] sm:$0xff]
    %v7244 = vld [vmem:[%s7212 + $0xf8] sm:$0xff]
    %v7245 = vld [vmem:[%s7212 + $0x100] sm:$0xff]
    %v7246 = vld [vmem:[%s7212 + $0x108] sm:$0xff]
    %v7247 = vld [vmem:[%s7212 + $0x110] sm:$0xff]
    %v7248 = vld [vmem:[%s7212 + $0x118] sm:$0xff]
    %v7249 = vld [vmem:[%s7212 + $0x120] sm:$0xff]
    %v7250 = vld [vmem:[%s7212 + $0x128] sm:$0xff]
    %v7251 = vld [vmem:[%s7212 + $0x130] sm:$0xff]
    %v7252 = vld [vmem:[%s7212 + $0x138] sm:$0xff]
    %v7253 = vld [vmem:[%s7212 + $0x140] sm:$0xff]
    %v7254 = vld [vmem:[%s7212 + $0x148] sm:$0xff]
    %v7255 = vld [vmem:[%s7212 + $0x150] sm:$0xff]
    %v7256 = vld [vmem:[%s7212 + $0x158] sm:$0xff]
    %v7257 = vld [vmem:[%s7212 + $0x160] sm:$0xff]
    %v7258 = vld [vmem:[%s7212 + $0x168] sm:$0xff]
    %v7259 = vld [vmem:[%s7212 + $0x170] sm:$0xff]
    %v7260 = vld [vmem:[%s7212 + $0x178] sm:$0xff]
    %v7261 = vld [vmem:[%s7212 + $0x180] sm:$0xff]
    %v7262 = vld [vmem:[%s7212 + $0x188] sm:$0xff]
    %v7263 = vld [vmem:[%s7212 + $0x190] sm:$0xff]
    %v7264 = vld [vmem:[%s7212 + $0x198] sm:$0xff]
    %v7265 = vld [vmem:[%s7212 + $0x1a0] sm:$0xff]
    %v7266 = vld [vmem:[%s7212 + $0x1a8] sm:$0xff]
    %v7267 = vld [vmem:[%s7212 + $0x1b0] sm:$0xff]
    %v7268 = vld [vmem:[%s7212 + $0x1b8] sm:$0xff]
    %v7269 = vld [vmem:[%s7212 + $0x1c0] sm:$0xff]
    %v7270 = vld [vmem:[%s7212 + $0x1c8] sm:$0xff]
    %v7271 = vld [vmem:[%s7212 + $0x1d0] sm:$0xff]
    %v7272 = vld [vmem:[%s7212 + $0x1d8] sm:$0xff]
    %v7273 = vld [vmem:[%s7212 + $0x1e0] sm:$0xff]
    %v7274 = vld [vmem:[%s7212 + $0x1e8] sm:$0xff]
    %v7275 = vld [vmem:[%s7212 + $0x1f0] sm:$0xff]
    %v7276 = vld [vmem:[%s7212 + $0x1f8] sm:$0xff]
    %v7277 = vld [vmem:[%s7212 + $0x200] sm:$0xff]
    %v7278 = vld [vmem:[%s7212 + $0x208] sm:$0xff]
    %v7279 = vld [vmem:[%s7212 + $0x210] sm:$0xff]
    %v7280 = vld [vmem:[%s7212 + $0x218] sm:$0xff]
    %v7281 = vld [vmem:[%s7212 + $0x220] sm:$0xff]
    %v7282 = vld [vmem:[%s7212 + $0x228] sm:$0xff]
    %v7283 = vld [vmem:[%s7212 + $0x230] sm:$0xff]
    %v7284 = vld [vmem:[%s7212 + $0x238] sm:$0xff]
    %v7285 = vld [vmem:[%s7212 + $0x240] sm:$0xff]
    %v7286 = vld [vmem:[%s7212 + $0x248] sm:$0xff]
    %v7287 = vld [vmem:[%s7212 + $0x250] sm:$0xff]
    %v7288 = vld [vmem:[%s7212 + $0x258] sm:$0xff]
    %v7289 = vld [vmem:[%s7212 + $0x260] sm:$0xff]
    %v7290 = vld [vmem:[%s7212 + $0x268] sm:$0xff]
    %v7291 = vld [vmem:[%s7212 + $0x270] sm:$0xff]
    %v7292 = vld [vmem:[%s7212 + $0x278] sm:$0xff]
    %v7293 = vld [vmem:[%s7212 + $0x280] sm:$0xff]
    %v7294 = vld [vmem:[%s7212 + $0x288] sm:$0xff]
    %v7295 = vld [vmem:[%s7212 + $0x290] sm:$0xff]
    %v7296 = vld [vmem:[%s7212 + $0x298] sm:$0xff]
    %v7297 = vld [vmem:[%s7212 + $0x2a0] sm:$0xff]
    %v7298 = vld [vmem:[%s7212 + $0x2a8] sm:$0xff]
    %v7299 = vld [vmem:[%s7212 + $0x2b0] sm:$0xff]
    %v7300 = vld [vmem:[%s7212 + $0x2b8] sm:$0xff]
    %v7301 = vld [vmem:[%s7212 + $0x2c0] sm:$0xff]
    %v7302 = vld [vmem:[%s7212 + $0x2c8] sm:$0xff]
    %v7303 = vld [vmem:[%s7212 + $0x2d0] sm:$0xff]
    %v7304 = vld [vmem:[%s7212 + $0x2d8] sm:$0xff]
    %v7305 = vld [vmem:[%s7212 + $0x2e0] sm:$0xff]
    %v7306 = vld [vmem:[%s7212 + $0x2e8] sm:$0xff]
    %v7307 = vld [vmem:[%s7212 + $0x2f0] sm:$0xff]
    %v7308 = vld [vmem:[%s7212 + $0x2f8] sm:$0xff]
    %v7357 = vunpack.c.l.b16 %v7164
    %v7358 = vunpack.c.h.b16 %v7164
    %v7359 = vunpack.c.l.b16 %v7165
    %v7360 = vunpack.c.h.b16 %v7165
    %v7361 = vunpack.c.l.b16 %v7166
    %v7362 = vunpack.c.h.b16 %v7166
    %v7363 = vunpack.c.l.b16 %v7167
    %v7364 = vunpack.c.h.b16 %v7167
    %v7365 = vunpack.c.l.b16 %v7168
    %v7366 = vunpack.c.h.b16 %v7168
    %v7367 = vunpack.c.l.b16 %v7169
    %v7368 = vunpack.c.h.b16 %v7169
    %v7369 = vunpack.c.l.b16 %v7170
    %v7370 = vunpack.c.h.b16 %v7170
    %v7371 = vunpack.c.l.b16 %v7171
    %v7372 = vunpack.c.h.b16 %v7171
    %v7373 = vunpack.c.l.b16 %v7172
    %v7374 = vunpack.c.h.b16 %v7172
    %v7375 = vunpack.c.l.b16 %v7173
    %v7376 = vunpack.c.h.b16 %v7173
    %v7377 = vunpack.c.l.b16 %v7174
    %v7378 = vunpack.c.h.b16 %v7174
    %v7379 = vunpack.c.l.b16 %v7175
    %v7380 = vunpack.c.h.b16 %v7175
    %v7381 = vunpack.c.l.b16 %v7176
    %v7382 = vunpack.c.h.b16 %v7176
    %v7383 = vunpack.c.l.b16 %v7177
    %v7384 = vunpack.c.h.b16 %v7177
    %v7385 = vunpack.c.l.b16 %v7178
    %v7386 = vunpack.c.h.b16 %v7178
    %v7387 = vunpack.c.l.b16 %v7179
    %v7388 = vunpack.c.h.b16 %v7179
    %v7389 = vunpack.c.l.b16 %v7180
    %v7390 = vunpack.c.h.b16 %v7180
    %v7391 = vunpack.c.l.b16 %v7181
    %v7392 = vunpack.c.h.b16 %v7181
    %v7393 = vunpack.c.l.b16 %v7182
    %v7394 = vunpack.c.h.b16 %v7182
    %v7395 = vunpack.c.l.b16 %v7183
    %v7396 = vunpack.c.h.b16 %v7183
    %v7397 = vunpack.c.l.b16 %v7184
    %v7398 = vunpack.c.h.b16 %v7184
    %v7399 = vunpack.c.l.b16 %v7185
    %v7400 = vunpack.c.h.b16 %v7185
    %v7401 = vunpack.c.l.b16 %v7186
    %v7402 = vunpack.c.h.b16 %v7186
    %v7403 = vunpack.c.l.b16 %v7187
    %v7404 = vunpack.c.h.b16 %v7187
    %v7405 = vunpack.c.l.b16 %v7188
    %v7406 = vunpack.c.h.b16 %v7188
    %v7407 = vunpack.c.l.b16 %v7189
    %v7408 = vunpack.c.h.b16 %v7189
    %v7409 = vunpack.c.l.b16 %v7190
    %v7410 = vunpack.c.h.b16 %v7190
    %v7411 = vunpack.c.l.b16 %v7191
    %v7412 = vunpack.c.h.b16 %v7191
    %v7413 = vunpack.c.l.b16 %v7192
    %v7414 = vunpack.c.h.b16 %v7192
    %v7415 = vunpack.c.l.b16 %v7193
    %v7416 = vunpack.c.h.b16 %v7193
    %v7417 = vunpack.c.l.b16 %v7194
    %v7418 = vunpack.c.h.b16 %v7194
    %v7419 = vunpack.c.l.b16 %v7195
    %v7420 = vunpack.c.h.b16 %v7195
    %v7421 = vunpack.c.l.b16 %v7196
    %v7422 = vunpack.c.h.b16 %v7196
    %v7423 = vunpack.c.l.b16 %v7197
    %v7424 = vunpack.c.h.b16 %v7197
    %v7425 = vunpack.c.l.b16 %v7198
    %v7426 = vunpack.c.h.b16 %v7198
    %v7427 = vunpack.c.l.b16 %v7199
    %v7428 = vunpack.c.h.b16 %v7199
    %v7429 = vunpack.c.l.b16 %v7200
    %v7430 = vunpack.c.h.b16 %v7200
    %v7431 = vunpack.c.l.b16 %v7201
    %v7432 = vunpack.c.h.b16 %v7201
    %v7433 = vunpack.c.l.b16 %v7202
    %v7434 = vunpack.c.h.b16 %v7202
    %v7435 = vunpack.c.l.b16 %v7203
    %v7436 = vunpack.c.h.b16 %v7203
    %v7437 = vunpack.c.l.b16 %v7204
    %v7438 = vunpack.c.h.b16 %v7204
    %v7439 = vunpack.c.l.b16 %v7205
    %v7440 = vunpack.c.h.b16 %v7205
    %v7441 = vunpack.c.l.b16 %v7206
    %v7442 = vunpack.c.h.b16 %v7206
    %v7443 = vunpack.c.l.b16 %v7207
    %v7444 = vunpack.c.h.b16 %v7207
    %v7445 = vunpack.c.l.b16 %v7208
    %v7446 = vunpack.c.h.b16 %v7208
    %v7447 = vunpack.c.l.b16 %v7209
    %v7448 = vunpack.c.h.b16 %v7209
    %v7449 = vunpack.c.l.b16 %v7210
    %v7450 = vunpack.c.h.b16 %v7210
    %v7451 = vunpack.c.l.b16 %v7211
    %v7452 = vunpack.c.h.b16 %v7211
    %v7453 = vpack.c.b16 %v7363, %v7357
    %v7454 = vpack.c.b16 %v7364, %v7358
    %v7455 = vpack.c.b16 %v7365, %v7359
    %v7456 = vpack.c.b16 %v7366, %v7360
    %v7457 = vpack.c.b16 %v7367, %v7361
    %v7458 = vpack.c.b16 %v7368, %v7362
    %v7459 = vpack.c.b16 %v7375, %v7369
    %v7460 = vpack.c.b16 %v7376, %v7370
    %v7461 = vpack.c.b16 %v7377, %v7371
    %v7462 = vpack.c.b16 %v7378, %v7372
    %v7463 = vpack.c.b16 %v7379, %v7373
    %v7464 = vpack.c.b16 %v7380, %v7374
    %v7465 = vpack.c.b16 %v7387, %v7381
    %v7466 = vpack.c.b16 %v7388, %v7382
    %v7467 = vpack.c.b16 %v7389, %v7383
    %v7468 = vpack.c.b16 %v7390, %v7384
    %v7469 = vpack.c.b16 %v7391, %v7385
    %v7470 = vpack.c.b16 %v7392, %v7386
    %v7471 = vpack.c.b16 %v7399, %v7393
    %v7472 = vpack.c.b16 %v7400, %v7394
    %v7473 = vpack.c.b16 %v7401, %v7395
    %v7474 = vpack.c.b16 %v7402, %v7396
    %v7475 = vpack.c.b16 %v7403, %v7397
    %v7476 = vpack.c.b16 %v7404, %v7398
    %v7477 = vpack.c.b16 %v7411, %v7405
    %v7478 = vpack.c.b16 %v7412, %v7406
    %v7479 = vpack.c.b16 %v7413, %v7407
    %v7480 = vpack.c.b16 %v7414, %v7408
    %v7481 = vpack.c.b16 %v7415, %v7409
    %v7482 = vpack.c.b16 %v7416, %v7410
    %v7483 = vpack.c.b16 %v7423, %v7417
    %v7484 = vpack.c.b16 %v7424, %v7418
    %v7485 = vpack.c.b16 %v7425, %v7419
    %v7486 = vpack.c.b16 %v7426, %v7420
    %v7487 = vpack.c.b16 %v7427, %v7421
    %v7488 = vpack.c.b16 %v7428, %v7422
    %v7489 = vpack.c.b16 %v7435, %v7429
    %v7490 = vpack.c.b16 %v7436, %v7430
    %v7491 = vpack.c.b16 %v7437, %v7431
    %v7492 = vpack.c.b16 %v7438, %v7432
    %v7493 = vpack.c.b16 %v7439, %v7433
    %v7494 = vpack.c.b16 %v7440, %v7434
    %v7495 = vpack.c.b16 %v7447, %v7441
    %v7496 = vpack.c.b16 %v7448, %v7442
    %v7497 = vpack.c.b16 %v7449, %v7443
    %v7498 = vpack.c.b16 %v7450, %v7444
    %v7499 = vpack.c.b16 %v7451, %v7445
    %v7500 = vpack.c.b16 %v7452, %v7446
    %v7645 = vunpack.c.l.b16 %v7213
    %v7646 = vunpack.c.h.b16 %v7213
    %v7647 = vunpack.c.l.b16 %v7214
    %v7648 = vunpack.c.h.b16 %v7214
    %v7649 = vunpack.c.l.b16 %v7215
    %v7650 = vunpack.c.h.b16 %v7215
    %v7651 = vunpack.c.l.b16 %v7216
    %v7652 = vunpack.c.h.b16 %v7216
    %v7653 = vunpack.c.l.b16 %v7217
    %v7654 = vunpack.c.h.b16 %v7217
    %v7655 = vunpack.c.l.b16 %v7218
    %v7656 = vunpack.c.h.b16 %v7218
    %v7657 = vunpack.c.l.b16 %v7219
    %v7658 = vunpack.c.h.b16 %v7219
    %v7659 = vunpack.c.l.b16 %v7220
    %v7660 = vunpack.c.h.b16 %v7220
    %v7661 = vunpack.c.l.b16 %v7221
    %v7662 = vunpack.c.h.b16 %v7221
    %v7663 = vunpack.c.l.b16 %v7222
    %v7664 = vunpack.c.h.b16 %v7222
    %v7665 = vunpack.c.l.b16 %v7223
    %v7666 = vunpack.c.h.b16 %v7223
    %v7667 = vunpack.c.l.b16 %v7224
    %v7668 = vunpack.c.h.b16 %v7224
    %v7669 = vunpack.c.l.b16 %v7225
    %v7670 = vunpack.c.h.b16 %v7225
    %v7671 = vunpack.c.l.b16 %v7226
    %v7672 = vunpack.c.h.b16 %v7226
    %v7673 = vunpack.c.l.b16 %v7227
    %v7674 = vunpack.c.h.b16 %v7227
    %v7675 = vunpack.c.l.b16 %v7228
    %v7676 = vunpack.c.h.b16 %v7228
    %v7677 = vunpack.c.l.b16 %v7229
    %v7678 = vunpack.c.h.b16 %v7229
    %v7679 = vunpack.c.l.b16 %v7230
    %v7680 = vunpack.c.h.b16 %v7230
    %v7681 = vunpack.c.l.b16 %v7231
    %v7682 = vunpack.c.h.b16 %v7231
    %v7683 = vunpack.c.l.b16 %v7232
    %v7684 = vunpack.c.h.b16 %v7232
    %v7685 = vunpack.c.l.b16 %v7233
    %v7686 = vunpack.c.h.b16 %v7233
    %v7687 = vunpack.c.l.b16 %v7234
    %v7688 = vunpack.c.h.b16 %v7234
    %v7689 = vunpack.c.l.b16 %v7235
    %v7690 = vunpack.c.h.b16 %v7235
    %v7691 = vunpack.c.l.b16 %v7236
    %v7692 = vunpack.c.h.b16 %v7236
    %v7693 = vunpack.c.l.b16 %v7237
    %v7694 = vunpack.c.h.b16 %v7237
    %v7695 = vunpack.c.l.b16 %v7238
    %v7696 = vunpack.c.h.b16 %v7238
    %v7697 = vunpack.c.l.b16 %v7239
    %v7698 = vunpack.c.h.b16 %v7239
    %v7699 = vunpack.c.l.b16 %v7240
    %v7700 = vunpack.c.h.b16 %v7240
    %v7701 = vunpack.c.l.b16 %v7241
    %v7702 = vunpack.c.h.b16 %v7241
    %v7703 = vunpack.c.l.b16 %v7242
    %v7704 = vunpack.c.h.b16 %v7242
    %v7705 = vunpack.c.l.b16 %v7243
    %v7706 = vunpack.c.h.b16 %v7243
    %v7707 = vunpack.c.l.b16 %v7244
    %v7708 = vunpack.c.h.b16 %v7244
    %v7709 = vunpack.c.l.b16 %v7245
    %v7710 = vunpack.c.h.b16 %v7245
    %v7711 = vunpack.c.l.b16 %v7246
    %v7712 = vunpack.c.h.b16 %v7246
    %v7713 = vunpack.c.l.b16 %v7247
    %v7714 = vunpack.c.h.b16 %v7247
    %v7715 = vunpack.c.l.b16 %v7248
    %v7716 = vunpack.c.h.b16 %v7248
    %v7717 = vunpack.c.l.b16 %v7249
    %v7718 = vunpack.c.h.b16 %v7249
    %v7719 = vunpack.c.l.b16 %v7250
    %v7720 = vunpack.c.h.b16 %v7250
    %v7721 = vunpack.c.l.b16 %v7251
    %v7722 = vunpack.c.h.b16 %v7251
    %v7723 = vunpack.c.l.b16 %v7252
    %v7724 = vunpack.c.h.b16 %v7252
    %v7725 = vunpack.c.l.b16 %v7253
    %v7726 = vunpack.c.h.b16 %v7253
    %v7727 = vunpack.c.l.b16 %v7254
    %v7728 = vunpack.c.h.b16 %v7254
    %v7729 = vunpack.c.l.b16 %v7255
    %v7730 = vunpack.c.h.b16 %v7255
    %v7731 = vunpack.c.l.b16 %v7256
    %v7732 = vunpack.c.h.b16 %v7256
    %v7733 = vunpack.c.l.b16 %v7257
    %v7734 = vunpack.c.h.b16 %v7257
    %v7735 = vunpack.c.l.b16 %v7258
    %v7736 = vunpack.c.h.b16 %v7258
    %v7737 = vunpack.c.l.b16 %v7259
    %v7738 = vunpack.c.h.b16 %v7259
    %v7739 = vunpack.c.l.b16 %v7260
    %v7740 = vunpack.c.h.b16 %v7260
    %v7741 = vunpack.c.l.b16 %v7261
    %v7742 = vunpack.c.h.b16 %v7261
    %v7743 = vunpack.c.l.b16 %v7262
    %v7744 = vunpack.c.h.b16 %v7262
    %v7745 = vunpack.c.l.b16 %v7263
    %v7746 = vunpack.c.h.b16 %v7263
    %v7747 = vunpack.c.l.b16 %v7264
    %v7748 = vunpack.c.h.b16 %v7264
    %v7749 = vunpack.c.l.b16 %v7265
    %v7750 = vunpack.c.h.b16 %v7265
    %v7751 = vunpack.c.l.b16 %v7266
    %v7752 = vunpack.c.h.b16 %v7266
    %v7753 = vunpack.c.l.b16 %v7267
    %v7754 = vunpack.c.h.b16 %v7267
    %v7755 = vunpack.c.l.b16 %v7268
    %v7756 = vunpack.c.h.b16 %v7268
    %v7757 = vunpack.c.l.b16 %v7269
    %v7758 = vunpack.c.h.b16 %v7269
    %v7759 = vunpack.c.l.b16 %v7270
    %v7760 = vunpack.c.h.b16 %v7270
    %v7761 = vunpack.c.l.b16 %v7271
    %v7762 = vunpack.c.h.b16 %v7271
    %v7763 = vunpack.c.l.b16 %v7272
    %v7764 = vunpack.c.h.b16 %v7272
    %v7765 = vunpack.c.l.b16 %v7273
    %v7766 = vunpack.c.h.b16 %v7273
    %v7767 = vunpack.c.l.b16 %v7274
    %v7768 = vunpack.c.h.b16 %v7274
    %v7769 = vunpack.c.l.b16 %v7275
    %v7770 = vunpack.c.h.b16 %v7275
    %v7771 = vunpack.c.l.b16 %v7276
    %v7772 = vunpack.c.h.b16 %v7276
    %v7773 = vunpack.c.l.b16 %v7277
    %v7774 = vunpack.c.h.b16 %v7277
    %v7775 = vunpack.c.l.b16 %v7278
    %v7776 = vunpack.c.h.b16 %v7278
    %v7777 = vunpack.c.l.b16 %v7279
    %v7778 = vunpack.c.h.b16 %v7279
    %v7779 = vunpack.c.l.b16 %v7280
    %v7780 = vunpack.c.h.b16 %v7280
    %v7781 = vunpack.c.l.b16 %v7281
    %v7782 = vunpack.c.h.b16 %v7281
    %v7783 = vunpack.c.l.b16 %v7282
    %v7784 = vunpack.c.h.b16 %v7282
    %v7785 = vunpack.c.l.b16 %v7283
    %v7786 = vunpack.c.h.b16 %v7283
    %v7787 = vunpack.c.l.b16 %v7284
    %v7788 = vunpack.c.h.b16 %v7284
    %v7789 = vunpack.c.l.b16 %v7285
    %v7790 = vunpack.c.h.b16 %v7285
    %v7791 = vunpack.c.l.b16 %v7286
    %v7792 = vunpack.c.h.b16 %v7286
    %v7793 = vunpack.c.l.b16 %v7287
    %v7794 = vunpack.c.h.b16 %v7287
    %v7795 = vunpack.c.l.b16 %v7288
    %v7796 = vunpack.c.h.b16 %v7288
    %v7797 = vunpack.c.l.b16 %v7289
    %v7798 = vunpack.c.h.b16 %v7289
    %v7799 = vunpack.c.l.b16 %v7290
    %v7800 = vunpack.c.h.b16 %v7290
    %v7801 = vunpack.c.l.b16 %v7291
    %v7802 = vunpack.c.h.b16 %v7291
    %v7803 = vunpack.c.l.b16 %v7292
    %v7804 = vunpack.c.h.b16 %v7292
    %v7805 = vunpack.c.l.b16 %v7293
    %v7806 = vunpack.c.h.b16 %v7293
    %v7807 = vunpack.c.l.b16 %v7294
    %v7808 = vunpack.c.h.b16 %v7294
    %v7809 = vunpack.c.l.b16 %v7295
    %v7810 = vunpack.c.h.b16 %v7295
    %v7811 = vunpack.c.l.b16 %v7296
    %v7812 = vunpack.c.h.b16 %v7296
    %v7813 = vunpack.c.l.b16 %v7297
    %v7814 = vunpack.c.h.b16 %v7297
    %v7815 = vunpack.c.l.b16 %v7298
    %v7816 = vunpack.c.h.b16 %v7298
    %v7817 = vunpack.c.l.b16 %v7299
    %v7818 = vunpack.c.h.b16 %v7299
    %v7819 = vunpack.c.l.b16 %v7300
    %v7820 = vunpack.c.h.b16 %v7300
    %v7821 = vunpack.c.l.b16 %v7301
    %v7822 = vunpack.c.h.b16 %v7301
    %v7823 = vunpack.c.l.b16 %v7302
    %v7824 = vunpack.c.h.b16 %v7302
    %v7825 = vunpack.c.l.b16 %v7303
    %v7826 = vunpack.c.h.b16 %v7303
    %v7827 = vunpack.c.l.b16 %v7304
    %v7828 = vunpack.c.h.b16 %v7304
    %v7829 = vunpack.c.l.b16 %v7305
    %v7830 = vunpack.c.h.b16 %v7305
    %v7831 = vunpack.c.l.b16 %v7306
    %v7832 = vunpack.c.h.b16 %v7306
    %v7833 = vunpack.c.l.b16 %v7307
    %v7834 = vunpack.c.h.b16 %v7307
    %v7835 = vunpack.c.l.b16 %v7308
    %v7836 = vunpack.c.h.b16 %v7308
    %v7837 = vpack.c.b16 %v7647, %v7645
    %v7838 = vpack.c.b16 %v7648, %v7646
    %v7839 = vpack.c.b16 %v7651, %v7649
    %v7840 = vpack.c.b16 %v7652, %v7650
    %v7841 = vpack.c.b16 %v7655, %v7653
    %v7842 = vpack.c.b16 %v7656, %v7654
    %v7843 = vpack.c.b16 %v7659, %v7657
    %v7844 = vpack.c.b16 %v7660, %v7658
    %v7845 = vpack.c.b16 %v7663, %v7661
    %v7846 = vpack.c.b16 %v7664, %v7662
    %v7847 = vpack.c.b16 %v7667, %v7665
    %v7848 = vpack.c.b16 %v7668, %v7666
    %v7849 = vpack.c.b16 %v7671, %v7669
    %v7850 = vpack.c.b16 %v7672, %v7670
    %v7851 = vpack.c.b16 %v7675, %v7673
    %v7852 = vpack.c.b16 %v7676, %v7674
    %v7853 = vpack.c.b16 %v7679, %v7677
    %v7854 = vpack.c.b16 %v7680, %v7678
    %v7855 = vpack.c.b16 %v7683, %v7681
    %v7856 = vpack.c.b16 %v7684, %v7682
    %v7857 = vpack.c.b16 %v7687, %v7685
    %v7858 = vpack.c.b16 %v7688, %v7686
    %v7859 = vpack.c.b16 %v7691, %v7689
    %v7860 = vpack.c.b16 %v7692, %v7690
    %v7861 = vpack.c.b16 %v7695, %v7693
    %v7862 = vpack.c.b16 %v7696, %v7694
    %v7863 = vpack.c.b16 %v7699, %v7697
    %v7864 = vpack.c.b16 %v7700, %v7698
    %v7865 = vpack.c.b16 %v7703, %v7701
    %v7866 = vpack.c.b16 %v7704, %v7702
    %v7867 = vpack.c.b16 %v7707, %v7705
    %v7868 = vpack.c.b16 %v7708, %v7706
    %v7869 = vpack.c.b16 %v7711, %v7709
    %v7870 = vpack.c.b16 %v7712, %v7710
    %v7871 = vpack.c.b16 %v7715, %v7713
    %v7872 = vpack.c.b16 %v7716, %v7714
    %v7873 = vpack.c.b16 %v7719, %v7717
    %v7874 = vpack.c.b16 %v7720, %v7718
    %v7875 = vpack.c.b16 %v7723, %v7721
    %v7876 = vpack.c.b16 %v7724, %v7722
    %v7877 = vpack.c.b16 %v7727, %v7725
    %v7878 = vpack.c.b16 %v7728, %v7726
    %v7879 = vpack.c.b16 %v7731, %v7729
    %v7880 = vpack.c.b16 %v7732, %v7730
    %v7881 = vpack.c.b16 %v7735, %v7733
    %v7882 = vpack.c.b16 %v7736, %v7734
    %v7883 = vpack.c.b16 %v7739, %v7737
    %v7884 = vpack.c.b16 %v7740, %v7738
    %v7885 = vpack.c.b16 %v7743, %v7741
    %v7886 = vpack.c.b16 %v7744, %v7742
    %v7887 = vpack.c.b16 %v7747, %v7745
    %v7888 = vpack.c.b16 %v7748, %v7746
    %v7889 = vpack.c.b16 %v7751, %v7749
    %v7890 = vpack.c.b16 %v7752, %v7750
    %v7891 = vpack.c.b16 %v7755, %v7753
    %v7892 = vpack.c.b16 %v7756, %v7754
    %v7893 = vpack.c.b16 %v7759, %v7757
    %v7894 = vpack.c.b16 %v7760, %v7758
    %v7895 = vpack.c.b16 %v7763, %v7761
    %v7896 = vpack.c.b16 %v7764, %v7762
    %v7897 = vpack.c.b16 %v7767, %v7765
    %v7898 = vpack.c.b16 %v7768, %v7766
    %v7899 = vpack.c.b16 %v7771, %v7769
    %v7900 = vpack.c.b16 %v7772, %v7770
    %v7901 = vpack.c.b16 %v7775, %v7773
    %v7902 = vpack.c.b16 %v7776, %v7774
    %v7903 = vpack.c.b16 %v7779, %v7777
    %v7904 = vpack.c.b16 %v7780, %v7778
    %v7905 = vpack.c.b16 %v7783, %v7781
    %v7906 = vpack.c.b16 %v7784, %v7782
    %v7907 = vpack.c.b16 %v7787, %v7785
    %v7908 = vpack.c.b16 %v7788, %v7786
    %v7909 = vpack.c.b16 %v7791, %v7789
    %v7910 = vpack.c.b16 %v7792, %v7790
    %v7911 = vpack.c.b16 %v7795, %v7793
    %v7912 = vpack.c.b16 %v7796, %v7794
    %v7913 = vpack.c.b16 %v7799, %v7797
    %v7914 = vpack.c.b16 %v7800, %v7798
    %v7915 = vpack.c.b16 %v7803, %v7801
    %v7916 = vpack.c.b16 %v7804, %v7802
    %v7917 = vpack.c.b16 %v7807, %v7805
    %v7918 = vpack.c.b16 %v7808, %v7806
    %v7919 = vpack.c.b16 %v7811, %v7809
    %v7920 = vpack.c.b16 %v7812, %v7810
    %v7921 = vpack.c.b16 %v7815, %v7813
    %v7922 = vpack.c.b16 %v7816, %v7814
    %v7923 = vpack.c.b16 %v7819, %v7817
    %v7924 = vpack.c.b16 %v7820, %v7818
    %v7925 = vpack.c.b16 %v7823, %v7821
    %v7926 = vpack.c.b16 %v7824, %v7822
    %v7927 = vpack.c.b16 %v7827, %v7825
    %v7928 = vpack.c.b16 %v7828, %v7826
    %v7929 = vpack.c.b16 %v7831, %v7829
    %v7930 = vpack.c.b16 %v7832, %v7830
    %v7931 = vpack.c.b16 %v7835, %v7833
    %v7932 = vpack.c.b16 %v7836, %v7834
    %8029 = vmatprep.subr.bf16.mxu0 %v7852
    %8030 = vmatpush1.bf16.msra.mxu0 %v7851
    %8031 = vmatprep.subr.bf16.mxu0 %v7850
    %8032 = vmatpush1.bf16.msra.mxu0 %v7849
    %8033 = vmatprep.subr.bf16.mxu0 %v7848
    %8034 = vmatpush1.bf16.msra.mxu0 %v7847
    %8035 = vmatprep.subr.bf16.mxu0 %v7846
    %8036 = vmatpush1.bf16.msra.mxu0 %v7845
    %8037 = vmatprep.subr.bf16.mxu0 %v7844
    %8038 = vmatpush1.bf16.msra.mxu0 %v7843
    %8039 = vmatprep.subr.bf16.mxu0 %v7842
    %8040 = vmatpush1.bf16.msra.mxu0 %v7841
    %8041 = vmatprep.subr.bf16.mxu0 %v7840
    %8042 = vmatpush1.bf16.msra.mxu0 %v7839
    %8043 = vmatprep.subr.bf16.mxu0 %v7838
    %8044 = vmatpush1.bf16.msra.mxu0 %v7837
    %8045 = vmatprep.subr.bf16.mxu0 %v7868
    %8046 = vmatpush2.bf16.msra.mxu0 %v7867
    %8047 = vmatprep.subr.bf16.mxu0 %v7866
    %8048 = vmatpush2.bf16.msra.mxu0 %v7865
    %8049 = vmatprep.subr.bf16.mxu0 %v7864
    %8050 = vmatpush2.bf16.msra.mxu0 %v7863
    %8051 = vmatprep.subr.bf16.mxu0 %v7862
    %8052 = vmatpush2.bf16.msra.mxu0 %v7861
    %8053 = vmatprep.subr.bf16.mxu0 %v7860
    %8054 = vmatpush2.bf16.msra.mxu0 %v7859
    %8055 = vmatprep.subr.bf16.mxu0 %v7858
    %8056 = vmatpush2.bf16.msra.mxu0 %v7857
    %8057 = vmatprep.subr.bf16.mxu0 %v7856
    %8058 = vmatpush2.bf16.msra.mxu0 %v7855
    %8059 = vmatprep.subr.bf16.mxu0 %v7854
    %8060 = vmatpush2.bf16.msra.mxu0 %v7853
    %8061 = vmatprep.mubr.bf16.mxu0 %v7454
    %8062 = vmatmul.mubr.bf16.gmra.mxu0 %v7453
    %v8063 = vpop.f32.mrf.mxu0
    %v8064 = vadd.f32 0.0, %v8063
    %v8065 = vpop.f32.mrf.mxu0
    %v8066 = vadd.f32 0.0, %v8065
    %v8067 = vpop.f32.mrf.mxu0
    %v8068 = vadd.f32 0.0, %v8067
    %v8069 = vpop.f32.mrf.mxu0
    %v8070 = vadd.f32 0.0, %v8069
    %8071 = vmatprep.mubr.bf16.mxu0 %v7460
    %8072 = vmatmul.mubr.bf16.gmra.mxu0 %v7459
    %v8073 = vpop.f32.mrf.mxu0
    %v8074 = vadd.f32 0.0, %v8073
    %v8075 = vpop.f32.mrf.mxu0
    %v8076 = vadd.f32 0.0, %v8075
    %v8077 = vpop.f32.mrf.mxu0
    %v8078 = vadd.f32 0.0, %v8077
    %v8079 = vpop.f32.mrf.mxu0
    %v8080 = vadd.f32 0.0, %v8079
    %8081 = vmatprep.mubr.bf16.mxu0 %v7466
    %8082 = vmatmul.mubr.bf16.gmra.mxu0 %v7465
    %v8083 = vpop.f32.mrf.mxu0
    %v8084 = vadd.f32 0.0, %v8083
    %v8085 = vpop.f32.mrf.mxu0
    %v8086 = vadd.f32 0.0, %v8085
    %v8087 = vpop.f32.mrf.mxu0
    %v8088 = vadd.f32 0.0, %v8087
    %v8089 = vpop.f32.mrf.mxu0
    %v8090 = vadd.f32 0.0, %v8089
    %8091 = vmatprep.mubr.bf16.mxu0 %v7472
    %8092 = vmatmul.mubr.bf16.gmra.mxu0 %v7471
    %v8093 = vpop.f32.mrf.mxu0
    %v8094 = vadd.f32 0.0, %v8093
    %v8095 = vpop.f32.mrf.mxu0
    %v8096 = vadd.f32 0.0, %v8095
    %v8097 = vpop.f32.mrf.mxu0
    %v8098 = vadd.f32 0.0, %v8097
    %v8099 = vpop.f32.mrf.mxu0
    %v8100 = vadd.f32 0.0, %v8099
    %8101 = vmatprep.mubr.bf16.mxu0 %v7478
    %8102 = vmatmul.mubr.bf16.gmra.mxu0 %v7477
    %v8103 = vpop.f32.mrf.mxu0
    %v8104 = vadd.f32 0.0, %v8103
    %v8105 = vpop.f32.mrf.mxu0
    %v8106 = vadd.f32 0.0, %v8105
    %v8107 = vpop.f32.mrf.mxu0
    %v8108 = vadd.f32 0.0, %v8107
    %v8109 = vpop.f32.mrf.mxu0
    %v8110 = vadd.f32 0.0, %v8109
    %8111 = vmatprep.mubr.bf16.mxu0 %v7484
    %8112 = vmatmul.mubr.bf16.gmra.mxu0 %v7483
    %v8113 = vpop.f32.mrf.mxu0
    %v8114 = vadd.f32 0.0, %v8113
    %v8115 = vpop.f32.mrf.mxu0
    %v8116 = vadd.f32 0.0, %v8115
    %v8117 = vpop.f32.mrf.mxu0
    %v8118 = vadd.f32 0.0, %v8117
    %v8119 = vpop.f32.mrf.mxu0
    %v8120 = vadd.f32 0.0, %v8119
    %8121 = vmatprep.mubr.bf16.mxu0 %v7490
    %8122 = vmatmul.mubr.bf16.gmra.mxu0 %v7489
    %v8123 = vpop.f32.mrf.mxu0
    %v8124 = vadd.f32 0.0, %v8123
    %v8125 = vpop.f32.mrf.mxu0
    %v8126 = vadd.f32 0.0, %v8125
    %v8127 = vpop.f32.mrf.mxu0
    %v8128 = vadd.f32 0.0, %v8127
    %v8129 = vpop.f32.mrf.mxu0
    %v8130 = vadd.f32 0.0, %v8129
    %8131 = vmatprep.mubr.bf16.mxu0 %v7496
    %8132 = vmatmul.mubr.bf16.gmra.mxu0 %v7495
    %v8133 = vpop.f32.mrf.mxu0
    %v8134 = vadd.f32 0.0, %v8133
    %v8135 = vpop.f32.mrf.mxu0
    %v8136 = vadd.f32 0.0, %v8135
    %v8137 = vpop.f32.mrf.mxu0
    %v8138 = vadd.f32 0.0, %v8137
    %v8139 = vpop.f32.mrf.mxu0
    %v8140 = vadd.f32 0.0, %v8139
    %8141 = vdwg.mxu0
    %8142 = vmatprep.subr.bf16.mxu0 %v7884
    %8143 = vmatpush1.bf16.msra.mxu0 %v7883
    %8144 = vmatprep.subr.bf16.mxu0 %v7882
    %8145 = vmatpush1.bf16.msra.mxu0 %v7881
    %8146 = vmatprep.subr.bf16.mxu0 %v7880
    %8147 = vmatpush1.bf16.msra.mxu0 %v7879
    %8148 = vmatprep.subr.bf16.mxu0 %v7878
    %8149 = vmatpush1.bf16.msra.mxu0 %v7877
    %8150 = vmatprep.subr.bf16.mxu0 %v7876
    %8151 = vmatpush1.bf16.msra.mxu0 %v7875
    %8152 = vmatprep.subr.bf16.mxu0 %v7874
    %8153 = vmatpush1.bf16.msra.mxu0 %v7873
    %8154 = vmatprep.subr.bf16.mxu0 %v7872
    %8155 = vmatpush1.bf16.msra.mxu0 %v7871
    %8156 = vmatprep.subr.bf16.mxu0 %v7870
    %8157 = vmatpush1.bf16.msra.mxu0 %v7869
    %8158 = vmatprep.subr.bf16.mxu0 %v7900
    %8159 = vmatpush2.bf16.msra.mxu0 %v7899
    %8160 = vmatprep.subr.bf16.mxu0 %v7898
    %8161 = vmatpush2.bf16.msra.mxu0 %v7897
    %8162 = vmatprep.subr.bf16.mxu0 %v7896
    %8163 = vmatpush2.bf16.msra.mxu0 %v7895
    %8164 = vmatprep.subr.bf16.mxu0 %v7894
    %8165 = vmatpush2.bf16.msra.mxu0 %v7893
    %8166 = vmatprep.subr.bf16.mxu0 %v7892
    %8167 = vmatpush2.bf16.msra.mxu0 %v7891
    %8168 = vmatprep.subr.bf16.mxu0 %v7890
    %8169 = vmatpush2.bf16.msra.mxu0 %v7889
    %8170 = vmatprep.subr.bf16.mxu0 %v7888
    %8171 = vmatpush2.bf16.msra.mxu0 %v7887
    %8172 = vmatprep.subr.bf16.mxu0 %v7886
    %8173 = vmatpush2.bf16.msra.mxu0 %v7885
    %8174 = vmatprep.mubr.bf16.mxu0 %v7456
    %8175 = vmatmul.mubr.bf16.gmra.mxu0 %v7455
    %v8176 = vpop.f32.mrf.mxu0
    %v8177 = vadd.f32 %v8064, %v8176
    %v8178 = vpop.f32.mrf.mxu0
    %v8179 = vadd.f32 %v8066, %v8178
    %v8180 = vpop.f32.mrf.mxu0
    %v8181 = vadd.f32 %v8068, %v8180
    %v8182 = vpop.f32.mrf.mxu0
    %v8183 = vadd.f32 %v8070, %v8182
    %8184 = vmatprep.mubr.bf16.mxu0 %v7462
    %8185 = vmatmul.mubr.bf16.gmra.mxu0 %v7461
    %v8186 = vpop.f32.mrf.mxu0
    %v8187 = vadd.f32 %v8074, %v8186
    %v8188 = vpop.f32.mrf.mxu0
    %v8189 = vadd.f32 %v8076, %v8188
    %v8190 = vpop.f32.mrf.mxu0
    %v8191 = vadd.f32 %v8078, %v8190
    %v8192 = vpop.f32.mrf.mxu0
    %v8193 = vadd.f32 %v8080, %v8192
    %8194 = vmatprep.mubr.bf16.mxu0 %v7468
    %8195 = vmatmul.mubr.bf16.gmra.mxu0 %v7467
    %v8196 = vpop.f32.mrf.mxu0
    %v8197 = vadd.f32 %v8084, %v8196
    %v8198 = vpop.f32.mrf.mxu0
    %v8199 = vadd.f32 %v8086, %v8198
    %v8200 = vpop.f32.mrf.mxu0
    %v8201 = vadd.f32 %v8088, %v8200
    %v8202 = vpop.f32.mrf.mxu0
    %v8203 = vadd.f32 %v8090, %v8202
    %8204 = vmatprep.mubr.bf16.mxu0 %v7474
    %8205 = vmatmul.mubr.bf16.gmra.mxu0 %v7473
    %v8206 = vpop.f32.mrf.mxu0
    %v8207 = vadd.f32 %v8094, %v8206
    %v8208 = vpop.f32.mrf.mxu0
    %v8209 = vadd.f32 %v8096, %v8208
    %v8210 = vpop.f32.mrf.mxu0
    %v8211 = vadd.f32 %v8098, %v8210
    %v8212 = vpop.f32.mrf.mxu0
    %v8213 = vadd.f32 %v8100, %v8212
    %8214 = vmatprep.mubr.bf16.mxu0 %v7480
    %8215 = vmatmul.mubr.bf16.gmra.mxu0 %v7479
    %v8216 = vpop.f32.mrf.mxu0
    %v8217 = vadd.f32 %v8104, %v8216
    %v8218 = vpop.f32.mrf.mxu0
    %v8219 = vadd.f32 %v8106, %v8218
    %v8220 = vpop.f32.mrf.mxu0
    %v8221 = vadd.f32 %v8108, %v8220
    %v8222 = vpop.f32.mrf.mxu0
    %v8223 = vadd.f32 %v8110, %v8222
    %8224 = vmatprep.mubr.bf16.mxu0 %v7486
    %8225 = vmatmul.mubr.bf16.gmra.mxu0 %v7485
    %v8226 = vpop.f32.mrf.mxu0
    %v8227 = vadd.f32 %v8114, %v8226
    %v8228 = vpop.f32.mrf.mxu0
    %v8229 = vadd.f32 %v8116, %v8228
    %v8230 = vpop.f32.mrf.mxu0
    %v8231 = vadd.f32 %v8118, %v8230
    %v8232 = vpop.f32.mrf.mxu0
    %v8233 = vadd.f32 %v8120, %v8232
    %8234 = vmatprep.mubr.bf16.mxu0 %v7492
    %8235 = vmatmul.mubr.bf16.gmra.mxu0 %v7491
    %v8236 = vpop.f32.mrf.mxu0
    %v8237 = vadd.f32 %v8124, %v8236
    %v8238 = vpop.f32.mrf.mxu0
    %v8239 = vadd.f32 %v8126, %v8238
    %v8240 = vpop.f32.mrf.mxu0
    %v8241 = vadd.f32 %v8128, %v8240
    %v8242 = vpop.f32.mrf.mxu0
    %v8243 = vadd.f32 %v8130, %v8242
    %8244 = vmatprep.mubr.bf16.mxu0 %v7498
    %8245 = vmatmul.mubr.bf16.gmra.mxu0 %v7497
    %v8246 = vpop.f32.mrf.mxu0
    %v8247 = vadd.f32 %v8134, %v8246
    %v8248 = vpop.f32.mrf.mxu0
    %v8249 = vadd.f32 %v8136, %v8248
    %v8250 = vpop.f32.mrf.mxu0
    %v8251 = vadd.f32 %v8138, %v8250
    %v8252 = vpop.f32.mrf.mxu0
    %v8253 = vadd.f32 %v8140, %v8252
    %8254 = vdwg.mxu0
    %8255 = vmatprep.subr.bf16.mxu0 %v7916
    %8256 = vmatpush1.bf16.msra.mxu0 %v7915
    %8257 = vmatprep.subr.bf16.mxu0 %v7914
    %8258 = vmatpush1.bf16.msra.mxu0 %v7913
    %8259 = vmatprep.subr.bf16.mxu0 %v7912
    %8260 = vmatpush1.bf16.msra.mxu0 %v7911
    %8261 = vmatprep.subr.bf16.mxu0 %v7910
    %8262 = vmatpush1.bf16.msra.mxu0 %v7909
    %8263 = vmatprep.subr.bf16.mxu0 %v7908
    %8264 = vmatpush1.bf16.msra.mxu0 %v7907
    %8265 = vmatprep.subr.bf16.mxu0 %v7906
    %8266 = vmatpush1.bf16.msra.mxu0 %v7905
    %8267 = vmatprep.subr.bf16.mxu0 %v7904
    %8268 = vmatpush1.bf16.msra.mxu0 %v7903
    %8269 = vmatprep.subr.bf16.mxu0 %v7902
    %8270 = vmatpush1.bf16.msra.mxu0 %v7901
    %8271 = vmatprep.subr.bf16.mxu0 %v7932
    %8272 = vmatpush2.bf16.msra.mxu0 %v7931
    %8273 = vmatprep.subr.bf16.mxu0 %v7930
    %8274 = vmatpush2.bf16.msra.mxu0 %v7929
    %8275 = vmatprep.subr.bf16.mxu0 %v7928
    %8276 = vmatpush2.bf16.msra.mxu0 %v7927
    %8277 = vmatprep.subr.bf16.mxu0 %v7926
    %8278 = vmatpush2.bf16.msra.mxu0 %v7925
    %8279 = vmatprep.subr.bf16.mxu0 %v7924
    %8280 = vmatpush2.bf16.msra.mxu0 %v7923
    %8281 = vmatprep.subr.bf16.mxu0 %v7922
    %8282 = vmatpush2.bf16.msra.mxu0 %v7921
    %8283 = vmatprep.subr.bf16.mxu0 %v7920
    %8284 = vmatpush2.bf16.msra.mxu0 %v7919
    %8285 = vmatprep.subr.bf16.mxu0 %v7918
    %8286 = vmatpush2.bf16.msra.mxu0 %v7917
    %8287 = vmatprep.mubr.bf16.mxu0 %v7458
    %8288 = vmatmul.mubr.bf16.gmra.mxu0 %v7457
    %v8289 = vpop.f32.mrf.mxu0
    %v8290 = vadd.f32 %v8177, %v8289
    %v8291 = vpop.f32.mrf.mxu0
    %v8292 = vadd.f32 %v8179, %v8291
    %v8293 = vpop.f32.mrf.mxu0
    %v8294 = vadd.f32 %v8181, %v8293
    %v8295 = vpop.f32.mrf.mxu0
    %v8296 = vadd.f32 %v8183, %v8295
    %8297 = vmatprep.mubr.bf16.mxu0 %v7464
    %8298 = vmatmul.mubr.bf16.gmra.mxu0 %v7463
    %v8299 = vpop.f32.mrf.mxu0
    %v8300 = vadd.f32 %v8187, %v8299
    %v8301 = vpop.f32.mrf.mxu0
    %v8302 = vadd.f32 %v8189, %v8301
    %v8303 = vpop.f32.mrf.mxu0
    %v8304 = vadd.f32 %v8191, %v8303
    %v8305 = vpop.f32.mrf.mxu0
    %v8306 = vadd.f32 %v8193, %v8305
    %8307 = vmatprep.mubr.bf16.mxu0 %v7470
    %8308 = vmatmul.mubr.bf16.gmra.mxu0 %v7469
    %v8309 = vpop.f32.mrf.mxu0
    %v8310 = vadd.f32 %v8197, %v8309
    %v8311 = vpop.f32.mrf.mxu0
    %v8312 = vadd.f32 %v8199, %v8311
    %v8313 = vpop.f32.mrf.mxu0
    %v8314 = vadd.f32 %v8201, %v8313
    %v8315 = vpop.f32.mrf.mxu0
    %v8316 = vadd.f32 %v8203, %v8315
    %8317 = vmatprep.mubr.bf16.mxu0 %v7476
    %8318 = vmatmul.mubr.bf16.gmra.mxu0 %v7475
    %v8319 = vpop.f32.mrf.mxu0
    %v8320 = vadd.f32 %v8207, %v8319
    %v8321 = vpop.f32.mrf.mxu0
    %v8322 = vadd.f32 %v8209, %v8321
    %v8323 = vpop.f32.mrf.mxu0
    %v8324 = vadd.f32 %v8211, %v8323
    %v8325 = vpop.f32.mrf.mxu0
    %v8326 = vadd.f32 %v8213, %v8325
    %8327 = vmatprep.mubr.bf16.mxu0 %v7482
    %8328 = vmatmul.mubr.bf16.gmra.mxu0 %v7481
    %v8329 = vpop.f32.mrf.mxu0
    %v8330 = vadd.f32 %v8217, %v8329
    %v8331 = vpop.f32.mrf.mxu0
    %v8332 = vadd.f32 %v8219, %v8331
    %v8333 = vpop.f32.mrf.mxu0
    %v8334 = vadd.f32 %v8221, %v8333
    %v8335 = vpop.f32.mrf.mxu0
    %v8336 = vadd.f32 %v8223, %v8335
    %8337 = vmatprep.mubr.bf16.mxu0 %v7488
    %8338 = vmatmul.mubr.bf16.gmra.mxu0 %v7487
    %v8339 = vpop.f32.mrf.mxu0
    %v8340 = vadd.f32 %v8227, %v8339
    %v8341 = vpop.f32.mrf.mxu0
    %v8342 = vadd.f32 %v8229, %v8341
    %v8343 = vpop.f32.mrf.mxu0
    %v8344 = vadd.f32 %v8231, %v8343
    %v8345 = vpop.f32.mrf.mxu0
    %v8346 = vadd.f32 %v8233, %v8345
    %8347 = vmatprep.mubr.bf16.mxu0 %v7494
    %8348 = vmatmul.mubr.bf16.gmra.mxu0 %v7493
    %v8349 = vpop.f32.mrf.mxu0
    %v8350 = vadd.f32 %v8237, %v8349
    %v8351 = vpop.f32.mrf.mxu0
    %v8352 = vadd.f32 %v8239, %v8351
    %v8353 = vpop.f32.mrf.mxu0
    %v8354 = vadd.f32 %v8241, %v8353
    %v8355 = vpop.f32.mrf.mxu0
    %v8356 = vadd.f32 %v8243, %v8355
    %8357 = vmatprep.mubr.bf16.mxu0 %v7500
    %8358 = vmatmul.mubr.bf16.gmra.mxu0 %v7499
    %v8359 = vpop.f32.mrf.mxu0
    %v8360 = vadd.f32 %v8247, %v8359
    %v8361 = vpop.f32.mrf.mxu0
    %v8362 = vadd.f32 %v8249, %v8361
    %v8363 = vpop.f32.mrf.mxu0
    %v8364 = vadd.f32 %v8251, %v8363
    %v8365 = vpop.f32.mrf.mxu0
    %v8366 = vadd.f32 %v8253, %v8365
    %8367 = vdwg.mxu0
    %v8368 = vadd.f32 %v7086, %v8290
    %v8369 = vadd.f32 %v7088, %v8292
    %v8370 = vadd.f32 %v7090, %v8294
    %v8371 = vadd.f32 %v7092, %v8296
    %v8372 = vadd.f32 %v7096, %v8300
    %v8373 = vadd.f32 %v7098, %v8302
    %v8374 = vadd.f32 %v7100, %v8304
    %v8375 = vadd.f32 %v7102, %v8306
    %v8376 = vadd.f32 %v7106, %v8310
    %v8377 = vadd.f32 %v7108, %v8312
    %v8378 = vadd.f32 %v7110, %v8314
    %v8379 = vadd.f32 %v7112, %v8316
    %v8380 = vadd.f32 %v7116, %v8320
    %v8381 = vadd.f32 %v7118, %v8322
    %v8382 = vadd.f32 %v7120, %v8324
    %v8383 = vadd.f32 %v7122, %v8326
    %v8384 = vadd.f32 %v7126, %v8330
    %v8385 = vadd.f32 %v7128, %v8332
    %v8386 = vadd.f32 %v7130, %v8334
    %v8387 = vadd.f32 %v7132, %v8336
    %v8388 = vadd.f32 %v7136, %v8340
    %v8389 = vadd.f32 %v7138, %v8342
    %v8390 = vadd.f32 %v7140, %v8344
    %v8391 = vadd.f32 %v7142, %v8346
    %v8392 = vadd.f32 %v7146, %v8350
    %v8393 = vadd.f32 %v7148, %v8352
    %v8394 = vadd.f32 %v7150, %v8354
    %v8395 = vadd.f32 %v7152, %v8356
    %v8396 = vadd.f32 %v7156, %v8360
    %v8397 = vadd.f32 %v7158, %v8362
    %v8398 = vadd.f32 %v7160, %v8364
    %v8399 = vadd.f32 %v7162, %v8366
    %v8400 = vmul.f32 %v8368, %v8368
    %v8401 = vmul.f32 %v8369, %v8369
    %v8402 = vmul.f32 %v8370, %v8370
    %v8403 = vmul.f32 %v8371, %v8371
    %v8404 = vmul.f32 %v8372, %v8372
    %v8405 = vmul.f32 %v8373, %v8373
    %v8406 = vmul.f32 %v8374, %v8374
    %v8407 = vmul.f32 %v8375, %v8375
    %v8408 = vmul.f32 %v8376, %v8376
    %v8409 = vmul.f32 %v8377, %v8377
    %v8410 = vmul.f32 %v8378, %v8378
    %v8411 = vmul.f32 %v8379, %v8379
    %v8412 = vmul.f32 %v8380, %v8380
    %v8413 = vmul.f32 %v8381, %v8381
    %v8414 = vmul.f32 %v8382, %v8382
    %v8415 = vmul.f32 %v8383, %v8383
    %v8416 = vmul.f32 %v8384, %v8384
    %v8417 = vmul.f32 %v8385, %v8385
    %v8418 = vmul.f32 %v8386, %v8386
    %v8419 = vmul.f32 %v8387, %v8387
    %v8420 = vmul.f32 %v8388, %v8388
    %v8421 = vmul.f32 %v8389, %v8389
    %v8422 = vmul.f32 %v8390, %v8390
    %v8423 = vmul.f32 %v8391, %v8391
    %v8424 = vmul.f32 %v8392, %v8392
    %v8425 = vmul.f32 %v8393, %v8393
    %v8426 = vmul.f32 %v8394, %v8394
    %v8427 = vmul.f32 %v8395, %v8395
    %v8428 = vmul.f32 %v8396, %v8396
    %v8429 = vmul.f32 %v8397, %v8397
    %v8430 = vmul.f32 %v8398, %v8398
    %v8431 = vmul.f32 %v8399, %v8399
    %v8432 = vadd.f32 %v8368, %v8370
    %v8433 = vadd.f32 %v8432, %v8372
    %v8434 = vadd.f32 %v8433, %v8374
    %v8435 = vadd.f32 %v8434, %v8376
    %v8436 = vadd.f32 %v8435, %v8378
    %v8437 = vadd.f32 %v8436, %v8380
    %v8438 = vadd.f32 %v8437, %v8382
    %v8439 = vadd.f32 %v8438, %v8384
    %v8440 = vadd.f32 %v8439, %v8386
    %v8441 = vadd.f32 %v8440, %v8388
    %v8442 = vadd.f32 %v8441, %v8390
    %v8443 = vadd.f32 %v8442, %v8392
    %v8444 = vadd.f32 %v8443, %v8394
    %v8445 = vadd.f32 %v8444, %v8396
    %v8446 = vadd.f32 %v8445, %v8398
    %v8447 = vrot.slane %v8446, 4
    %v8448 = vadd.f32 %v8446, %v8447
    %v8449 = vrot.slane %v8448, 2
    %v8450 = vadd.f32 %v8448, %v8449
    %v8451 = vrot.slane %v8450, 1
    %v8452 = vadd.f32 %v8450, %v8451
    %v8453 = vadd.f32 %v8369, %v8371
    %v8454 = vadd.f32 %v8453, %v8373
    %v8455 = vadd.f32 %v8454, %v8375
    %v8456 = vadd.f32 %v8455, %v8377
    %v8457 = vadd.f32 %v8456, %v8379
    %v8458 = vadd.f32 %v8457, %v8381
    %v8459 = vadd.f32 %v8458, %v8383
    %v8460 = vadd.f32 %v8459, %v8385
    %v8461 = vadd.f32 %v8460, %v8387
    %v8462 = vadd.f32 %v8461, %v8389
    %v8463 = vadd.f32 %v8462, %v8391
    %v8464 = vadd.f32 %v8463, %v8393
    %v8465 = vadd.f32 %v8464, %v8395
    %v8466 = vadd.f32 %v8465, %v8397
    %v8467 = vadd.f32 %v8466, %v8399
    %v8468 = vrot.slane %v8467, 4
    %v8469 = vadd.f32 %v8467, %v8468
    %v8470 = vrot.slane %v8469, 2
    %v8471 = vadd.f32 %v8469, %v8470
    %v8472 = vrot.slane %v8471, 1
    %v8473 = vadd.f32 %v8471, %v8472
    %v8474 = vadd.f32 %v8400, %v8402
    %v8475 = vadd.f32 %v8474, %v8404
    %v8476 = vadd.f32 %v8475, %v8406
    %v8477 = vadd.f32 %v8476, %v8408
    %v8478 = vadd.f32 %v8477, %v8410
    %v8479 = vadd.f32 %v8478, %v8412
    %v8480 = vadd.f32 %v8479, %v8414
    %v8481 = vadd.f32 %v8480, %v8416
    %v8482 = vadd.f32 %v8481, %v8418
    %v8483 = vadd.f32 %v8482, %v8420
    %v8484 = vadd.f32 %v8483, %v8422
    %v8485 = vadd.f32 %v8484, %v8424
    %v8486 = vadd.f32 %v8485, %v8426
    %v8487 = vadd.f32 %v8486, %v8428
    %v8488 = vadd.f32 %v8487, %v8430
    %v8489 = vrot.slane %v8488, 4
    %v8490 = vadd.f32 %v8488, %v8489
    %v8491 = vrot.slane %v8490, 2
    %v8492 = vadd.f32 %v8490, %v8491
    %v8493 = vrot.slane %v8492, 1
    %v8494 = vadd.f32 %v8492, %v8493
    %v8495 = vadd.f32 %v8401, %v8403
    %v8496 = vadd.f32 %v8495, %v8405
    %v8497 = vadd.f32 %v8496, %v8407
    %v8498 = vadd.f32 %v8497, %v8409
    %v8499 = vadd.f32 %v8498, %v8411
    %v8500 = vadd.f32 %v8499, %v8413
    %v8501 = vadd.f32 %v8500, %v8415
    %v8502 = vadd.f32 %v8501, %v8417
    %v8503 = vadd.f32 %v8502, %v8419
    %v8504 = vadd.f32 %v8503, %v8421
    %v8505 = vadd.f32 %v8504, %v8423
    %v8506 = vadd.f32 %v8505, %v8425
    %v8507 = vadd.f32 %v8506, %v8427
    %v8508 = vadd.f32 %v8507, %v8429
    %v8509 = vadd.f32 %v8508, %v8431
    %v8510 = vrot.slane %v8509, 4
    %v8511 = vadd.f32 %v8509, %v8510
    %v8512 = vrot.slane %v8511, 2
    %v8513 = vadd.f32 %v8511, %v8512
    %v8514 = vrot.slane %v8513, 1
    %v8515 = vadd.f32 %v8513, %v8514
    %v8516 = vmul.f32 %v8452, 0.0078125
    %v8517 = vmul.f32 %v8473, 0.0078125
    %v8518 = vmul.f32 %v8494, 0.0078125
    %v8519 = vmul.f32 %v8515, 0.0078125
    %v8520 = vmul.f32 %v8516, %v8516
    %v8521 = vmul.f32 %v8517, %v8517
    %v8522 = vsub.f32 %v8518, %v8520
    %v8523 = vsub.f32 %v8519, %v8521
    %v8524 = vld [vmem:[#allocation11] sm:$0x3]
    %v8525 = vadd.f32 %v8522, 1e-05
    %v8526 = vadd.f32 %v8523, 1e-05
    %v8527 = vrsqrt.pop %v8525
    %v8528 = vrsqrt.pop %v8526
    %v8531 = vcombine.low %v8527, %v8528
    %v8533 = vunpack.c.l.s4 1966171168
    %v8534 = vunpack.c.0.s8 %v8533
    %v8535 = vlaneseq
    %v8536 = vshrl.u32 %v8535, 7
    %v8537 = vsub.s32 %v8534, %v8536
    %v8538 = vrot.slane %v8531, %v8537
    %v8540 = vunpack.c.l.s4 1966171168
    %v8541 = vunpack.c.0.s8 %v8540
    %v8542 = vlaneseq
    %v8543 = vshrl.u32 %v8542, 7
    %v8544 = vsub.s32 %v8541, %v8543
    %v8545 = vrot.slane %v8538, %v8544
    %v8547 = vmul.f32 %v8524, %v8545
    %v8548 = vld [vmem:[#allocation12] sm:$0x3]
    %v8550 = vlaneseq
    %v8551 = vshrl.u32 %v8550, 7
    %v8552 = vsub.s32 0, %v8551
    %v8553 = vrot.slane %v8547, %v8552
    %v8554 = vlaneseq
    %v8555 = vshrl.u32 %v8554, 7
    %v8556 = vsub.s32 1, %v8555
    %v8557 = vrot.slane %v8547, %v8556
    %v8560 = vmul.f32 %v8516, %v8553
    %v8561 = vmul.f32 %v8517, %v8557
    %v8564 = vcombine.low %v8560, %v8561
    %v8566 = vunpack.c.l.s4 1966171168
    %v8567 = vunpack.c.0.s8 %v8566
    %v8568 = vlaneseq
    %v8569 = vshrl.u32 %v8568, 7
    %v8570 = vsub.s32 %v8567, %v8569
    %v8571 = vrot.slane %v8564, %v8570
    %v8573 = vunpack.c.l.s4 1966171168
    %v8574 = vunpack.c.0.s8 %v8573
    %v8575 = vlaneseq
    %v8576 = vshrl.u32 %v8575, 7
    %v8577 = vsub.s32 %v8574, %v8576
    %v8578 = vrot.slane %v8571, %v8577
    %v8580 = vsub.f32 %v8548, %v8578
    %v8581 = vmul.f32 %v8368, %v8553
    %v8582 = vmul.f32 %v8369, %v8557
    %v8583 = vmul.f32 %v8370, %v8553
    %v8584 = vmul.f32 %v8371, %v8557
    %v8585 = vmul.f32 %v8372, %v8553
    %v8586 = vmul.f32 %v8373, %v8557
    %v8587 = vmul.f32 %v8374, %v8553
    %v8588 = vmul.f32 %v8375, %v8557
    %v8589 = vmul.f32 %v8376, %v8553
    %v8590 = vmul.f32 %v8377, %v8557
    %v8591 = vmul.f32 %v8378, %v8553
    %v8592 = vmul.f32 %v8379, %v8557
    %v8593 = vmul.f32 %v8380, %v8553
    %v8594 = vmul.f32 %v8381, %v8557
    %v8595 = vmul.f32 %v8382, %v8553
    %v8596 = vmul.f32 %v8383, %v8557
    %v8597 = vmul.f32 %v8384, %v8553
    %v8598 = vmul.f32 %v8385, %v8557
    %v8599 = vmul.f32 %v8386, %v8553
    %v8600 = vmul.f32 %v8387, %v8557
    %v8601 = vmul.f32 %v8388, %v8553
    %v8602 = vmul.f32 %v8389, %v8557
    %v8603 = vmul.f32 %v8390, %v8553
    %v8604 = vmul.f32 %v8391, %v8557
    %v8605 = vmul.f32 %v8392, %v8553
    %v8606 = vmul.f32 %v8393, %v8557
    %v8607 = vmul.f32 %v8394, %v8553
    %v8608 = vmul.f32 %v8395, %v8557
    %v8609 = vmul.f32 %v8396, %v8553
    %v8610 = vmul.f32 %v8397, %v8557
    %v8611 = vmul.f32 %v8398, %v8553
    %v8612 = vmul.f32 %v8399, %v8557
    %v8614 = vlaneseq
    %v8615 = vshrl.u32 %v8614, 7
    %v8616 = vsub.s32 0, %v8615
    %v8617 = vrot.slane %v8580, %v8616
    %v8618 = vlaneseq
    %v8619 = vshrl.u32 %v8618, 7
    %v8620 = vsub.s32 1, %v8619
    %v8621 = vrot.slane %v8580, %v8620
    %v8624 = vadd.f32 %v8581, %v8617
    %v8625 = vadd.f32 %v8582, %v8621
    %v8626 = vadd.f32 %v8583, %v8617
    %v8627 = vadd.f32 %v8584, %v8621
    %v8628 = vadd.f32 %v8585, %v8617
    %v8629 = vadd.f32 %v8586, %v8621
    %v8630 = vadd.f32 %v8587, %v8617
    %v8631 = vadd.f32 %v8588, %v8621
    %v8632 = vadd.f32 %v8589, %v8617
    %v8633 = vadd.f32 %v8590, %v8621
    %v8634 = vadd.f32 %v8591, %v8617
    %v8635 = vadd.f32 %v8592, %v8621
    %v8636 = vadd.f32 %v8593, %v8617
    %v8637 = vadd.f32 %v8594, %v8621
    %v8638 = vadd.f32 %v8595, %v8617
    %v8639 = vadd.f32 %v8596, %v8621
    %v8640 = vadd.f32 %v8597, %v8617
    %v8641 = vadd.f32 %v8598, %v8621
    %v8642 = vadd.f32 %v8599, %v8617
    %v8643 = vadd.f32 %v8600, %v8621
    %v8644 = vadd.f32 %v8601, %v8617
    %v8645 = vadd.f32 %v8602, %v8621
    %v8646 = vadd.f32 %v8603, %v8617
    %v8647 = vadd.f32 %v8604, %v8621
    %v8648 = vadd.f32 %v8605, %v8617
    %v8649 = vadd.f32 %v8606, %v8621
    %v8650 = vadd.f32 %v8607, %v8617
    %v8651 = vadd.f32 %v8608, %v8621
    %v8652 = vadd.f32 %v8609, %v8617
    %v8653 = vadd.f32 %v8610, %v8621
    %v8654 = vadd.f32 %v8611, %v8617
    %v8655 = vadd.f32 %v8612, %v8621
    %v8656 = vld [vmem:[%s0] sm:$0xff]
    %v8657 = vld [vmem:[%s0 + $0x8] sm:$0xff]
    %v8658 = vld [vmem:[%s0 + $0x10] sm:$0xff]
    %v8659 = vld [vmem:[%s0 + $0x18] sm:$0xff]
    %v8660 = vld [vmem:[%s0 + $0x20] sm:$0xff]
    %v8661 = vld [vmem:[%s0 + $0x28] sm:$0xff]
    %v8662 = vld [vmem:[%s0 + $0x30] sm:$0xff]
    %v8663 = vld [vmem:[%s0 + $0x38] sm:$0xff]
    %v8664 = vld [vmem:[%s0 + $0x40] sm:$0xff]
    %v8665 = vld [vmem:[%s0 + $0x48] sm:$0xff]
    %v8666 = vld [vmem:[%s0 + $0x50] sm:$0xff]
    %v8667 = vld [vmem:[%s0 + $0x58] sm:$0xff]
    %v8668 = vld [vmem:[%s0 + $0x60] sm:$0xff]
    %v8669 = vld [vmem:[%s0 + $0x68] sm:$0xff]
    %v8670 = vld [vmem:[%s0 + $0x70] sm:$0xff]
    %v8671 = vld [vmem:[%s0 + $0x78] sm:$0xff]
    %v8672 = vld [vmem:[%s0 + $0x80] sm:$0xff]
    %v8673 = vld [vmem:[%s0 + $0x88] sm:$0xff]
    %v8674 = vld [vmem:[%s0 + $0x90] sm:$0xff]
    %v8675 = vld [vmem:[%s0 + $0x98] sm:$0xff]
    %v8676 = vld [vmem:[%s0 + $0xa0] sm:$0xff]
    %v8677 = vld [vmem:[%s0 + $0xa8] sm:$0xff]
    %v8678 = vld [vmem:[%s0 + $0xb0] sm:$0xff]
    %v8679 = vld [vmem:[%s0 + $0xb8] sm:$0xff]
    %v8680 = vld [vmem:[%s0 + $0xc0] sm:$0xff]
    %v8681 = vld [vmem:[%s0 + $0xc8] sm:$0xff]
    %v8682 = vld [vmem:[%s0 + $0xd0] sm:$0xff]
    %v8683 = vld [vmem:[%s0 + $0xd8] sm:$0xff]
    %v8684 = vld [vmem:[%s0 + $0xe0] sm:$0xff]
    %v8685 = vld [vmem:[%s0 + $0xe8] sm:$0xff]
    %v8686 = vld [vmem:[%s0 + $0xf0] sm:$0xff]
    %v8687 = vld [vmem:[%s0 + $0xf8] sm:$0xff]
    %v8688 = vadd.f32 %v8624, %v8656
    %v8689 = vadd.f32 %v8625, %v8657
    %v8690 = vadd.f32 %v8626, %v8658
    %v8691 = vadd.f32 %v8627, %v8659
    %v8692 = vadd.f32 %v8628, %v8660
    %v8693 = vadd.f32 %v8629, %v8661
    %v8694 = vadd.f32 %v8630, %v8662
    %v8695 = vadd.f32 %v8631, %v8663
    %v8696 = vadd.f32 %v8632, %v8664
    %v8697 = vadd.f32 %v8633, %v8665
    %v8698 = vadd.f32 %v8634, %v8666
    %v8699 = vadd.f32 %v8635, %v8667
    %v8700 = vadd.f32 %v8636, %v8668
    %v8701 = vadd.f32 %v8637, %v8669
    %v8702 = vadd.f32 %v8638, %v8670
    %v8703 = vadd.f32 %v8639, %v8671
    %v8704 = vadd.f32 %v8640, %v8672
    %v8705 = vadd.f32 %v8641, %v8673
    %v8706 = vadd.f32 %v8642, %v8674
    %v8707 = vadd.f32 %v8643, %v8675
    %v8708 = vadd.f32 %v8644, %v8676
    %v8709 = vadd.f32 %v8645, %v8677
    %v8710 = vadd.f32 %v8646, %v8678
    %v8711 = vadd.f32 %v8647, %v8679
    %v8712 = vadd.f32 %v8648, %v8680
    %v8713 = vadd.f32 %v8649, %v8681
    %v8714 = vadd.f32 %v8650, %v8682
    %v8715 = vadd.f32 %v8651, %v8683
    %v8716 = vadd.f32 %v8652, %v8684
    %v8717 = vadd.f32 %v8653, %v8685
    %v8718 = vadd.f32 %v8654, %v8686
    %v8719 = vadd.f32 %v8655, %v8687
    %v8720 = vmax.f32 %v8688, 0.0
    %v8721 = vmax.f32 %v8689, 0.0
    %v8722 = vmax.f32 %v8690, 0.0
    %v8723 = vmax.f32 %v8691, 0.0
    %v8724 = vmax.f32 %v8692, 0.0
    %v8725 = vmax.f32 %v8693, 0.0
    %v8726 = vmax.f32 %v8694, 0.0
    %v8727 = vmax.f32 %v8695, 0.0
    %v8728 = vmax.f32 %v8696, 0.0
    %v8729 = vmax.f32 %v8697, 0.0
    %v8730 = vmax.f32 %v8698, 0.0
    %v8731 = vmax.f32 %v8699, 0.0
    %v8732 = vmax.f32 %v8700, 0.0
    %v8733 = vmax.f32 %v8701, 0.0
    %v8734 = vmax.f32 %v8702, 0.0
    %v8735 = vmax.f32 %v8703, 0.0
    %v8736 = vmax.f32 %v8704, 0.0
    %v8737 = vmax.f32 %v8705, 0.0
    %v8738 = vmax.f32 %v8706, 0.0
    %v8739 = vmax.f32 %v8707, 0.0
    %v8740 = vmax.f32 %v8708, 0.0
    %v8741 = vmax.f32 %v8709, 0.0
    %v8742 = vmax.f32 %v8710, 0.0
    %v8743 = vmax.f32 %v8711, 0.0
    %v8744 = vmax.f32 %v8712, 0.0
    %v8745 = vmax.f32 %v8713, 0.0
    %v8746 = vmax.f32 %v8714, 0.0
    %v8747 = vmax.f32 %v8715, 0.0
    %v8748 = vmax.f32 %v8716, 0.0
    %v8749 = vmax.f32 %v8717, 0.0
    %v8750 = vmax.f32 %v8718, 0.0
    %v8751 = vmax.f32 %v8719, 0.0
    %8752 = vst [vmem:[%s7] sm:$0xff] %v8720
    %8753 = vst [vmem:[%s7 + $0x8] sm:$0xff] %v8721
    %8754 = vst [vmem:[%s7 + $0x10] sm:$0xff] %v8722
    %8755 = vst [vmem:[%s7 + $0x18] sm:$0xff] %v8723
    %8756 = vst [vmem:[%s7 + $0x20] sm:$0xff] %v8724
    %8757 = vst [vmem:[%s7 + $0x28] sm:$0xff] %v8725
    %8758 = vst [vmem:[%s7 + $0x30] sm:$0xff] %v8726
    %8759 = vst [vmem:[%s7 + $0x38] sm:$0xff] %v8727
    %8760 = vst [vmem:[%s7 + $0x40] sm:$0xff] %v8728
    %8761 = vst [vmem:[%s7 + $0x48] sm:$0xff] %v8729
    %8762 = vst [vmem:[%s7 + $0x50] sm:$0xff] %v8730
    %8763 = vst [vmem:[%s7 + $0x58] sm:$0xff] %v8731
    %8764 = vst [vmem:[%s7 + $0x60] sm:$0xff] %v8732
    %8765 = vst [vmem:[%s7 + $0x68] sm:$0xff] %v8733
    %8766 = vst [vmem:[%s7 + $0x70] sm:$0xff] %v8734
    %8767 = vst [vmem:[%s7 + $0x78] sm:$0xff] %v8735
    %8768 = vst [vmem:[%s7 + $0x80] sm:$0xff] %v8736
    %8769 = vst [vmem:[%s7 + $0x88] sm:$0xff] %v8737
    %8770 = vst [vmem:[%s7 + $0x90] sm:$0xff] %v8738
    %8771 = vst [vmem:[%s7 + $0x98] sm:$0xff] %v8739
    %8772 = vst [vmem:[%s7 + $0xa0] sm:$0xff] %v8740
    %8773 = vst [vmem:[%s7 + $0xa8] sm:$0xff] %v8741
    %8774 = vst [vmem:[%s7 + $0xb0] sm:$0xff] %v8742
    %8775 = vst [vmem:[%s7 + $0xb8] sm:$0xff] %v8743
    %8776 = vst [vmem:[%s7 + $0xc0] sm:$0xff] %v8744
    %8777 = vst [vmem:[%s7 + $0xc8] sm:$0xff] %v8745
    %8778 = vst [vmem:[%s7 + $0xd0] sm:$0xff] %v8746
    %8779 = vst [vmem:[%s7 + $0xd8] sm:$0xff] %v8747
    %8780 = vst [vmem:[%s7 + $0xe0] sm:$0xff] %v8748
    %8781 = vst [vmem:[%s7 + $0xe8] sm:$0xff] %v8749
    %8782 = vst [vmem:[%s7 + $0xf0] sm:$0xff] %v8750
    %8783 = vst [vmem:[%s7 + $0xf8] sm:$0xff] %v8751
    // Predicated region
    $region46: #{block_forward.1} parent=1 // pred_check
      _
    $region47: #{block_forward.1} parent=1 // pred_check_branch
      %8785 = sbr.rel (0) target = $region49
    $region48: #{block_forward.1} parent=1 // pred_region
      _
    $region49: #{block_forward.1} parent=1 // pred_fallthru
      _
    // Predicated region
    $region50: #{block_forward.1} parent=1 // pred_check
      _
    $region51: #{block_forward.1} parent=1 // pred_check_branch
      %8787 = sbr.rel (0) target = $region53
    $region52: #{block_forward.1} parent=1 // pred_region
      _
    $region53: #{block_forward.1} parent=1 // pred_fallthru
      _
    %8788 = vsyncpa [#allocation8], 1
    %8789 = vsyncpa [#allocation10], 1
    %8790 = vsyncpa [#allocation13], 1
  %8791 = vsyncmov [#allocation5]
  %s8792 = vpop.sfrf %8791
  %p8793 = scmp.eq.s32.totalorder %s8792, 0
  %p8794 = pneg %p8793
  %8796 = shalt.err (%p8794)
  %8797 = vsyncmov [#allocation6]
  %s8798 = vpop.sfrf %8797
  %p8799 = scmp.eq.s32.totalorder %s8798, 0
  %p8800 = pneg %p8799
  %8802 = shalt.err (%p8800)

</llo_original>
